<compile_context>
chip_gen: v7x
topology: tpu7x:2x2x1
jax: 0.10.0
libtpu: 0.0.40
codegen_flags: <defaults>
</compile_context>

<pallas_src>
import jax
import jax.numpy as jnp
from jax import lax
from jax.experimental import pallas as pl
from jax.experimental.pallas import tpu as pltpu


def _round_up(x, m):
    return ((x + m - 1) // m) * m


def _pick_vmem_limit():
    """~half of physical VMEM: 64 MiB on v5e/v6e (128 MiB), 32 MiB on v7x (64 MiB)."""
    try:
        cap = int(pltpu.get_tpu_info().vmem_capacity_bytes)
    except Exception:
        cap = 128 * 1024 * 1024
    return max(32 * 1024 * 1024, min(cap // 2, 96 * 1024 * 1024))


# ----------------------------------------------------------------------------
# Fused Pallas kernel:  num_convs x (conv3x3 + ReLU)  ->  fc6 + ReLU
# ----------------------------------------------------------------------------
def _make_fused_head_kernel(num_convs, H, W, dilation, mxu_dtype):
    """Kernel body factory.  Per grid step it processes one tile of ROIs.

    Ref layout (inputs..., output):
      x_ref      : (TR, H, W*Cin)        mxu   pooled ROIs, (w, c) packed rows
      conv_w[l]  : (3, W*Cin_l, W*Cd)    mxu   block-banded conv weights (per kh)
      conv_b[l]  : (1, W*Cd)             f32   bias tiled over w
      fcw_ref    : (H, W*Cd, Npad)       mxu   fc6 weight, flatten order folded in
      fcb_ref    : (1, Npad)             f32
      o_ref      : (TR, Npad)            f32
    """
    d = dilation

    def kernel(x_ref, *refs):
        conv_w = refs[0:num_convs]
        conv_b = refs[num_convs:2 * num_convs]
        fcw_ref = refs[2 * num_convs]
        fcb_ref = refs[2 * num_convs + 1]
        o_ref = refs[2 * num_convs + 2]

        TR = x_ref.shape[0]
        M = TR * H

        # Vertical-padding row masks, hoisted out of the conv-layer loop (JAX
        # does not CSE iota/broadcast, so per-layer recompute is real VPU
        # work).  Shape (TR, H, 1) broadcasts over the packed (w, c) lanes.
        h_idx = lax.broadcasted_iota(jnp.int32, (TR, H, 1), 1)
        top_ok = h_idx >= d          # the (h - d) neighbour row exists
        bot_ok = h_idx < H - d       # the (h + d) neighbour row exists

        # Activations stay f32 between layers (sublane roll / mask in f32
        # lowers on all generations); MXU operands are cast per tap.
        cur = x_ref[...].astype(jnp.float32)               # (TR, H, W*Cin)

        for l in range(num_convs):
            wc_in = cur.shape[-1]
            wc_out = conv_w[l].shape[-1]

            # centre vertical tap (kh == 1): rows used as-is.
            acc = jnp.dot(cur.reshape(M, wc_in).astype(mxu_dtype),
                          conv_w[l][1],
                          preferred_element_type=jnp.float32)

            # kh == 0: input row h - d (zero padded at the top of each ROI).
            prev = jnp.where(top_ok, pltpu.roll(cur, shift=d, axis=1), 0.0)
            acc = acc + jnp.dot(prev.reshape(M, wc_in).astype(mxu_dtype),
                                conv_w[l][0],
                                preferred_element_type=jnp.float32)

            # kh == 2: input row h + d (zero padded at the bottom of each ROI).
            nxt = jnp.where(bot_ok, pltpu.roll(cur, shift=H - d, axis=1), 0.0)
            acc = acc + jnp.dot(nxt.reshape(M, wc_in).astype(mxu_dtype),
                                conv_w[l][2],
                                preferred_element_type=jnp.float32)

            acc = jnp.maximum(acc + conv_b[l][...], 0.0)    # bias + ReLU (f32)
            cur = acc.reshape(TR, H, wc_out)

        # fc6 + ReLU.  Torch's NCHW flatten permutation is folded into fcw_ref,
        # so we contract row-by-row over h with (w, c)-packed columns.  N is
        # 128-padded (lane-dense stores) and y is initialised from h == 0.
        y = jnp.dot(cur[:, 0, :].astype(mxu_dtype), fcw_ref[0],
                    preferred_element_type=jnp.float32)
        for h in range(1, H):
            y = y + jnp.dot(cur[:, h, :].astype(mxu_dtype), fcw_ref[h],
                            preferred_element_type=jnp.float32)
        y = y + fcb_ref[...]
        o_ref[...] = jnp.maximum(y, 0.0).astype(o_ref.dtype)

    return kernel


# ----------------------------------------------------------------------------
# Parameter preparation (done once, outside the hot path)
# ----------------------------------------------------------------------------
def _banded_conv_weight(w_hwio, W, dilation, dtype):
    """Fold the horizontal taps (and horizontal zero padding) of a 3x3 conv
    into a block-banded weight of shape (3, W*Cin, W*Cout) acting on
    (w, cin)-packed rows:  B[kh][wi*Cin+ci, wo*Cout+co] = w[kh, kw, ci, co]
    with wi = wo + (kw-1)*dilation (entries outside [0, W) stay zero)."""
    KH, KW, Cin, Cout = w_hwio.shape
    B = jnp.zeros((KH, W * Cin, W * Cout), jnp.float32)
    for kh in range(KH):
        for kw in range(KW):
            off = (kw - KW // 2) * dilation
            for wo in range(W):
                wi = wo + off
                if 0 <= wi < W:
                    B = B.at[kh,
                             wi * Cin:(wi + 1) * Cin,
                             wo * Cout:(wo + 1) * Cout].set(w_hwio[kh, kw])
    return B.astype(dtype)


def prepare_head_params(params, cfg, mxu_dtype=jnp.bfloat16):
    """Pack raw (HWIO conv / torch-order fc6) params into the kernel layout."""
    H = W = cfg["resolution"]
    d = cfg["dilation"]
    cd = cfg["conv_head_dim"]
    n = cfg["mlp_head_dim"]
    n_pad = _round_up(n, 128)         # lane-dense output / full MXU N dimension

    conv_ws, conv_bs = [], []
    for w, b in params["xconvs"]:
        conv_ws.append(_banded_conv_weight(w, W, d, mxu_dtype))
        cout = w.shape[-1]
        conv_bs.append(jnp.tile(b, W).reshape(1, W * cout).astype(jnp.float32))

    # fc6 weight rows are in torch NCHW-flatten order (c, h, w); permute them
    # once to the kernel's (h, w, c) packed order -> no activation transpose.
    fcw = params["fc6_w"].reshape(cd, H, W, n)
    fcw = jnp.transpose(fcw, (1, 2, 0, 3)).reshape(H, W * cd, n)
    fcb = params["fc6_b"].reshape(1, n)
    if n_pad != n:
        fcw = jnp.pad(fcw, ((0, 0), (0, 0), (0, n_pad - n)))
        fcb = jnp.pad(fcb, ((0, 0), (0, n_pad - n)))

    return dict(conv_ws=conv_ws, conv_bs=conv_bs,
                fc_w=fcw.astype(mxu_dtype),
                fc_b=fcb.astype(jnp.float32),
                n_out=n)


# ----------------------------------------------------------------------------
# Pallas wrapper for the fused head
# ----------------------------------------------------------------------------
def xconv_fc_head(x_pool_nhwc, packed, cfg, roi_tile=128):
    R, H, W, cin = x_pool_nhwc.shape
    num_convs = len(packed["conv_ws"])
    n_out = packed["n_out"]
    n_pad = packed["fc_b"].shape[-1]
    d = cfg["dilation"]
    assert 0 < d < H, "dilation must satisfy 0 < dilation < resolution"
    mxu_dtype = packed["conv_ws"][0].dtype

    # Adaptive tile: don't pad a handful of ROIs up to a full tile, and prefer
    # >= 2 grid steps when there is enough work (v7x has 2 TensorCores).
    roi_tile = max(8, min(roi_tile, _round_up(R, 8)))
    if _round_up(R, roi_tile) // roi_tile < 2 and roi_tile > 32:
        roi_tile = _round_up(pl.cdiv(roi_tile, 2), 8)
    r_pad = _round_up(R, roi_tile)

    # (w, c)-packed rows, already in the MXU dtype (halves the streamed DMA).
    x_packed = x_pool_nhwc.reshape(R, H, W * cin).astype(mxu_dtype)
    if r_pad != R:
        x_packed = jnp.pad(x_packed, ((0, r_pad - R), (0, 0), (0, 0)))

    kernel = _make_fused_head_kernel(num_convs, H, W, d, mxu_dtype)
    inputs = ([x_packed] + list(packed["conv_ws"]) + list(packed["conv_bs"])
              + [packed["fc_w"], packed["fc_b"]])

    def build(single_buffer_weights):
        # Weights/biases have constant index maps -> single-buffer them to halve
        # their VMEM footprint (frees room for a bigger roi_tile).
        def wspec(shape, imap):
            if single_buffer_weights:
                return pl.BlockSpec(shape, imap, pipeline_mode=pl.Buffered(1))
            return pl.BlockSpec(shape, imap)

        in_specs = [pl.BlockSpec((roi_tile, H, W * cin), lambda r: (r, 0, 0))]
        for wl in packed["conv_ws"]:
            in_specs.append(wspec(wl.shape, lambda r: (0, 0, 0)))
        for bl in packed["conv_bs"]:
            in_specs.append(wspec(bl.shape, lambda r: (0, 0)))
        in_specs.append(wspec(packed["fc_w"].shape, lambda r: (0, 0, 0)))
        in_specs.append(wspec(packed["fc_b"].shape, lambda r: (0, 0)))

        return pl.pallas_call(
            kernel,
            out_shape=jax.ShapeDtypeStruct((r_pad, n_pad), jnp.float32),
            grid=(r_pad // roi_tile,),
            in_specs=in_specs,
            out_specs=pl.BlockSpec((roi_tile, n_pad), lambda r: (r, 0)),
            compiler_params=pltpu.CompilerParams(
                dimension_semantics=("parallel",),
                vmem_limit_bytes=_pick_vmem_limit()),
        )

    try:
        out = jax.block_until_ready(build(True)(*inputs))
    except Exception:
        # Fallback if single-buffered (Buffered(1)) weight specs are rejected.
        out = build(False)(*inputs)
    return out[:R, :n_out]


# ----------------------------------------------------------------------------
# Plain-JAX glue: single-level ROIAlign (maskrcnn_benchmark, aligned=False),
# expressed as interpolation matmuls (no point gathers).
# ----------------------------------------------------------------------------
# TODO(synk): multi-level FPN level assignment (LevelMapper) is omitted; a
#             single feature level / scale is pooled.
# TODO(synk): at production feature-map sizes the pooler should be fused into
#             the Pallas kernel (boxes via PrefetchScalarGridSpec in SMEM,
#             feature level via pl.ANY + manual DMA) to avoid the per-ROI
#             feature-map take below.
def roi_align(feat_nhwc, rois, spatial_scale, resolution, sampling_ratio):
    """feat_nhwc: (N, H, W, C); rois: (R, 5) = [batch_idx, x1, y1, x2, y2]."""
    N, H, W, C = feat_nhwc.shape
    R = rois.shape[0]
    sr = sampling_ratio
    S = resolution * sr

    batch_idx = rois[:, 0].astype(jnp.int32)
    x1 = rois[:, 1] * spatial_scale
    y1 = rois[:, 2] * spatial_scale
    x2 = rois[:, 3] * spatial_scale
    y2 = rois[:, 4] * spatial_scale
    roi_w = jnp.maximum(x2 - x1, 1.0)
    roi_h = jnp.maximum(y2 - y1, 1.0)
    bin_w = roi_w / resolution
    bin_h = roi_h / resolution

    frac = (jnp.arange(sr, dtype=jnp.float32) + 0.5) / sr          # (sr,)
    p = jnp.arange(resolution, dtype=jnp.float32)                  # (res,)
    grid = (p[:, None] + frac[None, :]).reshape(S)                 # (S,)
    ys = y1[:, None] + grid[None, :] * bin_h[:, None]              # (R, S)
    xs = x1[:, None] + grid[None, :] * bin_w[:, None]              # (R, S)

    def interp_matrix(coords, size):
        """(R, S) sample coords -> (R, S, size) bilinear interpolation weights.
        Reference ROIAlign zeroes samples outside [-1, size]."""
        valid = (coords >= -1.0) & (coords <= size)
        c = jnp.clip(coords, 0.0, size - 1.0)
        c0f = jnp.floor(c)
        lo = c0f.astype(jnp.int32)
        hi = jnp.minimum(lo + 1, size - 1)
        l = c - c0f
        idx = jnp.arange(size, dtype=jnp.int32)
        m_lo = (idx[None, None, :] == lo[:, :, None]).astype(jnp.float32)
        m_hi = (idx[None, None, :] == hi[:, :, None]).astype(jnp.float32)
        wmat = m_lo * (1.0 - l)[:, :, None] + m_hi * l[:, :, None]
        return wmat * valid[:, :, None].astype(jnp.float32)

    Ry = interp_matrix(ys, H)                                      # (R, S, H)
    Rx = interp_matrix(xs, W)                                      # (R, S, W)

    fm = feat_nhwc[batch_idx]                                      # (R, H, W, C)
    tmp = jnp.einsum('rsh,rhwc->rswc', Ry, fm,
                     precision=lax.Precision.HIGHEST)              # (R, S, W, C)
    samp = jnp.einsum('rtw,rswc->rstc', Rx, tmp,
                      precision=lax.Precision.HIGHEST)             # (R, S, S, C)
    pooled = samp.reshape(R, resolution, sr, resolution, sr, C).mean(axis=(2, 4))
    return pooled                                                  # (R, res, res, C)


# ----------------------------------------------------------------------------
# Full forward pass
# ----------------------------------------------------------------------------
# TODO(synk): use_gn=True (GroupNorm between conv and ReLU) is not implemented.
def fpn_xconv1fc_forward(feat_nchw, rois, packed_params, cfg, roi_tile=128):
    feat_nhwc = jnp.transpose(feat_nchw, (0, 2, 3, 1))
    x = roi_align(feat_nhwc, rois, cfg["scale"], cfg["resolution"],
                  cfg["sampling_ratio"])                           # (R, res, res, Cin)
    return xconv_fc_head(x, packed_params, cfg, roi_tile=roi_tile) # (R, mlp_head_dim)


# ----------------------------------------------------------------------------
# Pure-JAX reference (for correctness cross-check)
# ----------------------------------------------------------------------------
def reference_forward(feat_nchw, rois, params, cfg):
    feat_nhwc = jnp.transpose(feat_nchw, (0, 2, 3, 1))
    x = roi_align(feat_nhwc, rois, cfg["scale"], cfg["resolution"],
                  cfg["sampling_ratio"])
    d = cfg["dilation"]
    for w, b in params["xconvs"]:
        x = lax.conv_general_dilated(
            x, w, window_strides=(1, 1), padding=((d, d), (d, d)),
            rhs_dilation=(d, d), dimension_numbers=("NHWC", "HWIO", "NHWC"),
            precision=lax.Precision.HIGHEST)
        x = jnp.maximum(x + b[None, None, None, :], 0.0)
    R = x.shape[0]
    x = jnp.transpose(x, (0, 3, 1, 2)).reshape(R, -1)              # NCHW flatten
    x = jnp.dot(x, params["fc6_w"], precision=lax.Precision.HIGHEST)
    x = x + params["fc6_b"]
    return jnp.maximum(x, 0.0)


if __name__ == "__main__":
    # Small synthetic config (stands in for cfg.MODEL.ROI_BOX_HEAD.*)
    cfg = dict(
        resolution=8,            # POOLER_RESOLUTION
        scale=0.25,              # POOLER_SCALES (single level)
        sampling_ratio=2,        # POOLER_SAMPLING_RATIO
        in_channels=16,
        conv_head_dim=32,        # CONV_HEAD_DIM
        num_stacked_convs=4,     # NUM_STACKED_CONVS
        dilation=1,              # DILATION
        use_gn=False,            # USE_GN
        mlp_head_dim=64,         # MLP_HEAD_DIM (representation_size)
    )

    key = jax.random.PRNGKey(0)

    # Deterministic parameter init (mirrors normal_(std=0.01) / zero bias).
    params = {"xconvs": []}
    c_in = cfg["in_channels"]
    for _ in range(cfg["num_stacked_convs"]):
        key, kw = jax.random.split(key)
        w = 0.01 * jax.random.normal(kw, (3, 3, c_in, cfg["conv_head_dim"]),
                                     jnp.float32)
        b = jnp.zeros((cfg["conv_head_dim"],), jnp.float32)
        params["xconvs"].append((w, b))
        c_in = cfg["conv_head_dim"]
    input_size = cfg["conv_head_dim"] * cfg["resolution"] ** 2
    key, kw = jax.random.split(key)
    params["fc6_w"] = 0.01 * jax.random.normal(
        kw, (input_size, cfg["mlp_head_dim"]), jnp.float32)
    params["fc6_b"] = jnp.zeros((cfg["mlp_head_dim"],), jnp.float32)

    # Example inputs: one FPN level, NCHW features + proposal boxes.
    key, kx = jax.random.split(key)
    feat_nchw = jax.random.normal(kx, (2, cfg["in_channels"], 16, 16),
                                  jnp.float32)
    rois = jnp.array([
        [0.0,  4.0,  4.0, 40.0, 40.0],
        [0.0, 10.0,  8.0, 60.0, 30.0],
        [1.0,  0.0,  0.0, 63.0, 63.0],
        [1.0, 20.0, 16.0, 50.0, 58.0],
    ], jnp.float32)

    ref = jax.block_until_ready(reference_forward(feat_nchw, rois, params, cfg))

    # Fast path: bf16 MXU operands, f32 accumulation / elementwise.
    packed_bf16 = prepare_head_params(params, cfg, mxu_dtype=jnp.bfloat16)
    out = fpn_xconv1fc_forward(feat_nchw, rois, packed_bf16, cfg)
    out = jax.block_until_ready(out)
    assert out.shape == (4, cfg["mlp_head_dim"])
    assert bool(jnp.all(jnp.isfinite(out)))
    # bf16 path validated against the f32 reference at a loose tolerance.
    scale = float(jnp.max(jnp.abs(ref)))
    err_bf16 = float(jnp.max(jnp.abs(out - ref)))
    assert err_bf16 <= 0.1 * scale + 1e-6, (
        "bf16 path max abs err %e vs ref scale %e" % (err_bf16, scale))

    # Exact-math variant cross-checked against a pure-JAX reference.
    packed_f32 = prepare_head_params(params, cfg, mxu_dtype=jnp.float32)
    out_f32 = jax.block_until_ready(
        fpn_xconv1fc_forward(feat_nchw, rois, packed_f32, cfg))
    assert bool(jnp.allclose(out_f32, ref, rtol=5e-2, atol=1e-5)), (
        "max abs diff = %e" % float(jnp.max(jnp.abs(out_f32 - ref))))

    print("KERNEL_OK")
</pallas_src>

<mosaic_0001>
module attributes {stable_mosaic.version = 11 : i64} {
  func.func @kernel(%arg0: i32, %arg1: memref<8x8x128xbf16, #tpu.memory_space<vmem>>, %arg2: memref<3x128x256xbf16, #tpu.memory_space<vmem>>, %arg3: memref<3x256x256xbf16, #tpu.memory_space<vmem>>, %arg4: memref<3x256x256xbf16, #tpu.memory_space<vmem>>, %arg5: memref<3x256x256xbf16, #tpu.memory_space<vmem>>, %arg6: memref<1x256xf32, #tpu.memory_space<vmem>>, %arg7: memref<1x256xf32, #tpu.memory_space<vmem>>, %arg8: memref<1x256xf32, #tpu.memory_space<vmem>>, %arg9: memref<1x256xf32, #tpu.memory_space<vmem>>, %arg10: memref<8x256x128xbf16, #tpu.memory_space<vmem>>, %arg11: memref<1x128xf32, #tpu.memory_space<vmem>>, %arg12: memref<8x128xf32, #tpu.memory_space<vmem>>) attributes {dimension_semantics = [#tpu.dimension_semantics<parallel>], iteration_bounds = array<i64: 1>, scalar_prefetch = 0 : i64, scratch_operands = 0 : i64, tpu.core_type = #tpu.core_type<tc>, window_params = [{transform_indices = @transform_0, window_bounds = array<i64: 8, 8, 128>}, {pipeline_mode = #tpu.pipeline_mode<synchronous>, transform_indices = @transform_1, window_bounds = array<i64: 3, 128, 256>}, {pipeline_mode = #tpu.pipeline_mode<synchronous>, transform_indices = @transform_2, window_bounds = array<i64: 3, 256, 256>}, {pipeline_mode = #tpu.pipeline_mode<synchronous>, transform_indices = @transform_3, window_bounds = array<i64: 3, 256, 256>}, {pipeline_mode = #tpu.pipeline_mode<synchronous>, transform_indices = @transform_4, window_bounds = array<i64: 3, 256, 256>}, {pipeline_mode = #tpu.pipeline_mode<synchronous>, transform_indices = @transform_5, window_bounds = array<i64: 1, 256>}, {pipeline_mode = #tpu.pipeline_mode<synchronous>, transform_indices = @transform_6, window_bounds = array<i64: 1, 256>}, {pipeline_mode = #tpu.pipeline_mode<synchronous>, transform_indices = @transform_7, window_bounds = array<i64: 1, 256>}, {pipeline_mode = #tpu.pipeline_mode<synchronous>, transform_indices = @transform_8, window_bounds = array<i64: 1, 256>}, {pipeline_mode = #tpu.pipeline_mode<synchronous>, transform_indices = @transform_9, window_bounds = array<i64: 8, 256, 128>}, {pipeline_mode = #tpu.pipeline_mode<synchronous>, transform_indices = @transform_10, window_bounds = array<i64: 1, 128>}, {transform_indices = @transform_11, window_bounds = array<i64: 8, 128>}]} {
    %0 = tpu.iota {dimensions = array<i32: 1>} : vector<8x8x1xi32>
    %c1_i32 = arith.constant 1 : i32
    %1 = vector.broadcast %c1_i32 : i32 to vector<8x8x1xi32>
    %2 = arith.cmpi sge, %0, %1 : vector<8x8x1xi32>
    %c7_i32 = arith.constant 7 : i32
    %3 = vector.broadcast %c7_i32 : i32 to vector<8x8x1xi32>
    %4 = arith.cmpi slt, %0, %3 : vector<8x8x1xi32>
    %c0 = arith.constant 0 : index
    %c0_0 = arith.constant 0 : index
    %c0_1 = arith.constant 0 : index
    %5 = vector.load %arg1[%c0, %c0_0, %c0_1] : memref<8x8x128xbf16, #tpu.memory_space<vmem>>, vector<8x8x128xbf16>
    %6 = arith.extf %5 : vector<8x8x128xbf16> to vector<8x8x128xf32>
    %7 = vector.shape_cast %6 : vector<8x8x128xf32> to vector<64x128xf32>
    %8 = arith.truncf %7 : vector<64x128xf32> to vector<64x128xbf16>
    %c1 = arith.constant 1 : index
    %c0_2 = arith.constant 0 : index
    %c0_3 = arith.constant 0 : index
    %9 = vector.load %arg2[%c1, %c0_2, %c0_3] : memref<3x128x256xbf16, #tpu.memory_space<vmem>>, vector<1x128x256xbf16>
    %10 = vector.shape_cast %9 : vector<1x128x256xbf16> to vector<128x256xbf16>
    %cst = arith.constant dense<0.000000e+00> : vector<64x256xf32>
    %11 = tpu.matmul %8, %10, %cst {dimension_numbers = #tpu.dot_dimension_numbers<[1], [0], [0], [1], [0, 0, 1, 1], [], []>} : vector<64x128xbf16>, vector<128x256xbf16>, vector<64x256xf32> -> vector<64x256xf32>
    %c1_i32_4 = arith.constant 1 : i32
    %12 = tpu.dynamic_rotate %6 by %c1_i32_4 dim 1 : vector<8x8x128xf32>, i32 -> vector<8x8x128xf32>
    %cst_5 = arith.constant 0.000000e+00 : f32
    %13 = vector.shape_cast %2 : vector<8x8x1xi1> to vector<8x8x1xi1>
    %14 = vector.broadcast %13 : vector<8x8x1xi1> to vector<8x8x128xi1>
    %15 = vector.broadcast %cst_5 : f32 to vector<8x8x128xf32>
    %16 = arith.select %14, %12, %15 : vector<8x8x128xi1>, vector<8x8x128xf32>
    %17 = vector.shape_cast %16 : vector<8x8x128xf32> to vector<64x128xf32>
    %18 = arith.truncf %17 : vector<64x128xf32> to vector<64x128xbf16>
    %c0_6 = arith.constant 0 : index
    %c0_7 = arith.constant 0 : index
    %c0_8 = arith.constant 0 : index
    %19 = vector.load %arg2[%c0_6, %c0_7, %c0_8] : memref<3x128x256xbf16, #tpu.memory_space<vmem>>, vector<1x128x256xbf16>
    %20 = vector.shape_cast %19 : vector<1x128x256xbf16> to vector<128x256xbf16>
    %cst_9 = arith.constant dense<0.000000e+00> : vector<64x256xf32>
    %21 = tpu.matmul %18, %20, %cst_9 {dimension_numbers = #tpu.dot_dimension_numbers<[1], [0], [0], [1], [0, 0, 1, 1], [], []>} : vector<64x128xbf16>, vector<128x256xbf16>, vector<64x256xf32> -> vector<64x256xf32>
    %22 = arith.addf %11, %21 : vector<64x256xf32>
    %c7_i32_10 = arith.constant 7 : i32
    %23 = tpu.dynamic_rotate %6 by %c7_i32_10 dim 1 : vector<8x8x128xf32>, i32 -> vector<8x8x128xf32>
    %cst_11 = arith.constant 0.000000e+00 : f32
    %24 = vector.shape_cast %4 : vector<8x8x1xi1> to vector<8x8x1xi1>
    %25 = vector.broadcast %24 : vector<8x8x1xi1> to vector<8x8x128xi1>
    %26 = vector.broadcast %cst_11 : f32 to vector<8x8x128xf32>
    %27 = arith.select %25, %23, %26 : vector<8x8x128xi1>, vector<8x8x128xf32>
    %28 = vector.shape_cast %27 : vector<8x8x128xf32> to vector<64x128xf32>
    %29 = arith.truncf %28 : vector<64x128xf32> to vector<64x128xbf16>
    %c2 = arith.constant 2 : index
    %c0_12 = arith.constant 0 : index
    %c0_13 = arith.constant 0 : index
    %30 = vector.load %arg2[%c2, %c0_12, %c0_13] : memref<3x128x256xbf16, #tpu.memory_space<vmem>>, vector<1x128x256xbf16>
    %31 = vector.shape_cast %30 : vector<1x128x256xbf16> to vector<128x256xbf16>
    %cst_14 = arith.constant dense<0.000000e+00> : vector<64x256xf32>
    %32 = tpu.matmul %29, %31, %cst_14 {dimension_numbers = #tpu.dot_dimension_numbers<[1], [0], [0], [1], [0, 0, 1, 1], [], []>} : vector<64x128xbf16>, vector<128x256xbf16>, vector<64x256xf32> -> vector<64x256xf32>
    %33 = arith.addf %22, %32 : vector<64x256xf32>
    %c0_15 = arith.constant 0 : index
    %c0_16 = arith.constant 0 : index
    %34 = vector.load %arg6[%c0_15, %c0_16] : memref<1x256xf32, #tpu.memory_space<vmem>>, vector<1x256xf32>
    %35 = vector.broadcast %34 : vector<1x256xf32> to vector<64x256xf32>
    %36 = arith.addf %33, %35 : vector<64x256xf32>
    %cst_17 = arith.constant 0.000000e+00 : f32
    %37 = vector.broadcast %cst_17 : f32 to vector<64x256xf32>
    %38 = arith.maximumf %36, %37 : vector<64x256xf32>
    %39 = vector.shape_cast %38 : vector<64x256xf32> to vector<8x8x256xf32>
    %40 = vector.shape_cast %39 : vector<8x8x256xf32> to vector<64x256xf32>
    %41 = arith.truncf %40 : vector<64x256xf32> to vector<64x256xbf16>
    %c1_18 = arith.constant 1 : index
    %c0_19 = arith.constant 0 : index
    %c0_20 = arith.constant 0 : index
    %42 = vector.load %arg3[%c1_18, %c0_19, %c0_20] : memref<3x256x256xbf16, #tpu.memory_space<vmem>>, vector<1x256x256xbf16>
    %43 = vector.shape_cast %42 : vector<1x256x256xbf16> to vector<256x256xbf16>
    %cst_21 = arith.constant dense<0.000000e+00> : vector<64x256xf32>
    %44 = tpu.matmul %41, %43, %cst_21 {dimension_numbers = #tpu.dot_dimension_numbers<[1], [0], [0], [1], [0, 0, 1, 1], [], []>} : vector<64x256xbf16>, vector<256x256xbf16>, vector<64x256xf32> -> vector<64x256xf32>
    %c1_i32_22 = arith.constant 1 : i32
    %45 = tpu.dynamic_rotate %39 by %c1_i32_22 dim 1 : vector<8x8x256xf32>, i32 -> vector<8x8x256xf32>
    %cst_23 = arith.constant 0.000000e+00 : f32
    %46 = vector.shape_cast %2 : vector<8x8x1xi1> to vector<8x8x1xi1>
    %47 = vector.broadcast %46 : vector<8x8x1xi1> to vector<8x8x256xi1>
    %48 = vector.broadcast %cst_23 : f32 to vector<8x8x256xf32>
    %49 = arith.select %47, %45, %48 : vector<8x8x256xi1>, vector<8x8x256xf32>
    %50 = vector.shape_cast %49 : vector<8x8x256xf32> to vector<64x256xf32>
    %51 = arith.truncf %50 : vector<64x256xf32> to vector<64x256xbf16>
    %c0_24 = arith.constant 0 : index
    %c0_25 = arith.constant 0 : index
    %c0_26 = arith.constant 0 : index
    %52 = vector.load %arg3[%c0_24, %c0_25, %c0_26] : memref<3x256x256xbf16, #tpu.memory_space<vmem>>, vector<1x256x256xbf16>
    %53 = vector.shape_cast %52 : vector<1x256x256xbf16> to vector<256x256xbf16>
    %cst_27 = arith.constant dense<0.000000e+00> : vector<64x256xf32>
    %54 = tpu.matmul %51, %53, %cst_27 {dimension_numbers = #tpu.dot_dimension_numbers<[1], [0], [0], [1], [0, 0, 1, 1], [], []>} : vector<64x256xbf16>, vector<256x256xbf16>, vector<64x256xf32> -> vector<64x256xf32>
    %55 = arith.addf %44, %54 : vector<64x256xf32>
    %c7_i32_28 = arith.constant 7 : i32
    %56 = tpu.dynamic_rotate %39 by %c7_i32_28 dim 1 : vector<8x8x256xf32>, i32 -> vector<8x8x256xf32>
    %cst_29 = arith.constant 0.000000e+00 : f32
    %57 = vector.shape_cast %4 : vector<8x8x1xi1> to vector<8x8x1xi1>
    %58 = vector.broadcast %57 : vector<8x8x1xi1> to vector<8x8x256xi1>
    %59 = vector.broadcast %cst_29 : f32 to vector<8x8x256xf32>
    %60 = arith.select %58, %56, %59 : vector<8x8x256xi1>, vector<8x8x256xf32>
    %61 = vector.shape_cast %60 : vector<8x8x256xf32> to vector<64x256xf32>
    %62 = arith.truncf %61 : vector<64x256xf32> to vector<64x256xbf16>
    %c2_30 = arith.constant 2 : index
    %c0_31 = arith.constant 0 : index
    %c0_32 = arith.constant 0 : index
    %63 = vector.load %arg3[%c2_30, %c0_31, %c0_32] : memref<3x256x256xbf16, #tpu.memory_space<vmem>>, vector<1x256x256xbf16>
    %64 = vector.shape_cast %63 : vector<1x256x256xbf16> to vector<256x256xbf16>
    %cst_33 = arith.constant dense<0.000000e+00> : vector<64x256xf32>
    %65 = tpu.matmul %62, %64, %cst_33 {dimension_numbers = #tpu.dot_dimension_numbers<[1], [0], [0], [1], [0, 0, 1, 1], [], []>} : vector<64x256xbf16>, vector<256x256xbf16>, vector<64x256xf32> -> vector<64x256xf32>
    %66 = arith.addf %55, %65 : vector<64x256xf32>
    %c0_34 = arith.constant 0 : index
    %c0_35 = arith.constant 0 : index
    %67 = vector.load %arg7[%c0_34, %c0_35] : memref<1x256xf32, #tpu.memory_space<vmem>>, vector<1x256xf32>
    %68 = vector.broadcast %67 : vector<1x256xf32> to vector<64x256xf32>
    %69 = arith.addf %66, %68 : vector<64x256xf32>
    %cst_36 = arith.constant 0.000000e+00 : f32
    %70 = vector.broadcast %cst_36 : f32 to vector<64x256xf32>
    %71 = arith.maximumf %69, %70 : vector<64x256xf32>
    %72 = vector.shape_cast %71 : vector<64x256xf32> to vector<8x8x256xf32>
    %73 = vector.shape_cast %72 : vector<8x8x256xf32> to vector<64x256xf32>
    %74 = arith.truncf %73 : vector<64x256xf32> to vector<64x256xbf16>
    %c1_37 = arith.constant 1 : index
    %c0_38 = arith.constant 0 : index
    %c0_39 = arith.constant 0 : index
    %75 = vector.load %arg4[%c1_37, %c0_38, %c0_39] : memref<3x256x256xbf16, #tpu.memory_space<vmem>>, vector<1x256x256xbf16>
    %76 = vector.shape_cast %75 : vector<1x256x256xbf16> to vector<256x256xbf16>
    %cst_40 = arith.constant dense<0.000000e+00> : vector<64x256xf32>
    %77 = tpu.matmul %74, %76, %cst_40 {dimension_numbers = #tpu.dot_dimension_numbers<[1], [0], [0], [1], [0, 0, 1, 1], [], []>} : vector<64x256xbf16>, vector<256x256xbf16>, vector<64x256xf32> -> vector<64x256xf32>
    %c1_i32_41 = arith.constant 1 : i32
    %78 = tpu.dynamic_rotate %72 by %c1_i32_41 dim 1 : vector<8x8x256xf32>, i32 -> vector<8x8x256xf32>
    %cst_42 = arith.constant 0.000000e+00 : f32
    %79 = vector.shape_cast %2 : vector<8x8x1xi1> to vector<8x8x1xi1>
    %80 = vector.broadcast %79 : vector<8x8x1xi1> to vector<8x8x256xi1>
    %81 = vector.broadcast %cst_42 : f32 to vector<8x8x256xf32>
    %82 = arith.select %80, %78, %81 : vector<8x8x256xi1>, vector<8x8x256xf32>
    %83 = vector.shape_cast %82 : vector<8x8x256xf32> to vector<64x256xf32>
    %84 = arith.truncf %83 : vector<64x256xf32> to vector<64x256xbf16>
    %c0_43 = arith.constant 0 : index
    %c0_44 = arith.constant 0 : index
    %c0_45 = arith.constant 0 : index
    %85 = vector.load %arg4[%c0_43, %c0_44, %c0_45] : memref<3x256x256xbf16, #tpu.memory_space<vmem>>, vector<1x256x256xbf16>
    %86 = vector.shape_cast %85 : vector<1x256x256xbf16> to vector<256x256xbf16>
    %cst_46 = arith.constant dense<0.000000e+00> : vector<64x256xf32>
    %87 = tpu.matmul %84, %86, %cst_46 {dimension_numbers = #tpu.dot_dimension_numbers<[1], [0], [0], [1], [0, 0, 1, 1], [], []>} : vector<64x256xbf16>, vector<256x256xbf16>, vector<64x256xf32> -> vector<64x256xf32>
    %88 = arith.addf %77, %87 : vector<64x256xf32>
    %c7_i32_47 = arith.constant 7 : i32
    %89 = tpu.dynamic_rotate %72 by %c7_i32_47 dim 1 : vector<8x8x256xf32>, i32 -> vector<8x8x256xf32>
    %cst_48 = arith.constant 0.000000e+00 : f32
    %90 = vector.shape_cast %4 : vector<8x8x1xi1> to vector<8x8x1xi1>
    %91 = vector.broadcast %90 : vector<8x8x1xi1> to vector<8x8x256xi1>
    %92 = vector.broadcast %cst_48 : f32 to vector<8x8x256xf32>
    %93 = arith.select %91, %89, %92 : vector<8x8x256xi1>, vector<8x8x256xf32>
    %94 = vector.shape_cast %93 : vector<8x8x256xf32> to vector<64x256xf32>
    %95 = arith.truncf %94 : vector<64x256xf32> to vector<64x256xbf16>
    %c2_49 = arith.constant 2 : index
    %c0_50 = arith.constant 0 : index
    %c0_51 = arith.constant 0 : index
    %96 = vector.load %arg4[%c2_49, %c0_50, %c0_51] : memref<3x256x256xbf16, #tpu.memory_space<vmem>>, vector<1x256x256xbf16>
    %97 = vector.shape_cast %96 : vector<1x256x256xbf16> to vector<256x256xbf16>
    %cst_52 = arith.constant dense<0.000000e+00> : vector<64x256xf32>
    %98 = tpu.matmul %95, %97, %cst_52 {dimension_numbers = #tpu.dot_dimension_numbers<[1], [0], [0], [1], [0, 0, 1, 1], [], []>} : vector<64x256xbf16>, vector<256x256xbf16>, vector<64x256xf32> -> vector<64x256xf32>
    %99 = arith.addf %88, %98 : vector<64x256xf32>
    %c0_53 = arith.constant 0 : index
    %c0_54 = arith.constant 0 : index
    %100 = vector.load %arg8[%c0_53, %c0_54] : memref<1x256xf32, #tpu.memory_space<vmem>>, vector<1x256xf32>
    %101 = vector.broadcast %100 : vector<1x256xf32> to vector<64x256xf32>
    %102 = arith.addf %99, %101 : vector<64x256xf32>
    %cst_55 = arith.constant 0.000000e+00 : f32
    %103 = vector.broadcast %cst_55 : f32 to vector<64x256xf32>
    %104 = arith.maximumf %102, %103 : vector<64x256xf32>
    %105 = vector.shape_cast %104 : vector<64x256xf32> to vector<8x8x256xf32>
    %106 = vector.shape_cast %105 : vector<8x8x256xf32> to vector<64x256xf32>
    %107 = arith.truncf %106 : vector<64x256xf32> to vector<64x256xbf16>
    %c1_56 = arith.constant 1 : index
    %c0_57 = arith.constant 0 : index
    %c0_58 = arith.constant 0 : index
    %108 = vector.load %arg5[%c1_56, %c0_57, %c0_58] : memref<3x256x256xbf16, #tpu.memory_space<vmem>>, vector<1x256x256xbf16>
    %109 = vector.shape_cast %108 : vector<1x256x256xbf16> to vector<256x256xbf16>
    %cst_59 = arith.constant dense<0.000000e+00> : vector<64x256xf32>
    %110 = tpu.matmul %107, %109, %cst_59 {dimension_numbers = #tpu.dot_dimension_numbers<[1], [0], [0], [1], [0, 0, 1, 1], [], []>} : vector<64x256xbf16>, vector<256x256xbf16>, vector<64x256xf32> -> vector<64x256xf32>
    %c1_i32_60 = arith.constant 1 : i32
    %111 = tpu.dynamic_rotate %105 by %c1_i32_60 dim 1 : vector<8x8x256xf32>, i32 -> vector<8x8x256xf32>
    %cst_61 = arith.constant 0.000000e+00 : f32
    %112 = vector.shape_cast %2 : vector<8x8x1xi1> to vector<8x8x1xi1>
    %113 = vector.broadcast %112 : vector<8x8x1xi1> to vector<8x8x256xi1>
    %114 = vector.broadcast %cst_61 : f32 to vector<8x8x256xf32>
    %115 = arith.select %113, %111, %114 : vector<8x8x256xi1>, vector<8x8x256xf32>
    %116 = vector.shape_cast %115 : vector<8x8x256xf32> to vector<64x256xf32>
    %117 = arith.truncf %116 : vector<64x256xf32> to vector<64x256xbf16>
    %c0_62 = arith.constant 0 : index
    %c0_63 = arith.constant 0 : index
    %c0_64 = arith.constant 0 : index
    %118 = vector.load %arg5[%c0_62, %c0_63, %c0_64] : memref<3x256x256xbf16, #tpu.memory_space<vmem>>, vector<1x256x256xbf16>
    %119 = vector.shape_cast %118 : vector<1x256x256xbf16> to vector<256x256xbf16>
    %cst_65 = arith.constant dense<0.000000e+00> : vector<64x256xf32>
    %120 = tpu.matmul %117, %119, %cst_65 {dimension_numbers = #tpu.dot_dimension_numbers<[1], [0], [0], [1], [0, 0, 1, 1], [], []>} : vector<64x256xbf16>, vector<256x256xbf16>, vector<64x256xf32> -> vector<64x256xf32>
    %121 = arith.addf %110, %120 : vector<64x256xf32>
    %c7_i32_66 = arith.constant 7 : i32
    %122 = tpu.dynamic_rotate %105 by %c7_i32_66 dim 1 : vector<8x8x256xf32>, i32 -> vector<8x8x256xf32>
    %cst_67 = arith.constant 0.000000e+00 : f32
    %123 = vector.shape_cast %4 : vector<8x8x1xi1> to vector<8x8x1xi1>
    %124 = vector.broadcast %123 : vector<8x8x1xi1> to vector<8x8x256xi1>
    %125 = vector.broadcast %cst_67 : f32 to vector<8x8x256xf32>
    %126 = arith.select %124, %122, %125 : vector<8x8x256xi1>, vector<8x8x256xf32>
    %127 = vector.shape_cast %126 : vector<8x8x256xf32> to vector<64x256xf32>
    %128 = arith.truncf %127 : vector<64x256xf32> to vector<64x256xbf16>
    %c2_68 = arith.constant 2 : index
    %c0_69 = arith.constant 0 : index
    %c0_70 = arith.constant 0 : index
    %129 = vector.load %arg5[%c2_68, %c0_69, %c0_70] : memref<3x256x256xbf16, #tpu.memory_space<vmem>>, vector<1x256x256xbf16>
    %130 = vector.shape_cast %129 : vector<1x256x256xbf16> to vector<256x256xbf16>
    %cst_71 = arith.constant dense<0.000000e+00> : vector<64x256xf32>
    %131 = tpu.matmul %128, %130, %cst_71 {dimension_numbers = #tpu.dot_dimension_numbers<[1], [0], [0], [1], [0, 0, 1, 1], [], []>} : vector<64x256xbf16>, vector<256x256xbf16>, vector<64x256xf32> -> vector<64x256xf32>
    %132 = arith.addf %121, %131 : vector<64x256xf32>
    %c0_72 = arith.constant 0 : index
    %c0_73 = arith.constant 0 : index
    %133 = vector.load %arg9[%c0_72, %c0_73] : memref<1x256xf32, #tpu.memory_space<vmem>>, vector<1x256xf32>
    %134 = vector.broadcast %133 : vector<1x256xf32> to vector<64x256xf32>
    %135 = arith.addf %132, %134 : vector<64x256xf32>
    %cst_74 = arith.constant 0.000000e+00 : f32
    %136 = vector.broadcast %cst_74 : f32 to vector<64x256xf32>
    %137 = arith.maximumf %135, %136 : vector<64x256xf32>
    %138 = vector.shape_cast %137 : vector<64x256xf32> to vector<8x8x256xf32>
    %139 = vector.extract_strided_slice %138 {offsets = [0, 0, 0], sizes = [8, 1, 256], strides = [1, 1, 1]} : vector<8x8x256xf32> to vector<8x1x256xf32>
    %140 = vector.shape_cast %139 : vector<8x1x256xf32> to vector<8x256xf32>
    %141 = arith.truncf %140 : vector<8x256xf32> to vector<8x256xbf16>
    %c0_75 = arith.constant 0 : index
    %c0_76 = arith.constant 0 : index
    %c0_77 = arith.constant 0 : index
    %142 = vector.load %arg10[%c0_75, %c0_76, %c0_77] : memref<8x256x128xbf16, #tpu.memory_space<vmem>>, vector<1x256x128xbf16>
    %143 = vector.shape_cast %142 : vector<1x256x128xbf16> to vector<256x128xbf16>
    %cst_78 = arith.constant dense<0.000000e+00> : vector<8x128xf32>
    %144 = tpu.matmul %141, %143, %cst_78 {dimension_numbers = #tpu.dot_dimension_numbers<[1], [0], [0], [1], [0, 0, 1, 1], [], []>} : vector<8x256xbf16>, vector<256x128xbf16>, vector<8x128xf32> -> vector<8x128xf32>
    %145 = vector.extract_strided_slice %138 {offsets = [0, 1, 0], sizes = [8, 1, 256], strides = [1, 1, 1]} : vector<8x8x256xf32> to vector<8x1x256xf32>
    %146 = vector.shape_cast %145 : vector<8x1x256xf32> to vector<8x256xf32>
    %147 = arith.truncf %146 : vector<8x256xf32> to vector<8x256xbf16>
    %c1_79 = arith.constant 1 : index
    %c0_80 = arith.constant 0 : index
    %c0_81 = arith.constant 0 : index
    %148 = vector.load %arg10[%c1_79, %c0_80, %c0_81] : memref<8x256x128xbf16, #tpu.memory_space<vmem>>, vector<1x256x128xbf16>
    %149 = vector.shape_cast %148 : vector<1x256x128xbf16> to vector<256x128xbf16>
    %cst_82 = arith.constant dense<0.000000e+00> : vector<8x128xf32>
    %150 = tpu.matmul %147, %149, %cst_82 {dimension_numbers = #tpu.dot_dimension_numbers<[1], [0], [0], [1], [0, 0, 1, 1], [], []>} : vector<8x256xbf16>, vector<256x128xbf16>, vector<8x128xf32> -> vector<8x128xf32>
    %151 = arith.addf %144, %150 : vector<8x128xf32>
    %152 = vector.extract_strided_slice %138 {offsets = [0, 2, 0], sizes = [8, 1, 256], strides = [1, 1, 1]} : vector<8x8x256xf32> to vector<8x1x256xf32>
    %153 = vector.shape_cast %152 : vector<8x1x256xf32> to vector<8x256xf32>
    %154 = arith.truncf %153 : vector<8x256xf32> to vector<8x256xbf16>
    %c2_83 = arith.constant 2 : index
    %c0_84 = arith.constant 0 : index
    %c0_85 = arith.constant 0 : index
    %155 = vector.load %arg10[%c2_83, %c0_84, %c0_85] : memref<8x256x128xbf16, #tpu.memory_space<vmem>>, vector<1x256x128xbf16>
    %156 = vector.shape_cast %155 : vector<1x256x128xbf16> to vector<256x128xbf16>
    %cst_86 = arith.constant dense<0.000000e+00> : vector<8x128xf32>
    %157 = tpu.matmul %154, %156, %cst_86 {dimension_numbers = #tpu.dot_dimension_numbers<[1], [0], [0], [1], [0, 0, 1, 1], [], []>} : vector<8x256xbf16>, vector<256x128xbf16>, vector<8x128xf32> -> vector<8x128xf32>
    %158 = arith.addf %151, %157 : vector<8x128xf32>
    %159 = vector.extract_strided_slice %138 {offsets = [0, 3, 0], sizes = [8, 1, 256], strides = [1, 1, 1]} : vector<8x8x256xf32> to vector<8x1x256xf32>
    %160 = vector.shape_cast %159 : vector<8x1x256xf32> to vector<8x256xf32>
    %161 = arith.truncf %160 : vector<8x256xf32> to vector<8x256xbf16>
    %c3 = arith.constant 3 : index
    %c0_87 = arith.constant 0 : index
    %c0_88 = arith.constant 0 : index
    %162 = vector.load %arg10[%c3, %c0_87, %c0_88] : memref<8x256x128xbf16, #tpu.memory_space<vmem>>, vector<1x256x128xbf16>
    %163 = vector.shape_cast %162 : vector<1x256x128xbf16> to vector<256x128xbf16>
    %cst_89 = arith.constant dense<0.000000e+00> : vector<8x128xf32>
    %164 = tpu.matmul %161, %163, %cst_89 {dimension_numbers = #tpu.dot_dimension_numbers<[1], [0], [0], [1], [0, 0, 1, 1], [], []>} : vector<8x256xbf16>, vector<256x128xbf16>, vector<8x128xf32> -> vector<8x128xf32>
    %165 = arith.addf %158, %164 : vector<8x128xf32>
    %166 = vector.extract_strided_slice %138 {offsets = [0, 4, 0], sizes = [8, 1, 256], strides = [1, 1, 1]} : vector<8x8x256xf32> to vector<8x1x256xf32>
    %167 = vector.shape_cast %166 : vector<8x1x256xf32> to vector<8x256xf32>
    %168 = arith.truncf %167 : vector<8x256xf32> to vector<8x256xbf16>
    %c4 = arith.constant 4 : index
    %c0_90 = arith.constant 0 : index
    %c0_91 = arith.constant 0 : index
    %169 = vector.load %arg10[%c4, %c0_90, %c0_91] : memref<8x256x128xbf16, #tpu.memory_space<vmem>>, vector<1x256x128xbf16>
    %170 = vector.shape_cast %169 : vector<1x256x128xbf16> to vector<256x128xbf16>
    %cst_92 = arith.constant dense<0.000000e+00> : vector<8x128xf32>
    %171 = tpu.matmul %168, %170, %cst_92 {dimension_numbers = #tpu.dot_dimension_numbers<[1], [0], [0], [1], [0, 0, 1, 1], [], []>} : vector<8x256xbf16>, vector<256x128xbf16>, vector<8x128xf32> -> vector<8x128xf32>
    %172 = arith.addf %165, %171 : vector<8x128xf32>
    %173 = vector.extract_strided_slice %138 {offsets = [0, 5, 0], sizes = [8, 1, 256], strides = [1, 1, 1]} : vector<8x8x256xf32> to vector<8x1x256xf32>
    %174 = vector.shape_cast %173 : vector<8x1x256xf32> to vector<8x256xf32>
    %175 = arith.truncf %174 : vector<8x256xf32> to vector<8x256xbf16>
    %c5 = arith.constant 5 : index
    %c0_93 = arith.constant 0 : index
    %c0_94 = arith.constant 0 : index
    %176 = vector.load %arg10[%c5, %c0_93, %c0_94] : memref<8x256x128xbf16, #tpu.memory_space<vmem>>, vector<1x256x128xbf16>
    %177 = vector.shape_cast %176 : vector<1x256x128xbf16> to vector<256x128xbf16>
    %cst_95 = arith.constant dense<0.000000e+00> : vector<8x128xf32>
    %178 = tpu.matmul %175, %177, %cst_95 {dimension_numbers = #tpu.dot_dimension_numbers<[1], [0], [0], [1], [0, 0, 1, 1], [], []>} : vector<8x256xbf16>, vector<256x128xbf16>, vector<8x128xf32> -> vector<8x128xf32>
    %179 = arith.addf %172, %178 : vector<8x128xf32>
    %180 = vector.extract_strided_slice %138 {offsets = [0, 6, 0], sizes = [8, 1, 256], strides = [1, 1, 1]} : vector<8x8x256xf32> to vector<8x1x256xf32>
    %181 = vector.shape_cast %180 : vector<8x1x256xf32> to vector<8x256xf32>
    %182 = arith.truncf %181 : vector<8x256xf32> to vector<8x256xbf16>
    %c6 = arith.constant 6 : index
    %c0_96 = arith.constant 0 : index
    %c0_97 = arith.constant 0 : index
    %183 = vector.load %arg10[%c6, %c0_96, %c0_97] : memref<8x256x128xbf16, #tpu.memory_space<vmem>>, vector<1x256x128xbf16>
    %184 = vector.shape_cast %183 : vector<1x256x128xbf16> to vector<256x128xbf16>
    %cst_98 = arith.constant dense<0.000000e+00> : vector<8x128xf32>
    %185 = tpu.matmul %182, %184, %cst_98 {dimension_numbers = #tpu.dot_dimension_numbers<[1], [0], [0], [1], [0, 0, 1, 1], [], []>} : vector<8x256xbf16>, vector<256x128xbf16>, vector<8x128xf32> -> vector<8x128xf32>
    %186 = arith.addf %179, %185 : vector<8x128xf32>
    %187 = vector.extract_strided_slice %138 {offsets = [0, 7, 0], sizes = [8, 1, 256], strides = [1, 1, 1]} : vector<8x8x256xf32> to vector<8x1x256xf32>
    %188 = vector.shape_cast %187 : vector<8x1x256xf32> to vector<8x256xf32>
    %189 = arith.truncf %188 : vector<8x256xf32> to vector<8x256xbf16>
    %c7 = arith.constant 7 : index
    %c0_99 = arith.constant 0 : index
    %c0_100 = arith.constant 0 : index
    %190 = vector.load %arg10[%c7, %c0_99, %c0_100] : memref<8x256x128xbf16, #tpu.memory_space<vmem>>, vector<1x256x128xbf16>
    %191 = vector.shape_cast %190 : vector<1x256x128xbf16> to vector<256x128xbf16>
    %cst_101 = arith.constant dense<0.000000e+00> : vector<8x128xf32>
    %192 = tpu.matmul %189, %191, %cst_101 {dimension_numbers = #tpu.dot_dimension_numbers<[1], [0], [0], [1], [0, 0, 1, 1], [], []>} : vector<8x256xbf16>, vector<256x128xbf16>, vector<8x128xf32> -> vector<8x128xf32>
    %193 = arith.addf %186, %192 : vector<8x128xf32>
    %c0_102 = arith.constant 0 : index
    %c0_103 = arith.constant 0 : index
    %194 = vector.load %arg11[%c0_102, %c0_103] : memref<1x128xf32, #tpu.memory_space<vmem>>, vector<1x128xf32>
    %195 = vector.broadcast %194 : vector<1x128xf32> to vector<8x128xf32>
    %196 = arith.addf %193, %195 : vector<8x128xf32>
    %cst_104 = arith.constant 0.000000e+00 : f32
    %197 = vector.broadcast %cst_104 : f32 to vector<8x128xf32>
    %198 = arith.maximumf %196, %197 : vector<8x128xf32>
    %c0_105 = arith.constant 0 : index
    %c0_106 = arith.constant 0 : index
    %199 = vector.load %arg12[%c0_105, %c0_106] : memref<8x128xf32, #tpu.memory_space<vmem>>, vector<8x128xf32>
    tpu.vector_store %arg12[%c0_105, %c0_106], %198 {strides = array<i32>} : memref<8x128xf32, #tpu.memory_space<vmem>>, vector<8x128xf32>,
    return
  }
  func.func @transform_0(%arg0: i32) -> (i32, i32, i32) {
    %c0_i32 = arith.constant 0 : i32
    %c0_i32_0 = arith.constant 0 : i32
    %c0_i32_1 = arith.constant 0 : i32
    return %arg0, %c0_i32, %c0_i32_0 : i32, i32, i32
  }
  func.func @transform_1(%arg0: i32) -> (i32, i32, i32) {
    %c0_i32 = arith.constant 0 : i32
    %c0_i32_0 = arith.constant 0 : i32
    %c0_i32_1 = arith.constant 0 : i32
    %c0_i32_2 = arith.constant 0 : i32
    return %c0_i32, %c0_i32_0, %c0_i32_1 : i32, i32, i32
  }
  func.func @transform_2(%arg0: i32) -> (i32, i32, i32) {
    %c0_i32 = arith.constant 0 : i32
    %c0_i32_0 = arith.constant 0 : i32
    %c0_i32_1 = arith.constant 0 : i32
    %c0_i32_2 = arith.constant 0 : i32
    return %c0_i32, %c0_i32_0, %c0_i32_1 : i32, i32, i32
  }
  func.func @transform_3(%arg0: i32) -> (i32, i32, i32) {
    %c0_i32 = arith.constant 0 : i32
    %c0_i32_0 = arith.constant 0 : i32
    %c0_i32_1 = arith.constant 0 : i32
    %c0_i32_2 = arith.constant 0 : i32
    return %c0_i32, %c0_i32_0, %c0_i32_1 : i32, i32, i32
  }
  func.func @transform_4(%arg0: i32) -> (i32, i32, i32) {
    %c0_i32 = arith.constant 0 : i32
    %c0_i32_0 = arith.constant 0 : i32
    %c0_i32_1 = arith.constant 0 : i32
    %c0_i32_2 = arith.constant 0 : i32
    return %c0_i32, %c0_i32_0, %c0_i32_1 : i32, i32, i32
  }
  func.func @transform_5(%arg0: i32) -> (i32, i32) {
    %c0_i32 = arith.constant 0 : i32
    %c0_i32_0 = arith.constant 0 : i32
    %c0_i32_1 = arith.constant 0 : i32
    return %c0_i32, %c0_i32_0 : i32, i32
  }
  func.func @transform_6(%arg0: i32) -> (i32, i32) {
    %c0_i32 = arith.constant 0 : i32
    %c0_i32_0 = arith.constant 0 : i32
    %c0_i32_1 = arith.constant 0 : i32
    return %c0_i32, %c0_i32_0 : i32, i32
  }
  func.func @transform_7(%arg0: i32) -> (i32, i32) {
    %c0_i32 = arith.constant 0 : i32
    %c0_i32_0 = arith.constant 0 : i32
    %c0_i32_1 = arith.constant 0 : i32
    return %c0_i32, %c0_i32_0 : i32, i32
  }
  func.func @transform_8(%arg0: i32) -> (i32, i32) {
    %c0_i32 = arith.constant 0 : i32
    %c0_i32_0 = arith.constant 0 : i32
    %c0_i32_1 = arith.constant 0 : i32
    return %c0_i32, %c0_i32_0 : i32, i32
  }
  func.func @transform_9(%arg0: i32) -> (i32, i32, i32) {
    %c0_i32 = arith.constant 0 : i32
    %c0_i32_0 = arith.constant 0 : i32
    %c0_i32_1 = arith.constant 0 : i32
    %c0_i32_2 = arith.constant 0 : i32
    return %c0_i32, %c0_i32_0, %c0_i32_1 : i32, i32, i32
  }
  func.func @transform_10(%arg0: i32) -> (i32, i32) {
    %c0_i32 = arith.constant 0 : i32
    %c0_i32_0 = arith.constant 0 : i32
    %c0_i32_1 = arith.constant 0 : i32
    return %c0_i32, %c0_i32_0 : i32, i32
  }
  func.func @transform_11(%arg0: i32) -> (i32, i32) {
    %c0_i32 = arith.constant 0 : i32
    %c0_i32_0 = arith.constant 0 : i32
    return %arg0, %c0_i32 : i32, i32
  }
}

module attributes {stable_mosaic.version = 11 : i64} {
  func.func @kernel(%arg0: i32, %arg1: memref<8x8x128xbf16, #tpu.memory_space<vmem>>, %arg2: memref<3x128x256xbf16, #tpu.memory_space<vmem>>, %arg3: memref<3x256x256xbf16, #tpu.memory_space<vmem>>, %arg4: memref<3x256x256xbf16, #tpu.memory_space<vmem>>, %arg5: memref<3x256x256xbf16, #tpu.memory_space<vmem>>, %arg6: memref<1x256xf32, #tpu.memory_space<vmem>>, %arg7: memref<1x256xf32, #tpu.memory_space<vmem>>, %arg8: memref<1x256xf32, #tpu.memory_space<vmem>>, %arg9: memref<1x256xf32, #tpu.memory_space<vmem>>, %arg10: memref<8x256x128xbf16, #tpu.memory_space<vmem>>, %arg11: memref<1x128xf32, #tpu.memory_space<vmem>>, %arg12: memref<8x128xf32, #tpu.memory_space<vmem>>) attributes {dimension_semantics = [#tpu.dimension_semantics<parallel>], iteration_bounds = array<i64: 1>, scalar_prefetch = 0 : i64, scratch_operands = 0 : i64, tpu.core_type = #tpu.core_type<tc>, window_params = [{transform_indices = @transform_0, window_bounds = array<i64: 8, 8, 128>}, {pipeline_mode = #tpu.pipeline_mode<synchronous>, transform_indices = @transform_1, window_bounds = array<i64: 3, 128, 256>}, {pipeline_mode = #tpu.pipeline_mode<synchronous>, transform_indices = @transform_2, window_bounds = array<i64: 3, 256, 256>}, {pipeline_mode = #tpu.pipeline_mode<synchronous>, transform_indices = @transform_3, window_bounds = array<i64: 3, 256, 256>}, {pipeline_mode = #tpu.pipeline_mode<synchronous>, transform_indices = @transform_4, window_bounds = array<i64: 3, 256, 256>}, {pipeline_mode = #tpu.pipeline_mode<synchronous>, transform_indices = @transform_5, window_bounds = array<i64: 1, 256>}, {pipeline_mode = #tpu.pipeline_mode<synchronous>, transform_indices = @transform_6, window_bounds = array<i64: 1, 256>}, {pipeline_mode = #tpu.pipeline_mode<synchronous>, transform_indices = @transform_7, window_bounds = array<i64: 1, 256>}, {pipeline_mode = #tpu.pipeline_mode<synchronous>, transform_indices = @transform_8, window_bounds = array<i64: 1, 256>}, {pipeline_mode = #tpu.pipeline_mode<synchronous>, transform_indices = @transform_9, window_bounds = array<i64: 8, 256, 128>}, {pipeline_mode = #tpu.pipeline_mode<synchronous>, transform_indices = @transform_10, window_bounds = array<i64: 1, 128>}, {transform_indices = @transform_11, window_bounds = array<i64: 8, 128>}]} {
    %0 = tpu.iota {dimensions = array<i32: 1>} : vector<8x8x1xi32>
    %c1_i32 = arith.constant 1 : i32
    %1 = vector.broadcast %c1_i32 : i32 to vector<8x8x1xi32>
    %2 = arith.cmpi sge, %0, %1 : vector<8x8x1xi32>
    %c7_i32 = arith.constant 7 : i32
    %3 = vector.broadcast %c7_i32 : i32 to vector<8x8x1xi32>
    %4 = arith.cmpi slt, %0, %3 : vector<8x8x1xi32>
    %c0 = arith.constant 0 : index
    %c0_0 = arith.constant 0 : index
    %c0_1 = arith.constant 0 : index
    %5 = vector.load %arg1[%c0, %c0_0, %c0_1] : memref<8x8x128xbf16, #tpu.memory_space<vmem>>, vector<8x8x128xbf16>
    %6 = arith.extf %5 : vector<8x8x128xbf16> to vector<8x8x128xf32>
    %7 = vector.shape_cast %6 : vector<8x8x128xf32> to vector<64x128xf32>
    %8 = arith.truncf %7 : vector<64x128xf32> to vector<64x128xbf16>
    %c1 = arith.constant 1 : index
    %c0_2 = arith.constant 0 : index
    %c0_3 = arith.constant 0 : index
    %9 = vector.load %arg2[%c1, %c0_2, %c0_3] : memref<3x128x256xbf16, #tpu.memory_space<vmem>>, vector<1x128x256xbf16>
    %10 = vector.shape_cast %9 : vector<1x128x256xbf16> to vector<128x256xbf16>
    %cst = arith.constant dense<0.000000e+00> : vector<64x256xf32>
    %11 = tpu.matmul %8, %10, %cst {dimension_numbers = #tpu.dot_dimension_numbers<[1], [0], [0], [1], [0, 0, 1, 1], [], []>} : vector<64x128xbf16>, vector<128x256xbf16>, vector<64x256xf32> -> vector<64x256xf32>
    %c1_i32_4 = arith.constant 1 : i32
    %12 = tpu.dynamic_rotate %6 by %c1_i32_4 dim 1 : vector<8x8x128xf32>, i32 -> vector<8x8x128xf32>
    %cst_5 = arith.constant 0.000000e+00 : f32
    %13 = vector.shape_cast %2 : vector<8x8x1xi1> to vector<8x8x1xi1>
    %14 = vector.broadcast %13 : vector<8x8x1xi1> to vector<8x8x128xi1>
    %15 = vector.broadcast %cst_5 : f32 to vector<8x8x128xf32>
    %16 = arith.select %14, %12, %15 : vector<8x8x128xi1>, vector<8x8x128xf32>
    %17 = vector.shape_cast %16 : vector<8x8x128xf32> to vector<64x128xf32>
    %18 = arith.truncf %17 : vector<64x128xf32> to vector<64x128xbf16>
    %c0_6 = arith.constant 0 : index
    %c0_7 = arith.constant 0 : index
    %c0_8 = arith.constant 0 : index
    %19 = vector.load %arg2[%c0_6, %c0_7, %c0_8] : memref<3x128x256xbf16, #tpu.memory_space<vmem>>, vector<1x128x256xbf16>
    %20 = vector.shape_cast %19 : vector<1x128x256xbf16> to vector<128x256xbf16>
    %cst_9 = arith.constant dense<0.000000e+00> : vector<64x256xf32>
    %21 = tpu.matmul %18, %20, %cst_9 {dimension_numbers = #tpu.dot_dimension_numbers<[1], [0], [0], [1], [0, 0, 1, 1], [], []>} : vector<64x128xbf16>, vector<128x256xbf16>, vector<64x256xf32> -> vector<64x256xf32>
    %22 = arith.addf %11, %21 : vector<64x256xf32>
    %c7_i32_10 = arith.constant 7 : i32
    %23 = tpu.dynamic_rotate %6 by %c7_i32_10 dim 1 : vector<8x8x128xf32>, i32 -> vector<8x8x128xf32>
    %cst_11 = arith.constant 0.000000e+00 : f32
    %24 = vector.shape_cast %4 : vector<8x8x1xi1> to vector<8x8x1xi1>
    %25 = vector.broadcast %24 : vector<8x8x1xi1> to vector<8x8x128xi1>
    %26 = vector.broadcast %cst_11 : f32 to vector<8x8x128xf32>
    %27 = arith.select %25, %23, %26 : vector<8x8x128xi1>, vector<8x8x128xf32>
    %28 = vector.shape_cast %27 : vector<8x8x128xf32> to vector<64x128xf32>
    %29 = arith.truncf %28 : vector<64x128xf32> to vector<64x128xbf16>
    %c2 = arith.constant 2 : index
    %c0_12 = arith.constant 0 : index
    %c0_13 = arith.constant 0 : index
    %30 = vector.load %arg2[%c2, %c0_12, %c0_13] : memref<3x128x256xbf16, #tpu.memory_space<vmem>>, vector<1x128x256xbf16>
    %31 = vector.shape_cast %30 : vector<1x128x256xbf16> to vector<128x256xbf16>
    %cst_14 = arith.constant dense<0.000000e+00> : vector<64x256xf32>
    %32 = tpu.matmul %29, %31, %cst_14 {dimension_numbers = #tpu.dot_dimension_numbers<[1], [0], [0], [1], [0, 0, 1, 1], [], []>} : vector<64x128xbf16>, vector<128x256xbf16>, vector<64x256xf32> -> vector<64x256xf32>
    %33 = arith.addf %22, %32 : vector<64x256xf32>
    %c0_15 = arith.constant 0 : index
    %c0_16 = arith.constant 0 : index
    %34 = vector.load %arg6[%c0_15, %c0_16] : memref<1x256xf32, #tpu.memory_space<vmem>>, vector<1x256xf32>
    %35 = vector.broadcast %34 : vector<1x256xf32> to vector<64x256xf32>
    %36 = arith.addf %33, %35 : vector<64x256xf32>
    %cst_17 = arith.constant 0.000000e+00 : f32
    %37 = vector.broadcast %cst_17 : f32 to vector<64x256xf32>
    %38 = arith.maximumf %36, %37 : vector<64x256xf32>
    %39 = vector.shape_cast %38 : vector<64x256xf32> to vector<8x8x256xf32>
    %40 = vector.shape_cast %39 : vector<8x8x256xf32> to vector<64x256xf32>
    %41 = arith.truncf %40 : vector<64x256xf32> to vector<64x256xbf16>
    %c1_18 = arith.constant 1 : index
    %c0_19 = arith.constant 0 : index
    %c0_20 = arith.constant 0 : index
    %42 = vector.load %arg3[%c1_18, %c0_19, %c0_20] : memref<3x256x256xbf16, #tpu.memory_space<vmem>>, vector<1x256x256xbf16>
    %43 = vector.shape_cast %42 : vector<1x256x256xbf16> to vector<256x256xbf16>
    %cst_21 = arith.constant dense<0.000000e+00> : vector<64x256xf32>
    %44 = tpu.matmul %41, %43, %cst_21 {dimension_numbers = #tpu.dot_dimension_numbers<[1], [0], [0], [1], [0, 0, 1, 1], [], []>} : vector<64x256xbf16>, vector<256x256xbf16>, vector<64x256xf32> -> vector<64x256xf32>
    %c1_i32_22 = arith.constant 1 : i32
    %45 = tpu.dynamic_rotate %39 by %c1_i32_22 dim 1 : vector<8x8x256xf32>, i32 -> vector<8x8x256xf32>
    %cst_23 = arith.constant 0.000000e+00 : f32
    %46 = vector.shape_cast %2 : vector<8x8x1xi1> to vector<8x8x1xi1>
    %47 = vector.broadcast %46 : vector<8x8x1xi1> to vector<8x8x256xi1>
    %48 = vector.broadcast %cst_23 : f32 to vector<8x8x256xf32>
    %49 = arith.select %47, %45, %48 : vector<8x8x256xi1>, vector<8x8x256xf32>
    %50 = vector.shape_cast %49 : vector<8x8x256xf32> to vector<64x256xf32>
    %51 = arith.truncf %50 : vector<64x256xf32> to vector<64x256xbf16>
    %c0_24 = arith.constant 0 : index
    %c0_25 = arith.constant 0 : index
    %c0_26 = arith.constant 0 : index
    %52 = vector.load %arg3[%c0_24, %c0_25, %c0_26] : memref<3x256x256xbf16, #tpu.memory_space<vmem>>, vector<1x256x256xbf16>
    %53 = vector.shape_cast %52 : vector<1x256x256xbf16> to vector<256x256xbf16>
    %cst_27 = arith.constant dense<0.000000e+00> : vector<64x256xf32>
    %54 = tpu.matmul %51, %53, %cst_27 {dimension_numbers = #tpu.dot_dimension_numbers<[1], [0], [0], [1], [0, 0, 1, 1], [], []>} : vector<64x256xbf16>, vector<256x256xbf16>, vector<64x256xf32> -> vector<64x256xf32>
    %55 = arith.addf %44, %54 : vector<64x256xf32>
    %c7_i32_28 = arith.constant 7 : i32
    %56 = tpu.dynamic_rotate %39 by %c7_i32_28 dim 1 : vector<8x8x256xf32>, i32 -> vector<8x8x256xf32>
    %cst_29 = arith.constant 0.000000e+00 : f32
    %57 = vector.shape_cast %4 : vector<8x8x1xi1> to vector<8x8x1xi1>
    %58 = vector.broadcast %57 : vector<8x8x1xi1> to vector<8x8x256xi1>
    %59 = vector.broadcast %cst_29 : f32 to vector<8x8x256xf32>
    %60 = arith.select %58, %56, %59 : vector<8x8x256xi1>, vector<8x8x256xf32>
    %61 = vector.shape_cast %60 : vector<8x8x256xf32> to vector<64x256xf32>
    %62 = arith.truncf %61 : vector<64x256xf32> to vector<64x256xbf16>
    %c2_30 = arith.constant 2 : index
    %c0_31 = arith.constant 0 : index
    %c0_32 = arith.constant 0 : index
    %63 = vector.load %arg3[%c2_30, %c0_31, %c0_32] : memref<3x256x256xbf16, #tpu.memory_space<vmem>>, vector<1x256x256xbf16>
    %64 = vector.shape_cast %63 : vector<1x256x256xbf16> to vector<256x256xbf16>
    %cst_33 = arith.constant dense<0.000000e+00> : vector<64x256xf32>
    %65 = tpu.matmul %62, %64, %cst_33 {dimension_numbers = #tpu.dot_dimension_numbers<[1], [0], [0], [1], [0, 0, 1, 1], [], []>} : vector<64x256xbf16>, vector<256x256xbf16>, vector<64x256xf32> -> vector<64x256xf32>
    %66 = arith.addf %55, %65 : vector<64x256xf32>
    %c0_34 = arith.constant 0 : index
    %c0_35 = arith.constant 0 : index
    %67 = vector.load %arg7[%c0_34, %c0_35] : memref<1x256xf32, #tpu.memory_space<vmem>>, vector<1x256xf32>
    %68 = vector.broadcast %67 : vector<1x256xf32> to vector<64x256xf32>
    %69 = arith.addf %66, %68 : vector<64x256xf32>
    %cst_36 = arith.constant 0.000000e+00 : f32
    %70 = vector.broadcast %cst_36 : f32 to vector<64x256xf32>
    %71 = arith.maximumf %69, %70 : vector<64x256xf32>
    %72 = vector.shape_cast %71 : vector<64x256xf32> to vector<8x8x256xf32>
    %73 = vector.shape_cast %72 : vector<8x8x256xf32> to vector<64x256xf32>
    %74 = arith.truncf %73 : vector<64x256xf32> to vector<64x256xbf16>
    %c1_37 = arith.constant 1 : index
    %c0_38 = arith.constant 0 : index
    %c0_39 = arith.constant 0 : index
    %75 = vector.load %arg4[%c1_37, %c0_38, %c0_39] : memref<3x256x256xbf16, #tpu.memory_space<vmem>>, vector<1x256x256xbf16>
    %76 = vector.shape_cast %75 : vector<1x256x256xbf16> to vector<256x256xbf16>
    %cst_40 = arith.constant dense<0.000000e+00> : vector<64x256xf32>
    %77 = tpu.matmul %74, %76, %cst_40 {dimension_numbers = #tpu.dot_dimension_numbers<[1], [0], [0], [1], [0, 0, 1, 1], [], []>} : vector<64x256xbf16>, vector<256x256xbf16>, vector<64x256xf32> -> vector<64x256xf32>
    %c1_i32_41 = arith.constant 1 : i32
    %78 = tpu.dynamic_rotate %72 by %c1_i32_41 dim 1 : vector<8x8x256xf32>, i32 -> vector<8x8x256xf32>
    %cst_42 = arith.constant 0.000000e+00 : f32
    %79 = vector.shape_cast %2 : vector<8x8x1xi1> to vector<8x8x1xi1>
    %80 = vector.broadcast %79 : vector<8x8x1xi1> to vector<8x8x256xi1>
    %81 = vector.broadcast %cst_42 : f32 to vector<8x8x256xf32>
    %82 = arith.select %80, %78, %81 : vector<8x8x256xi1>, vector<8x8x256xf32>
    %83 = vector.shape_cast %82 : vector<8x8x256xf32> to vector<64x256xf32>
    %84 = arith.truncf %83 : vector<64x256xf32> to vector<64x256xbf16>
    %c0_43 = arith.constant 0 : index
    %c0_44 = arith.constant 0 : index
    %c0_45 = arith.constant 0 : index
    %85 = vector.load %arg4[%c0_43, %c0_44, %c0_45] : memref<3x256x256xbf16, #tpu.memory_space<vmem>>, vector<1x256x256xbf16>
    %86 = vector.shape_cast %85 : vector<1x256x256xbf16> to vector<256x256xbf16>
    %cst_46 = arith.constant dense<0.000000e+00> : vector<64x256xf32>
    %87 = tpu.matmul %84, %86, %cst_46 {dimension_numbers = #tpu.dot_dimension_numbers<[1], [0], [0], [1], [0, 0, 1, 1], [], []>} : vector<64x256xbf16>, vector<256x256xbf16>, vector<64x256xf32> -> vector<64x256xf32>
    %88 = arith.addf %77, %87 : vector<64x256xf32>
    %c7_i32_47 = arith.constant 7 : i32
    %89 = tpu.dynamic_rotate %72 by %c7_i32_47 dim 1 : vector<8x8x256xf32>, i32 -> vector<8x8x256xf32>
    %cst_48 = arith.constant 0.000000e+00 : f32
    %90 = vector.shape_cast %4 : vector<8x8x1xi1> to vector<8x8x1xi1>
    %91 = vector.broadcast %90 : vector<8x8x1xi1> to vector<8x8x256xi1>
    %92 = vector.broadcast %cst_48 : f32 to vector<8x8x256xf32>
    %93 = arith.select %91, %89, %92 : vector<8x8x256xi1>, vector<8x8x256xf32>
    %94 = vector.shape_cast %93 : vector<8x8x256xf32> to vector<64x256xf32>
    %95 = arith.truncf %94 : vector<64x256xf32> to vector<64x256xbf16>
    %c2_49 = arith.constant 2 : index
    %c0_50 = arith.constant 0 : index
    %c0_51 = arith.constant 0 : index
    %96 = vector.load %arg4[%c2_49, %c0_50, %c0_51] : memref<3x256x256xbf16, #tpu.memory_space<vmem>>, vector<1x256x256xbf16>
    %97 = vector.shape_cast %96 : vector<1x256x256xbf16> to vector<256x256xbf16>
    %cst_52 = arith.constant dense<0.000000e+00> : vector<64x256xf32>
    %98 = tpu.matmul %95, %97, %cst_52 {dimension_numbers = #tpu.dot_dimension_numbers<[1], [0], [0], [1], [0, 0, 1, 1], [], []>} : vector<64x256xbf16>, vector<256x256xbf16>, vector<64x256xf32> -> vector<64x256xf32>
    %99 = arith.addf %88, %98 : vector<64x256xf32>
    %c0_53 = arith.constant 0 : index
    %c0_54 = arith.constant 0 : index
    %100 = vector.load %arg8[%c0_53, %c0_54] : memref<1x256xf32, #tpu.memory_space<vmem>>, vector<1x256xf32>
    %101 = vector.broadcast %100 : vector<1x256xf32> to vector<64x256xf32>
    %102 = arith.addf %99, %101 : vector<64x256xf32>
    %cst_55 = arith.constant 0.000000e+00 : f32
    %103 = vector.broadcast %cst_55 : f32 to vector<64x256xf32>
    %104 = arith.maximumf %102, %103 : vector<64x256xf32>
    %105 = vector.shape_cast %104 : vector<64x256xf32> to vector<8x8x256xf32>
    %106 = vector.shape_cast %105 : vector<8x8x256xf32> to vector<64x256xf32>
    %107 = arith.truncf %106 : vector<64x256xf32> to vector<64x256xbf16>
    %c1_56 = arith.constant 1 : index
    %c0_57 = arith.constant 0 : index
    %c0_58 = arith.constant 0 : index
    %108 = vector.load %arg5[%c1_56, %c0_57, %c0_58] : memref<3x256x256xbf16, #tpu.memory_space<vmem>>, vector<1x256x256xbf16>
    %109 = vector.shape_cast %108 : vector<1x256x256xbf16> to vector<256x256xbf16>
    %cst_59 = arith.constant dense<0.000000e+00> : vector<64x256xf32>
    %110 = tpu.matmul %107, %109, %cst_59 {dimension_numbers = #tpu.dot_dimension_numbers<[1], [0], [0], [1], [0, 0, 1, 1], [], []>} : vector<64x256xbf16>, vector<256x256xbf16>, vector<64x256xf32> -> vector<64x256xf32>
    %c1_i32_60 = arith.constant 1 : i32
    %111 = tpu.dynamic_rotate %105 by %c1_i32_60 dim 1 : vector<8x8x256xf32>, i32 -> vector<8x8x256xf32>
    %cst_61 = arith.constant 0.000000e+00 : f32
    %112 = vector.shape_cast %2 : vector<8x8x1xi1> to vector<8x8x1xi1>
    %113 = vector.broadcast %112 : vector<8x8x1xi1> to vector<8x8x256xi1>
    %114 = vector.broadcast %cst_61 : f32 to vector<8x8x256xf32>
    %115 = arith.select %113, %111, %114 : vector<8x8x256xi1>, vector<8x8x256xf32>
    %116 = vector.shape_cast %115 : vector<8x8x256xf32> to vector<64x256xf32>
    %117 = arith.truncf %116 : vector<64x256xf32> to vector<64x256xbf16>
    %c0_62 = arith.constant 0 : index
    %c0_63 = arith.constant 0 : index
    %c0_64 = arith.constant 0 : index
    %118 = vector.load %arg5[%c0_62, %c0_63, %c0_64] : memref<3x256x256xbf16, #tpu.memory_space<vmem>>, vector<1x256x256xbf16>
    %119 = vector.shape_cast %118 : vector<1x256x256xbf16> to vector<256x256xbf16>
    %cst_65 = arith.constant dense<0.000000e+00> : vector<64x256xf32>
    %120 = tpu.matmul %117, %119, %cst_65 {dimension_numbers = #tpu.dot_dimension_numbers<[1], [0], [0], [1], [0, 0, 1, 1], [], []>} : vector<64x256xbf16>, vector<256x256xbf16>, vector<64x256xf32> -> vector<64x256xf32>
    %121 = arith.addf %110, %120 : vector<64x256xf32>
    %c7_i32_66 = arith.constant 7 : i32
    %122 = tpu.dynamic_rotate %105 by %c7_i32_66 dim 1 : vector<8x8x256xf32>, i32 -> vector<8x8x256xf32>
    %cst_67 = arith.constant 0.000000e+00 : f32
    %123 = vector.shape_cast %4 : vector<8x8x1xi1> to vector<8x8x1xi1>
    %124 = vector.broadcast %123 : vector<8x8x1xi1> to vector<8x8x256xi1>
    %125 = vector.broadcast %cst_67 : f32 to vector<8x8x256xf32>
    %126 = arith.select %124, %122, %125 : vector<8x8x256xi1>, vector<8x8x256xf32>
    %127 = vector.shape_cast %126 : vector<8x8x256xf32> to vector<64x256xf32>
    %128 = arith.truncf %127 : vector<64x256xf32> to vector<64x256xbf16>
    %c2_68 = arith.constant 2 : index
    %c0_69 = arith.constant 0 : index
    %c0_70 = arith.constant 0 : index
    %129 = vector.load %arg5[%c2_68, %c0_69, %c0_70] : memref<3x256x256xbf16, #tpu.memory_space<vmem>>, vector<1x256x256xbf16>
    %130 = vector.shape_cast %129 : vector<1x256x256xbf16> to vector<256x256xbf16>
    %cst_71 = arith.constant dense<0.000000e+00> : vector<64x256xf32>
    %131 = tpu.matmul %128, %130, %cst_71 {dimension_numbers = #tpu.dot_dimension_numbers<[1], [0], [0], [1], [0, 0, 1, 1], [], []>} : vector<64x256xbf16>, vector<256x256xbf16>, vector<64x256xf32> -> vector<64x256xf32>
    %132 = arith.addf %121, %131 : vector<64x256xf32>
    %c0_72 = arith.constant 0 : index
    %c0_73 = arith.constant 0 : index
    %133 = vector.load %arg9[%c0_72, %c0_73] : memref<1x256xf32, #tpu.memory_space<vmem>>, vector<1x256xf32>
    %134 = vector.broadcast %133 : vector<1x256xf32> to vector<64x256xf32>
    %135 = arith.addf %132, %134 : vector<64x256xf32>
    %cst_74 = arith.constant 0.000000e+00 : f32
    %136 = vector.broadcast %cst_74 : f32 to vector<64x256xf32>
    %137 = arith.maximumf %135, %136 : vector<64x256xf32>
    %138 = vector.shape_cast %137 : vector<64x256xf32> to vector<8x8x256xf32>
    %139 = vector.extract_strided_slice %138 {offsets = [0, 0, 0], sizes = [8, 1, 256], strides = [1, 1, 1]} : vector<8x8x256xf32> to vector<8x1x256xf32>
    %140 = vector.shape_cast %139 : vector<8x1x256xf32> to vector<8x256xf32>
    %141 = arith.truncf %140 : vector<8x256xf32> to vector<8x256xbf16>
    %c0_75 = arith.constant 0 : index
    %c0_76 = arith.constant 0 : index
    %c0_77 = arith.constant 0 : index
    %142 = vector.load %arg10[%c0_75, %c0_76, %c0_77] : memref<8x256x128xbf16, #tpu.memory_space<vmem>>, vector<1x256x128xbf16>
    %143 = vector.shape_cast %142 : vector<1x256x128xbf16> to vector<256x128xbf16>
    %cst_78 = arith.constant dense<0.000000e+00> : vector<8x128xf32>
    %144 = tpu.matmul %141, %143, %cst_78 {dimension_numbers = #tpu.dot_dimension_numbers<[1], [0], [0], [1], [0, 0, 1, 1], [], []>} : vector<8x256xbf16>, vector<256x128xbf16>, vector<8x128xf32> -> vector<8x128xf32>
    %145 = vector.extract_strided_slice %138 {offsets = [0, 1, 0], sizes = [8, 1, 256], strides = [1, 1, 1]} : vector<8x8x256xf32> to vector<8x1x256xf32>
    %146 = vector.shape_cast %145 : vector<8x1x256xf32> to vector<8x256xf32>
    %147 = arith.truncf %146 : vector<8x256xf32> to vector<8x256xbf16>
    %c1_79 = arith.constant 1 : index
    %c0_80 = arith.constant 0 : index
    %c0_81 = arith.constant 0 : index
    %148 = vector.load %arg10[%c1_79, %c0_80, %c0_81] : memref<8x256x128xbf16, #tpu.memory_space<vmem>>, vector<1x256x128xbf16>
    %149 = vector.shape_cast %148 : vector<1x256x128xbf16> to vector<256x128xbf16>
    %cst_82 = arith.constant dense<0.000000e+00> : vector<8x128xf32>
    %150 = tpu.matmul %147, %149, %cst_82 {dimension_numbers = #tpu.dot_dimension_numbers<[1], [0], [0], [1], [0, 0, 1, 1], [], []>} : vector<8x256xbf16>, vector<256x128xbf16>, vector<8x128xf32> -> vector<8x128xf32>
    %151 = arith.addf %144, %150 : vector<8x128xf32>
    %152 = vector.extract_strided_slice %138 {offsets = [0, 2, 0], sizes = [8, 1, 256], strides = [1, 1, 1]} : vector<8x8x256xf32> to vector<8x1x256xf32>
    %153 = vector.shape_cast %152 : vector<8x1x256xf32> to vector<8x256xf32>
    %154 = arith.truncf %153 : vector<8x256xf32> to vector<8x256xbf16>
    %c2_83 = arith.constant 2 : index
    %c0_84 = arith.constant 0 : index
    %c0_85 = arith.constant 0 : index
    %155 = vector.load %arg10[%c2_83, %c0_84, %c0_85] : memref<8x256x128xbf16, #tpu.memory_space<vmem>>, vector<1x256x128xbf16>
    %156 = vector.shape_cast %155 : vector<1x256x128xbf16> to vector<256x128xbf16>
    %cst_86 = arith.constant dense<0.000000e+00> : vector<8x128xf32>
    %157 = tpu.matmul %154, %156, %cst_86 {dimension_numbers = #tpu.dot_dimension_numbers<[1], [0], [0], [1], [0, 0, 1, 1], [], []>} : vector<8x256xbf16>, vector<256x128xbf16>, vector<8x128xf32> -> vector<8x128xf32>
    %158 = arith.addf %151, %157 : vector<8x128xf32>
    %159 = vector.extract_strided_slice %138 {offsets = [0, 3, 0], sizes = [8, 1, 256], strides = [1, 1, 1]} : vector<8x8x256xf32> to vector<8x1x256xf32>
    %160 = vector.shape_cast %159 : vector<8x1x256xf32> to vector<8x256xf32>
    %161 = arith.truncf %160 : vector<8x256xf32> to vector<8x256xbf16>
    %c3 = arith.constant 3 : index
    %c0_87 = arith.constant 0 : index
    %c0_88 = arith.constant 0 : index
    %162 = vector.load %arg10[%c3, %c0_87, %c0_88] : memref<8x256x128xbf16, #tpu.memory_space<vmem>>, vector<1x256x128xbf16>
    %163 = vector.shape_cast %162 : vector<1x256x128xbf16> to vector<256x128xbf16>
    %cst_89 = arith.constant dense<0.000000e+00> : vector<8x128xf32>
    %164 = tpu.matmul %161, %163, %cst_89 {dimension_numbers = #tpu.dot_dimension_numbers<[1], [0], [0], [1], [0, 0, 1, 1], [], []>} : vector<8x256xbf16>, vector<256x128xbf16>, vector<8x128xf32> -> vector<8x128xf32>
    %165 = arith.addf %158, %164 : vector<8x128xf32>
    %166 = vector.extract_strided_slice %138 {offsets = [0, 4, 0], sizes = [8, 1, 256], strides = [1, 1, 1]} : vector<8x8x256xf32> to vector<8x1x256xf32>
    %167 = vector.shape_cast %166 : vector<8x1x256xf32> to vector<8x256xf32>
    %168 = arith.truncf %167 : vector<8x256xf32> to vector<8x256xbf16>
    %c4 = arith.constant 4 : index
    %c0_90 = arith.constant 0 : index
    %c0_91 = arith.constant 0 : index
    %169 = vector.load %arg10[%c4, %c0_90, %c0_91] : memref<8x256x128xbf16, #tpu.memory_space<vmem>>, vector<1x256x128xbf16>
    %170 = vector.shape_cast %169 : vector<1x256x128xbf16> to vector<256x128xbf16>
    %cst_92 = arith.constant dense<0.000000e+00> : vector<8x128xf32>
    %171 = tpu.matmul %168, %170, %cst_92 {dimension_numbers = #tpu.dot_dimension_numbers<[1], [0], [0], [1], [0, 0, 1, 1], [], []>} : vector<8x256xbf16>, vector<256x128xbf16>, vector<8x128xf32> -> vector<8x128xf32>
    %172 = arith.addf %165, %171 : vector<8x128xf32>
    %173 = vector.extract_strided_slice %138 {offsets = [0, 5, 0], sizes = [8, 1, 256], strides = [1, 1, 1]} : vector<8x8x256xf32> to vector<8x1x256xf32>
    %174 = vector.shape_cast %173 : vector<8x1x256xf32> to vector<8x256xf32>
    %175 = arith.truncf %174 : vector<8x256xf32> to vector<8x256xbf16>
    %c5 = arith.constant 5 : index
    %c0_93 = arith.constant 0 : index
    %c0_94 = arith.constant 0 : index
    %176 = vector.load %arg10[%c5, %c0_93, %c0_94] : memref<8x256x128xbf16, #tpu.memory_space<vmem>>, vector<1x256x128xbf16>
    %177 = vector.shape_cast %176 : vector<1x256x128xbf16> to vector<256x128xbf16>
    %cst_95 = arith.constant dense<0.000000e+00> : vector<8x128xf32>
    %178 = tpu.matmul %175, %177, %cst_95 {dimension_numbers = #tpu.dot_dimension_numbers<[1], [0], [0], [1], [0, 0, 1, 1], [], []>} : vector<8x256xbf16>, vector<256x128xbf16>, vector<8x128xf32> -> vector<8x128xf32>
    %179 = arith.addf %172, %178 : vector<8x128xf32>
    %180 = vector.extract_strided_slice %138 {offsets = [0, 6, 0], sizes = [8, 1, 256], strides = [1, 1, 1]} : vector<8x8x256xf32> to vector<8x1x256xf32>
    %181 = vector.shape_cast %180 : vector<8x1x256xf32> to vector<8x256xf32>
    %182 = arith.truncf %181 : vector<8x256xf32> to vector<8x256xbf16>
    %c6 = arith.constant 6 : index
    %c0_96 = arith.constant 0 : index
    %c0_97 = arith.constant 0 : index
    %183 = vector.load %arg10[%c6, %c0_96, %c0_97] : memref<8x256x128xbf16, #tpu.memory_space<vmem>>, vector<1x256x128xbf16>
    %184 = vector.shape_cast %183 : vector<1x256x128xbf16> to vector<256x128xbf16>
    %cst_98 = arith.constant dense<0.000000e+00> : vector<8x128xf32>
    %185 = tpu.matmul %182, %184, %cst_98 {dimension_numbers = #tpu.dot_dimension_numbers<[1], [0], [0], [1], [0, 0, 1, 1], [], []>} : vector<8x256xbf16>, vector<256x128xbf16>, vector<8x128xf32> -> vector<8x128xf32>
    %186 = arith.addf %179, %185 : vector<8x128xf32>
    %187 = vector.extract_strided_slice %138 {offsets = [0, 7, 0], sizes = [8, 1, 256], strides = [1, 1, 1]} : vector<8x8x256xf32> to vector<8x1x256xf32>
    %188 = vector.shape_cast %187 : vector<8x1x256xf32> to vector<8x256xf32>
    %189 = arith.truncf %188 : vector<8x256xf32> to vector<8x256xbf16>
    %c7 = arith.constant 7 : index
    %c0_99 = arith.constant 0 : index
    %c0_100 = arith.constant 0 : index
    %190 = vector.load %arg10[%c7, %c0_99, %c0_100] : memref<8x256x128xbf16, #tpu.memory_space<vmem>>, vector<1x256x128xbf16>
    %191 = vector.shape_cast %190 : vector<1x256x128xbf16> to vector<256x128xbf16>
    %cst_101 = arith.constant dense<0.000000e+00> : vector<8x128xf32>
    %192 = tpu.matmul %189, %191, %cst_101 {dimension_numbers = #tpu.dot_dimension_numbers<[1], [0], [0], [1], [0, 0, 1, 1], [], []>} : vector<8x256xbf16>, vector<256x128xbf16>, vector<8x128xf32> -> vector<8x128xf32>
    %193 = arith.addf %186, %192 : vector<8x128xf32>
    %c0_102 = arith.constant 0 : index
    %c0_103 = arith.constant 0 : index
    %194 = vector.load %arg11[%c0_102, %c0_103] : memref<1x128xf32, #tpu.memory_space<vmem>>, vector<1x128xf32>
    %195 = vector.broadcast %194 : vector<1x128xf32> to vector<8x128xf32>
    %196 = arith.addf %193, %195 : vector<8x128xf32>
    %cst_104 = arith.constant 0.000000e+00 : f32
    %197 = vector.broadcast %cst_104 : f32 to vector<8x128xf32>
    %198 = arith.maximumf %196, %197 : vector<8x128xf32>
    %c0_105 = arith.constant 0 : index
    %c0_106 = arith.constant 0 : index
    %199 = vector.load %arg12[%c0_105, %c0_106] : memref<8x128xf32, #tpu.memory_space<vmem>>, vector<8x128xf32>
    tpu.vector_store %arg12[%c0_105, %c0_106], %198 {strides = array<i32>} : memref<8x128xf32, #tpu.memory_space<vmem>>, vector<8x128xf32>,
    return
  }
  func.func @transform_0(%arg0: i32) -> (i32, i32, i32) {
    %c0_i32 = arith.constant 0 : i32
    %c0_i32_0 = arith.constant 0 : i32
    %c0_i32_1 = arith.constant 0 : i32
    return %arg0, %c0_i32, %c0_i32_0 : i32, i32, i32
  }
  func.func @transform_1(%arg0: i32) -> (i32, i32, i32) {
    %c0_i32 = arith.constant 0 : i32
    %c0_i32_0 = arith.constant 0 : i32
    %c0_i32_1 = arith.constant 0 : i32
    %c0_i32_2 = arith.constant 0 : i32
    return %c0_i32, %c0_i32_0, %c0_i32_1 : i32, i32, i32
  }
  func.func @transform_2(%arg0: i32) -> (i32, i32, i32) {
    %c0_i32 = arith.constant 0 : i32
    %c0_i32_0 = arith.constant 0 : i32
    %c0_i32_1 = arith.constant 0 : i32
    %c0_i32_2 = arith.constant 0 : i32
    return %c0_i32, %c0_i32_0, %c0_i32_1 : i32, i32, i32
  }
  func.func @transform_3(%arg0: i32) -> (i32, i32, i32) {
    %c0_i32 = arith.constant 0 : i32
    %c0_i32_0 = arith.constant 0 : i32
    %c0_i32_1 = arith.constant 0 : i32
    %c0_i32_2 = arith.constant 0 : i32
    return %c0_i32, %c0_i32_0, %c0_i32_1 : i32, i32, i32
  }
  func.func @transform_4(%arg0: i32) -> (i32, i32, i32) {
    %c0_i32 = arith.constant 0 : i32
    %c0_i32_0 = arith.constant 0 : i32
    %c0_i32_1 = arith.constant 0 : i32
    %c0_i32_2 = arith.constant 0 : i32
    return %c0_i32, %c0_i32_0, %c0_i32_1 : i32, i32, i32
  }
  func.func @transform_5(%arg0: i32) -> (i32, i32) {
    %c0_i32 = arith.constant 0 : i32
    %c0_i32_0 = arith.constant 0 : i32
    %c0_i32_1 = arith.constant 0 : i32
    return %c0_i32, %c0_i32_0 : i32, i32
  }
  func.func @transform_6(%arg0: i32) -> (i32, i32) {
    %c0_i32 = arith.constant 0 : i32
    %c0_i32_0 = arith.constant 0 : i32
    %c0_i32_1 = arith.constant 0 : i32
    return %c0_i32, %c0_i32_0 : i32, i32
  }
  func.func @transform_7(%arg0: i32) -> (i32, i32) {
    %c0_i32 = arith.constant 0 : i32
    %c0_i32_0 = arith.constant 0 : i32
    %c0_i32_1 = arith.constant 0 : i32
    return %c0_i32, %c0_i32_0 : i32, i32
  }
  func.func @transform_8(%arg0: i32) -> (i32, i32) {
    %c0_i32 = arith.constant 0 : i32
    %c0_i32_0 = arith.constant 0 : i32
    %c0_i32_1 = arith.constant 0 : i32
    return %c0_i32, %c0_i32_0 : i32, i32
  }
  func.func @transform_9(%arg0: i32) -> (i32, i32, i32) {
    %c0_i32 = arith.constant 0 : i32
    %c0_i32_0 = arith.constant 0 : i32
    %c0_i32_1 = arith.constant 0 : i32
    %c0_i32_2 = arith.constant 0 : i32
    return %c0_i32, %c0_i32_0, %c0_i32_1 : i32, i32, i32
  }
  func.func @transform_10(%arg0: i32) -> (i32, i32) {
    %c0_i32 = arith.constant 0 : i32
    %c0_i32_0 = arith.constant 0 : i32
    %c0_i32_1 = arith.constant 0 : i32
    return %c0_i32, %c0_i32_0 : i32, i32
  }
  func.func @transform_11(%arg0: i32) -> (i32, i32) {
    %c0_i32 = arith.constant 0 : i32
    %c0_i32_0 = arith.constant 0 : i32
    return %arg0, %c0_i32 : i32, i32
  }
}

</mosaic_0001>

<llo_original>
// kernel: tpu_custom_call.1
$region0: #{tpu_custom_call.1}
  #allocation0 [shape = 'u32[]', space=smem, size = 0x4, offset = 0x4, fixed_abs, tag = 'smem constant byte address 0x4 - core index']
  #allocation1 [shape = 'u32[144,128]{1,0:T(1,128)}', space=vmem, size = 0x12000, scoped, tag = 'internal scratch']
  %s0 = inlined_call_operand.hbm [shape: bf16[8,8,128], index: 0, kind: input, shape index: {}]
  %s1 = inlined_call_operand.hbm [shape: bf16[3,128,256], index: 1, kind: input, shape index: {}]
  %s2 = inlined_call_operand.hbm [shape: bf16[3,256,256], index: 2, kind: input, shape index: {}]
  %s3 = inlined_call_operand.hbm [shape: bf16[3,256,256], index: 3, kind: input, shape index: {}]
  %s4 = inlined_call_operand.hbm [shape: bf16[3,256,256], index: 4, kind: input, shape index: {}]
  %s5 = inlined_call_operand.hbm [shape: f32[1,256], index: 5, kind: input, shape index: {}]
  %s6 = inlined_call_operand.hbm [shape: f32[1,256], index: 6, kind: input, shape index: {}]
  %s7 = inlined_call_operand.hbm [shape: f32[1,256], index: 7, kind: input, shape index: {}]
  %s8 = inlined_call_operand.hbm [shape: f32[1,256], index: 8, kind: input, shape index: {}]
  %s9 = inlined_call_operand.hbm [shape: bf16[8,256,128], index: 9, kind: input, shape index: {}]
  %s10 = inlined_call_operand.hbm [shape: f32[1,128], index: 10, kind: input, shape index: {}]
  %s11 = inlined_call_operand.hbm [shape: f32[8,128], index: 11, kind: output, shape index: {}]
  %s12 = sld [smem:[#allocation0]]
  $region98: #{tpu_custom_call.1} parent=0
    _
  %s14 = ssub.s32 1, %s12
  %s15 = scalar_select 0, %s14, %s12
  $region1: #{tpu_custom_call.1} parent=0
    #allocation2 [shape = 'u8[16384]{0}', space=vmem, size = 0x4000, scoped, tag = 'input window, operand 0, single buffered']
    #allocation3 [shape = 's32[1]{0}', space=sflag, size = 0x4, scoped, tag = 'scoped memory for tpu_custom_call.1']
    #allocation4 [shape = 's32[1]{0}', space=sflag, size = 0x4, scoped, tag = 'scoped memory for tpu_custom_call.1']
    #allocation5 [shape = 'u8[196608]{0}', space=vmem, size = 0x30000, scoped, tag = 'input window, operand 1, single buffered']
    #allocation6 [shape = 's32[1]{0}', space=sflag, size = 0x4, scoped, tag = 'scoped memory for tpu_custom_call.1']
    #allocation7 [shape = 'u8[393216]{0}', space=vmem, size = 0x60000, scoped, tag = 'input window, operand 2, single buffered']
    #allocation8 [shape = 'u8[393216]{0}', space=vmem, size = 0x60000, scoped, tag = 'input window, operand 3, single buffered']
    #allocation9 [shape = 's32[1]{0}', space=sflag, size = 0x4, scoped, tag = 'scoped memory for tpu_custom_call.1']
    #allocation10 [shape = 'u8[393216]{0}', space=vmem, size = 0x60000, scoped, tag = 'input window, operand 4, single buffered']
    #allocation11 [shape = 'u8[1024]{0}', space=vmem, size = 0x400, scoped, tag = 'input window, operand 5, single buffered']
    #allocation12 [shape = 's32[1]{0}', space=sflag, size = 0x4, scoped, tag = 'scoped memory for tpu_custom_call.1']
    #allocation13 [shape = 'u8[1024]{0}', space=vmem, size = 0x400, scoped, tag = 'input window, operand 6, single buffered']
    #allocation14 [shape = 'u8[1024]{0}', space=vmem, size = 0x400, scoped, tag = 'input window, operand 7, single buffered']
    #allocation15 [shape = 's32[1]{0}', space=sflag, size = 0x4, scoped, tag = 'scoped memory for tpu_custom_call.1']
    #allocation16 [shape = 'u8[1024]{0}', space=vmem, size = 0x400, scoped, tag = 'input window, operand 8, single buffered']
    #allocation17 [shape = 'u8[524288]{0}', space=vmem, size = 0x80000, scoped, tag = 'input window, operand 9, single buffered']
    #allocation18 [shape = 's32[1]{0}', space=sflag, size = 0x4, scoped, tag = 'scoped memory for tpu_custom_call.1']
    #allocation19 [shape = 'u8[512]{0}', space=vmem, size = 0x400, scoped, tag = 'input window, operand 10, single buffered']
    #allocation20 [shape = 'u8[4096]{0}', space=vmem, size = 0x1000, scoped, tag = 'output window, operand 0, single buffered']
    %16 = vsyncpa [#allocation3], 0
    %17 = vsyncpa [#allocation6], 0
    %18 = vsyncpa [#allocation9], 0
    %19 = vsyncpa [#allocation12], 0
    %20 = vsyncpa [#allocation15], 0
    %21 = vsyncpa [#allocation18], 0
    %22 = vsyncpa [#allocation4], 0
    // Predicated region
    $region2: #{tpu_custom_call.1} parent=1 // pred_check
      _
    $region3: #{tpu_custom_call.1} parent=1 // pred_check_branch
      %24 = sbr.rel (0) target = $region5
    $region4: #{tpu_custom_call.1} parent=1 // pred_region
      %s26 = ssub.s32 512, 512
      %27 = vsyncadd [#allocation3], %s26
      %s28 = sshll.u32 [#allocation2], 4
      %s29 = int_to_ptr.vmem [resolvable:$true] %s28
      %34 = dma.hbm_to_vmem [thread:$0]  %s0, 512, %s29, [#allocation3], 64, 64, 4
    $region5: #{tpu_custom_call.1} parent=1 // pred_fallthru
      _
    // Predicated region
    $region6: #{tpu_custom_call.1} parent=1 // pred_check
      _
    $region7: #{tpu_custom_call.1} parent=1 // pred_check_branch
      %36 = sbr.rel (0) target = $region9
    $region8: #{tpu_custom_call.1} parent=1 // pred_region
      %s38 = ssub.s32 6144, 6144
      %39 = vsyncadd [#allocation6], %s38
      %s40 = sshll.u32 [#allocation5], 4
      %s41 = int_to_ptr.vmem [resolvable:$true] %s40
      %46 = dma.hbm_to_vmem [thread:$0]  %s1, 6144, %s41, [#allocation6], 128, 128, 8
    $region9: #{tpu_custom_call.1} parent=1 // pred_fallthru
      _
    // Predicated region
    $region10: #{tpu_custom_call.1} parent=1 // pred_check
      _
    $region11: #{tpu_custom_call.1} parent=1 // pred_check_branch
      %48 = sbr.rel (0) target = $region13
    $region12: #{tpu_custom_call.1} parent=1 // pred_region
      %s50 = ssub.s32 12288, 12288
      %51 = vsyncadd [#allocation6], %s50
      %s52 = sshll.u32 [#allocation7], 4
      %s53 = int_to_ptr.vmem [resolvable:$true] %s52
      %58 = dma.hbm_to_vmem [thread:$0]  %s2, 12288, %s53, [#allocation6], 128, 128, 8
    $region13: #{tpu_custom_call.1} parent=1 // pred_fallthru
      _
    // Predicated region
    $region14: #{tpu_custom_call.1} parent=1 // pred_check
      _
    $region15: #{tpu_custom_call.1} parent=1 // pred_check_branch
      %60 = sbr.rel (0) target = $region17
    $region16: #{tpu_custom_call.1} parent=1 // pred_region
      %s62 = ssub.s32 12288, 12288
      %63 = vsyncadd [#allocation9], %s62
      %s64 = sshll.u32 [#allocation8], 4
      %s65 = int_to_ptr.vmem [resolvable:$true] %s64
      %70 = dma.hbm_to_vmem [thread:$0]  %s3, 12288, %s65, [#allocation9], 128, 128, 8
    $region17: #{tpu_custom_call.1} parent=1 // pred_fallthru
      _
    // Predicated region
    $region18: #{tpu_custom_call.1} parent=1 // pred_check
      _
    $region19: #{tpu_custom_call.1} parent=1 // pred_check_branch
      %72 = sbr.rel (0) target = $region21
    $region20: #{tpu_custom_call.1} parent=1 // pred_region
      %s74 = ssub.s32 12288, 12288
      %75 = vsyncadd [#allocation9], %s74
      %s76 = sshll.u32 [#allocation10], 4
      %s77 = int_to_ptr.vmem [resolvable:$true] %s76
      %82 = dma.hbm_to_vmem [thread:$0]  %s4, 12288, %s77, [#allocation9], 128, 128, 8
    $region21: #{tpu_custom_call.1} parent=1 // pred_fallthru
      _
    // Predicated region
    $region22: #{tpu_custom_call.1} parent=1 // pred_check
      _
    $region23: #{tpu_custom_call.1} parent=1 // pred_check_branch
      %84 = sbr.rel (0) target = $region25
    $region24: #{tpu_custom_call.1} parent=1 // pred_region
      %s86 = ssub.s32 32, 32
      %87 = vsyncadd [#allocation12], %s86
      %s89 = sshll.u32 [#allocation11], 4
      %s90 = int_to_ptr.vmem [resolvable:$true] %s89
      %92 = dma.hbm_to_vmem [thread:$0]  %s5, 32, %s90, [#allocation12]
    $region25: #{tpu_custom_call.1} parent=1 // pred_fallthru
      _
    // Predicated region
    $region26: #{tpu_custom_call.1} parent=1 // pred_check
      _
    $region27: #{tpu_custom_call.1} parent=1 // pred_check_branch
      %94 = sbr.rel (0) target = $region29
    $region28: #{tpu_custom_call.1} parent=1 // pred_region
      %s96 = ssub.s32 32, 32
      %97 = vsyncadd [#allocation12], %s96
      %s99 = sshll.u32 [#allocation13], 4
      %s100 = int_to_ptr.vmem [resolvable:$true] %s99
      %102 = dma.hbm_to_vmem [thread:$0]  %s6, 32, %s100, [#allocation12]
    $region29: #{tpu_custom_call.1} parent=1 // pred_fallthru
      _
    // Predicated region
    $region30: #{tpu_custom_call.1} parent=1 // pred_check
      _
    $region31: #{tpu_custom_call.1} parent=1 // pred_check_branch
      %104 = sbr.rel (0) target = $region33
    $region32: #{tpu_custom_call.1} parent=1 // pred_region
      %s106 = ssub.s32 32, 32
      %107 = vsyncadd [#allocation15], %s106
      %s109 = sshll.u32 [#allocation14], 4
      %s110 = int_to_ptr.vmem [resolvable:$true] %s109
      %112 = dma.hbm_to_vmem [thread:$0]  %s7, 32, %s110, [#allocation15]
    $region33: #{tpu_custom_call.1} parent=1 // pred_fallthru
      _
    // Predicated region
    $region34: #{tpu_custom_call.1} parent=1 // pred_check
      _
    $region35: #{tpu_custom_call.1} parent=1 // pred_check_branch
      %114 = sbr.rel (0) target = $region37
    $region36: #{tpu_custom_call.1} parent=1 // pred_region
      %s116 = ssub.s32 32, 32
      %117 = vsyncadd [#allocation15], %s116
      %s119 = sshll.u32 [#allocation16], 4
      %s120 = int_to_ptr.vmem [resolvable:$true] %s119
      %122 = dma.hbm_to_vmem [thread:$0]  %s8, 32, %s120, [#allocation15]
    $region37: #{tpu_custom_call.1} parent=1 // pred_fallthru
      _
    // Predicated region
    $region38: #{tpu_custom_call.1} parent=1 // pred_check
      _
    $region39: #{tpu_custom_call.1} parent=1 // pred_check_branch
      %124 = sbr.rel (0) target = $region41
    $region40: #{tpu_custom_call.1} parent=1 // pred_region
      %s126 = ssub.s32 16384, 16384
      %127 = vsyncadd [#allocation18], %s126
      %s128 = sshll.u32 [#allocation17], 4
      %s129 = int_to_ptr.vmem [resolvable:$true] %s128
      %134 = dma.hbm_to_vmem [thread:$0]  %s9, 16384, %s129, [#allocation18], 64, 64, 4
    $region41: #{tpu_custom_call.1} parent=1 // pred_fallthru
      _
    // Predicated region
    $region42: #{tpu_custom_call.1} parent=1 // pred_check
      _
    $region43: #{tpu_custom_call.1} parent=1 // pred_check_branch
      %136 = sbr.rel (0) target = $region45
    $region44: #{tpu_custom_call.1} parent=1 // pred_region
      %s138 = ssub.s32 16, 16
      %139 = vsyncadd [#allocation18], %s138
      %s141 = sshll.u32 [#allocation19], 4
      %s142 = int_to_ptr.vmem [resolvable:$true] %s141
      %144 = dma.hbm_to_vmem [thread:$0]  %s10, 16, %s142, [#allocation18]
    $region45: #{tpu_custom_call.1} parent=1 // pred_fallthru
      _
    // Predicated region
    $region46: #{tpu_custom_call.1} parent=1 // pred_check
      _
    $region47: #{tpu_custom_call.1} parent=1 // pred_check_branch
      %146 = sbr.rel (0) target = $region49
    $region48: #{tpu_custom_call.1} parent=1 // pred_region
      %147 = dma.done [#allocation3], 512
    $region49: #{tpu_custom_call.1} parent=1 // pred_fallthru
      _
    // Predicated region
    $region50: #{tpu_custom_call.1} parent=1 // pred_check
      _
    $region51: #{tpu_custom_call.1} parent=1 // pred_check_branch
      %149 = sbr.rel (0) target = $region53
    $region52: #{tpu_custom_call.1} parent=1 // pred_region
      %150 = dma.done [#allocation6], 6144
    $region53: #{tpu_custom_call.1} parent=1 // pred_fallthru
      _
    // Predicated region
    $region54: #{tpu_custom_call.1} parent=1 // pred_check
      _
    $region55: #{tpu_custom_call.1} parent=1 // pred_check_branch
      %152 = sbr.rel (0) target = $region57
    $region56: #{tpu_custom_call.1} parent=1 // pred_region
      %153 = dma.done [#allocation6], 12288
    $region57: #{tpu_custom_call.1} parent=1 // pred_fallthru
      _
    // Predicated region
    $region58: #{tpu_custom_call.1} parent=1 // pred_check
      _
    $region59: #{tpu_custom_call.1} parent=1 // pred_check_branch
      %155 = sbr.rel (0) target = $region61
    $region60: #{tpu_custom_call.1} parent=1 // pred_region
      %156 = dma.done [#allocation9], 12288
    $region61: #{tpu_custom_call.1} parent=1 // pred_fallthru
      _
    // Predicated region
    $region62: #{tpu_custom_call.1} parent=1 // pred_check
      _
    $region63: #{tpu_custom_call.1} parent=1 // pred_check_branch
      %158 = sbr.rel (0) target = $region65
    $region64: #{tpu_custom_call.1} parent=1 // pred_region
      %159 = dma.done [#allocation9], 12288
    $region65: #{tpu_custom_call.1} parent=1 // pred_fallthru
      _
    // Predicated region
    $region66: #{tpu_custom_call.1} parent=1 // pred_check
      _
    $region67: #{tpu_custom_call.1} parent=1 // pred_check_branch
      %161 = sbr.rel (0) target = $region69
    $region68: #{tpu_custom_call.1} parent=1 // pred_region
      %162 = dma.done [#allocation12], 32
    $region69: #{tpu_custom_call.1} parent=1 // pred_fallthru
      _
    // Predicated region
    $region70: #{tpu_custom_call.1} parent=1 // pred_check
      _
    $region71: #{tpu_custom_call.1} parent=1 // pred_check_branch
      %164 = sbr.rel (0) target = $region73
    $region72: #{tpu_custom_call.1} parent=1 // pred_region
      %165 = dma.done [#allocation12], 32
    $region73: #{tpu_custom_call.1} parent=1 // pred_fallthru
      _
    // Predicated region
    $region74: #{tpu_custom_call.1} parent=1 // pred_check
      _
    $region75: #{tpu_custom_call.1} parent=1 // pred_check_branch
      %167 = sbr.rel (0) target = $region77
    $region76: #{tpu_custom_call.1} parent=1 // pred_region
      %168 = dma.done [#allocation15], 32
    $region77: #{tpu_custom_call.1} parent=1 // pred_fallthru
      _
    // Predicated region
    $region78: #{tpu_custom_call.1} parent=1 // pred_check
      _
    $region79: #{tpu_custom_call.1} parent=1 // pred_check_branch
      %170 = sbr.rel (0) target = $region81
    $region80: #{tpu_custom_call.1} parent=1 // pred_region
      %171 = dma.done [#allocation15], 32
    $region81: #{tpu_custom_call.1} parent=1 // pred_fallthru
      _
    // Predicated region
    $region82: #{tpu_custom_call.1} parent=1 // pred_check
      _
    $region83: #{tpu_custom_call.1} parent=1 // pred_check_branch
      %173 = sbr.rel (0) target = $region85
    $region84: #{tpu_custom_call.1} parent=1 // pred_region
      %174 = dma.done [#allocation18], 16384
    $region85: #{tpu_custom_call.1} parent=1 // pred_fallthru
      _
    // Predicated region
    $region86: #{tpu_custom_call.1} parent=1 // pred_check
      _
    $region87: #{tpu_custom_call.1} parent=1 // pred_check_branch
      %176 = sbr.rel (0) target = $region89
    $region88: #{tpu_custom_call.1} parent=1 // pred_region
      %177 = dma.done [#allocation18], 16
    $region89: #{tpu_custom_call.1} parent=1 // pred_fallthru
      _
    %v179 = vlaneseq
    %v180 = vshrl.u32 %v179, 7
    %vm181 = vcmp.ge.s32.totalorder %v180, 1
    %vm182 = vcmp.lt.s32.totalorder %v180, 7
    %v183 = vld [vmem:[#allocation2] sm:$0xf]
    %v184 = vld [vmem:[#allocation2 + $0x4] sm:$0xf]
    %v185 = vld [vmem:[#allocation2 + $0x8] sm:$0xf]
    %v186 = vld [vmem:[#allocation2 + $0xc] sm:$0xf]
    %v187 = vld [vmem:[#allocation2 + $0x10] sm:$0xf]
    %v188 = vld [vmem:[#allocation2 + $0x14] sm:$0xf]
    %v189 = vld [vmem:[#allocation2 + $0x18] sm:$0xf]
    %v190 = vld [vmem:[#allocation2 + $0x1c] sm:$0xf]
    %v191 = vunpack.c.l.bf16 %v183
    %v192 = vunpack.c.l.bf16 %v184
    %v193 = vunpack.c.l.bf16 %v185
    %v194 = vunpack.c.l.bf16 %v186
    %v195 = vunpack.c.l.bf16 %v187
    %v196 = vunpack.c.l.bf16 %v188
    %v197 = vunpack.c.l.bf16 %v189
    %v198 = vunpack.c.l.bf16 %v190
    %v199 = vpack.c.bf16 %v192, %v191
    %v200 = vpack.c.bf16 %v194, %v193
    %v201 = vpack.c.bf16 %v196, %v195
    %v202 = vpack.c.bf16 %v198, %v197
    %s203 = scalar_lea.vmem [#allocation5], 128
    %v204 = vld [vmem:[%s203] sm:$0xff]
    %v205 = vld [vmem:[%s203 + $0x8] sm:$0xff]
    %v206 = vld [vmem:[%s203 + $0x10] sm:$0xff]
    %v207 = vld [vmem:[%s203 + $0x18] sm:$0xff]
    %v208 = vld [vmem:[%s203 + $0x20] sm:$0xff]
    %v209 = vld [vmem:[%s203 + $0x28] sm:$0xff]
    %v210 = vld [vmem:[%s203 + $0x30] sm:$0xff]
    %v211 = vld [vmem:[%s203 + $0x38] sm:$0xff]
    %v212 = vld [vmem:[%s203 + $0x40] sm:$0xff]
    %v213 = vld [vmem:[%s203 + $0x48] sm:$0xff]
    %v214 = vld [vmem:[%s203 + $0x50] sm:$0xff]
    %v215 = vld [vmem:[%s203 + $0x58] sm:$0xff]
    %v216 = vld [vmem:[%s203 + $0x60] sm:$0xff]
    %v217 = vld [vmem:[%s203 + $0x68] sm:$0xff]
    %v218 = vld [vmem:[%s203 + $0x70] sm:$0xff]
    %v219 = vld [vmem:[%s203 + $0x78] sm:$0xff]
    %v220 = vrot.slane %v191, 7
    %v221 = vrot.slane %v192, 7
    %v222 = vrot.slane %v193, 7
    %v223 = vrot.slane %v194, 7
    %v224 = vrot.slane %v195, 7
    %v225 = vrot.slane %v196, 7
    %v226 = vrot.slane %v197, 7
    %v227 = vrot.slane %v198, 7
    %v228 = vsel %vm181, 1, 0
    %vm229 = vcmp.eq.s32.totalorder %v228, 1
    %v230 = vsel %vm229, %v220, 0.0
    %v231 = vsel %vm229, %v221, 0.0
    %v232 = vsel %vm229, %v222, 0.0
    %v233 = vsel %vm229, %v223, 0.0
    %v234 = vsel %vm229, %v224, 0.0
    %v235 = vsel %vm229, %v225, 0.0
    %v236 = vsel %vm229, %v226, 0.0
    %v237 = vsel %vm229, %v227, 0.0
    %v238 = vpack.c.bf16 %v231, %v230
    %v239 = vpack.c.bf16 %v233, %v232
    %v240 = vpack.c.bf16 %v235, %v234
    %v241 = vpack.c.bf16 %v237, %v236
    %v242 = vld [vmem:[#allocation5] sm:$0xff]
    %v243 = vld [vmem:[#allocation5 + $0x8] sm:$0xff]
    %v244 = vld [vmem:[#allocation5 + $0x10] sm:$0xff]
    %v245 = vld [vmem:[#allocation5 + $0x18] sm:$0xff]
    %v246 = vld [vmem:[#allocation5 + $0x20] sm:$0xff]
    %v247 = vld [vmem:[#allocation5 + $0x28] sm:$0xff]
    %v248 = vld [vmem:[#allocation5 + $0x30] sm:$0xff]
    %v249 = vld [vmem:[#allocation5 + $0x38] sm:$0xff]
    %v250 = vld [vmem:[#allocation5 + $0x40] sm:$0xff]
    %v251 = vld [vmem:[#allocation5 + $0x48] sm:$0xff]
    %v252 = vld [vmem:[#allocation5 + $0x50] sm:$0xff]
    %v253 = vld [vmem:[#allocation5 + $0x58] sm:$0xff]
    %v254 = vld [vmem:[#allocation5 + $0x60] sm:$0xff]
    %v255 = vld [vmem:[#allocation5 + $0x68] sm:$0xff]
    %v256 = vld [vmem:[#allocation5 + $0x70] sm:$0xff]
    %v257 = vld [vmem:[#allocation5 + $0x78] sm:$0xff]
    %v274 = vunpack.c.l.b16 %v242
    %v275 = vunpack.c.h.b16 %v242
    %v276 = vunpack.c.l.b16 %v243
    %v277 = vunpack.c.h.b16 %v243
    %v278 = vunpack.c.l.b16 %v244
    %v279 = vunpack.c.h.b16 %v244
    %v280 = vunpack.c.l.b16 %v245
    %v281 = vunpack.c.h.b16 %v245
    %v282 = vunpack.c.l.b16 %v246
    %v283 = vunpack.c.h.b16 %v246
    %v284 = vunpack.c.l.b16 %v247
    %v285 = vunpack.c.h.b16 %v247
    %v286 = vunpack.c.l.b16 %v248
    %v287 = vunpack.c.h.b16 %v248
    %v288 = vunpack.c.l.b16 %v249
    %v289 = vunpack.c.h.b16 %v249
    %v290 = vunpack.c.l.b16 %v250
    %v291 = vunpack.c.h.b16 %v250
    %v292 = vunpack.c.l.b16 %v251
    %v293 = vunpack.c.h.b16 %v251
    %v294 = vunpack.c.l.b16 %v252
    %v295 = vunpack.c.h.b16 %v252
    %v296 = vunpack.c.l.b16 %v253
    %v297 = vunpack.c.h.b16 %v253
    %v298 = vunpack.c.l.b16 %v254
    %v299 = vunpack.c.h.b16 %v254
    %v300 = vunpack.c.l.b16 %v255
    %v301 = vunpack.c.h.b16 %v255
    %v302 = vunpack.c.l.b16 %v256
    %v303 = vunpack.c.h.b16 %v256
    %v304 = vunpack.c.l.b16 %v257
    %v305 = vunpack.c.h.b16 %v257
    %v306 = vpack.c.b16 %v276, %v274
    %v307 = vpack.c.b16 %v277, %v275
    %v308 = vpack.c.b16 %v280, %v278
    %v309 = vpack.c.b16 %v281, %v279
    %v310 = vpack.c.b16 %v284, %v282
    %v311 = vpack.c.b16 %v285, %v283
    %v312 = vpack.c.b16 %v288, %v286
    %v313 = vpack.c.b16 %v289, %v287
    %v314 = vpack.c.b16 %v292, %v290
    %v315 = vpack.c.b16 %v293, %v291
    %v316 = vpack.c.b16 %v296, %v294
    %v317 = vpack.c.b16 %v297, %v295
    %v318 = vpack.c.b16 %v300, %v298
    %v319 = vpack.c.b16 %v301, %v299
    %v320 = vpack.c.b16 %v304, %v302
    %v321 = vpack.c.b16 %v305, %v303
    %338 = vmatprep.subr.bf16.mxu0 %v307
    %339 = vmatpush1.bf16.msra.mxu0 %v306
    %340 = vmatprep.subr.bf16.mxu0 %v309
    %341 = vmatpush1.bf16.msra.mxu0 %v308
    %342 = vmatprep.subr.bf16.mxu0 %v311
    %343 = vmatpush1.bf16.msra.mxu0 %v310
    %344 = vmatprep.subr.bf16.mxu0 %v313
    %345 = vmatpush1.bf16.msra.mxu0 %v312
    %346 = vmatprep.subr.bf16.mxu0 %v315
    %347 = vmatpush1.bf16.msra.mxu0 %v314
    %348 = vmatprep.subr.bf16.mxu0 %v317
    %349 = vmatpush1.bf16.msra.mxu0 %v316
    %350 = vmatprep.subr.bf16.mxu0 %v319
    %351 = vmatpush1.bf16.msra.mxu0 %v318
    %352 = vmatprep.subr.bf16.mxu0 %v321
    %353 = vmatpush1.bf16.msra.mxu0 %v320
    %354 = vmatprep.subr.bf16.mxu0 0
    %355 = vmatpush1.bf16.msra.mxu0 0
    %356 = vmatprep.subr.bf16.mxu0 0
    %357 = vmatpush1.bf16.msra.mxu0 0
    %358 = vmatprep.subr.bf16.mxu0 0
    %359 = vmatpush1.bf16.msra.mxu0 0
    %360 = vmatprep.subr.bf16.mxu0 0
    %361 = vmatpush1.bf16.msra.mxu0 0
    %362 = vmatprep.subr.bf16.mxu0 0
    %363 = vmatpush1.bf16.msra.mxu0 0
    %364 = vmatprep.subr.bf16.mxu0 0
    %365 = vmatpush1.bf16.msra.mxu0 0
    %366 = vmatprep.subr.bf16.mxu0 0
    %367 = vmatpush1.bf16.msra.mxu0 0
    %368 = vmatprep.subr.bf16.mxu0 0
    %369 = vmatpush1.bf16.msra.mxu0 0
    %370 = vmatprep.mubr.bf16.mxu0 0
    %371 = vmatmul.mubr.bf16.gmra.mrb[0].mxu0 %v238
    %v372 = vpop.f32.mrb[0].mxu0
    %v373 = vadd.f32 0.0, %v372
    %v374 = vpop.f32.mrb[0].mxu0
    %v375 = vadd.f32 0.0, %v374
    %v376 = vpop.f32.mrb[0].mxu0
    %v377 = vadd.f32 0.0, %v376
    %v378 = vpop.f32.mrb[0].mxu0
    %v379 = vadd.f32 0.0, %v378
    %380 = vmatprep.mubr.bf16.mxu0 0
    %381 = vmatmul.mubr.bf16.gmra.mrb[0].mxu0 %v239
    %v382 = vpop.f32.mrb[0].mxu0
    %v383 = vadd.f32 0.0, %v382
    %v384 = vpop.f32.mrb[0].mxu0
    %v385 = vadd.f32 0.0, %v384
    %v386 = vpop.f32.mrb[0].mxu0
    %v387 = vadd.f32 0.0, %v386
    %v388 = vpop.f32.mrb[0].mxu0
    %v389 = vadd.f32 0.0, %v388
    %390 = vmatprep.mubr.bf16.mxu0 0
    %391 = vmatmul.mubr.bf16.gmra.mrb[0].mxu0 %v240
    %v392 = vpop.f32.mrb[0].mxu0
    %v393 = vadd.f32 0.0, %v392
    %v394 = vpop.f32.mrb[0].mxu0
    %v395 = vadd.f32 0.0, %v394
    %v396 = vpop.f32.mrb[0].mxu0
    %v397 = vadd.f32 0.0, %v396
    %v398 = vpop.f32.mrb[0].mxu0
    %v399 = vadd.f32 0.0, %v398
    %400 = vmatprep.mubr.bf16.mxu0 0
    %401 = vmatmul.mubr.bf16.gmra.mrb[0].mxu0 %v241
    %v402 = vpop.f32.mrb[0].mxu0
    %v403 = vadd.f32 0.0, %v402
    %v404 = vpop.f32.mrb[0].mxu0
    %v405 = vadd.f32 0.0, %v404
    %v406 = vpop.f32.mrb[0].mxu0
    %v407 = vadd.f32 0.0, %v406
    %v408 = vpop.f32.mrb[0].mxu0
    %v409 = vadd.f32 0.0, %v408
    %410 = vdwg.mxu0
    %v427 = vunpack.c.l.b16 %v204
    %v428 = vunpack.c.h.b16 %v204
    %v429 = vunpack.c.l.b16 %v205
    %v430 = vunpack.c.h.b16 %v205
    %v431 = vunpack.c.l.b16 %v206
    %v432 = vunpack.c.h.b16 %v206
    %v433 = vunpack.c.l.b16 %v207
    %v434 = vunpack.c.h.b16 %v207
    %v435 = vunpack.c.l.b16 %v208
    %v436 = vunpack.c.h.b16 %v208
    %v437 = vunpack.c.l.b16 %v209
    %v438 = vunpack.c.h.b16 %v209
    %v439 = vunpack.c.l.b16 %v210
    %v440 = vunpack.c.h.b16 %v210
    %v441 = vunpack.c.l.b16 %v211
    %v442 = vunpack.c.h.b16 %v211
    %v443 = vunpack.c.l.b16 %v212
    %v444 = vunpack.c.h.b16 %v212
    %v445 = vunpack.c.l.b16 %v213
    %v446 = vunpack.c.h.b16 %v213
    %v447 = vunpack.c.l.b16 %v214
    %v448 = vunpack.c.h.b16 %v214
    %v449 = vunpack.c.l.b16 %v215
    %v450 = vunpack.c.h.b16 %v215
    %v451 = vunpack.c.l.b16 %v216
    %v452 = vunpack.c.h.b16 %v216
    %v453 = vunpack.c.l.b16 %v217
    %v454 = vunpack.c.h.b16 %v217
    %v455 = vunpack.c.l.b16 %v218
    %v456 = vunpack.c.h.b16 %v218
    %v457 = vunpack.c.l.b16 %v219
    %v458 = vunpack.c.h.b16 %v219
    %v459 = vpack.c.b16 %v429, %v427
    %v460 = vpack.c.b16 %v430, %v428
    %v461 = vpack.c.b16 %v433, %v431
    %v462 = vpack.c.b16 %v434, %v432
    %v463 = vpack.c.b16 %v437, %v435
    %v464 = vpack.c.b16 %v438, %v436
    %v465 = vpack.c.b16 %v441, %v439
    %v466 = vpack.c.b16 %v442, %v440
    %v467 = vpack.c.b16 %v445, %v443
    %v468 = vpack.c.b16 %v446, %v444
    %v469 = vpack.c.b16 %v449, %v447
    %v470 = vpack.c.b16 %v450, %v448
    %v471 = vpack.c.b16 %v453, %v451
    %v472 = vpack.c.b16 %v454, %v452
    %v473 = vpack.c.b16 %v457, %v455
    %v474 = vpack.c.b16 %v458, %v456
    %491 = vmatprep.subr.bf16.mxu0 %v460
    %492 = vmatpush1.bf16.msra.mxu0 %v459
    %493 = vmatprep.subr.bf16.mxu0 %v462
    %494 = vmatpush1.bf16.msra.mxu0 %v461
    %495 = vmatprep.subr.bf16.mxu0 %v464
    %496 = vmatpush1.bf16.msra.mxu0 %v463
    %497 = vmatprep.subr.bf16.mxu0 %v466
    %498 = vmatpush1.bf16.msra.mxu0 %v465
    %499 = vmatprep.subr.bf16.mxu0 %v468
    %500 = vmatpush1.bf16.msra.mxu0 %v467
    %501 = vmatprep.subr.bf16.mxu0 %v470
    %502 = vmatpush1.bf16.msra.mxu0 %v469
    %503 = vmatprep.subr.bf16.mxu0 %v472
    %504 = vmatpush1.bf16.msra.mxu0 %v471
    %505 = vmatprep.subr.bf16.mxu0 %v474
    %506 = vmatpush1.bf16.msra.mxu0 %v473
    %507 = vmatprep.subr.bf16.mxu0 0
    %508 = vmatpush1.bf16.msra.mxu0 0
    %509 = vmatprep.subr.bf16.mxu0 0
    %510 = vmatpush1.bf16.msra.mxu0 0
    %511 = vmatprep.subr.bf16.mxu0 0
    %512 = vmatpush1.bf16.msra.mxu0 0
    %513 = vmatprep.subr.bf16.mxu0 0
    %514 = vmatpush1.bf16.msra.mxu0 0
    %515 = vmatprep.subr.bf16.mxu0 0
    %516 = vmatpush1.bf16.msra.mxu0 0
    %517 = vmatprep.subr.bf16.mxu0 0
    %518 = vmatpush1.bf16.msra.mxu0 0
    %519 = vmatprep.subr.bf16.mxu0 0
    %520 = vmatpush1.bf16.msra.mxu0 0
    %521 = vmatprep.subr.bf16.mxu0 0
    %522 = vmatpush1.bf16.msra.mxu0 0
    %523 = vmatprep.mubr.bf16.mxu0 0
    %524 = vmatmul.mubr.bf16.gmra.mrb[0].mxu0 %v199
    %v525 = vpop.f32.mrb[0].mxu0
    %v526 = vadd.f32 %v373, %v525
    %v527 = vpop.f32.mrb[0].mxu0
    %v528 = vadd.f32 %v375, %v527
    %v529 = vpop.f32.mrb[0].mxu0
    %v530 = vadd.f32 %v377, %v529
    %v531 = vpop.f32.mrb[0].mxu0
    %v532 = vadd.f32 %v379, %v531
    %533 = vmatprep.mubr.bf16.mxu0 0
    %534 = vmatmul.mubr.bf16.gmra.mrb[0].mxu0 %v200
    %v535 = vpop.f32.mrb[0].mxu0
    %v536 = vadd.f32 %v383, %v535
    %v537 = vpop.f32.mrb[0].mxu0
    %v538 = vadd.f32 %v385, %v537
    %v539 = vpop.f32.mrb[0].mxu0
    %v540 = vadd.f32 %v387, %v539
    %v541 = vpop.f32.mrb[0].mxu0
    %v542 = vadd.f32 %v389, %v541
    %543 = vmatprep.mubr.bf16.mxu0 0
    %544 = vmatmul.mubr.bf16.gmra.mrb[0].mxu0 %v201
    %v545 = vpop.f32.mrb[0].mxu0
    %v546 = vadd.f32 %v393, %v545
    %v547 = vpop.f32.mrb[0].mxu0
    %v548 = vadd.f32 %v395, %v547
    %v549 = vpop.f32.mrb[0].mxu0
    %v550 = vadd.f32 %v397, %v549
    %v551 = vpop.f32.mrb[0].mxu0
    %v552 = vadd.f32 %v399, %v551
    %553 = vmatprep.mubr.bf16.mxu0 0
    %554 = vmatmul.mubr.bf16.gmra.mrb[0].mxu0 %v202
    %v555 = vpop.f32.mrb[0].mxu0
    %v556 = vadd.f32 %v403, %v555
    %v557 = vpop.f32.mrb[0].mxu0
    %v558 = vadd.f32 %v405, %v557
    %v559 = vpop.f32.mrb[0].mxu0
    %v560 = vadd.f32 %v407, %v559
    %v561 = vpop.f32.mrb[0].mxu0
    %v562 = vadd.f32 %v409, %v561
    %563 = vdwg.mxu0
    %v564 = vrot.slane %v191, 1
    %v565 = vrot.slane %v192, 1
    %v566 = vrot.slane %v193, 1
    %v567 = vrot.slane %v194, 1
    %v568 = vrot.slane %v195, 1
    %v569 = vrot.slane %v196, 1
    %v570 = vrot.slane %v197, 1
    %v571 = vrot.slane %v198, 1
    %v572 = vsel %vm182, 1, 0
    %vm573 = vcmp.eq.s32.totalorder %v572, 1
    %v574 = vsel %vm573, %v564, 0.0
    %v575 = vsel %vm573, %v565, 0.0
    %v576 = vsel %vm573, %v566, 0.0
    %v577 = vsel %vm573, %v567, 0.0
    %v578 = vsel %vm573, %v568, 0.0
    %v579 = vsel %vm573, %v569, 0.0
    %v580 = vsel %vm573, %v570, 0.0
    %v581 = vsel %vm573, %v571, 0.0
    %v582 = vpack.c.bf16 %v575, %v574
    %v583 = vpack.c.bf16 %v577, %v576
    %v584 = vpack.c.bf16 %v579, %v578
    %v585 = vpack.c.bf16 %v581, %v580
    %s586 = scalar_lea.vmem [#allocation5], 256
    %v587 = vld [vmem:[%s586] sm:$0xff]
    %v588 = vld [vmem:[%s586 + $0x8] sm:$0xff]
    %v589 = vld [vmem:[%s586 + $0x10] sm:$0xff]
    %v590 = vld [vmem:[%s586 + $0x18] sm:$0xff]
    %v591 = vld [vmem:[%s586 + $0x20] sm:$0xff]
    %v592 = vld [vmem:[%s586 + $0x28] sm:$0xff]
    %v593 = vld [vmem:[%s586 + $0x30] sm:$0xff]
    %v594 = vld [vmem:[%s586 + $0x38] sm:$0xff]
    %v595 = vld [vmem:[%s586 + $0x40] sm:$0xff]
    %v596 = vld [vmem:[%s586 + $0x48] sm:$0xff]
    %v597 = vld [vmem:[%s586 + $0x50] sm:$0xff]
    %v598 = vld [vmem:[%s586 + $0x58] sm:$0xff]
    %v599 = vld [vmem:[%s586 + $0x60] sm:$0xff]
    %v600 = vld [vmem:[%s586 + $0x68] sm:$0xff]
    %v601 = vld [vmem:[%s586 + $0x70] sm:$0xff]
    %v602 = vld [vmem:[%s586 + $0x78] sm:$0xff]
    %v619 = vunpack.c.l.b16 %v587
    %v620 = vunpack.c.h.b16 %v587
    %v621 = vunpack.c.l.b16 %v588
    %v622 = vunpack.c.h.b16 %v588
    %v623 = vunpack.c.l.b16 %v589
    %v624 = vunpack.c.h.b16 %v589
    %v625 = vunpack.c.l.b16 %v590
    %v626 = vunpack.c.h.b16 %v590
    %v627 = vunpack.c.l.b16 %v591
    %v628 = vunpack.c.h.b16 %v591
    %v629 = vunpack.c.l.b16 %v592
    %v630 = vunpack.c.h.b16 %v592
    %v631 = vunpack.c.l.b16 %v593
    %v632 = vunpack.c.h.b16 %v593
    %v633 = vunpack.c.l.b16 %v594
    %v634 = vunpack.c.h.b16 %v594
    %v635 = vunpack.c.l.b16 %v595
    %v636 = vunpack.c.h.b16 %v595
    %v637 = vunpack.c.l.b16 %v596
    %v638 = vunpack.c.h.b16 %v596
    %v639 = vunpack.c.l.b16 %v597
    %v640 = vunpack.c.h.b16 %v597
    %v641 = vunpack.c.l.b16 %v598
    %v642 = vunpack.c.h.b16 %v598
    %v643 = vunpack.c.l.b16 %v599
    %v644 = vunpack.c.h.b16 %v599
    %v645 = vunpack.c.l.b16 %v600
    %v646 = vunpack.c.h.b16 %v600
    %v647 = vunpack.c.l.b16 %v601
    %v648 = vunpack.c.h.b16 %v601
    %v649 = vunpack.c.l.b16 %v602
    %v650 = vunpack.c.h.b16 %v602
    %v651 = vpack.c.b16 %v621, %v619
    %v652 = vpack.c.b16 %v622, %v620
    %v653 = vpack.c.b16 %v625, %v623
    %v654 = vpack.c.b16 %v626, %v624
    %v655 = vpack.c.b16 %v629, %v627
    %v656 = vpack.c.b16 %v630, %v628
    %v657 = vpack.c.b16 %v633, %v631
    %v658 = vpack.c.b16 %v634, %v632
    %v659 = vpack.c.b16 %v637, %v635
    %v660 = vpack.c.b16 %v638, %v636
    %v661 = vpack.c.b16 %v641, %v639
    %v662 = vpack.c.b16 %v642, %v640
    %v663 = vpack.c.b16 %v645, %v643
    %v664 = vpack.c.b16 %v646, %v644
    %v665 = vpack.c.b16 %v649, %v647
    %v666 = vpack.c.b16 %v650, %v648
    %683 = vmatprep.subr.bf16.mxu0 %v652
    %684 = vmatpush1.bf16.msra.mxu0 %v651
    %685 = vmatprep.subr.bf16.mxu0 %v654
    %686 = vmatpush1.bf16.msra.mxu0 %v653
    %687 = vmatprep.subr.bf16.mxu0 %v656
    %688 = vmatpush1.bf16.msra.mxu0 %v655
    %689 = vmatprep.subr.bf16.mxu0 %v658
    %690 = vmatpush1.bf16.msra.mxu0 %v657
    %691 = vmatprep.subr.bf16.mxu0 %v660
    %692 = vmatpush1.bf16.msra.mxu0 %v659
    %693 = vmatprep.subr.bf16.mxu0 %v662
    %694 = vmatpush1.bf16.msra.mxu0 %v661
    %695 = vmatprep.subr.bf16.mxu0 %v664
    %696 = vmatpush1.bf16.msra.mxu0 %v663
    %697 = vmatprep.subr.bf16.mxu0 %v666
    %698 = vmatpush1.bf16.msra.mxu0 %v665
    %699 = vmatprep.subr.bf16.mxu0 0
    %700 = vmatpush1.bf16.msra.mxu0 0
    %701 = vmatprep.subr.bf16.mxu0 0
    %702 = vmatpush1.bf16.msra.mxu0 0
    %703 = vmatprep.subr.bf16.mxu0 0
    %704 = vmatpush1.bf16.msra.mxu0 0
    %705 = vmatprep.subr.bf16.mxu0 0
    %706 = vmatpush1.bf16.msra.mxu0 0
    %707 = vmatprep.subr.bf16.mxu0 0
    %708 = vmatpush1.bf16.msra.mxu0 0
    %709 = vmatprep.subr.bf16.mxu0 0
    %710 = vmatpush1.bf16.msra.mxu0 0
    %711 = vmatprep.subr.bf16.mxu0 0
    %712 = vmatpush1.bf16.msra.mxu0 0
    %713 = vmatprep.subr.bf16.mxu0 0
    %714 = vmatpush1.bf16.msra.mxu0 0
    %715 = vmatprep.mubr.bf16.mxu0 0
    %716 = vmatmul.mubr.bf16.gmra.mrb[0].mxu0 %v582
    %v717 = vpop.f32.mrb[0].mxu0
    %v718 = vadd.f32 0.0, %v717
    %v719 = vpop.f32.mrb[0].mxu0
    %v720 = vadd.f32 0.0, %v719
    %v721 = vpop.f32.mrb[0].mxu0
    %v722 = vadd.f32 0.0, %v721
    %v723 = vpop.f32.mrb[0].mxu0
    %v724 = vadd.f32 0.0, %v723
    %725 = vmatprep.mubr.bf16.mxu0 0
    %726 = vmatmul.mubr.bf16.gmra.mrb[0].mxu0 %v583
    %v727 = vpop.f32.mrb[0].mxu0
    %v728 = vadd.f32 0.0, %v727
    %v729 = vpop.f32.mrb[0].mxu0
    %v730 = vadd.f32 0.0, %v729
    %v731 = vpop.f32.mrb[0].mxu0
    %v732 = vadd.f32 0.0, %v731
    %v733 = vpop.f32.mrb[0].mxu0
    %v734 = vadd.f32 0.0, %v733
    %735 = vmatprep.mubr.bf16.mxu0 0
    %736 = vmatmul.mubr.bf16.gmra.mrb[0].mxu0 %v584
    %v737 = vpop.f32.mrb[0].mxu0
    %v738 = vadd.f32 0.0, %v737
    %v739 = vpop.f32.mrb[0].mxu0
    %v740 = vadd.f32 0.0, %v739
    %v741 = vpop.f32.mrb[0].mxu0
    %v742 = vadd.f32 0.0, %v741
    %v743 = vpop.f32.mrb[0].mxu0
    %v744 = vadd.f32 0.0, %v743
    %745 = vmatprep.mubr.bf16.mxu0 0
    %746 = vmatmul.mubr.bf16.gmra.mrb[0].mxu0 %v585
    %v747 = vpop.f32.mrb[0].mxu0
    %v748 = vadd.f32 0.0, %v747
    %v749 = vpop.f32.mrb[0].mxu0
    %v750 = vadd.f32 0.0, %v749
    %v751 = vpop.f32.mrb[0].mxu0
    %v752 = vadd.f32 0.0, %v751
    %v753 = vpop.f32.mrb[0].mxu0
    %v754 = vadd.f32 0.0, %v753
    %755 = vdwg.mxu0
    %v756 = vadd.f32 %v526, %v718
    %v757 = vadd.f32 %v528, %v720
    %v758 = vadd.f32 %v530, %v722
    %v759 = vadd.f32 %v532, %v724
    %v760 = vadd.f32 %v536, %v728
    %v761 = vadd.f32 %v538, %v730
    %v762 = vadd.f32 %v540, %v732
    %v763 = vadd.f32 %v542, %v734
    %v764 = vadd.f32 %v546, %v738
    %v765 = vadd.f32 %v548, %v740
    %v766 = vadd.f32 %v550, %v742
    %v767 = vadd.f32 %v552, %v744
    %v768 = vadd.f32 %v556, %v748
    %v769 = vadd.f32 %v558, %v750
    %v770 = vadd.f32 %v560, %v752
    %v771 = vadd.f32 %v562, %v754
    %v772 = vld [vmem:[#allocation11] sm:$0x3]
    %v774 = vlaneseq
    %v775 = vshrl.u32 %v774, 7
    %v776 = vsub.s32 0, %v775
    %v777 = vrot.slane %v772, %v776
    %v778 = vlaneseq
    %v779 = vshrl.u32 %v778, 7
    %v780 = vsub.s32 1, %v779
    %v781 = vrot.slane %v772, %v780
    %v784 = vadd.f32 %v756, %v777
    %v785 = vadd.f32 %v757, %v781
    %v786 = vadd.f32 %v758, %v777
    %v787 = vadd.f32 %v759, %v781
    %v788 = vadd.f32 %v760, %v777
    %v789 = vadd.f32 %v761, %v781
    %v790 = vadd.f32 %v762, %v777
    %v791 = vadd.f32 %v763, %v781
    %v792 = vadd.f32 %v764, %v777
    %v793 = vadd.f32 %v765, %v781
    %v794 = vadd.f32 %v766, %v777
    %v795 = vadd.f32 %v767, %v781
    %v796 = vadd.f32 %v768, %v777
    %v797 = vadd.f32 %v769, %v781
    %v798 = vadd.f32 %v770, %v777
    %v799 = vadd.f32 %v771, %v781
    %v800 = vmax.f32 %v784, 0.0
    %v801 = vmax.f32 %v785, 0.0
    %v802 = vmax.f32 %v786, 0.0
    %v803 = vmax.f32 %v787, 0.0
    %v804 = vmax.f32 %v788, 0.0
    %v805 = vmax.f32 %v789, 0.0
    %v806 = vmax.f32 %v790, 0.0
    %v807 = vmax.f32 %v791, 0.0
    %v808 = vmax.f32 %v792, 0.0
    %v809 = vmax.f32 %v793, 0.0
    %v810 = vmax.f32 %v794, 0.0
    %v811 = vmax.f32 %v795, 0.0
    %v812 = vmax.f32 %v796, 0.0
    %v813 = vmax.f32 %v797, 0.0
    %v814 = vmax.f32 %v798, 0.0
    %v815 = vmax.f32 %v799, 0.0
    %v816 = vpack.c.bf16 %v802, %v800
    %v817 = vpack.c.bf16 %v803, %v801
    %v818 = vpack.c.bf16 %v806, %v804
    %v819 = vpack.c.bf16 %v807, %v805
    %v820 = vpack.c.bf16 %v810, %v808
    %v821 = vpack.c.bf16 %v811, %v809
    %v822 = vpack.c.bf16 %v814, %v812
    %v823 = vpack.c.bf16 %v815, %v813
    %s824 = scalar_lea.vmem [#allocation7], 256
    %v825 = vld [vmem:[%s824] sm:$0xff]
    %v826 = vld [vmem:[%s824 + $0x8] sm:$0xff]
    %v827 = vld [vmem:[%s824 + $0x10] sm:$0xff]
    %v828 = vld [vmem:[%s824 + $0x18] sm:$0xff]
    %v829 = vld [vmem:[%s824 + $0x20] sm:$0xff]
    %v830 = vld [vmem:[%s824 + $0x28] sm:$0xff]
    %v831 = vld [vmem:[%s824 + $0x30] sm:$0xff]
    %v832 = vld [vmem:[%s824 + $0x38] sm:$0xff]
    %v833 = vld [vmem:[%s824 + $0x40] sm:$0xff]
    %v834 = vld [vmem:[%s824 + $0x48] sm:$0xff]
    %v835 = vld [vmem:[%s824 + $0x50] sm:$0xff]
    %v836 = vld [vmem:[%s824 + $0x58] sm:$0xff]
    %v837 = vld [vmem:[%s824 + $0x60] sm:$0xff]
    %v838 = vld [vmem:[%s824 + $0x68] sm:$0xff]
    %v839 = vld [vmem:[%s824 + $0x70] sm:$0xff]
    %v840 = vld [vmem:[%s824 + $0x78] sm:$0xff]
    %v841 = vld [vmem:[%s824 + $0x80] sm:$0xff]
    %v842 = vld [vmem:[%s824 + $0x88] sm:$0xff]
    %v843 = vld [vmem:[%s824 + $0x90] sm:$0xff]
    %v844 = vld [vmem:[%s824 + $0x98] sm:$0xff]
    %v845 = vld [vmem:[%s824 + $0xa0] sm:$0xff]
    %v846 = vld [vmem:[%s824 + $0xa8] sm:$0xff]
    %v847 = vld [vmem:[%s824 + $0xb0] sm:$0xff]
    %v848 = vld [vmem:[%s824 + $0xb8] sm:$0xff]
    %v849 = vld [vmem:[%s824 + $0xc0] sm:$0xff]
    %v850 = vld [vmem:[%s824 + $0xc8] sm:$0xff]
    %v851 = vld [vmem:[%s824 + $0xd0] sm:$0xff]
    %v852 = vld [vmem:[%s824 + $0xd8] sm:$0xff]
    %v853 = vld [vmem:[%s824 + $0xe0] sm:$0xff]
    %v854 = vld [vmem:[%s824 + $0xe8] sm:$0xff]
    %v855 = vld [vmem:[%s824 + $0xf0] sm:$0xff]
    %v856 = vld [vmem:[%s824 + $0xf8] sm:$0xff]
    %v857 = vrot.slane %v800, 7
    %v858 = vrot.slane %v801, 7
    %v859 = vrot.slane %v802, 7
    %v860 = vrot.slane %v803, 7
    %v861 = vrot.slane %v804, 7
    %v862 = vrot.slane %v805, 7
    %v863 = vrot.slane %v806, 7
    %v864 = vrot.slane %v807, 7
    %v865 = vrot.slane %v808, 7
    %v866 = vrot.slane %v809, 7
    %v867 = vrot.slane %v810, 7
    %v868 = vrot.slane %v811, 7
    %v869 = vrot.slane %v812, 7
    %v870 = vrot.slane %v813, 7
    %v871 = vrot.slane %v814, 7
    %v872 = vrot.slane %v815, 7
    %v873 = vsel %vm229, %v857, 0.0
    %v874 = vsel %vm229, %v858, 0.0
    %v875 = vsel %vm229, %v859, 0.0
    %v876 = vsel %vm229, %v860, 0.0
    %v877 = vsel %vm229, %v861, 0.0
    %v878 = vsel %vm229, %v862, 0.0
    %v879 = vsel %vm229, %v863, 0.0
    %v880 = vsel %vm229, %v864, 0.0
    %v881 = vsel %vm229, %v865, 0.0
    %v882 = vsel %vm229, %v866, 0.0
    %v883 = vsel %vm229, %v867, 0.0
    %v884 = vsel %vm229, %v868, 0.0
    %v885 = vsel %vm229, %v869, 0.0
    %v886 = vsel %vm229, %v870, 0.0
    %v887 = vsel %vm229, %v871, 0.0
    %v888 = vsel %vm229, %v872, 0.0
    %v889 = vpack.c.bf16 %v875, %v873
    %v890 = vpack.c.bf16 %v876, %v874
    %v891 = vpack.c.bf16 %v879, %v877
    %v892 = vpack.c.bf16 %v880, %v878
    %v893 = vpack.c.bf16 %v883, %v881
    %v894 = vpack.c.bf16 %v884, %v882
    %v895 = vpack.c.bf16 %v887, %v885
    %v896 = vpack.c.bf16 %v888, %v886
    %v897 = vld [vmem:[#allocation7] sm:$0xff]
    %v898 = vld [vmem:[#allocation7 + $0x8] sm:$0xff]
    %v899 = vld [vmem:[#allocation7 + $0x10] sm:$0xff]
    %v900 = vld [vmem:[#allocation7 + $0x18] sm:$0xff]
    %v901 = vld [vmem:[#allocation7 + $0x20] sm:$0xff]
    %v902 = vld [vmem:[#allocation7 + $0x28] sm:$0xff]
    %v903 = vld [vmem:[#allocation7 + $0x30] sm:$0xff]
    %v904 = vld [vmem:[#allocation7 + $0x38] sm:$0xff]
    %v905 = vld [vmem:[#allocation7 + $0x40] sm:$0xff]
    %v906 = vld [vmem:[#allocation7 + $0x48] sm:$0xff]
    %v907 = vld [vmem:[#allocation7 + $0x50] sm:$0xff]
    %v908 = vld [vmem:[#allocation7 + $0x58] sm:$0xff]
    %v909 = vld [vmem:[#allocation7 + $0x60] sm:$0xff]
    %v910 = vld [vmem:[#allocation7 + $0x68] sm:$0xff]
    %v911 = vld [vmem:[#allocation7 + $0x70] sm:$0xff]
    %v912 = vld [vmem:[#allocation7 + $0x78] sm:$0xff]
    %v913 = vld [vmem:[#allocation7 + $0x80] sm:$0xff]
    %v914 = vld [vmem:[#allocation7 + $0x88] sm:$0xff]
    %v915 = vld [vmem:[#allocation7 + $0x90] sm:$0xff]
    %v916 = vld [vmem:[#allocation7 + $0x98] sm:$0xff]
    %v917 = vld [vmem:[#allocation7 + $0xa0] sm:$0xff]
    %v918 = vld [vmem:[#allocation7 + $0xa8] sm:$0xff]
    %v919 = vld [vmem:[#allocation7 + $0xb0] sm:$0xff]
    %v920 = vld [vmem:[#allocation7 + $0xb8] sm:$0xff]
    %v921 = vld [vmem:[#allocation7 + $0xc0] sm:$0xff]
    %v922 = vld [vmem:[#allocation7 + $0xc8] sm:$0xff]
    %v923 = vld [vmem:[#allocation7 + $0xd0] sm:$0xff]
    %v924 = vld [vmem:[#allocation7 + $0xd8] sm:$0xff]
    %v925 = vld [vmem:[#allocation7 + $0xe0] sm:$0xff]
    %v926 = vld [vmem:[#allocation7 + $0xe8] sm:$0xff]
    %v927 = vld [vmem:[#allocation7 + $0xf0] sm:$0xff]
    %v928 = vld [vmem:[#allocation7 + $0xf8] sm:$0xff]
    %v961 = vunpack.c.l.b16 %v897
    %v962 = vunpack.c.h.b16 %v897
    %v963 = vunpack.c.l.b16 %v898
    %v964 = vunpack.c.h.b16 %v898
    %v965 = vunpack.c.l.b16 %v899
    %v966 = vunpack.c.h.b16 %v899
    %v967 = vunpack.c.l.b16 %v900
    %v968 = vunpack.c.h.b16 %v900
    %v969 = vunpack.c.l.b16 %v901
    %v970 = vunpack.c.h.b16 %v901
    %v971 = vunpack.c.l.b16 %v902
    %v972 = vunpack.c.h.b16 %v902
    %v973 = vunpack.c.l.b16 %v903
    %v974 = vunpack.c.h.b16 %v903
    %v975 = vunpack.c.l.b16 %v904
    %v976 = vunpack.c.h.b16 %v904
    %v977 = vunpack.c.l.b16 %v905
    %v978 = vunpack.c.h.b16 %v905
    %v979 = vunpack.c.l.b16 %v906
    %v980 = vunpack.c.h.b16 %v906
    %v981 = vunpack.c.l.b16 %v907
    %v982 = vunpack.c.h.b16 %v907
    %v983 = vunpack.c.l.b16 %v908
    %v984 = vunpack.c.h.b16 %v908
    %v985 = vunpack.c.l.b16 %v909
    %v986 = vunpack.c.h.b16 %v909
    %v987 = vunpack.c.l.b16 %v910
    %v988 = vunpack.c.h.b16 %v910
    %v989 = vunpack.c.l.b16 %v911
    %v990 = vunpack.c.h.b16 %v911
    %v991 = vunpack.c.l.b16 %v912
    %v992 = vunpack.c.h.b16 %v912
    %v993 = vunpack.c.l.b16 %v913
    %v994 = vunpack.c.h.b16 %v913
    %v995 = vunpack.c.l.b16 %v914
    %v996 = vunpack.c.h.b16 %v914
    %v997 = vunpack.c.l.b16 %v915
    %v998 = vunpack.c.h.b16 %v915
    %v999 = vunpack.c.l.b16 %v916
    %v1000 = vunpack.c.h.b16 %v916
    %v1001 = vunpack.c.l.b16 %v917
    %v1002 = vunpack.c.h.b16 %v917
    %v1003 = vunpack.c.l.b16 %v918
    %v1004 = vunpack.c.h.b16 %v918
    %v1005 = vunpack.c.l.b16 %v919
    %v1006 = vunpack.c.h.b16 %v919
    %v1007 = vunpack.c.l.b16 %v920
    %v1008 = vunpack.c.h.b16 %v920
    %v1009 = vunpack.c.l.b16 %v921
    %v1010 = vunpack.c.h.b16 %v921
    %v1011 = vunpack.c.l.b16 %v922
    %v1012 = vunpack.c.h.b16 %v922
    %v1013 = vunpack.c.l.b16 %v923
    %v1014 = vunpack.c.h.b16 %v923
    %v1015 = vunpack.c.l.b16 %v924
    %v1016 = vunpack.c.h.b16 %v924
    %v1017 = vunpack.c.l.b16 %v925
    %v1018 = vunpack.c.h.b16 %v925
    %v1019 = vunpack.c.l.b16 %v926
    %v1020 = vunpack.c.h.b16 %v926
    %v1021 = vunpack.c.l.b16 %v927
    %v1022 = vunpack.c.h.b16 %v927
    %v1023 = vunpack.c.l.b16 %v928
    %v1024 = vunpack.c.h.b16 %v928
    %v1025 = vpack.c.b16 %v963, %v961
    %v1026 = vpack.c.b16 %v964, %v962
    %v1027 = vpack.c.b16 %v967, %v965
    %v1028 = vpack.c.b16 %v968, %v966
    %v1029 = vpack.c.b16 %v971, %v969
    %v1030 = vpack.c.b16 %v972, %v970
    %v1031 = vpack.c.b16 %v975, %v973
    %v1032 = vpack.c.b16 %v976, %v974
    %v1033 = vpack.c.b16 %v979, %v977
    %v1034 = vpack.c.b16 %v980, %v978
    %v1035 = vpack.c.b16 %v983, %v981
    %v1036 = vpack.c.b16 %v984, %v982
    %v1037 = vpack.c.b16 %v987, %v985
    %v1038 = vpack.c.b16 %v988, %v986
    %v1039 = vpack.c.b16 %v991, %v989
    %v1040 = vpack.c.b16 %v992, %v990
    %v1041 = vpack.c.b16 %v995, %v993
    %v1042 = vpack.c.b16 %v996, %v994
    %v1043 = vpack.c.b16 %v999, %v997
    %v1044 = vpack.c.b16 %v1000, %v998
    %v1045 = vpack.c.b16 %v1003, %v1001
    %v1046 = vpack.c.b16 %v1004, %v1002
    %v1047 = vpack.c.b16 %v1007, %v1005
    %v1048 = vpack.c.b16 %v1008, %v1006
    %v1049 = vpack.c.b16 %v1011, %v1009
    %v1050 = vpack.c.b16 %v1012, %v1010
    %v1051 = vpack.c.b16 %v1015, %v1013
    %v1052 = vpack.c.b16 %v1016, %v1014
    %v1053 = vpack.c.b16 %v1019, %v1017
    %v1054 = vpack.c.b16 %v1020, %v1018
    %v1055 = vpack.c.b16 %v1023, %v1021
    %v1056 = vpack.c.b16 %v1024, %v1022
    %1089 = vmatprep.subr.bf16.mxu0 %v1026
    %1090 = vmatpush1.bf16.msra.mxu0 %v1025
    %1091 = vmatprep.subr.bf16.mxu0 %v1028
    %1092 = vmatpush1.bf16.msra.mxu0 %v1027
    %1093 = vmatprep.subr.bf16.mxu0 %v1030
    %1094 = vmatpush1.bf16.msra.mxu0 %v1029
    %1095 = vmatprep.subr.bf16.mxu0 %v1032
    %1096 = vmatpush1.bf16.msra.mxu0 %v1031
    %1097 = vmatprep.subr.bf16.mxu0 %v1034
    %1098 = vmatpush1.bf16.msra.mxu0 %v1033
    %1099 = vmatprep.subr.bf16.mxu0 %v1036
    %1100 = vmatpush1.bf16.msra.mxu0 %v1035
    %1101 = vmatprep.subr.bf16.mxu0 %v1038
    %1102 = vmatpush1.bf16.msra.mxu0 %v1037
    %1103 = vmatprep.subr.bf16.mxu0 %v1040
    %1104 = vmatpush1.bf16.msra.mxu0 %v1039
    %1105 = vmatprep.subr.bf16.mxu0 %v1042
    %1106 = vmatpush1.bf16.msra.mxu0 %v1041
    %1107 = vmatprep.subr.bf16.mxu0 %v1044
    %1108 = vmatpush1.bf16.msra.mxu0 %v1043
    %1109 = vmatprep.subr.bf16.mxu0 %v1046
    %1110 = vmatpush1.bf16.msra.mxu0 %v1045
    %1111 = vmatprep.subr.bf16.mxu0 %v1048
    %1112 = vmatpush1.bf16.msra.mxu0 %v1047
    %1113 = vmatprep.subr.bf16.mxu0 %v1050
    %1114 = vmatpush1.bf16.msra.mxu0 %v1049
    %1115 = vmatprep.subr.bf16.mxu0 %v1052
    %1116 = vmatpush1.bf16.msra.mxu0 %v1051
    %1117 = vmatprep.subr.bf16.mxu0 %v1054
    %1118 = vmatpush1.bf16.msra.mxu0 %v1053
    %1119 = vmatprep.subr.bf16.mxu0 %v1056
    %1120 = vmatpush1.bf16.msra.mxu0 %v1055
    %1121 = vmatprep.mubr.bf16.mxu0 %v890
    %1122 = vmatmul.mubr.bf16.gmra.mrb[0].mxu0 %v889
    %v1123 = vpop.f32.mrb[0].mxu0
    %v1124 = vadd.f32 0.0, %v1123
    %v1125 = vpop.f32.mrb[0].mxu0
    %v1126 = vadd.f32 0.0, %v1125
    %v1127 = vpop.f32.mrb[0].mxu0
    %v1128 = vadd.f32 0.0, %v1127
    %v1129 = vpop.f32.mrb[0].mxu0
    %v1130 = vadd.f32 0.0, %v1129
    %1131 = vmatprep.mubr.bf16.mxu0 %v892
    %1132 = vmatmul.mubr.bf16.gmra.mrb[0].mxu0 %v891
    %v1133 = vpop.f32.mrb[0].mxu0
    %v1134 = vadd.f32 0.0, %v1133
    %v1135 = vpop.f32.mrb[0].mxu0
    %v1136 = vadd.f32 0.0, %v1135
    %v1137 = vpop.f32.mrb[0].mxu0
    %v1138 = vadd.f32 0.0, %v1137
    %v1139 = vpop.f32.mrb[0].mxu0
    %v1140 = vadd.f32 0.0, %v1139
    %1141 = vmatprep.mubr.bf16.mxu0 %v894
    %1142 = vmatmul.mubr.bf16.gmra.mrb[0].mxu0 %v893
    %v1143 = vpop.f32.mrb[0].mxu0
    %v1144 = vadd.f32 0.0, %v1143
    %v1145 = vpop.f32.mrb[0].mxu0
    %v1146 = vadd.f32 0.0, %v1145
    %v1147 = vpop.f32.mrb[0].mxu0
    %v1148 = vadd.f32 0.0, %v1147
    %v1149 = vpop.f32.mrb[0].mxu0
    %v1150 = vadd.f32 0.0, %v1149
    %1151 = vmatprep.mubr.bf16.mxu0 %v896
    %1152 = vmatmul.mubr.bf16.gmra.mrb[0].mxu0 %v895
    %v1153 = vpop.f32.mrb[0].mxu0
    %v1154 = vadd.f32 0.0, %v1153
    %v1155 = vpop.f32.mrb[0].mxu0
    %v1156 = vadd.f32 0.0, %v1155
    %v1157 = vpop.f32.mrb[0].mxu0
    %v1158 = vadd.f32 0.0, %v1157
    %v1159 = vpop.f32.mrb[0].mxu0
    %v1160 = vadd.f32 0.0, %v1159
    %1161 = vdwg.mxu0
    %v1194 = vunpack.c.l.b16 %v825
    %v1195 = vunpack.c.h.b16 %v825
    %v1196 = vunpack.c.l.b16 %v826
    %v1197 = vunpack.c.h.b16 %v826
    %v1198 = vunpack.c.l.b16 %v827
    %v1199 = vunpack.c.h.b16 %v827
    %v1200 = vunpack.c.l.b16 %v828
    %v1201 = vunpack.c.h.b16 %v828
    %v1202 = vunpack.c.l.b16 %v829
    %v1203 = vunpack.c.h.b16 %v829
    %v1204 = vunpack.c.l.b16 %v830
    %v1205 = vunpack.c.h.b16 %v830
    %v1206 = vunpack.c.l.b16 %v831
    %v1207 = vunpack.c.h.b16 %v831
    %v1208 = vunpack.c.l.b16 %v832
    %v1209 = vunpack.c.h.b16 %v832
    %v1210 = vunpack.c.l.b16 %v833
    %v1211 = vunpack.c.h.b16 %v833
    %v1212 = vunpack.c.l.b16 %v834
    %v1213 = vunpack.c.h.b16 %v834
    %v1214 = vunpack.c.l.b16 %v835
    %v1215 = vunpack.c.h.b16 %v835
    %v1216 = vunpack.c.l.b16 %v836
    %v1217 = vunpack.c.h.b16 %v836
    %v1218 = vunpack.c.l.b16 %v837
    %v1219 = vunpack.c.h.b16 %v837
    %v1220 = vunpack.c.l.b16 %v838
    %v1221 = vunpack.c.h.b16 %v838
    %v1222 = vunpack.c.l.b16 %v839
    %v1223 = vunpack.c.h.b16 %v839
    %v1224 = vunpack.c.l.b16 %v840
    %v1225 = vunpack.c.h.b16 %v840
    %v1226 = vunpack.c.l.b16 %v841
    %v1227 = vunpack.c.h.b16 %v841
    %v1228 = vunpack.c.l.b16 %v842
    %v1229 = vunpack.c.h.b16 %v842
    %v1230 = vunpack.c.l.b16 %v843
    %v1231 = vunpack.c.h.b16 %v843
    %v1232 = vunpack.c.l.b16 %v844
    %v1233 = vunpack.c.h.b16 %v844
    %v1234 = vunpack.c.l.b16 %v845
    %v1235 = vunpack.c.h.b16 %v845
    %v1236 = vunpack.c.l.b16 %v846
    %v1237 = vunpack.c.h.b16 %v846
    %v1238 = vunpack.c.l.b16 %v847
    %v1239 = vunpack.c.h.b16 %v847
    %v1240 = vunpack.c.l.b16 %v848
    %v1241 = vunpack.c.h.b16 %v848
    %v1242 = vunpack.c.l.b16 %v849
    %v1243 = vunpack.c.h.b16 %v849
    %v1244 = vunpack.c.l.b16 %v850
    %v1245 = vunpack.c.h.b16 %v850
    %v1246 = vunpack.c.l.b16 %v851
    %v1247 = vunpack.c.h.b16 %v851
    %v1248 = vunpack.c.l.b16 %v852
    %v1249 = vunpack.c.h.b16 %v852
    %v1250 = vunpack.c.l.b16 %v853
    %v1251 = vunpack.c.h.b16 %v853
    %v1252 = vunpack.c.l.b16 %v854
    %v1253 = vunpack.c.h.b16 %v854
    %v1254 = vunpack.c.l.b16 %v855
    %v1255 = vunpack.c.h.b16 %v855
    %v1256 = vunpack.c.l.b16 %v856
    %v1257 = vunpack.c.h.b16 %v856
    %v1258 = vpack.c.b16 %v1196, %v1194
    %v1259 = vpack.c.b16 %v1197, %v1195
    %v1260 = vpack.c.b16 %v1200, %v1198
    %v1261 = vpack.c.b16 %v1201, %v1199
    %v1262 = vpack.c.b16 %v1204, %v1202
    %v1263 = vpack.c.b16 %v1205, %v1203
    %v1264 = vpack.c.b16 %v1208, %v1206
    %v1265 = vpack.c.b16 %v1209, %v1207
    %v1266 = vpack.c.b16 %v1212, %v1210
    %v1267 = vpack.c.b16 %v1213, %v1211
    %v1268 = vpack.c.b16 %v1216, %v1214
    %v1269 = vpack.c.b16 %v1217, %v1215
    %v1270 = vpack.c.b16 %v1220, %v1218
    %v1271 = vpack.c.b16 %v1221, %v1219
    %v1272 = vpack.c.b16 %v1224, %v1222
    %v1273 = vpack.c.b16 %v1225, %v1223
    %v1274 = vpack.c.b16 %v1228, %v1226
    %v1275 = vpack.c.b16 %v1229, %v1227
    %v1276 = vpack.c.b16 %v1232, %v1230
    %v1277 = vpack.c.b16 %v1233, %v1231
    %v1278 = vpack.c.b16 %v1236, %v1234
    %v1279 = vpack.c.b16 %v1237, %v1235
    %v1280 = vpack.c.b16 %v1240, %v1238
    %v1281 = vpack.c.b16 %v1241, %v1239
    %v1282 = vpack.c.b16 %v1244, %v1242
    %v1283 = vpack.c.b16 %v1245, %v1243
    %v1284 = vpack.c.b16 %v1248, %v1246
    %v1285 = vpack.c.b16 %v1249, %v1247
    %v1286 = vpack.c.b16 %v1252, %v1250
    %v1287 = vpack.c.b16 %v1253, %v1251
    %v1288 = vpack.c.b16 %v1256, %v1254
    %v1289 = vpack.c.b16 %v1257, %v1255
    %1322 = vmatprep.subr.bf16.mxu0 %v1259
    %1323 = vmatpush1.bf16.msra.mxu0 %v1258
    %1324 = vmatprep.subr.bf16.mxu0 %v1261
    %1325 = vmatpush1.bf16.msra.mxu0 %v1260
    %1326 = vmatprep.subr.bf16.mxu0 %v1263
    %1327 = vmatpush1.bf16.msra.mxu0 %v1262
    %1328 = vmatprep.subr.bf16.mxu0 %v1265
    %1329 = vmatpush1.bf16.msra.mxu0 %v1264
    %1330 = vmatprep.subr.bf16.mxu0 %v1267
    %1331 = vmatpush1.bf16.msra.mxu0 %v1266
    %1332 = vmatprep.subr.bf16.mxu0 %v1269
    %1333 = vmatpush1.bf16.msra.mxu0 %v1268
    %1334 = vmatprep.subr.bf16.mxu0 %v1271
    %1335 = vmatpush1.bf16.msra.mxu0 %v1270
    %1336 = vmatprep.subr.bf16.mxu0 %v1273
    %1337 = vmatpush1.bf16.msra.mxu0 %v1272
    %1338 = vmatprep.subr.bf16.mxu0 %v1275
    %1339 = vmatpush1.bf16.msra.mxu0 %v1274
    %1340 = vmatprep.subr.bf16.mxu0 %v1277
    %1341 = vmatpush1.bf16.msra.mxu0 %v1276
    %1342 = vmatprep.subr.bf16.mxu0 %v1279
    %1343 = vmatpush1.bf16.msra.mxu0 %v1278
    %1344 = vmatprep.subr.bf16.mxu0 %v1281
    %1345 = vmatpush1.bf16.msra.mxu0 %v1280
    %1346 = vmatprep.subr.bf16.mxu0 %v1283
    %1347 = vmatpush1.bf16.msra.mxu0 %v1282
    %1348 = vmatprep.subr.bf16.mxu0 %v1285
    %1349 = vmatpush1.bf16.msra.mxu0 %v1284
    %1350 = vmatprep.subr.bf16.mxu0 %v1287
    %1351 = vmatpush1.bf16.msra.mxu0 %v1286
    %1352 = vmatprep.subr.bf16.mxu0 %v1289
    %1353 = vmatpush1.bf16.msra.mxu0 %v1288
    %1354 = vmatprep.mubr.bf16.mxu0 %v817
    %1355 = vmatmul.mubr.bf16.gmra.mrb[0].mxu0 %v816
    %v1356 = vpop.f32.mrb[0].mxu0
    %v1357 = vadd.f32 %v1124, %v1356
    %v1358 = vpop.f32.mrb[0].mxu0
    %v1359 = vadd.f32 %v1126, %v1358
    %v1360 = vpop.f32.mrb[0].mxu0
    %v1361 = vadd.f32 %v1128, %v1360
    %v1362 = vpop.f32.mrb[0].mxu0
    %v1363 = vadd.f32 %v1130, %v1362
    %1364 = vmatprep.mubr.bf16.mxu0 %v819
    %1365 = vmatmul.mubr.bf16.gmra.mrb[0].mxu0 %v818
    %v1366 = vpop.f32.mrb[0].mxu0
    %v1367 = vadd.f32 %v1134, %v1366
    %v1368 = vpop.f32.mrb[0].mxu0
    %v1369 = vadd.f32 %v1136, %v1368
    %v1370 = vpop.f32.mrb[0].mxu0
    %v1371 = vadd.f32 %v1138, %v1370
    %v1372 = vpop.f32.mrb[0].mxu0
    %v1373 = vadd.f32 %v1140, %v1372
    %1374 = vmatprep.mubr.bf16.mxu0 %v821
    %1375 = vmatmul.mubr.bf16.gmra.mrb[0].mxu0 %v820
    %v1376 = vpop.f32.mrb[0].mxu0
    %v1377 = vadd.f32 %v1144, %v1376
    %v1378 = vpop.f32.mrb[0].mxu0
    %v1379 = vadd.f32 %v1146, %v1378
    %v1380 = vpop.f32.mrb[0].mxu0
    %v1381 = vadd.f32 %v1148, %v1380
    %v1382 = vpop.f32.mrb[0].mxu0
    %v1383 = vadd.f32 %v1150, %v1382
    %1384 = vmatprep.mubr.bf16.mxu0 %v823
    %1385 = vmatmul.mubr.bf16.gmra.mrb[0].mxu0 %v822
    %v1386 = vpop.f32.mrb[0].mxu0
    %v1387 = vadd.f32 %v1154, %v1386
    %v1388 = vpop.f32.mrb[0].mxu0
    %v1389 = vadd.f32 %v1156, %v1388
    %v1390 = vpop.f32.mrb[0].mxu0
    %v1391 = vadd.f32 %v1158, %v1390
    %v1392 = vpop.f32.mrb[0].mxu0
    %v1393 = vadd.f32 %v1160, %v1392
    %1394 = vdwg.mxu0
    %v1395 = vrot.slane %v800, 1
    %v1396 = vrot.slane %v801, 1
    %v1397 = vrot.slane %v802, 1
    %v1398 = vrot.slane %v803, 1
    %v1399 = vrot.slane %v804, 1
    %v1400 = vrot.slane %v805, 1
    %v1401 = vrot.slane %v806, 1
    %v1402 = vrot.slane %v807, 1
    %v1403 = vrot.slane %v808, 1
    %v1404 = vrot.slane %v809, 1
    %v1405 = vrot.slane %v810, 1
    %v1406 = vrot.slane %v811, 1
    %v1407 = vrot.slane %v812, 1
    %v1408 = vrot.slane %v813, 1
    %v1409 = vrot.slane %v814, 1
    %v1410 = vrot.slane %v815, 1
    %v1411 = vsel %vm573, %v1395, 0.0
    %v1412 = vsel %vm573, %v1396, 0.0
    %v1413 = vsel %vm573, %v1397, 0.0
    %v1414 = vsel %vm573, %v1398, 0.0
    %v1415 = vsel %vm573, %v1399, 0.0
    %v1416 = vsel %vm573, %v1400, 0.0
    %v1417 = vsel %vm573, %v1401, 0.0
    %v1418 = vsel %vm573, %v1402, 0.0
    %v1419 = vsel %vm573, %v1403, 0.0
    %v1420 = vsel %vm573, %v1404, 0.0
    %v1421 = vsel %vm573, %v1405, 0.0
    %v1422 = vsel %vm573, %v1406, 0.0
    %v1423 = vsel %vm573, %v1407, 0.0
    %v1424 = vsel %vm573, %v1408, 0.0
    %v1425 = vsel %vm573, %v1409, 0.0
    %v1426 = vsel %vm573, %v1410, 0.0
    %v1427 = vpack.c.bf16 %v1413, %v1411
    %v1428 = vpack.c.bf16 %v1414, %v1412
    %v1429 = vpack.c.bf16 %v1417, %v1415
    %v1430 = vpack.c.bf16 %v1418, %v1416
    %v1431 = vpack.c.bf16 %v1421, %v1419
    %v1432 = vpack.c.bf16 %v1422, %v1420
    %v1433 = vpack.c.bf16 %v1425, %v1423
    %v1434 = vpack.c.bf16 %v1426, %v1424
    %s1435 = scalar_lea.vmem [#allocation7], 512
    %v1436 = vld [vmem:[%s1435] sm:$0xff]
    %v1437 = vld [vmem:[%s1435 + $0x8] sm:$0xff]
    %v1438 = vld [vmem:[%s1435 + $0x10] sm:$0xff]
    %v1439 = vld [vmem:[%s1435 + $0x18] sm:$0xff]
    %v1440 = vld [vmem:[%s1435 + $0x20] sm:$0xff]
    %v1441 = vld [vmem:[%s1435 + $0x28] sm:$0xff]
    %v1442 = vld [vmem:[%s1435 + $0x30] sm:$0xff]
    %v1443 = vld [vmem:[%s1435 + $0x38] sm:$0xff]
    %v1444 = vld [vmem:[%s1435 + $0x40] sm:$0xff]
    %v1445 = vld [vmem:[%s1435 + $0x48] sm:$0xff]
    %v1446 = vld [vmem:[%s1435 + $0x50] sm:$0xff]
    %v1447 = vld [vmem:[%s1435 + $0x58] sm:$0xff]
    %v1448 = vld [vmem:[%s1435 + $0x60] sm:$0xff]
    %v1449 = vld [vmem:[%s1435 + $0x68] sm:$0xff]
    %v1450 = vld [vmem:[%s1435 + $0x70] sm:$0xff]
    %v1451 = vld [vmem:[%s1435 + $0x78] sm:$0xff]
    %v1452 = vld [vmem:[%s1435 + $0x80] sm:$0xff]
    %v1453 = vld [vmem:[%s1435 + $0x88] sm:$0xff]
    %v1454 = vld [vmem:[%s1435 + $0x90] sm:$0xff]
    %v1455 = vld [vmem:[%s1435 + $0x98] sm:$0xff]
    %v1456 = vld [vmem:[%s1435 + $0xa0] sm:$0xff]
    %v1457 = vld [vmem:[%s1435 + $0xa8] sm:$0xff]
    %v1458 = vld [vmem:[%s1435 + $0xb0] sm:$0xff]
    %v1459 = vld [vmem:[%s1435 + $0xb8] sm:$0xff]
    %v1460 = vld [vmem:[%s1435 + $0xc0] sm:$0xff]
    %v1461 = vld [vmem:[%s1435 + $0xc8] sm:$0xff]
    %v1462 = vld [vmem:[%s1435 + $0xd0] sm:$0xff]
    %v1463 = vld [vmem:[%s1435 + $0xd8] sm:$0xff]
    %v1464 = vld [vmem:[%s1435 + $0xe0] sm:$0xff]
    %v1465 = vld [vmem:[%s1435 + $0xe8] sm:$0xff]
    %v1466 = vld [vmem:[%s1435 + $0xf0] sm:$0xff]
    %v1467 = vld [vmem:[%s1435 + $0xf8] sm:$0xff]
    %v1500 = vunpack.c.l.b16 %v1436
    %v1501 = vunpack.c.h.b16 %v1436
    %v1502 = vunpack.c.l.b16 %v1437
    %v1503 = vunpack.c.h.b16 %v1437
    %v1504 = vunpack.c.l.b16 %v1438
    %v1505 = vunpack.c.h.b16 %v1438
    %v1506 = vunpack.c.l.b16 %v1439
    %v1507 = vunpack.c.h.b16 %v1439
    %v1508 = vunpack.c.l.b16 %v1440
    %v1509 = vunpack.c.h.b16 %v1440
    %v1510 = vunpack.c.l.b16 %v1441
    %v1511 = vunpack.c.h.b16 %v1441
    %v1512 = vunpack.c.l.b16 %v1442
    %v1513 = vunpack.c.h.b16 %v1442
    %v1514 = vunpack.c.l.b16 %v1443
    %v1515 = vunpack.c.h.b16 %v1443
    %v1516 = vunpack.c.l.b16 %v1444
    %v1517 = vunpack.c.h.b16 %v1444
    %v1518 = vunpack.c.l.b16 %v1445
    %v1519 = vunpack.c.h.b16 %v1445
    %v1520 = vunpack.c.l.b16 %v1446
    %v1521 = vunpack.c.h.b16 %v1446
    %v1522 = vunpack.c.l.b16 %v1447
    %v1523 = vunpack.c.h.b16 %v1447
    %v1524 = vunpack.c.l.b16 %v1448
    %v1525 = vunpack.c.h.b16 %v1448
    %v1526 = vunpack.c.l.b16 %v1449
    %v1527 = vunpack.c.h.b16 %v1449
    %v1528 = vunpack.c.l.b16 %v1450
    %v1529 = vunpack.c.h.b16 %v1450
    %v1530 = vunpack.c.l.b16 %v1451
    %v1531 = vunpack.c.h.b16 %v1451
    %v1532 = vunpack.c.l.b16 %v1452
    %v1533 = vunpack.c.h.b16 %v1452
    %v1534 = vunpack.c.l.b16 %v1453
    %v1535 = vunpack.c.h.b16 %v1453
    %v1536 = vunpack.c.l.b16 %v1454
    %v1537 = vunpack.c.h.b16 %v1454
    %v1538 = vunpack.c.l.b16 %v1455
    %v1539 = vunpack.c.h.b16 %v1455
    %v1540 = vunpack.c.l.b16 %v1456
    %v1541 = vunpack.c.h.b16 %v1456
    %v1542 = vunpack.c.l.b16 %v1457
    %v1543 = vunpack.c.h.b16 %v1457
    %v1544 = vunpack.c.l.b16 %v1458
    %v1545 = vunpack.c.h.b16 %v1458
    %v1546 = vunpack.c.l.b16 %v1459
    %v1547 = vunpack.c.h.b16 %v1459
    %v1548 = vunpack.c.l.b16 %v1460
    %v1549 = vunpack.c.h.b16 %v1460
    %v1550 = vunpack.c.l.b16 %v1461
    %v1551 = vunpack.c.h.b16 %v1461
    %v1552 = vunpack.c.l.b16 %v1462
    %v1553 = vunpack.c.h.b16 %v1462
    %v1554 = vunpack.c.l.b16 %v1463
    %v1555 = vunpack.c.h.b16 %v1463
    %v1556 = vunpack.c.l.b16 %v1464
    %v1557 = vunpack.c.h.b16 %v1464
    %v1558 = vunpack.c.l.b16 %v1465
    %v1559 = vunpack.c.h.b16 %v1465
    %v1560 = vunpack.c.l.b16 %v1466
    %v1561 = vunpack.c.h.b16 %v1466
    %v1562 = vunpack.c.l.b16 %v1467
    %v1563 = vunpack.c.h.b16 %v1467
    %v1564 = vpack.c.b16 %v1502, %v1500
    %v1565 = vpack.c.b16 %v1503, %v1501
    %v1566 = vpack.c.b16 %v1506, %v1504
    %v1567 = vpack.c.b16 %v1507, %v1505
    %v1568 = vpack.c.b16 %v1510, %v1508
    %v1569 = vpack.c.b16 %v1511, %v1509
    %v1570 = vpack.c.b16 %v1514, %v1512
    %v1571 = vpack.c.b16 %v1515, %v1513
    %v1572 = vpack.c.b16 %v1518, %v1516
    %v1573 = vpack.c.b16 %v1519, %v1517
    %v1574 = vpack.c.b16 %v1522, %v1520
    %v1575 = vpack.c.b16 %v1523, %v1521
    %v1576 = vpack.c.b16 %v1526, %v1524
    %v1577 = vpack.c.b16 %v1527, %v1525
    %v1578 = vpack.c.b16 %v1530, %v1528
    %v1579 = vpack.c.b16 %v1531, %v1529
    %v1580 = vpack.c.b16 %v1534, %v1532
    %v1581 = vpack.c.b16 %v1535, %v1533
    %v1582 = vpack.c.b16 %v1538, %v1536
    %v1583 = vpack.c.b16 %v1539, %v1537
    %v1584 = vpack.c.b16 %v1542, %v1540
    %v1585 = vpack.c.b16 %v1543, %v1541
    %v1586 = vpack.c.b16 %v1546, %v1544
    %v1587 = vpack.c.b16 %v1547, %v1545
    %v1588 = vpack.c.b16 %v1550, %v1548
    %v1589 = vpack.c.b16 %v1551, %v1549
    %v1590 = vpack.c.b16 %v1554, %v1552
    %v1591 = vpack.c.b16 %v1555, %v1553
    %v1592 = vpack.c.b16 %v1558, %v1556
    %v1593 = vpack.c.b16 %v1559, %v1557
    %v1594 = vpack.c.b16 %v1562, %v1560
    %v1595 = vpack.c.b16 %v1563, %v1561
    %1628 = vmatprep.subr.bf16.mxu0 %v1565
    %1629 = vmatpush1.bf16.msra.mxu0 %v1564
    %1630 = vmatprep.subr.bf16.mxu0 %v1567
    %1631 = vmatpush1.bf16.msra.mxu0 %v1566
    %1632 = vmatprep.subr.bf16.mxu0 %v1569
    %1633 = vmatpush1.bf16.msra.mxu0 %v1568
    %1634 = vmatprep.subr.bf16.mxu0 %v1571
    %1635 = vmatpush1.bf16.msra.mxu0 %v1570
    %1636 = vmatprep.subr.bf16.mxu0 %v1573
    %1637 = vmatpush1.bf16.msra.mxu0 %v1572
    %1638 = vmatprep.subr.bf16.mxu0 %v1575
    %1639 = vmatpush1.bf16.msra.mxu0 %v1574
    %1640 = vmatprep.subr.bf16.mxu0 %v1577
    %1641 = vmatpush1.bf16.msra.mxu0 %v1576
    %1642 = vmatprep.subr.bf16.mxu0 %v1579
    %1643 = vmatpush1.bf16.msra.mxu0 %v1578
    %1644 = vmatprep.subr.bf16.mxu0 %v1581
    %1645 = vmatpush1.bf16.msra.mxu0 %v1580
    %1646 = vmatprep.subr.bf16.mxu0 %v1583
    %1647 = vmatpush1.bf16.msra.mxu0 %v1582
    %1648 = vmatprep.subr.bf16.mxu0 %v1585
    %1649 = vmatpush1.bf16.msra.mxu0 %v1584
    %1650 = vmatprep.subr.bf16.mxu0 %v1587
    %1651 = vmatpush1.bf16.msra.mxu0 %v1586
    %1652 = vmatprep.subr.bf16.mxu0 %v1589
    %1653 = vmatpush1.bf16.msra.mxu0 %v1588
    %1654 = vmatprep.subr.bf16.mxu0 %v1591
    %1655 = vmatpush1.bf16.msra.mxu0 %v1590
    %1656 = vmatprep.subr.bf16.mxu0 %v1593
    %1657 = vmatpush1.bf16.msra.mxu0 %v1592
    %1658 = vmatprep.subr.bf16.mxu0 %v1595
    %1659 = vmatpush1.bf16.msra.mxu0 %v1594
    %1660 = vmatprep.mubr.bf16.mxu0 %v1428
    %1661 = vmatmul.mubr.bf16.gmra.mrb[0].mxu0 %v1427
    %v1662 = vpop.f32.mrb[0].mxu0
    %v1663 = vadd.f32 0.0, %v1662
    %v1664 = vpop.f32.mrb[0].mxu0
    %v1665 = vadd.f32 0.0, %v1664
    %v1666 = vpop.f32.mrb[0].mxu0
    %v1667 = vadd.f32 0.0, %v1666
    %v1668 = vpop.f32.mrb[0].mxu0
    %v1669 = vadd.f32 0.0, %v1668
    %1670 = vmatprep.mubr.bf16.mxu0 %v1430
    %1671 = vmatmul.mubr.bf16.gmra.mrb[0].mxu0 %v1429
    %v1672 = vpop.f32.mrb[0].mxu0
    %v1673 = vadd.f32 0.0, %v1672
    %v1674 = vpop.f32.mrb[0].mxu0
    %v1675 = vadd.f32 0.0, %v1674
    %v1676 = vpop.f32.mrb[0].mxu0
    %v1677 = vadd.f32 0.0, %v1676
    %v1678 = vpop.f32.mrb[0].mxu0
    %v1679 = vadd.f32 0.0, %v1678
    %1680 = vmatprep.mubr.bf16.mxu0 %v1432
    %1681 = vmatmul.mubr.bf16.gmra.mrb[0].mxu0 %v1431
    %v1682 = vpop.f32.mrb[0].mxu0
    %v1683 = vadd.f32 0.0, %v1682
    %v1684 = vpop.f32.mrb[0].mxu0
    %v1685 = vadd.f32 0.0, %v1684
    %v1686 = vpop.f32.mrb[0].mxu0
    %v1687 = vadd.f32 0.0, %v1686
    %v1688 = vpop.f32.mrb[0].mxu0
    %v1689 = vadd.f32 0.0, %v1688
    %1690 = vmatprep.mubr.bf16.mxu0 %v1434
    %1691 = vmatmul.mubr.bf16.gmra.mrb[0].mxu0 %v1433
    %v1692 = vpop.f32.mrb[0].mxu0
    %v1693 = vadd.f32 0.0, %v1692
    %v1694 = vpop.f32.mrb[0].mxu0
    %v1695 = vadd.f32 0.0, %v1694
    %v1696 = vpop.f32.mrb[0].mxu0
    %v1697 = vadd.f32 0.0, %v1696
    %v1698 = vpop.f32.mrb[0].mxu0
    %v1699 = vadd.f32 0.0, %v1698
    %1700 = vdwg.mxu0
    %v1701 = vadd.f32 %v1357, %v1663
    %v1702 = vadd.f32 %v1359, %v1665
    %v1703 = vadd.f32 %v1361, %v1667
    %v1704 = vadd.f32 %v1363, %v1669
    %v1705 = vadd.f32 %v1367, %v1673
    %v1706 = vadd.f32 %v1369, %v1675
    %v1707 = vadd.f32 %v1371, %v1677
    %v1708 = vadd.f32 %v1373, %v1679
    %v1709 = vadd.f32 %v1377, %v1683
    %v1710 = vadd.f32 %v1379, %v1685
    %v1711 = vadd.f32 %v1381, %v1687
    %v1712 = vadd.f32 %v1383, %v1689
    %v1713 = vadd.f32 %v1387, %v1693
    %v1714 = vadd.f32 %v1389, %v1695
    %v1715 = vadd.f32 %v1391, %v1697
    %v1716 = vadd.f32 %v1393, %v1699
    %v1717 = vld [vmem:[#allocation13] sm:$0x3]
    %v1719 = vlaneseq
    %v1720 = vshrl.u32 %v1719, 7
    %v1721 = vsub.s32 0, %v1720
    %v1722 = vrot.slane %v1717, %v1721
    %v1723 = vlaneseq
    %v1724 = vshrl.u32 %v1723, 7
    %v1725 = vsub.s32 1, %v1724
    %v1726 = vrot.slane %v1717, %v1725
    %v1729 = vadd.f32 %v1701, %v1722
    %v1730 = vadd.f32 %v1702, %v1726
    %v1731 = vadd.f32 %v1703, %v1722
    %v1732 = vadd.f32 %v1704, %v1726
    %v1733 = vadd.f32 %v1705, %v1722
    %v1734 = vadd.f32 %v1706, %v1726
    %v1735 = vadd.f32 %v1707, %v1722
    %v1736 = vadd.f32 %v1708, %v1726
    %v1737 = vadd.f32 %v1709, %v1722
    %v1738 = vadd.f32 %v1710, %v1726
    %v1739 = vadd.f32 %v1711, %v1722
    %v1740 = vadd.f32 %v1712, %v1726
    %v1741 = vadd.f32 %v1713, %v1722
    %v1742 = vadd.f32 %v1714, %v1726
    %v1743 = vadd.f32 %v1715, %v1722
    %v1744 = vadd.f32 %v1716, %v1726
    %v1745 = vmax.f32 %v1729, 0.0
    %v1746 = vmax.f32 %v1730, 0.0
    %v1747 = vmax.f32 %v1731, 0.0
    %v1748 = vmax.f32 %v1732, 0.0
    %v1749 = vmax.f32 %v1733, 0.0
    %v1750 = vmax.f32 %v1734, 0.0
    %v1751 = vmax.f32 %v1735, 0.0
    %v1752 = vmax.f32 %v1736, 0.0
    %v1753 = vmax.f32 %v1737, 0.0
    %v1754 = vmax.f32 %v1738, 0.0
    %v1755 = vmax.f32 %v1739, 0.0
    %v1756 = vmax.f32 %v1740, 0.0
    %v1757 = vmax.f32 %v1741, 0.0
    %v1758 = vmax.f32 %v1742, 0.0
    %v1759 = vmax.f32 %v1743, 0.0
    %v1760 = vmax.f32 %v1744, 0.0
    %v1761 = vpack.c.bf16 %v1747, %v1745
    %v1762 = vpack.c.bf16 %v1748, %v1746
    %v1763 = vpack.c.bf16 %v1751, %v1749
    %v1764 = vpack.c.bf16 %v1752, %v1750
    %v1765 = vpack.c.bf16 %v1755, %v1753
    %v1766 = vpack.c.bf16 %v1756, %v1754
    %v1767 = vpack.c.bf16 %v1759, %v1757
    %v1768 = vpack.c.bf16 %v1760, %v1758
    %s1769 = scalar_lea.vmem [#allocation8], 256
    %v1770 = vld [vmem:[%s1769] sm:$0xff]
    %v1771 = vld [vmem:[%s1769 + $0x8] sm:$0xff]
    %v1772 = vld [vmem:[%s1769 + $0x10] sm:$0xff]
    %v1773 = vld [vmem:[%s1769 + $0x18] sm:$0xff]
    %v1774 = vld [vmem:[%s1769 + $0x20] sm:$0xff]
    %v1775 = vld [vmem:[%s1769 + $0x28] sm:$0xff]
    %v1776 = vld [vmem:[%s1769 + $0x30] sm:$0xff]
    %v1777 = vld [vmem:[%s1769 + $0x38] sm:$0xff]
    %v1778 = vld [vmem:[%s1769 + $0x40] sm:$0xff]
    %v1779 = vld [vmem:[%s1769 + $0x48] sm:$0xff]
    %v1780 = vld [vmem:[%s1769 + $0x50] sm:$0xff]
    %v1781 = vld [vmem:[%s1769 + $0x58] sm:$0xff]
    %v1782 = vld [vmem:[%s1769 + $0x60] sm:$0xff]
    %v1783 = vld [vmem:[%s1769 + $0x68] sm:$0xff]
    %v1784 = vld [vmem:[%s1769 + $0x70] sm:$0xff]
    %v1785 = vld [vmem:[%s1769 + $0x78] sm:$0xff]
    %v1786 = vld [vmem:[%s1769 + $0x80] sm:$0xff]
    %v1787 = vld [vmem:[%s1769 + $0x88] sm:$0xff]
    %v1788 = vld [vmem:[%s1769 + $0x90] sm:$0xff]
    %v1789 = vld [vmem:[%s1769 + $0x98] sm:$0xff]
    %v1790 = vld [vmem:[%s1769 + $0xa0] sm:$0xff]
    %v1791 = vld [vmem:[%s1769 + $0xa8] sm:$0xff]
    %v1792 = vld [vmem:[%s1769 + $0xb0] sm:$0xff]
    %v1793 = vld [vmem:[%s1769 + $0xb8] sm:$0xff]
    %v1794 = vld [vmem:[%s1769 + $0xc0] sm:$0xff]
    %v1795 = vld [vmem:[%s1769 + $0xc8] sm:$0xff]
    %v1796 = vld [vmem:[%s1769 + $0xd0] sm:$0xff]
    %v1797 = vld [vmem:[%s1769 + $0xd8] sm:$0xff]
    %v1798 = vld [vmem:[%s1769 + $0xe0] sm:$0xff]
    %v1799 = vld [vmem:[%s1769 + $0xe8] sm:$0xff]
    %v1800 = vld [vmem:[%s1769 + $0xf0] sm:$0xff]
    %v1801 = vld [vmem:[%s1769 + $0xf8] sm:$0xff]
    %v1802 = vrot.slane %v1745, 7
    %v1803 = vrot.slane %v1746, 7
    %v1804 = vrot.slane %v1747, 7
    %v1805 = vrot.slane %v1748, 7
    %v1806 = vrot.slane %v1749, 7
    %v1807 = vrot.slane %v1750, 7
    %v1808 = vrot.slane %v1751, 7
    %v1809 = vrot.slane %v1752, 7
    %v1810 = vrot.slane %v1753, 7
    %v1811 = vrot.slane %v1754, 7
    %v1812 = vrot.slane %v1755, 7
    %v1813 = vrot.slane %v1756, 7
    %v1814 = vrot.slane %v1757, 7
    %v1815 = vrot.slane %v1758, 7
    %v1816 = vrot.slane %v1759, 7
    %v1817 = vrot.slane %v1760, 7
    %v1818 = vsel %vm229, %v1802, 0.0
    %v1819 = vsel %vm229, %v1803, 0.0
    %v1820 = vsel %vm229, %v1804, 0.0
    %v1821 = vsel %vm229, %v1805, 0.0
    %v1822 = vsel %vm229, %v1806, 0.0
    %v1823 = vsel %vm229, %v1807, 0.0
    %v1824 = vsel %vm229, %v1808, 0.0
    %v1825 = vsel %vm229, %v1809, 0.0
    %v1826 = vsel %vm229, %v1810, 0.0
    %v1827 = vsel %vm229, %v1811, 0.0
    %v1828 = vsel %vm229, %v1812, 0.0
    %v1829 = vsel %vm229, %v1813, 0.0
    %v1830 = vsel %vm229, %v1814, 0.0
    %v1831 = vsel %vm229, %v1815, 0.0
    %v1832 = vsel %vm229, %v1816, 0.0
    %v1833 = vsel %vm229, %v1817, 0.0
    %v1834 = vpack.c.bf16 %v1820, %v1818
    %v1835 = vpack.c.bf16 %v1821, %v1819
    %v1836 = vpack.c.bf16 %v1824, %v1822
    %v1837 = vpack.c.bf16 %v1825, %v1823
    %v1838 = vpack.c.bf16 %v1828, %v1826
    %v1839 = vpack.c.bf16 %v1829, %v1827
    %v1840 = vpack.c.bf16 %v1832, %v1830
    %v1841 = vpack.c.bf16 %v1833, %v1831
    %v1842 = vld [vmem:[#allocation8] sm:$0xff]
    %v1843 = vld [vmem:[#allocation8 + $0x8] sm:$0xff]
    %v1844 = vld [vmem:[#allocation8 + $0x10] sm:$0xff]
    %v1845 = vld [vmem:[#allocation8 + $0x18] sm:$0xff]
    %v1846 = vld [vmem:[#allocation8 + $0x20] sm:$0xff]
    %v1847 = vld [vmem:[#allocation8 + $0x28] sm:$0xff]
    %v1848 = vld [vmem:[#allocation8 + $0x30] sm:$0xff]
    %v1849 = vld [vmem:[#allocation8 + $0x38] sm:$0xff]
    %v1850 = vld [vmem:[#allocation8 + $0x40] sm:$0xff]
    %v1851 = vld [vmem:[#allocation8 + $0x48] sm:$0xff]
    %v1852 = vld [vmem:[#allocation8 + $0x50] sm:$0xff]
    %v1853 = vld [vmem:[#allocation8 + $0x58] sm:$0xff]
    %v1854 = vld [vmem:[#allocation8 + $0x60] sm:$0xff]
    %v1855 = vld [vmem:[#allocation8 + $0x68] sm:$0xff]
    %v1856 = vld [vmem:[#allocation8 + $0x70] sm:$0xff]
    %v1857 = vld [vmem:[#allocation8 + $0x78] sm:$0xff]
    %v1858 = vld [vmem:[#allocation8 + $0x80] sm:$0xff]
    %v1859 = vld [vmem:[#allocation8 + $0x88] sm:$0xff]
    %v1860 = vld [vmem:[#allocation8 + $0x90] sm:$0xff]
    %v1861 = vld [vmem:[#allocation8 + $0x98] sm:$0xff]
    %v1862 = vld [vmem:[#allocation8 + $0xa0] sm:$0xff]
    %v1863 = vld [vmem:[#allocation8 + $0xa8] sm:$0xff]
    %v1864 = vld [vmem:[#allocation8 + $0xb0] sm:$0xff]
    %v1865 = vld [vmem:[#allocation8 + $0xb8] sm:$0xff]
    %v1866 = vld [vmem:[#allocation8 + $0xc0] sm:$0xff]
    %v1867 = vld [vmem:[#allocation8 + $0xc8] sm:$0xff]
    %v1868 = vld [vmem:[#allocation8 + $0xd0] sm:$0xff]
    %v1869 = vld [vmem:[#allocation8 + $0xd8] sm:$0xff]
    %v1870 = vld [vmem:[#allocation8 + $0xe0] sm:$0xff]
    %v1871 = vld [vmem:[#allocation8 + $0xe8] sm:$0xff]
    %v1872 = vld [vmem:[#allocation8 + $0xf0] sm:$0xff]
    %v1873 = vld [vmem:[#allocation8 + $0xf8] sm:$0xff]
    %v1906 = vunpack.c.l.b16 %v1842
    %v1907 = vunpack.c.h.b16 %v1842
    %v1908 = vunpack.c.l.b16 %v1843
    %v1909 = vunpack.c.h.b16 %v1843
    %v1910 = vunpack.c.l.b16 %v1844
    %v1911 = vunpack.c.h.b16 %v1844
    %v1912 = vunpack.c.l.b16 %v1845
    %v1913 = vunpack.c.h.b16 %v1845
    %v1914 = vunpack.c.l.b16 %v1846
    %v1915 = vunpack.c.h.b16 %v1846
    %v1916 = vunpack.c.l.b16 %v1847
    %v1917 = vunpack.c.h.b16 %v1847
    %v1918 = vunpack.c.l.b16 %v1848
    %v1919 = vunpack.c.h.b16 %v1848
    %v1920 = vunpack.c.l.b16 %v1849
    %v1921 = vunpack.c.h.b16 %v1849
    %v1922 = vunpack.c.l.b16 %v1850
    %v1923 = vunpack.c.h.b16 %v1850
    %v1924 = vunpack.c.l.b16 %v1851
    %v1925 = vunpack.c.h.b16 %v1851
    %v1926 = vunpack.c.l.b16 %v1852
    %v1927 = vunpack.c.h.b16 %v1852
    %v1928 = vunpack.c.l.b16 %v1853
    %v1929 = vunpack.c.h.b16 %v1853
    %v1930 = vunpack.c.l.b16 %v1854
    %v1931 = vunpack.c.h.b16 %v1854
    %v1932 = vunpack.c.l.b16 %v1855
    %v1933 = vunpack.c.h.b16 %v1855
    %v1934 = vunpack.c.l.b16 %v1856
    %v1935 = vunpack.c.h.b16 %v1856
    %v1936 = vunpack.c.l.b16 %v1857
    %v1937 = vunpack.c.h.b16 %v1857
    %v1938 = vunpack.c.l.b16 %v1858
    %v1939 = vunpack.c.h.b16 %v1858
    %v1940 = vunpack.c.l.b16 %v1859
    %v1941 = vunpack.c.h.b16 %v1859
    %v1942 = vunpack.c.l.b16 %v1860
    %v1943 = vunpack.c.h.b16 %v1860
    %v1944 = vunpack.c.l.b16 %v1861
    %v1945 = vunpack.c.h.b16 %v1861
    %v1946 = vunpack.c.l.b16 %v1862
    %v1947 = vunpack.c.h.b16 %v1862
    %v1948 = vunpack.c.l.b16 %v1863
    %v1949 = vunpack.c.h.b16 %v1863
    %v1950 = vunpack.c.l.b16 %v1864
    %v1951 = vunpack.c.h.b16 %v1864
    %v1952 = vunpack.c.l.b16 %v1865
    %v1953 = vunpack.c.h.b16 %v1865
    %v1954 = vunpack.c.l.b16 %v1866
    %v1955 = vunpack.c.h.b16 %v1866
    %v1956 = vunpack.c.l.b16 %v1867
    %v1957 = vunpack.c.h.b16 %v1867
    %v1958 = vunpack.c.l.b16 %v1868
    %v1959 = vunpack.c.h.b16 %v1868
    %v1960 = vunpack.c.l.b16 %v1869
    %v1961 = vunpack.c.h.b16 %v1869
    %v1962 = vunpack.c.l.b16 %v1870
    %v1963 = vunpack.c.h.b16 %v1870
    %v1964 = vunpack.c.l.b16 %v1871
    %v1965 = vunpack.c.h.b16 %v1871
    %v1966 = vunpack.c.l.b16 %v1872
    %v1967 = vunpack.c.h.b16 %v1872
    %v1968 = vunpack.c.l.b16 %v1873
    %v1969 = vunpack.c.h.b16 %v1873
    %v1970 = vpack.c.b16 %v1908, %v1906
    %v1971 = vpack.c.b16 %v1909, %v1907
    %v1972 = vpack.c.b16 %v1912, %v1910
    %v1973 = vpack.c.b16 %v1913, %v1911
    %v1974 = vpack.c.b16 %v1916, %v1914
    %v1975 = vpack.c.b16 %v1917, %v1915
    %v1976 = vpack.c.b16 %v1920, %v1918
    %v1977 = vpack.c.b16 %v1921, %v1919
    %v1978 = vpack.c.b16 %v1924, %v1922
    %v1979 = vpack.c.b16 %v1925, %v1923
    %v1980 = vpack.c.b16 %v1928, %v1926
    %v1981 = vpack.c.b16 %v1929, %v1927
    %v1982 = vpack.c.b16 %v1932, %v1930
    %v1983 = vpack.c.b16 %v1933, %v1931
    %v1984 = vpack.c.b16 %v1936, %v1934
    %v1985 = vpack.c.b16 %v1937, %v1935
    %v1986 = vpack.c.b16 %v1940, %v1938
    %v1987 = vpack.c.b16 %v1941, %v1939
    %v1988 = vpack.c.b16 %v1944, %v1942
    %v1989 = vpack.c.b16 %v1945, %v1943
    %v1990 = vpack.c.b16 %v1948, %v1946
    %v1991 = vpack.c.b16 %v1949, %v1947
    %v1992 = vpack.c.b16 %v1952, %v1950
    %v1993 = vpack.c.b16 %v1953, %v1951
    %v1994 = vpack.c.b16 %v1956, %v1954
    %v1995 = vpack.c.b16 %v1957, %v1955
    %v1996 = vpack.c.b16 %v1960, %v1958
    %v1997 = vpack.c.b16 %v1961, %v1959
    %v1998 = vpack.c.b16 %v1964, %v1962
    %v1999 = vpack.c.b16 %v1965, %v1963
    %v2000 = vpack.c.b16 %v1968, %v1966
    %v2001 = vpack.c.b16 %v1969, %v1967
    %2034 = vmatprep.subr.bf16.mxu0 %v1971
    %2035 = vmatpush1.bf16.msra.mxu0 %v1970
    %2036 = vmatprep.subr.bf16.mxu0 %v1973
    %2037 = vmatpush1.bf16.msra.mxu0 %v1972
    %2038 = vmatprep.subr.bf16.mxu0 %v1975
    %2039 = vmatpush1.bf16.msra.mxu0 %v1974
    %2040 = vmatprep.subr.bf16.mxu0 %v1977
    %2041 = vmatpush1.bf16.msra.mxu0 %v1976
    %2042 = vmatprep.subr.bf16.mxu0 %v1979
    %2043 = vmatpush1.bf16.msra.mxu0 %v1978
    %2044 = vmatprep.subr.bf16.mxu0 %v1981
    %2045 = vmatpush1.bf16.msra.mxu0 %v1980
    %2046 = vmatprep.subr.bf16.mxu0 %v1983
    %2047 = vmatpush1.bf16.msra.mxu0 %v1982
    %2048 = vmatprep.subr.bf16.mxu0 %v1985
    %2049 = vmatpush1.bf16.msra.mxu0 %v1984
    %2050 = vmatprep.subr.bf16.mxu0 %v1987
    %2051 = vmatpush1.bf16.msra.mxu0 %v1986
    %2052 = vmatprep.subr.bf16.mxu0 %v1989
    %2053 = vmatpush1.bf16.msra.mxu0 %v1988
    %2054 = vmatprep.subr.bf16.mxu0 %v1991
    %2055 = vmatpush1.bf16.msra.mxu0 %v1990
    %2056 = vmatprep.subr.bf16.mxu0 %v1993
    %2057 = vmatpush1.bf16.msra.mxu0 %v1992
    %2058 = vmatprep.subr.bf16.mxu0 %v1995
    %2059 = vmatpush1.bf16.msra.mxu0 %v1994
    %2060 = vmatprep.subr.bf16.mxu0 %v1997
    %2061 = vmatpush1.bf16.msra.mxu0 %v1996
    %2062 = vmatprep.subr.bf16.mxu0 %v1999
    %2063 = vmatpush1.bf16.msra.mxu0 %v1998
    %2064 = vmatprep.subr.bf16.mxu0 %v2001
    %2065 = vmatpush1.bf16.msra.mxu0 %v2000
    %2066 = vmatprep.mubr.bf16.mxu0 %v1835
    %2067 = vmatmul.mubr.bf16.gmra.mrb[0].mxu0 %v1834
    %v2068 = vpop.f32.mrb[0].mxu0
    %v2069 = vadd.f32 0.0, %v2068
    %v2070 = vpop.f32.mrb[0].mxu0
    %v2071 = vadd.f32 0.0, %v2070
    %v2072 = vpop.f32.mrb[0].mxu0
    %v2073 = vadd.f32 0.0, %v2072
    %v2074 = vpop.f32.mrb[0].mxu0
    %v2075 = vadd.f32 0.0, %v2074
    %2076 = vmatprep.mubr.bf16.mxu0 %v1837
    %2077 = vmatmul.mubr.bf16.gmra.mrb[0].mxu0 %v1836
    %v2078 = vpop.f32.mrb[0].mxu0
    %v2079 = vadd.f32 0.0, %v2078
    %v2080 = vpop.f32.mrb[0].mxu0
    %v2081 = vadd.f32 0.0, %v2080
    %v2082 = vpop.f32.mrb[0].mxu0
    %v2083 = vadd.f32 0.0, %v2082
    %v2084 = vpop.f32.mrb[0].mxu0
    %v2085 = vadd.f32 0.0, %v2084
    %2086 = vmatprep.mubr.bf16.mxu0 %v1839
    %2087 = vmatmul.mubr.bf16.gmra.mrb[0].mxu0 %v1838
    %v2088 = vpop.f32.mrb[0].mxu0
    %v2089 = vadd.f32 0.0, %v2088
    %v2090 = vpop.f32.mrb[0].mxu0
    %v2091 = vadd.f32 0.0, %v2090
    %v2092 = vpop.f32.mrb[0].mxu0
    %v2093 = vadd.f32 0.0, %v2092
    %v2094 = vpop.f32.mrb[0].mxu0
    %v2095 = vadd.f32 0.0, %v2094
    %2096 = vmatprep.mubr.bf16.mxu0 %v1841
    %2097 = vmatmul.mubr.bf16.gmra.mrb[0].mxu0 %v1840
    %v2098 = vpop.f32.mrb[0].mxu0
    %v2099 = vadd.f32 0.0, %v2098
    %v2100 = vpop.f32.mrb[0].mxu0
    %v2101 = vadd.f32 0.0, %v2100
    %v2102 = vpop.f32.mrb[0].mxu0
    %v2103 = vadd.f32 0.0, %v2102
    %v2104 = vpop.f32.mrb[0].mxu0
    %v2105 = vadd.f32 0.0, %v2104
    %2106 = vdwg.mxu0
    %v2139 = vunpack.c.l.b16 %v1770
    %v2140 = vunpack.c.h.b16 %v1770
    %v2141 = vunpack.c.l.b16 %v1771
    %v2142 = vunpack.c.h.b16 %v1771
    %v2143 = vunpack.c.l.b16 %v1772
    %v2144 = vunpack.c.h.b16 %v1772
    %v2145 = vunpack.c.l.b16 %v1773
    %v2146 = vunpack.c.h.b16 %v1773
    %v2147 = vunpack.c.l.b16 %v1774
    %v2148 = vunpack.c.h.b16 %v1774
    %v2149 = vunpack.c.l.b16 %v1775
    %v2150 = vunpack.c.h.b16 %v1775
    %v2151 = vunpack.c.l.b16 %v1776
    %v2152 = vunpack.c.h.b16 %v1776
    %v2153 = vunpack.c.l.b16 %v1777
    %v2154 = vunpack.c.h.b16 %v1777
    %v2155 = vunpack.c.l.b16 %v1778
    %v2156 = vunpack.c.h.b16 %v1778
    %v2157 = vunpack.c.l.b16 %v1779
    %v2158 = vunpack.c.h.b16 %v1779
    %v2159 = vunpack.c.l.b16 %v1780
    %v2160 = vunpack.c.h.b16 %v1780
    %v2161 = vunpack.c.l.b16 %v1781
    %v2162 = vunpack.c.h.b16 %v1781
    %v2163 = vunpack.c.l.b16 %v1782
    %v2164 = vunpack.c.h.b16 %v1782
    %v2165 = vunpack.c.l.b16 %v1783
    %v2166 = vunpack.c.h.b16 %v1783
    %v2167 = vunpack.c.l.b16 %v1784
    %v2168 = vunpack.c.h.b16 %v1784
    %v2169 = vunpack.c.l.b16 %v1785
    %v2170 = vunpack.c.h.b16 %v1785
    %v2171 = vunpack.c.l.b16 %v1786
    %v2172 = vunpack.c.h.b16 %v1786
    %v2173 = vunpack.c.l.b16 %v1787
    %v2174 = vunpack.c.h.b16 %v1787
    %v2175 = vunpack.c.l.b16 %v1788
    %v2176 = vunpack.c.h.b16 %v1788
    %v2177 = vunpack.c.l.b16 %v1789
    %v2178 = vunpack.c.h.b16 %v1789
    %v2179 = vunpack.c.l.b16 %v1790
    %v2180 = vunpack.c.h.b16 %v1790
    %v2181 = vunpack.c.l.b16 %v1791
    %v2182 = vunpack.c.h.b16 %v1791
    %v2183 = vunpack.c.l.b16 %v1792
    %v2184 = vunpack.c.h.b16 %v1792
    %v2185 = vunpack.c.l.b16 %v1793
    %v2186 = vunpack.c.h.b16 %v1793
    %v2187 = vunpack.c.l.b16 %v1794
    %v2188 = vunpack.c.h.b16 %v1794
    %v2189 = vunpack.c.l.b16 %v1795
    %v2190 = vunpack.c.h.b16 %v1795
    %v2191 = vunpack.c.l.b16 %v1796
    %v2192 = vunpack.c.h.b16 %v1796
    %v2193 = vunpack.c.l.b16 %v1797
    %v2194 = vunpack.c.h.b16 %v1797
    %v2195 = vunpack.c.l.b16 %v1798
    %v2196 = vunpack.c.h.b16 %v1798
    %v2197 = vunpack.c.l.b16 %v1799
    %v2198 = vunpack.c.h.b16 %v1799
    %v2199 = vunpack.c.l.b16 %v1800
    %v2200 = vunpack.c.h.b16 %v1800
    %v2201 = vunpack.c.l.b16 %v1801
    %v2202 = vunpack.c.h.b16 %v1801
    %v2203 = vpack.c.b16 %v2141, %v2139
    %v2204 = vpack.c.b16 %v2142, %v2140
    %v2205 = vpack.c.b16 %v2145, %v2143
    %v2206 = vpack.c.b16 %v2146, %v2144
    %v2207 = vpack.c.b16 %v2149, %v2147
    %v2208 = vpack.c.b16 %v2150, %v2148
    %v2209 = vpack.c.b16 %v2153, %v2151
    %v2210 = vpack.c.b16 %v2154, %v2152
    %v2211 = vpack.c.b16 %v2157, %v2155
    %v2212 = vpack.c.b16 %v2158, %v2156
    %v2213 = vpack.c.b16 %v2161, %v2159
    %v2214 = vpack.c.b16 %v2162, %v2160
    %v2215 = vpack.c.b16 %v2165, %v2163
    %v2216 = vpack.c.b16 %v2166, %v2164
    %v2217 = vpack.c.b16 %v2169, %v2167
    %v2218 = vpack.c.b16 %v2170, %v2168
    %v2219 = vpack.c.b16 %v2173, %v2171
    %v2220 = vpack.c.b16 %v2174, %v2172
    %v2221 = vpack.c.b16 %v2177, %v2175
    %v2222 = vpack.c.b16 %v2178, %v2176
    %v2223 = vpack.c.b16 %v2181, %v2179
    %v2224 = vpack.c.b16 %v2182, %v2180
    %v2225 = vpack.c.b16 %v2185, %v2183
    %v2226 = vpack.c.b16 %v2186, %v2184
    %v2227 = vpack.c.b16 %v2189, %v2187
    %v2228 = vpack.c.b16 %v2190, %v2188
    %v2229 = vpack.c.b16 %v2193, %v2191
    %v2230 = vpack.c.b16 %v2194, %v2192
    %v2231 = vpack.c.b16 %v2197, %v2195
    %v2232 = vpack.c.b16 %v2198, %v2196
    %v2233 = vpack.c.b16 %v2201, %v2199
    %v2234 = vpack.c.b16 %v2202, %v2200
    %2267 = vmatprep.subr.bf16.mxu0 %v2204
    %2268 = vmatpush1.bf16.msra.mxu0 %v2203
    %2269 = vmatprep.subr.bf16.mxu0 %v2206
    %2270 = vmatpush1.bf16.msra.mxu0 %v2205
    %2271 = vmatprep.subr.bf16.mxu0 %v2208
    %2272 = vmatpush1.bf16.msra.mxu0 %v2207
    %2273 = vmatprep.subr.bf16.mxu0 %v2210
    %2274 = vmatpush1.bf16.msra.mxu0 %v2209
    %2275 = vmatprep.subr.bf16.mxu0 %v2212
    %2276 = vmatpush1.bf16.msra.mxu0 %v2211
    %2277 = vmatprep.subr.bf16.mxu0 %v2214
    %2278 = vmatpush1.bf16.msra.mxu0 %v2213
    %2279 = vmatprep.subr.bf16.mxu0 %v2216
    %2280 = vmatpush1.bf16.msra.mxu0 %v2215
    %2281 = vmatprep.subr.bf16.mxu0 %v2218
    %2282 = vmatpush1.bf16.msra.mxu0 %v2217
    %2283 = vmatprep.subr.bf16.mxu0 %v2220
    %2284 = vmatpush1.bf16.msra.mxu0 %v2219
    %2285 = vmatprep.subr.bf16.mxu0 %v2222
    %2286 = vmatpush1.bf16.msra.mxu0 %v2221
    %2287 = vmatprep.subr.bf16.mxu0 %v2224
    %2288 = vmatpush1.bf16.msra.mxu0 %v2223
    %2289 = vmatprep.subr.bf16.mxu0 %v2226
    %2290 = vmatpush1.bf16.msra.mxu0 %v2225
    %2291 = vmatprep.subr.bf16.mxu0 %v2228
    %2292 = vmatpush1.bf16.msra.mxu0 %v2227
    %2293 = vmatprep.subr.bf16.mxu0 %v2230
    %2294 = vmatpush1.bf16.msra.mxu0 %v2229
    %2295 = vmatprep.subr.bf16.mxu0 %v2232
    %2296 = vmatpush1.bf16.msra.mxu0 %v2231
    %2297 = vmatprep.subr.bf16.mxu0 %v2234
    %2298 = vmatpush1.bf16.msra.mxu0 %v2233
    %2299 = vmatprep.mubr.bf16.mxu0 %v1762
    %2300 = vmatmul.mubr.bf16.gmra.mrb[0].mxu0 %v1761
    %v2301 = vpop.f32.mrb[0].mxu0
    %v2302 = vadd.f32 %v2069, %v2301
    %v2303 = vpop.f32.mrb[0].mxu0
    %v2304 = vadd.f32 %v2071, %v2303
    %v2305 = vpop.f32.mrb[0].mxu0
    %v2306 = vadd.f32 %v2073, %v2305
    %v2307 = vpop.f32.mrb[0].mxu0
    %v2308 = vadd.f32 %v2075, %v2307
    %2309 = vmatprep.mubr.bf16.mxu0 %v1764
    %2310 = vmatmul.mubr.bf16.gmra.mrb[0].mxu0 %v1763
    %v2311 = vpop.f32.mrb[0].mxu0
    %v2312 = vadd.f32 %v2079, %v2311
    %v2313 = vpop.f32.mrb[0].mxu0
    %v2314 = vadd.f32 %v2081, %v2313
    %v2315 = vpop.f32.mrb[0].mxu0
    %v2316 = vadd.f32 %v2083, %v2315
    %v2317 = vpop.f32.mrb[0].mxu0
    %v2318 = vadd.f32 %v2085, %v2317
    %2319 = vmatprep.mubr.bf16.mxu0 %v1766
    %2320 = vmatmul.mubr.bf16.gmra.mrb[0].mxu0 %v1765
    %v2321 = vpop.f32.mrb[0].mxu0
    %v2322 = vadd.f32 %v2089, %v2321
    %v2323 = vpop.f32.mrb[0].mxu0
    %v2324 = vadd.f32 %v2091, %v2323
    %v2325 = vpop.f32.mrb[0].mxu0
    %v2326 = vadd.f32 %v2093, %v2325
    %v2327 = vpop.f32.mrb[0].mxu0
    %v2328 = vadd.f32 %v2095, %v2327
    %2329 = vmatprep.mubr.bf16.mxu0 %v1768
    %2330 = vmatmul.mubr.bf16.gmra.mrb[0].mxu0 %v1767
    %v2331 = vpop.f32.mrb[0].mxu0
    %v2332 = vadd.f32 %v2099, %v2331
    %v2333 = vpop.f32.mrb[0].mxu0
    %v2334 = vadd.f32 %v2101, %v2333
    %v2335 = vpop.f32.mrb[0].mxu0
    %v2336 = vadd.f32 %v2103, %v2335
    %v2337 = vpop.f32.mrb[0].mxu0
    %v2338 = vadd.f32 %v2105, %v2337
    %2339 = vdwg.mxu0
    %v2340 = vrot.slane %v1745, 1
    %v2341 = vrot.slane %v1746, 1
    %v2342 = vrot.slane %v1747, 1
    %v2343 = vrot.slane %v1748, 1
    %v2344 = vrot.slane %v1749, 1
    %v2345 = vrot.slane %v1750, 1
    %v2346 = vrot.slane %v1751, 1
    %v2347 = vrot.slane %v1752, 1
    %v2348 = vrot.slane %v1753, 1
    %v2349 = vrot.slane %v1754, 1
    %v2350 = vrot.slane %v1755, 1
    %v2351 = vrot.slane %v1756, 1
    %v2352 = vrot.slane %v1757, 1
    %v2353 = vrot.slane %v1758, 1
    %v2354 = vrot.slane %v1759, 1
    %v2355 = vrot.slane %v1760, 1
    %v2356 = vsel %vm573, %v2340, 0.0
    %v2357 = vsel %vm573, %v2341, 0.0
    %v2358 = vsel %vm573, %v2342, 0.0
    %v2359 = vsel %vm573, %v2343, 0.0
    %v2360 = vsel %vm573, %v2344, 0.0
    %v2361 = vsel %vm573, %v2345, 0.0
    %v2362 = vsel %vm573, %v2346, 0.0
    %v2363 = vsel %vm573, %v2347, 0.0
    %v2364 = vsel %vm573, %v2348, 0.0
    %v2365 = vsel %vm573, %v2349, 0.0
    %v2366 = vsel %vm573, %v2350, 0.0
    %v2367 = vsel %vm573, %v2351, 0.0
    %v2368 = vsel %vm573, %v2352, 0.0
    %v2369 = vsel %vm573, %v2353, 0.0
    %v2370 = vsel %vm573, %v2354, 0.0
    %v2371 = vsel %vm573, %v2355, 0.0
    %v2372 = vpack.c.bf16 %v2358, %v2356
    %v2373 = vpack.c.bf16 %v2359, %v2357
    %v2374 = vpack.c.bf16 %v2362, %v2360
    %v2375 = vpack.c.bf16 %v2363, %v2361
    %v2376 = vpack.c.bf16 %v2366, %v2364
    %v2377 = vpack.c.bf16 %v2367, %v2365
    %v2378 = vpack.c.bf16 %v2370, %v2368
    %v2379 = vpack.c.bf16 %v2371, %v2369
    %s2380 = scalar_lea.vmem [#allocation8], 512
    %v2381 = vld [vmem:[%s2380] sm:$0xff]
    %v2382 = vld [vmem:[%s2380 + $0x8] sm:$0xff]
    %v2383 = vld [vmem:[%s2380 + $0x10] sm:$0xff]
    %v2384 = vld [vmem:[%s2380 + $0x18] sm:$0xff]
    %v2385 = vld [vmem:[%s2380 + $0x20] sm:$0xff]
    %v2386 = vld [vmem:[%s2380 + $0x28] sm:$0xff]
    %v2387 = vld [vmem:[%s2380 + $0x30] sm:$0xff]
    %v2388 = vld [vmem:[%s2380 + $0x38] sm:$0xff]
    %v2389 = vld [vmem:[%s2380 + $0x40] sm:$0xff]
    %v2390 = vld [vmem:[%s2380 + $0x48] sm:$0xff]
    %v2391 = vld [vmem:[%s2380 + $0x50] sm:$0xff]
    %v2392 = vld [vmem:[%s2380 + $0x58] sm:$0xff]
    %v2393 = vld [vmem:[%s2380 + $0x60] sm:$0xff]
    %v2394 = vld [vmem:[%s2380 + $0x68] sm:$0xff]
    %v2395 = vld [vmem:[%s2380 + $0x70] sm:$0xff]
    %v2396 = vld [vmem:[%s2380 + $0x78] sm:$0xff]
    %v2397 = vld [vmem:[%s2380 + $0x80] sm:$0xff]
    %v2398 = vld [vmem:[%s2380 + $0x88] sm:$0xff]
    %v2399 = vld [vmem:[%s2380 + $0x90] sm:$0xff]
    %v2400 = vld [vmem:[%s2380 + $0x98] sm:$0xff]
    %v2401 = vld [vmem:[%s2380 + $0xa0] sm:$0xff]
    %v2402 = vld [vmem:[%s2380 + $0xa8] sm:$0xff]
    %v2403 = vld [vmem:[%s2380 + $0xb0] sm:$0xff]
    %v2404 = vld [vmem:[%s2380 + $0xb8] sm:$0xff]
    %v2405 = vld [vmem:[%s2380 + $0xc0] sm:$0xff]
    %v2406 = vld [vmem:[%s2380 + $0xc8] sm:$0xff]
    %v2407 = vld [vmem:[%s2380 + $0xd0] sm:$0xff]
    %v2408 = vld [vmem:[%s2380 + $0xd8] sm:$0xff]
    %v2409 = vld [vmem:[%s2380 + $0xe0] sm:$0xff]
    %v2410 = vld [vmem:[%s2380 + $0xe8] sm:$0xff]
    %v2411 = vld [vmem:[%s2380 + $0xf0] sm:$0xff]
    %v2412 = vld [vmem:[%s2380 + $0xf8] sm:$0xff]
    %v2445 = vunpack.c.l.b16 %v2381
    %v2446 = vunpack.c.h.b16 %v2381
    %v2447 = vunpack.c.l.b16 %v2382
    %v2448 = vunpack.c.h.b16 %v2382
    %v2449 = vunpack.c.l.b16 %v2383
    %v2450 = vunpack.c.h.b16 %v2383
    %v2451 = vunpack.c.l.b16 %v2384
    %v2452 = vunpack.c.h.b16 %v2384
    %v2453 = vunpack.c.l.b16 %v2385
    %v2454 = vunpack.c.h.b16 %v2385
    %v2455 = vunpack.c.l.b16 %v2386
    %v2456 = vunpack.c.h.b16 %v2386
    %v2457 = vunpack.c.l.b16 %v2387
    %v2458 = vunpack.c.h.b16 %v2387
    %v2459 = vunpack.c.l.b16 %v2388
    %v2460 = vunpack.c.h.b16 %v2388
    %v2461 = vunpack.c.l.b16 %v2389
    %v2462 = vunpack.c.h.b16 %v2389
    %v2463 = vunpack.c.l.b16 %v2390
    %v2464 = vunpack.c.h.b16 %v2390
    %v2465 = vunpack.c.l.b16 %v2391
    %v2466 = vunpack.c.h.b16 %v2391
    %v2467 = vunpack.c.l.b16 %v2392
    %v2468 = vunpack.c.h.b16 %v2392
    %v2469 = vunpack.c.l.b16 %v2393
    %v2470 = vunpack.c.h.b16 %v2393
    %v2471 = vunpack.c.l.b16 %v2394
    %v2472 = vunpack.c.h.b16 %v2394
    %v2473 = vunpack.c.l.b16 %v2395
    %v2474 = vunpack.c.h.b16 %v2395
    %v2475 = vunpack.c.l.b16 %v2396
    %v2476 = vunpack.c.h.b16 %v2396
    %v2477 = vunpack.c.l.b16 %v2397
    %v2478 = vunpack.c.h.b16 %v2397
    %v2479 = vunpack.c.l.b16 %v2398
    %v2480 = vunpack.c.h.b16 %v2398
    %v2481 = vunpack.c.l.b16 %v2399
    %v2482 = vunpack.c.h.b16 %v2399
    %v2483 = vunpack.c.l.b16 %v2400
    %v2484 = vunpack.c.h.b16 %v2400
    %v2485 = vunpack.c.l.b16 %v2401
    %v2486 = vunpack.c.h.b16 %v2401
    %v2487 = vunpack.c.l.b16 %v2402
    %v2488 = vunpack.c.h.b16 %v2402
    %v2489 = vunpack.c.l.b16 %v2403
    %v2490 = vunpack.c.h.b16 %v2403
    %v2491 = vunpack.c.l.b16 %v2404
    %v2492 = vunpack.c.h.b16 %v2404
    %v2493 = vunpack.c.l.b16 %v2405
    %v2494 = vunpack.c.h.b16 %v2405
    %v2495 = vunpack.c.l.b16 %v2406
    %v2496 = vunpack.c.h.b16 %v2406
    %v2497 = vunpack.c.l.b16 %v2407
    %v2498 = vunpack.c.h.b16 %v2407
    %v2499 = vunpack.c.l.b16 %v2408
    %v2500 = vunpack.c.h.b16 %v2408
    %v2501 = vunpack.c.l.b16 %v2409
    %v2502 = vunpack.c.h.b16 %v2409
    %v2503 = vunpack.c.l.b16 %v2410
    %v2504 = vunpack.c.h.b16 %v2410
    %v2505 = vunpack.c.l.b16 %v2411
    %v2506 = vunpack.c.h.b16 %v2411
    %v2507 = vunpack.c.l.b16 %v2412
    %v2508 = vunpack.c.h.b16 %v2412
    %v2509 = vpack.c.b16 %v2447, %v2445
    %v2510 = vpack.c.b16 %v2448, %v2446
    %v2511 = vpack.c.b16 %v2451, %v2449
    %v2512 = vpack.c.b16 %v2452, %v2450
    %v2513 = vpack.c.b16 %v2455, %v2453
    %v2514 = vpack.c.b16 %v2456, %v2454
    %v2515 = vpack.c.b16 %v2459, %v2457
    %v2516 = vpack.c.b16 %v2460, %v2458
    %v2517 = vpack.c.b16 %v2463, %v2461
    %v2518 = vpack.c.b16 %v2464, %v2462
    %v2519 = vpack.c.b16 %v2467, %v2465
    %v2520 = vpack.c.b16 %v2468, %v2466
    %v2521 = vpack.c.b16 %v2471, %v2469
    %v2522 = vpack.c.b16 %v2472, %v2470
    %v2523 = vpack.c.b16 %v2475, %v2473
    %v2524 = vpack.c.b16 %v2476, %v2474
    %v2525 = vpack.c.b16 %v2479, %v2477
    %v2526 = vpack.c.b16 %v2480, %v2478
    %v2527 = vpack.c.b16 %v2483, %v2481
    %v2528 = vpack.c.b16 %v2484, %v2482
    %v2529 = vpack.c.b16 %v2487, %v2485
    %v2530 = vpack.c.b16 %v2488, %v2486
    %v2531 = vpack.c.b16 %v2491, %v2489
    %v2532 = vpack.c.b16 %v2492, %v2490
    %v2533 = vpack.c.b16 %v2495, %v2493
    %v2534 = vpack.c.b16 %v2496, %v2494
    %v2535 = vpack.c.b16 %v2499, %v2497
    %v2536 = vpack.c.b16 %v2500, %v2498
    %v2537 = vpack.c.b16 %v2503, %v2501
    %v2538 = vpack.c.b16 %v2504, %v2502
    %v2539 = vpack.c.b16 %v2507, %v2505
    %v2540 = vpack.c.b16 %v2508, %v2506
    %2573 = vmatprep.subr.bf16.mxu0 %v2510
    %2574 = vmatpush1.bf16.msra.mxu0 %v2509
    %2575 = vmatprep.subr.bf16.mxu0 %v2512
    %2576 = vmatpush1.bf16.msra.mxu0 %v2511
    %2577 = vmatprep.subr.bf16.mxu0 %v2514
    %2578 = vmatpush1.bf16.msra.mxu0 %v2513
    %2579 = vmatprep.subr.bf16.mxu0 %v2516
    %2580 = vmatpush1.bf16.msra.mxu0 %v2515
    %2581 = vmatprep.subr.bf16.mxu0 %v2518
    %2582 = vmatpush1.bf16.msra.mxu0 %v2517
    %2583 = vmatprep.subr.bf16.mxu0 %v2520
    %2584 = vmatpush1.bf16.msra.mxu0 %v2519
    %2585 = vmatprep.subr.bf16.mxu0 %v2522
    %2586 = vmatpush1.bf16.msra.mxu0 %v2521
    %2587 = vmatprep.subr.bf16.mxu0 %v2524
    %2588 = vmatpush1.bf16.msra.mxu0 %v2523
    %2589 = vmatprep.subr.bf16.mxu0 %v2526
    %2590 = vmatpush1.bf16.msra.mxu0 %v2525
    %2591 = vmatprep.subr.bf16.mxu0 %v2528
    %2592 = vmatpush1.bf16.msra.mxu0 %v2527
    %2593 = vmatprep.subr.bf16.mxu0 %v2530
    %2594 = vmatpush1.bf16.msra.mxu0 %v2529
    %2595 = vmatprep.subr.bf16.mxu0 %v2532
    %2596 = vmatpush1.bf16.msra.mxu0 %v2531
    %2597 = vmatprep.subr.bf16.mxu0 %v2534
    %2598 = vmatpush1.bf16.msra.mxu0 %v2533
    %2599 = vmatprep.subr.bf16.mxu0 %v2536
    %2600 = vmatpush1.bf16.msra.mxu0 %v2535
    %2601 = vmatprep.subr.bf16.mxu0 %v2538
    %2602 = vmatpush1.bf16.msra.mxu0 %v2537
    %2603 = vmatprep.subr.bf16.mxu0 %v2540
    %2604 = vmatpush1.bf16.msra.mxu0 %v2539
    %2605 = vmatprep.mubr.bf16.mxu0 %v2373
    %2606 = vmatmul.mubr.bf16.gmra.mrb[0].mxu0 %v2372
    %v2607 = vpop.f32.mrb[0].mxu0
    %v2608 = vadd.f32 0.0, %v2607
    %v2609 = vpop.f32.mrb[0].mxu0
    %v2610 = vadd.f32 0.0, %v2609
    %v2611 = vpop.f32.mrb[0].mxu0
    %v2612 = vadd.f32 0.0, %v2611
    %v2613 = vpop.f32.mrb[0].mxu0
    %v2614 = vadd.f32 0.0, %v2613
    %2615 = vmatprep.mubr.bf16.mxu0 %v2375
    %2616 = vmatmul.mubr.bf16.gmra.mrb[0].mxu0 %v2374
    %v2617 = vpop.f32.mrb[0].mxu0
    %v2618 = vadd.f32 0.0, %v2617
    %v2619 = vpop.f32.mrb[0].mxu0
    %v2620 = vadd.f32 0.0, %v2619
    %v2621 = vpop.f32.mrb[0].mxu0
    %v2622 = vadd.f32 0.0, %v2621
    %v2623 = vpop.f32.mrb[0].mxu0
    %v2624 = vadd.f32 0.0, %v2623
    %2625 = vmatprep.mubr.bf16.mxu0 %v2377
    %2626 = vmatmul.mubr.bf16.gmra.mrb[0].mxu0 %v2376
    %v2627 = vpop.f32.mrb[0].mxu0
    %v2628 = vadd.f32 0.0, %v2627
    %v2629 = vpop.f32.mrb[0].mxu0
    %v2630 = vadd.f32 0.0, %v2629
    %v2631 = vpop.f32.mrb[0].mxu0
    %v2632 = vadd.f32 0.0, %v2631
    %v2633 = vpop.f32.mrb[0].mxu0
    %v2634 = vadd.f32 0.0, %v2633
    %2635 = vmatprep.mubr.bf16.mxu0 %v2379
    %2636 = vmatmul.mubr.bf16.gmra.mrb[0].mxu0 %v2378
    %v2637 = vpop.f32.mrb[0].mxu0
    %v2638 = vadd.f32 0.0, %v2637
    %v2639 = vpop.f32.mrb[0].mxu0
    %v2640 = vadd.f32 0.0, %v2639
    %v2641 = vpop.f32.mrb[0].mxu0
    %v2642 = vadd.f32 0.0, %v2641
    %v2643 = vpop.f32.mrb[0].mxu0
    %v2644 = vadd.f32 0.0, %v2643
    %2645 = vdwg.mxu0
    %v2646 = vadd.f32 %v2302, %v2608
    %v2647 = vadd.f32 %v2304, %v2610
    %v2648 = vadd.f32 %v2306, %v2612
    %v2649 = vadd.f32 %v2308, %v2614
    %v2650 = vadd.f32 %v2312, %v2618
    %v2651 = vadd.f32 %v2314, %v2620
    %v2652 = vadd.f32 %v2316, %v2622
    %v2653 = vadd.f32 %v2318, %v2624
    %v2654 = vadd.f32 %v2322, %v2628
    %v2655 = vadd.f32 %v2324, %v2630
    %v2656 = vadd.f32 %v2326, %v2632
    %v2657 = vadd.f32 %v2328, %v2634
    %v2658 = vadd.f32 %v2332, %v2638
    %v2659 = vadd.f32 %v2334, %v2640
    %v2660 = vadd.f32 %v2336, %v2642
    %v2661 = vadd.f32 %v2338, %v2644
    %v2662 = vld [vmem:[#allocation14] sm:$0x3]
    %v2664 = vlaneseq
    %v2665 = vshrl.u32 %v2664, 7
    %v2666 = vsub.s32 0, %v2665
    %v2667 = vrot.slane %v2662, %v2666
    %v2668 = vlaneseq
    %v2669 = vshrl.u32 %v2668, 7
    %v2670 = vsub.s32 1, %v2669
    %v2671 = vrot.slane %v2662, %v2670
    %v2674 = vadd.f32 %v2646, %v2667
    %v2675 = vadd.f32 %v2647, %v2671
    %v2676 = vadd.f32 %v2648, %v2667
    %v2677 = vadd.f32 %v2649, %v2671
    %v2678 = vadd.f32 %v2650, %v2667
    %v2679 = vadd.f32 %v2651, %v2671
    %v2680 = vadd.f32 %v2652, %v2667
    %v2681 = vadd.f32 %v2653, %v2671
    %v2682 = vadd.f32 %v2654, %v2667
    %v2683 = vadd.f32 %v2655, %v2671
    %v2684 = vadd.f32 %v2656, %v2667
    %v2685 = vadd.f32 %v2657, %v2671
    %v2686 = vadd.f32 %v2658, %v2667
    %v2687 = vadd.f32 %v2659, %v2671
    %v2688 = vadd.f32 %v2660, %v2667
    %v2689 = vadd.f32 %v2661, %v2671
    %v2690 = vmax.f32 %v2674, 0.0
    %v2691 = vmax.f32 %v2675, 0.0
    %v2692 = vmax.f32 %v2676, 0.0
    %v2693 = vmax.f32 %v2677, 0.0
    %v2694 = vmax.f32 %v2678, 0.0
    %v2695 = vmax.f32 %v2679, 0.0
    %v2696 = vmax.f32 %v2680, 0.0
    %v2697 = vmax.f32 %v2681, 0.0
    %v2698 = vmax.f32 %v2682, 0.0
    %v2699 = vmax.f32 %v2683, 0.0
    %v2700 = vmax.f32 %v2684, 0.0
    %v2701 = vmax.f32 %v2685, 0.0
    %v2702 = vmax.f32 %v2686, 0.0
    %v2703 = vmax.f32 %v2687, 0.0
    %v2704 = vmax.f32 %v2688, 0.0
    %v2705 = vmax.f32 %v2689, 0.0
    %v2706 = vpack.c.bf16 %v2692, %v2690
    %v2707 = vpack.c.bf16 %v2693, %v2691
    %v2708 = vpack.c.bf16 %v2696, %v2694
    %v2709 = vpack.c.bf16 %v2697, %v2695
    %v2710 = vpack.c.bf16 %v2700, %v2698
    %v2711 = vpack.c.bf16 %v2701, %v2699
    %v2712 = vpack.c.bf16 %v2704, %v2702
    %v2713 = vpack.c.bf16 %v2705, %v2703
    %s2714 = scalar_lea.vmem [#allocation10], 256
    %v2715 = vld [vmem:[%s2714] sm:$0xff]
    %v2716 = vld [vmem:[%s2714 + $0x8] sm:$0xff]
    %v2717 = vld [vmem:[%s2714 + $0x10] sm:$0xff]
    %v2718 = vld [vmem:[%s2714 + $0x18] sm:$0xff]
    %v2719 = vld [vmem:[%s2714 + $0x20] sm:$0xff]
    %v2720 = vld [vmem:[%s2714 + $0x28] sm:$0xff]
    %v2721 = vld [vmem:[%s2714 + $0x30] sm:$0xff]
    %v2722 = vld [vmem:[%s2714 + $0x38] sm:$0xff]
    %v2723 = vld [vmem:[%s2714 + $0x40] sm:$0xff]
    %v2724 = vld [vmem:[%s2714 + $0x48] sm:$0xff]
    %v2725 = vld [vmem:[%s2714 + $0x50] sm:$0xff]
    %v2726 = vld [vmem:[%s2714 + $0x58] sm:$0xff]
    %v2727 = vld [vmem:[%s2714 + $0x60] sm:$0xff]
    %v2728 = vld [vmem:[%s2714 + $0x68] sm:$0xff]
    %v2729 = vld [vmem:[%s2714 + $0x70] sm:$0xff]
    %v2730 = vld [vmem:[%s2714 + $0x78] sm:$0xff]
    %v2731 = vld [vmem:[%s2714 + $0x80] sm:$0xff]
    %v2732 = vld [vmem:[%s2714 + $0x88] sm:$0xff]
    %v2733 = vld [vmem:[%s2714 + $0x90] sm:$0xff]
    %v2734 = vld [vmem:[%s2714 + $0x98] sm:$0xff]
    %v2735 = vld [vmem:[%s2714 + $0xa0] sm:$0xff]
    %v2736 = vld [vmem:[%s2714 + $0xa8] sm:$0xff]
    %v2737 = vld [vmem:[%s2714 + $0xb0] sm:$0xff]
    %v2738 = vld [vmem:[%s2714 + $0xb8] sm:$0xff]
    %v2739 = vld [vmem:[%s2714 + $0xc0] sm:$0xff]
    %v2740 = vld [vmem:[%s2714 + $0xc8] sm:$0xff]
    %v2741 = vld [vmem:[%s2714 + $0xd0] sm:$0xff]
    %v2742 = vld [vmem:[%s2714 + $0xd8] sm:$0xff]
    %v2743 = vld [vmem:[%s2714 + $0xe0] sm:$0xff]
    %v2744 = vld [vmem:[%s2714 + $0xe8] sm:$0xff]
    %v2745 = vld [vmem:[%s2714 + $0xf0] sm:$0xff]
    %v2746 = vld [vmem:[%s2714 + $0xf8] sm:$0xff]
    %v2747 = vrot.slane %v2690, 7
    %v2748 = vrot.slane %v2691, 7
    %v2749 = vrot.slane %v2692, 7
    %v2750 = vrot.slane %v2693, 7
    %v2751 = vrot.slane %v2694, 7
    %v2752 = vrot.slane %v2695, 7
    %v2753 = vrot.slane %v2696, 7
    %v2754 = vrot.slane %v2697, 7
    %v2755 = vrot.slane %v2698, 7
    %v2756 = vrot.slane %v2699, 7
    %v2757 = vrot.slane %v2700, 7
    %v2758 = vrot.slane %v2701, 7
    %v2759 = vrot.slane %v2702, 7
    %v2760 = vrot.slane %v2703, 7
    %v2761 = vrot.slane %v2704, 7
    %v2762 = vrot.slane %v2705, 7
    %v2763 = vsel %vm229, %v2747, 0.0
    %v2764 = vsel %vm229, %v2748, 0.0
    %v2765 = vsel %vm229, %v2749, 0.0
    %v2766 = vsel %vm229, %v2750, 0.0
    %v2767 = vsel %vm229, %v2751, 0.0
    %v2768 = vsel %vm229, %v2752, 0.0
    %v2769 = vsel %vm229, %v2753, 0.0
    %v2770 = vsel %vm229, %v2754, 0.0
    %v2771 = vsel %vm229, %v2755, 0.0
    %v2772 = vsel %vm229, %v2756, 0.0
    %v2773 = vsel %vm229, %v2757, 0.0
    %v2774 = vsel %vm229, %v2758, 0.0
    %v2775 = vsel %vm229, %v2759, 0.0
    %v2776 = vsel %vm229, %v2760, 0.0
    %v2777 = vsel %vm229, %v2761, 0.0
    %v2778 = vsel %vm229, %v2762, 0.0
    %v2779 = vpack.c.bf16 %v2765, %v2763
    %v2780 = vpack.c.bf16 %v2766, %v2764
    %v2781 = vpack.c.bf16 %v2769, %v2767
    %v2782 = vpack.c.bf16 %v2770, %v2768
    %v2783 = vpack.c.bf16 %v2773, %v2771
    %v2784 = vpack.c.bf16 %v2774, %v2772
    %v2785 = vpack.c.bf16 %v2777, %v2775
    %v2786 = vpack.c.bf16 %v2778, %v2776
    %v2787 = vld [vmem:[#allocation10] sm:$0xff]
    %v2788 = vld [vmem:[#allocation10 + $0x8] sm:$0xff]
    %v2789 = vld [vmem:[#allocation10 + $0x10] sm:$0xff]
    %v2790 = vld [vmem:[#allocation10 + $0x18] sm:$0xff]
    %v2791 = vld [vmem:[#allocation10 + $0x20] sm:$0xff]
    %v2792 = vld [vmem:[#allocation10 + $0x28] sm:$0xff]
    %v2793 = vld [vmem:[#allocation10 + $0x30] sm:$0xff]
    %v2794 = vld [vmem:[#allocation10 + $0x38] sm:$0xff]
    %v2795 = vld [vmem:[#allocation10 + $0x40] sm:$0xff]
    %v2796 = vld [vmem:[#allocation10 + $0x48] sm:$0xff]
    %v2797 = vld [vmem:[#allocation10 + $0x50] sm:$0xff]
    %v2798 = vld [vmem:[#allocation10 + $0x58] sm:$0xff]
    %v2799 = vld [vmem:[#allocation10 + $0x60] sm:$0xff]
    %v2800 = vld [vmem:[#allocation10 + $0x68] sm:$0xff]
    %v2801 = vld [vmem:[#allocation10 + $0x70] sm:$0xff]
    %v2802 = vld [vmem:[#allocation10 + $0x78] sm:$0xff]
    %v2803 = vld [vmem:[#allocation10 + $0x80] sm:$0xff]
    %v2804 = vld [vmem:[#allocation10 + $0x88] sm:$0xff]
    %v2805 = vld [vmem:[#allocation10 + $0x90] sm:$0xff]
    %v2806 = vld [vmem:[#allocation10 + $0x98] sm:$0xff]
    %v2807 = vld [vmem:[#allocation10 + $0xa0] sm:$0xff]
    %v2808 = vld [vmem:[#allocation10 + $0xa8] sm:$0xff]
    %v2809 = vld [vmem:[#allocation10 + $0xb0] sm:$0xff]
    %v2810 = vld [vmem:[#allocation10 + $0xb8] sm:$0xff]
    %v2811 = vld [vmem:[#allocation10 + $0xc0] sm:$0xff]
    %v2812 = vld [vmem:[#allocation10 + $0xc8] sm:$0xff]
    %v2813 = vld [vmem:[#allocation10 + $0xd0] sm:$0xff]
    %v2814 = vld [vmem:[#allocation10 + $0xd8] sm:$0xff]
    %v2815 = vld [vmem:[#allocation10 + $0xe0] sm:$0xff]
    %v2816 = vld [vmem:[#allocation10 + $0xe8] sm:$0xff]
    %v2817 = vld [vmem:[#allocation10 + $0xf0] sm:$0xff]
    %v2818 = vld [vmem:[#allocation10 + $0xf8] sm:$0xff]
    %v2851 = vunpack.c.l.b16 %v2787
    %v2852 = vunpack.c.h.b16 %v2787
    %v2853 = vunpack.c.l.b16 %v2788
    %v2854 = vunpack.c.h.b16 %v2788
    %v2855 = vunpack.c.l.b16 %v2789
    %v2856 = vunpack.c.h.b16 %v2789
    %v2857 = vunpack.c.l.b16 %v2790
    %v2858 = vunpack.c.h.b16 %v2790
    %v2859 = vunpack.c.l.b16 %v2791
    %v2860 = vunpack.c.h.b16 %v2791
    %v2861 = vunpack.c.l.b16 %v2792
    %v2862 = vunpack.c.h.b16 %v2792
    %v2863 = vunpack.c.l.b16 %v2793
    %v2864 = vunpack.c.h.b16 %v2793
    %v2865 = vunpack.c.l.b16 %v2794
    %v2866 = vunpack.c.h.b16 %v2794
    %v2867 = vunpack.c.l.b16 %v2795
    %v2868 = vunpack.c.h.b16 %v2795
    %v2869 = vunpack.c.l.b16 %v2796
    %v2870 = vunpack.c.h.b16 %v2796
    %v2871 = vunpack.c.l.b16 %v2797
    %v2872 = vunpack.c.h.b16 %v2797
    %v2873 = vunpack.c.l.b16 %v2798
    %v2874 = vunpack.c.h.b16 %v2798
    %v2875 = vunpack.c.l.b16 %v2799
    %v2876 = vunpack.c.h.b16 %v2799
    %v2877 = vunpack.c.l.b16 %v2800
    %v2878 = vunpack.c.h.b16 %v2800
    %v2879 = vunpack.c.l.b16 %v2801
    %v2880 = vunpack.c.h.b16 %v2801
    %v2881 = vunpack.c.l.b16 %v2802
    %v2882 = vunpack.c.h.b16 %v2802
    %v2883 = vunpack.c.l.b16 %v2803
    %v2884 = vunpack.c.h.b16 %v2803
    %v2885 = vunpack.c.l.b16 %v2804
    %v2886 = vunpack.c.h.b16 %v2804
    %v2887 = vunpack.c.l.b16 %v2805
    %v2888 = vunpack.c.h.b16 %v2805
    %v2889 = vunpack.c.l.b16 %v2806
    %v2890 = vunpack.c.h.b16 %v2806
    %v2891 = vunpack.c.l.b16 %v2807
    %v2892 = vunpack.c.h.b16 %v2807
    %v2893 = vunpack.c.l.b16 %v2808
    %v2894 = vunpack.c.h.b16 %v2808
    %v2895 = vunpack.c.l.b16 %v2809
    %v2896 = vunpack.c.h.b16 %v2809
    %v2897 = vunpack.c.l.b16 %v2810
    %v2898 = vunpack.c.h.b16 %v2810
    %v2899 = vunpack.c.l.b16 %v2811
    %v2900 = vunpack.c.h.b16 %v2811
    %v2901 = vunpack.c.l.b16 %v2812
    %v2902 = vunpack.c.h.b16 %v2812
    %v2903 = vunpack.c.l.b16 %v2813
    %v2904 = vunpack.c.h.b16 %v2813
    %v2905 = vunpack.c.l.b16 %v2814
    %v2906 = vunpack.c.h.b16 %v2814
    %v2907 = vunpack.c.l.b16 %v2815
    %v2908 = vunpack.c.h.b16 %v2815
    %v2909 = vunpack.c.l.b16 %v2816
    %v2910 = vunpack.c.h.b16 %v2816
    %v2911 = vunpack.c.l.b16 %v2817
    %v2912 = vunpack.c.h.b16 %v2817
    %v2913 = vunpack.c.l.b16 %v2818
    %v2914 = vunpack.c.h.b16 %v2818
    %v2915 = vpack.c.b16 %v2853, %v2851
    %v2916 = vpack.c.b16 %v2854, %v2852
    %v2917 = vpack.c.b16 %v2857, %v2855
    %v2918 = vpack.c.b16 %v2858, %v2856
    %v2919 = vpack.c.b16 %v2861, %v2859
    %v2920 = vpack.c.b16 %v2862, %v2860
    %v2921 = vpack.c.b16 %v2865, %v2863
    %v2922 = vpack.c.b16 %v2866, %v2864
    %v2923 = vpack.c.b16 %v2869, %v2867
    %v2924 = vpack.c.b16 %v2870, %v2868
    %v2925 = vpack.c.b16 %v2873, %v2871
    %v2926 = vpack.c.b16 %v2874, %v2872
    %v2927 = vpack.c.b16 %v2877, %v2875
    %v2928 = vpack.c.b16 %v2878, %v2876
    %v2929 = vpack.c.b16 %v2881, %v2879
    %v2930 = vpack.c.b16 %v2882, %v2880
    %v2931 = vpack.c.b16 %v2885, %v2883
    %v2932 = vpack.c.b16 %v2886, %v2884
    %v2933 = vpack.c.b16 %v2889, %v2887
    %v2934 = vpack.c.b16 %v2890, %v2888
    %v2935 = vpack.c.b16 %v2893, %v2891
    %v2936 = vpack.c.b16 %v2894, %v2892
    %v2937 = vpack.c.b16 %v2897, %v2895
    %v2938 = vpack.c.b16 %v2898, %v2896
    %v2939 = vpack.c.b16 %v2901, %v2899
    %v2940 = vpack.c.b16 %v2902, %v2900
    %v2941 = vpack.c.b16 %v2905, %v2903
    %v2942 = vpack.c.b16 %v2906, %v2904
    %v2943 = vpack.c.b16 %v2909, %v2907
    %v2944 = vpack.c.b16 %v2910, %v2908
    %v2945 = vpack.c.b16 %v2913, %v2911
    %v2946 = vpack.c.b16 %v2914, %v2912
    %2979 = vmatprep.subr.bf16.mxu0 %v2916
    %2980 = vmatpush1.bf16.msra.mxu0 %v2915
    %2981 = vmatprep.subr.bf16.mxu0 %v2918
    %2982 = vmatpush1.bf16.msra.mxu0 %v2917
    %2983 = vmatprep.subr.bf16.mxu0 %v2920
    %2984 = vmatpush1.bf16.msra.mxu0 %v2919
    %2985 = vmatprep.subr.bf16.mxu0 %v2922
    %2986 = vmatpush1.bf16.msra.mxu0 %v2921
    %2987 = vmatprep.subr.bf16.mxu0 %v2924
    %2988 = vmatpush1.bf16.msra.mxu0 %v2923
    %2989 = vmatprep.subr.bf16.mxu0 %v2926
    %2990 = vmatpush1.bf16.msra.mxu0 %v2925
    %2991 = vmatprep.subr.bf16.mxu0 %v2928
    %2992 = vmatpush1.bf16.msra.mxu0 %v2927
    %2993 = vmatprep.subr.bf16.mxu0 %v2930
    %2994 = vmatpush1.bf16.msra.mxu0 %v2929
    %2995 = vmatprep.subr.bf16.mxu0 %v2932
    %2996 = vmatpush1.bf16.msra.mxu0 %v2931
    %2997 = vmatprep.subr.bf16.mxu0 %v2934
    %2998 = vmatpush1.bf16.msra.mxu0 %v2933
    %2999 = vmatprep.subr.bf16.mxu0 %v2936
    %3000 = vmatpush1.bf16.msra.mxu0 %v2935
    %3001 = vmatprep.subr.bf16.mxu0 %v2938
    %3002 = vmatpush1.bf16.msra.mxu0 %v2937
    %3003 = vmatprep.subr.bf16.mxu0 %v2940
    %3004 = vmatpush1.bf16.msra.mxu0 %v2939
    %3005 = vmatprep.subr.bf16.mxu0 %v2942
    %3006 = vmatpush1.bf16.msra.mxu0 %v2941
    %3007 = vmatprep.subr.bf16.mxu0 %v2944
    %3008 = vmatpush1.bf16.msra.mxu0 %v2943
    %3009 = vmatprep.subr.bf16.mxu0 %v2946
    %3010 = vmatpush1.bf16.msra.mxu0 %v2945
    %3011 = vmatprep.mubr.bf16.mxu0 %v2780
    %3012 = vmatmul.mubr.bf16.gmra.mrb[0].mxu0 %v2779
    %v3013 = vpop.f32.mrb[0].mxu0
    %v3014 = vadd.f32 0.0, %v3013
    %v3015 = vpop.f32.mrb[0].mxu0
    %v3016 = vadd.f32 0.0, %v3015
    %v3017 = vpop.f32.mrb[0].mxu0
    %v3018 = vadd.f32 0.0, %v3017
    %v3019 = vpop.f32.mrb[0].mxu0
    %v3020 = vadd.f32 0.0, %v3019
    %3021 = vmatprep.mubr.bf16.mxu0 %v2782
    %3022 = vmatmul.mubr.bf16.gmra.mrb[0].mxu0 %v2781
    %v3023 = vpop.f32.mrb[0].mxu0
    %v3024 = vadd.f32 0.0, %v3023
    %v3025 = vpop.f32.mrb[0].mxu0
    %v3026 = vadd.f32 0.0, %v3025
    %v3027 = vpop.f32.mrb[0].mxu0
    %v3028 = vadd.f32 0.0, %v3027
    %v3029 = vpop.f32.mrb[0].mxu0
    %v3030 = vadd.f32 0.0, %v3029
    %3031 = vmatprep.mubr.bf16.mxu0 %v2784
    %3032 = vmatmul.mubr.bf16.gmra.mrb[0].mxu0 %v2783
    %v3033 = vpop.f32.mrb[0].mxu0
    %v3034 = vadd.f32 0.0, %v3033
    %v3035 = vpop.f32.mrb[0].mxu0
    %v3036 = vadd.f32 0.0, %v3035
    %v3037 = vpop.f32.mrb[0].mxu0
    %v3038 = vadd.f32 0.0, %v3037
    %v3039 = vpop.f32.mrb[0].mxu0
    %v3040 = vadd.f32 0.0, %v3039
    %3041 = vmatprep.mubr.bf16.mxu0 %v2786
    %3042 = vmatmul.mubr.bf16.gmra.mrb[0].mxu0 %v2785
    %v3043 = vpop.f32.mrb[0].mxu0
    %v3044 = vadd.f32 0.0, %v3043
    %v3045 = vpop.f32.mrb[0].mxu0
    %v3046 = vadd.f32 0.0, %v3045
    %v3047 = vpop.f32.mrb[0].mxu0
    %v3048 = vadd.f32 0.0, %v3047
    %v3049 = vpop.f32.mrb[0].mxu0
    %v3050 = vadd.f32 0.0, %v3049
    %3051 = vdwg.mxu0
    %v3084 = vunpack.c.l.b16 %v2715
    %v3085 = vunpack.c.h.b16 %v2715
    %v3086 = vunpack.c.l.b16 %v2716
    %v3087 = vunpack.c.h.b16 %v2716
    %v3088 = vunpack.c.l.b16 %v2717
    %v3089 = vunpack.c.h.b16 %v2717
    %v3090 = vunpack.c.l.b16 %v2718
    %v3091 = vunpack.c.h.b16 %v2718
    %v3092 = vunpack.c.l.b16 %v2719
    %v3093 = vunpack.c.h.b16 %v2719
    %v3094 = vunpack.c.l.b16 %v2720
    %v3095 = vunpack.c.h.b16 %v2720
    %v3096 = vunpack.c.l.b16 %v2721
    %v3097 = vunpack.c.h.b16 %v2721
    %v3098 = vunpack.c.l.b16 %v2722
    %v3099 = vunpack.c.h.b16 %v2722
    %v3100 = vunpack.c.l.b16 %v2723
    %v3101 = vunpack.c.h.b16 %v2723
    %v3102 = vunpack.c.l.b16 %v2724
    %v3103 = vunpack.c.h.b16 %v2724
    %v3104 = vunpack.c.l.b16 %v2725
    %v3105 = vunpack.c.h.b16 %v2725
    %v3106 = vunpack.c.l.b16 %v2726
    %v3107 = vunpack.c.h.b16 %v2726
    %v3108 = vunpack.c.l.b16 %v2727
    %v3109 = vunpack.c.h.b16 %v2727
    %v3110 = vunpack.c.l.b16 %v2728
    %v3111 = vunpack.c.h.b16 %v2728
    %v3112 = vunpack.c.l.b16 %v2729
    %v3113 = vunpack.c.h.b16 %v2729
    %v3114 = vunpack.c.l.b16 %v2730
    %v3115 = vunpack.c.h.b16 %v2730
    %v3116 = vunpack.c.l.b16 %v2731
    %v3117 = vunpack.c.h.b16 %v2731
    %v3118 = vunpack.c.l.b16 %v2732
    %v3119 = vunpack.c.h.b16 %v2732
    %v3120 = vunpack.c.l.b16 %v2733
    %v3121 = vunpack.c.h.b16 %v2733
    %v3122 = vunpack.c.l.b16 %v2734
    %v3123 = vunpack.c.h.b16 %v2734
    %v3124 = vunpack.c.l.b16 %v2735
    %v3125 = vunpack.c.h.b16 %v2735
    %v3126 = vunpack.c.l.b16 %v2736
    %v3127 = vunpack.c.h.b16 %v2736
    %v3128 = vunpack.c.l.b16 %v2737
    %v3129 = vunpack.c.h.b16 %v2737
    %v3130 = vunpack.c.l.b16 %v2738
    %v3131 = vunpack.c.h.b16 %v2738
    %v3132 = vunpack.c.l.b16 %v2739
    %v3133 = vunpack.c.h.b16 %v2739
    %v3134 = vunpack.c.l.b16 %v2740
    %v3135 = vunpack.c.h.b16 %v2740
    %v3136 = vunpack.c.l.b16 %v2741
    %v3137 = vunpack.c.h.b16 %v2741
    %v3138 = vunpack.c.l.b16 %v2742
    %v3139 = vunpack.c.h.b16 %v2742
    %v3140 = vunpack.c.l.b16 %v2743
    %v3141 = vunpack.c.h.b16 %v2743
    %v3142 = vunpack.c.l.b16 %v2744
    %v3143 = vunpack.c.h.b16 %v2744
    %v3144 = vunpack.c.l.b16 %v2745
    %v3145 = vunpack.c.h.b16 %v2745
    %v3146 = vunpack.c.l.b16 %v2746
    %v3147 = vunpack.c.h.b16 %v2746
    %v3148 = vpack.c.b16 %v3086, %v3084
    %v3149 = vpack.c.b16 %v3087, %v3085
    %v3150 = vpack.c.b16 %v3090, %v3088
    %v3151 = vpack.c.b16 %v3091, %v3089
    %v3152 = vpack.c.b16 %v3094, %v3092
    %v3153 = vpack.c.b16 %v3095, %v3093
    %v3154 = vpack.c.b16 %v3098, %v3096
    %v3155 = vpack.c.b16 %v3099, %v3097
    %v3156 = vpack.c.b16 %v3102, %v3100
    %v3157 = vpack.c.b16 %v3103, %v3101
    %v3158 = vpack.c.b16 %v3106, %v3104
    %v3159 = vpack.c.b16 %v3107, %v3105
    %v3160 = vpack.c.b16 %v3110, %v3108
    %v3161 = vpack.c.b16 %v3111, %v3109
    %v3162 = vpack.c.b16 %v3114, %v3112
    %v3163 = vpack.c.b16 %v3115, %v3113
    %v3164 = vpack.c.b16 %v3118, %v3116
    %v3165 = vpack.c.b16 %v3119, %v3117
    %v3166 = vpack.c.b16 %v3122, %v3120
    %v3167 = vpack.c.b16 %v3123, %v3121
    %v3168 = vpack.c.b16 %v3126, %v3124
    %v3169 = vpack.c.b16 %v3127, %v3125
    %v3170 = vpack.c.b16 %v3130, %v3128
    %v3171 = vpack.c.b16 %v3131, %v3129
    %v3172 = vpack.c.b16 %v3134, %v3132
    %v3173 = vpack.c.b16 %v3135, %v3133
    %v3174 = vpack.c.b16 %v3138, %v3136
    %v3175 = vpack.c.b16 %v3139, %v3137
    %v3176 = vpack.c.b16 %v3142, %v3140
    %v3177 = vpack.c.b16 %v3143, %v3141
    %v3178 = vpack.c.b16 %v3146, %v3144
    %v3179 = vpack.c.b16 %v3147, %v3145
    %3212 = vmatprep.subr.bf16.mxu0 %v3149
    %3213 = vmatpush1.bf16.msra.mxu0 %v3148
    %3214 = vmatprep.subr.bf16.mxu0 %v3151
    %3215 = vmatpush1.bf16.msra.mxu0 %v3150
    %3216 = vmatprep.subr.bf16.mxu0 %v3153
    %3217 = vmatpush1.bf16.msra.mxu0 %v3152
    %3218 = vmatprep.subr.bf16.mxu0 %v3155
    %3219 = vmatpush1.bf16.msra.mxu0 %v3154
    %3220 = vmatprep.subr.bf16.mxu0 %v3157
    %3221 = vmatpush1.bf16.msra.mxu0 %v3156
    %3222 = vmatprep.subr.bf16.mxu0 %v3159
    %3223 = vmatpush1.bf16.msra.mxu0 %v3158
    %3224 = vmatprep.subr.bf16.mxu0 %v3161
    %3225 = vmatpush1.bf16.msra.mxu0 %v3160
    %3226 = vmatprep.subr.bf16.mxu0 %v3163
    %3227 = vmatpush1.bf16.msra.mxu0 %v3162
    %3228 = vmatprep.subr.bf16.mxu0 %v3165
    %3229 = vmatpush1.bf16.msra.mxu0 %v3164
    %3230 = vmatprep.subr.bf16.mxu0 %v3167
    %3231 = vmatpush1.bf16.msra.mxu0 %v3166
    %3232 = vmatprep.subr.bf16.mxu0 %v3169
    %3233 = vmatpush1.bf16.msra.mxu0 %v3168
    %3234 = vmatprep.subr.bf16.mxu0 %v3171
    %3235 = vmatpush1.bf16.msra.mxu0 %v3170
    %3236 = vmatprep.subr.bf16.mxu0 %v3173
    %3237 = vmatpush1.bf16.msra.mxu0 %v3172
    %3238 = vmatprep.subr.bf16.mxu0 %v3175
    %3239 = vmatpush1.bf16.msra.mxu0 %v3174
    %3240 = vmatprep.subr.bf16.mxu0 %v3177
    %3241 = vmatpush1.bf16.msra.mxu0 %v3176
    %3242 = vmatprep.subr.bf16.mxu0 %v3179
    %3243 = vmatpush1.bf16.msra.mxu0 %v3178
    %3244 = vmatprep.mubr.bf16.mxu0 %v2707
    %3245 = vmatmul.mubr.bf16.gmra.mrb[0].mxu0 %v2706
    %v3246 = vpop.f32.mrb[0].mxu0
    %v3247 = vadd.f32 %v3014, %v3246
    %v3248 = vpop.f32.mrb[0].mxu0
    %v3249 = vadd.f32 %v3016, %v3248
    %v3250 = vpop.f32.mrb[0].mxu0
    %v3251 = vadd.f32 %v3018, %v3250
    %v3252 = vpop.f32.mrb[0].mxu0
    %v3253 = vadd.f32 %v3020, %v3252
    %3254 = vmatprep.mubr.bf16.mxu0 %v2709
    %3255 = vmatmul.mubr.bf16.gmra.mrb[0].mxu0 %v2708
    %v3256 = vpop.f32.mrb[0].mxu0
    %v3257 = vadd.f32 %v3024, %v3256
    %v3258 = vpop.f32.mrb[0].mxu0
    %v3259 = vadd.f32 %v3026, %v3258
    %v3260 = vpop.f32.mrb[0].mxu0
    %v3261 = vadd.f32 %v3028, %v3260
    %v3262 = vpop.f32.mrb[0].mxu0
    %v3263 = vadd.f32 %v3030, %v3262
    %3264 = vmatprep.mubr.bf16.mxu0 %v2711
    %3265 = vmatmul.mubr.bf16.gmra.mrb[0].mxu0 %v2710
    %v3266 = vpop.f32.mrb[0].mxu0
    %v3267 = vadd.f32 %v3034, %v3266
    %v3268 = vpop.f32.mrb[0].mxu0
    %v3269 = vadd.f32 %v3036, %v3268
    %v3270 = vpop.f32.mrb[0].mxu0
    %v3271 = vadd.f32 %v3038, %v3270
    %v3272 = vpop.f32.mrb[0].mxu0
    %v3273 = vadd.f32 %v3040, %v3272
    %3274 = vmatprep.mubr.bf16.mxu0 %v2713
    %3275 = vmatmul.mubr.bf16.gmra.mrb[0].mxu0 %v2712
    %v3276 = vpop.f32.mrb[0].mxu0
    %v3277 = vadd.f32 %v3044, %v3276
    %v3278 = vpop.f32.mrb[0].mxu0
    %v3279 = vadd.f32 %v3046, %v3278
    %v3280 = vpop.f32.mrb[0].mxu0
    %v3281 = vadd.f32 %v3048, %v3280
    %v3282 = vpop.f32.mrb[0].mxu0
    %v3283 = vadd.f32 %v3050, %v3282
    %3284 = vdwg.mxu0
    %v3285 = vrot.slane %v2690, 1
    %v3286 = vrot.slane %v2691, 1
    %v3287 = vrot.slane %v2692, 1
    %v3288 = vrot.slane %v2693, 1
    %v3289 = vrot.slane %v2694, 1
    %v3290 = vrot.slane %v2695, 1
    %v3291 = vrot.slane %v2696, 1
    %v3292 = vrot.slane %v2697, 1
    %v3293 = vrot.slane %v2698, 1
    %v3294 = vrot.slane %v2699, 1
    %v3295 = vrot.slane %v2700, 1
    %v3296 = vrot.slane %v2701, 1
    %v3297 = vrot.slane %v2702, 1
    %v3298 = vrot.slane %v2703, 1
    %v3299 = vrot.slane %v2704, 1
    %v3300 = vrot.slane %v2705, 1
    %v3301 = vsel %vm573, %v3285, 0.0
    %v3302 = vsel %vm573, %v3286, 0.0
    %v3303 = vsel %vm573, %v3287, 0.0
    %v3304 = vsel %vm573, %v3288, 0.0
    %v3305 = vsel %vm573, %v3289, 0.0
    %v3306 = vsel %vm573, %v3290, 0.0
    %v3307 = vsel %vm573, %v3291, 0.0
    %v3308 = vsel %vm573, %v3292, 0.0
    %v3309 = vsel %vm573, %v3293, 0.0
    %v3310 = vsel %vm573, %v3294, 0.0
    %v3311 = vsel %vm573, %v3295, 0.0
    %v3312 = vsel %vm573, %v3296, 0.0
    %v3313 = vsel %vm573, %v3297, 0.0
    %v3314 = vsel %vm573, %v3298, 0.0
    %v3315 = vsel %vm573, %v3299, 0.0
    %v3316 = vsel %vm573, %v3300, 0.0
    %v3317 = vpack.c.bf16 %v3303, %v3301
    %v3318 = vpack.c.bf16 %v3304, %v3302
    %v3319 = vpack.c.bf16 %v3307, %v3305
    %v3320 = vpack.c.bf16 %v3308, %v3306
    %v3321 = vpack.c.bf16 %v3311, %v3309
    %v3322 = vpack.c.bf16 %v3312, %v3310
    %v3323 = vpack.c.bf16 %v3315, %v3313
    %v3324 = vpack.c.bf16 %v3316, %v3314
    %s3325 = scalar_lea.vmem [#allocation10], 512
    %v3326 = vld [vmem:[%s3325] sm:$0xff]
    %v3327 = vld [vmem:[%s3325 + $0x8] sm:$0xff]
    %v3328 = vld [vmem:[%s3325 + $0x10] sm:$0xff]
    %v3329 = vld [vmem:[%s3325 + $0x18] sm:$0xff]
    %v3330 = vld [vmem:[%s3325 + $0x20] sm:$0xff]
    %v3331 = vld [vmem:[%s3325 + $0x28] sm:$0xff]
    %v3332 = vld [vmem:[%s3325 + $0x30] sm:$0xff]
    %v3333 = vld [vmem:[%s3325 + $0x38] sm:$0xff]
    %v3334 = vld [vmem:[%s3325 + $0x40] sm:$0xff]
    %v3335 = vld [vmem:[%s3325 + $0x48] sm:$0xff]
    %v3336 = vld [vmem:[%s3325 + $0x50] sm:$0xff]
    %v3337 = vld [vmem:[%s3325 + $0x58] sm:$0xff]
    %v3338 = vld [vmem:[%s3325 + $0x60] sm:$0xff]
    %v3339 = vld [vmem:[%s3325 + $0x68] sm:$0xff]
    %v3340 = vld [vmem:[%s3325 + $0x70] sm:$0xff]
    %v3341 = vld [vmem:[%s3325 + $0x78] sm:$0xff]
    %v3342 = vld [vmem:[%s3325 + $0x80] sm:$0xff]
    %v3343 = vld [vmem:[%s3325 + $0x88] sm:$0xff]
    %v3344 = vld [vmem:[%s3325 + $0x90] sm:$0xff]
    %v3345 = vld [vmem:[%s3325 + $0x98] sm:$0xff]
    %v3346 = vld [vmem:[%s3325 + $0xa0] sm:$0xff]
    %v3347 = vld [vmem:[%s3325 + $0xa8] sm:$0xff]
    %v3348 = vld [vmem:[%s3325 + $0xb0] sm:$0xff]
    %v3349 = vld [vmem:[%s3325 + $0xb8] sm:$0xff]
    %v3350 = vld [vmem:[%s3325 + $0xc0] sm:$0xff]
    %v3351 = vld [vmem:[%s3325 + $0xc8] sm:$0xff]
    %v3352 = vld [vmem:[%s3325 + $0xd0] sm:$0xff]
    %v3353 = vld [vmem:[%s3325 + $0xd8] sm:$0xff]
    %v3354 = vld [vmem:[%s3325 + $0xe0] sm:$0xff]
    %v3355 = vld [vmem:[%s3325 + $0xe8] sm:$0xff]
    %v3356 = vld [vmem:[%s3325 + $0xf0] sm:$0xff]
    %v3357 = vld [vmem:[%s3325 + $0xf8] sm:$0xff]
    %v3390 = vunpack.c.l.b16 %v3326
    %v3391 = vunpack.c.h.b16 %v3326
    %v3392 = vunpack.c.l.b16 %v3327
    %v3393 = vunpack.c.h.b16 %v3327
    %v3394 = vunpack.c.l.b16 %v3328
    %v3395 = vunpack.c.h.b16 %v3328
    %v3396 = vunpack.c.l.b16 %v3329
    %v3397 = vunpack.c.h.b16 %v3329
    %v3398 = vunpack.c.l.b16 %v3330
    %v3399 = vunpack.c.h.b16 %v3330
    %v3400 = vunpack.c.l.b16 %v3331
    %v3401 = vunpack.c.h.b16 %v3331
    %v3402 = vunpack.c.l.b16 %v3332
    %v3403 = vunpack.c.h.b16 %v3332
    %v3404 = vunpack.c.l.b16 %v3333
    %v3405 = vunpack.c.h.b16 %v3333
    %v3406 = vunpack.c.l.b16 %v3334
    %v3407 = vunpack.c.h.b16 %v3334
    %v3408 = vunpack.c.l.b16 %v3335
    %v3409 = vunpack.c.h.b16 %v3335
    %v3410 = vunpack.c.l.b16 %v3336
    %v3411 = vunpack.c.h.b16 %v3336
    %v3412 = vunpack.c.l.b16 %v3337
    %v3413 = vunpack.c.h.b16 %v3337
    %v3414 = vunpack.c.l.b16 %v3338
    %v3415 = vunpack.c.h.b16 %v3338
    %v3416 = vunpack.c.l.b16 %v3339
    %v3417 = vunpack.c.h.b16 %v3339
    %v3418 = vunpack.c.l.b16 %v3340
    %v3419 = vunpack.c.h.b16 %v3340
    %v3420 = vunpack.c.l.b16 %v3341
    %v3421 = vunpack.c.h.b16 %v3341
    %v3422 = vunpack.c.l.b16 %v3342
    %v3423 = vunpack.c.h.b16 %v3342
    %v3424 = vunpack.c.l.b16 %v3343
    %v3425 = vunpack.c.h.b16 %v3343
    %v3426 = vunpack.c.l.b16 %v3344
    %v3427 = vunpack.c.h.b16 %v3344
    %v3428 = vunpack.c.l.b16 %v3345
    %v3429 = vunpack.c.h.b16 %v3345
    %v3430 = vunpack.c.l.b16 %v3346
    %v3431 = vunpack.c.h.b16 %v3346
    %v3432 = vunpack.c.l.b16 %v3347
    %v3433 = vunpack.c.h.b16 %v3347
    %v3434 = vunpack.c.l.b16 %v3348
    %v3435 = vunpack.c.h.b16 %v3348
    %v3436 = vunpack.c.l.b16 %v3349
    %v3437 = vunpack.c.h.b16 %v3349
    %v3438 = vunpack.c.l.b16 %v3350
    %v3439 = vunpack.c.h.b16 %v3350
    %v3440 = vunpack.c.l.b16 %v3351
    %v3441 = vunpack.c.h.b16 %v3351
    %v3442 = vunpack.c.l.b16 %v3352
    %v3443 = vunpack.c.h.b16 %v3352
    %v3444 = vunpack.c.l.b16 %v3353
    %v3445 = vunpack.c.h.b16 %v3353
    %v3446 = vunpack.c.l.b16 %v3354
    %v3447 = vunpack.c.h.b16 %v3354
    %v3448 = vunpack.c.l.b16 %v3355
    %v3449 = vunpack.c.h.b16 %v3355
    %v3450 = vunpack.c.l.b16 %v3356
    %v3451 = vunpack.c.h.b16 %v3356
    %v3452 = vunpack.c.l.b16 %v3357
    %v3453 = vunpack.c.h.b16 %v3357
    %v3454 = vpack.c.b16 %v3392, %v3390
    %v3455 = vpack.c.b16 %v3393, %v3391
    %v3456 = vpack.c.b16 %v3396, %v3394
    %v3457 = vpack.c.b16 %v3397, %v3395
    %v3458 = vpack.c.b16 %v3400, %v3398
    %v3459 = vpack.c.b16 %v3401, %v3399
    %v3460 = vpack.c.b16 %v3404, %v3402
    %v3461 = vpack.c.b16 %v3405, %v3403
    %v3462 = vpack.c.b16 %v3408, %v3406
    %v3463 = vpack.c.b16 %v3409, %v3407
    %v3464 = vpack.c.b16 %v3412, %v3410
    %v3465 = vpack.c.b16 %v3413, %v3411
    %v3466 = vpack.c.b16 %v3416, %v3414
    %v3467 = vpack.c.b16 %v3417, %v3415
    %v3468 = vpack.c.b16 %v3420, %v3418
    %v3469 = vpack.c.b16 %v3421, %v3419
    %v3470 = vpack.c.b16 %v3424, %v3422
    %v3471 = vpack.c.b16 %v3425, %v3423
    %v3472 = vpack.c.b16 %v3428, %v3426
    %v3473 = vpack.c.b16 %v3429, %v3427
    %v3474 = vpack.c.b16 %v3432, %v3430
    %v3475 = vpack.c.b16 %v3433, %v3431
    %v3476 = vpack.c.b16 %v3436, %v3434
    %v3477 = vpack.c.b16 %v3437, %v3435
    %v3478 = vpack.c.b16 %v3440, %v3438
    %v3479 = vpack.c.b16 %v3441, %v3439
    %v3480 = vpack.c.b16 %v3444, %v3442
    %v3481 = vpack.c.b16 %v3445, %v3443
    %v3482 = vpack.c.b16 %v3448, %v3446
    %v3483 = vpack.c.b16 %v3449, %v3447
    %v3484 = vpack.c.b16 %v3452, %v3450
    %v3485 = vpack.c.b16 %v3453, %v3451
    %3518 = vmatprep.subr.bf16.mxu0 %v3455
    %3519 = vmatpush1.bf16.msra.mxu0 %v3454
    %3520 = vmatprep.subr.bf16.mxu0 %v3457
    %3521 = vmatpush1.bf16.msra.mxu0 %v3456
    %3522 = vmatprep.subr.bf16.mxu0 %v3459
    %3523 = vmatpush1.bf16.msra.mxu0 %v3458
    %3524 = vmatprep.subr.bf16.mxu0 %v3461
    %3525 = vmatpush1.bf16.msra.mxu0 %v3460
    %3526 = vmatprep.subr.bf16.mxu0 %v3463
    %3527 = vmatpush1.bf16.msra.mxu0 %v3462
    %3528 = vmatprep.subr.bf16.mxu0 %v3465
    %3529 = vmatpush1.bf16.msra.mxu0 %v3464
    %3530 = vmatprep.subr.bf16.mxu0 %v3467
    %3531 = vmatpush1.bf16.msra.mxu0 %v3466
    %3532 = vmatprep.subr.bf16.mxu0 %v3469
    %3533 = vmatpush1.bf16.msra.mxu0 %v3468
    %3534 = vmatprep.subr.bf16.mxu0 %v3471
    %3535 = vmatpush1.bf16.msra.mxu0 %v3470
    %3536 = vmatprep.subr.bf16.mxu0 %v3473
    %3537 = vmatpush1.bf16.msra.mxu0 %v3472
    %3538 = vmatprep.subr.bf16.mxu0 %v3475
    %3539 = vmatpush1.bf16.msra.mxu0 %v3474
    %3540 = vmatprep.subr.bf16.mxu0 %v3477
    %3541 = vmatpush1.bf16.msra.mxu0 %v3476
    %3542 = vmatprep.subr.bf16.mxu0 %v3479
    %3543 = vmatpush1.bf16.msra.mxu0 %v3478
    %3544 = vmatprep.subr.bf16.mxu0 %v3481
    %3545 = vmatpush1.bf16.msra.mxu0 %v3480
    %3546 = vmatprep.subr.bf16.mxu0 %v3483
    %3547 = vmatpush1.bf16.msra.mxu0 %v3482
    %3548 = vmatprep.subr.bf16.mxu0 %v3485
    %3549 = vmatpush1.bf16.msra.mxu0 %v3484
    %3550 = vmatprep.mubr.bf16.mxu0 %v3318
    %3551 = vmatmul.mubr.bf16.gmra.mrb[0].mxu0 %v3317
    %v3552 = vpop.f32.mrb[0].mxu0
    %v3553 = vadd.f32 0.0, %v3552
    %v3554 = vpop.f32.mrb[0].mxu0
    %v3555 = vadd.f32 0.0, %v3554
    %v3556 = vpop.f32.mrb[0].mxu0
    %v3557 = vadd.f32 0.0, %v3556
    %v3558 = vpop.f32.mrb[0].mxu0
    %v3559 = vadd.f32 0.0, %v3558
    %3560 = vmatprep.mubr.bf16.mxu0 %v3320
    %3561 = vmatmul.mubr.bf16.gmra.mrb[0].mxu0 %v3319
    %v3562 = vpop.f32.mrb[0].mxu0
    %v3563 = vadd.f32 0.0, %v3562
    %v3564 = vpop.f32.mrb[0].mxu0
    %v3565 = vadd.f32 0.0, %v3564
    %v3566 = vpop.f32.mrb[0].mxu0
    %v3567 = vadd.f32 0.0, %v3566
    %v3568 = vpop.f32.mrb[0].mxu0
    %v3569 = vadd.f32 0.0, %v3568
    %3570 = vmatprep.mubr.bf16.mxu0 %v3322
    %3571 = vmatmul.mubr.bf16.gmra.mrb[0].mxu0 %v3321
    %v3572 = vpop.f32.mrb[0].mxu0
    %v3573 = vadd.f32 0.0, %v3572
    %v3574 = vpop.f32.mrb[0].mxu0
    %v3575 = vadd.f32 0.0, %v3574
    %v3576 = vpop.f32.mrb[0].mxu0
    %v3577 = vadd.f32 0.0, %v3576
    %v3578 = vpop.f32.mrb[0].mxu0
    %v3579 = vadd.f32 0.0, %v3578
    %3580 = vmatprep.mubr.bf16.mxu0 %v3324
    %3581 = vmatmul.mubr.bf16.gmra.mrb[0].mxu0 %v3323
    %v3582 = vpop.f32.mrb[0].mxu0
    %v3583 = vadd.f32 0.0, %v3582
    %v3584 = vpop.f32.mrb[0].mxu0
    %v3585 = vadd.f32 0.0, %v3584
    %v3586 = vpop.f32.mrb[0].mxu0
    %v3587 = vadd.f32 0.0, %v3586
    %v3588 = vpop.f32.mrb[0].mxu0
    %v3589 = vadd.f32 0.0, %v3588
    %3590 = vdwg.mxu0
    %v3591 = vadd.f32 %v3247, %v3553
    %v3592 = vadd.f32 %v3249, %v3555
    %v3593 = vadd.f32 %v3251, %v3557
    %v3594 = vadd.f32 %v3253, %v3559
    %v3595 = vadd.f32 %v3257, %v3563
    %v3596 = vadd.f32 %v3259, %v3565
    %v3597 = vadd.f32 %v3261, %v3567
    %v3598 = vadd.f32 %v3263, %v3569
    %v3599 = vadd.f32 %v3267, %v3573
    %v3600 = vadd.f32 %v3269, %v3575
    %v3601 = vadd.f32 %v3271, %v3577
    %v3602 = vadd.f32 %v3273, %v3579
    %v3603 = vadd.f32 %v3277, %v3583
    %v3604 = vadd.f32 %v3279, %v3585
    %v3605 = vadd.f32 %v3281, %v3587
    %v3606 = vadd.f32 %v3283, %v3589
    %v3607 = vld [vmem:[#allocation16] sm:$0x3]
    %v3609 = vlaneseq
    %v3610 = vshrl.u32 %v3609, 7
    %v3611 = vsub.s32 0, %v3610
    %v3612 = vrot.slane %v3607, %v3611
    %v3613 = vlaneseq
    %v3614 = vshrl.u32 %v3613, 7
    %v3615 = vsub.s32 1, %v3614
    %v3616 = vrot.slane %v3607, %v3615
    %v3619 = vadd.f32 %v3591, %v3612
    %v3620 = vadd.f32 %v3592, %v3616
    %v3621 = vadd.f32 %v3593, %v3612
    %v3622 = vadd.f32 %v3594, %v3616
    %v3623 = vadd.f32 %v3595, %v3612
    %v3624 = vadd.f32 %v3596, %v3616
    %v3625 = vadd.f32 %v3597, %v3612
    %v3626 = vadd.f32 %v3598, %v3616
    %v3627 = vadd.f32 %v3599, %v3612
    %v3628 = vadd.f32 %v3600, %v3616
    %v3629 = vadd.f32 %v3601, %v3612
    %v3630 = vadd.f32 %v3602, %v3616
    %v3631 = vadd.f32 %v3603, %v3612
    %v3632 = vadd.f32 %v3604, %v3616
    %v3633 = vadd.f32 %v3605, %v3612
    %v3634 = vadd.f32 %v3606, %v3616
    %v3635 = vmax.f32 %v3619, 0.0
    %v3636 = vmax.f32 %v3620, 0.0
    %v3637 = vmax.f32 %v3621, 0.0
    %v3638 = vmax.f32 %v3622, 0.0
    %v3639 = vmax.f32 %v3623, 0.0
    %v3640 = vmax.f32 %v3624, 0.0
    %v3641 = vmax.f32 %v3625, 0.0
    %v3642 = vmax.f32 %v3626, 0.0
    %v3643 = vmax.f32 %v3627, 0.0
    %v3644 = vmax.f32 %v3628, 0.0
    %v3645 = vmax.f32 %v3629, 0.0
    %v3646 = vmax.f32 %v3630, 0.0
    %v3647 = vmax.f32 %v3631, 0.0
    %v3648 = vmax.f32 %v3632, 0.0
    %v3649 = vmax.f32 %v3633, 0.0
    %v3650 = vmax.f32 %v3634, 0.0
    %v3651 = vpack.c.bf16 %v3635, %v3635
    %v3652 = vpack.c.bf16 %v3636, %v3636
    %v3653 = vpack.c.bf16 %v3637, %v3637
    %v3654 = vpack.c.bf16 %v3638, %v3638
    %v3655 = vpack.c.bf16 %v3639, %v3639
    %v3656 = vpack.c.bf16 %v3640, %v3640
    %v3657 = vpack.c.bf16 %v3641, %v3641
    %v3658 = vpack.c.bf16 %v3642, %v3642
    %v3659 = vpack.c.bf16 %v3643, %v3643
    %v3660 = vpack.c.bf16 %v3644, %v3644
    %v3661 = vpack.c.bf16 %v3645, %v3645
    %v3662 = vpack.c.bf16 %v3646, %v3646
    %v3663 = vpack.c.bf16 %v3647, %v3647
    %v3664 = vpack.c.bf16 %v3648, %v3648
    %v3665 = vpack.c.bf16 %v3649, %v3649
    %v3666 = vpack.c.bf16 %v3650, %v3650
    %v3667 = vld [vmem:[#allocation17] sm:$0xf]
    %v3668 = vld [vmem:[#allocation17 + $0x4] sm:$0xf]
    %v3669 = vld [vmem:[#allocation17 + $0x8] sm:$0xf]
    %v3670 = vld [vmem:[#allocation17 + $0xc] sm:$0xf]
    %v3671 = vld [vmem:[#allocation17 + $0x10] sm:$0xf]
    %v3672 = vld [vmem:[#allocation17 + $0x14] sm:$0xf]
    %v3673 = vld [vmem:[#allocation17 + $0x18] sm:$0xf]
    %v3674 = vld [vmem:[#allocation17 + $0x1c] sm:$0xf]
    %v3675 = vld [vmem:[#allocation17 + $0x20] sm:$0xf]
    %v3676 = vld [vmem:[#allocation17 + $0x24] sm:$0xf]
    %v3677 = vld [vmem:[#allocation17 + $0x28] sm:$0xf]
    %v3678 = vld [vmem:[#allocation17 + $0x2c] sm:$0xf]
    %v3679 = vld [vmem:[#allocation17 + $0x30] sm:$0xf]
    %v3680 = vld [vmem:[#allocation17 + $0x34] sm:$0xf]
    %v3681 = vld [vmem:[#allocation17 + $0x38] sm:$0xf]
    %v3682 = vld [vmem:[#allocation17 + $0x3c] sm:$0xf]
    %v3683 = vld [vmem:[#allocation17 + $0x40] sm:$0xf]
    %v3684 = vld [vmem:[#allocation17 + $0x44] sm:$0xf]
    %v3685 = vld [vmem:[#allocation17 + $0x48] sm:$0xf]
    %v3686 = vld [vmem:[#allocation17 + $0x4c] sm:$0xf]
    %v3687 = vld [vmem:[#allocation17 + $0x50] sm:$0xf]
    %v3688 = vld [vmem:[#allocation17 + $0x54] sm:$0xf]
    %v3689 = vld [vmem:[#allocation17 + $0x58] sm:$0xf]
    %v3690 = vld [vmem:[#allocation17 + $0x5c] sm:$0xf]
    %v3691 = vld [vmem:[#allocation17 + $0x60] sm:$0xf]
    %v3692 = vld [vmem:[#allocation17 + $0x64] sm:$0xf]
    %v3693 = vld [vmem:[#allocation17 + $0x68] sm:$0xf]
    %v3694 = vld [vmem:[#allocation17 + $0x6c] sm:$0xf]
    %v3695 = vld [vmem:[#allocation17 + $0x70] sm:$0xf]
    %v3696 = vld [vmem:[#allocation17 + $0x74] sm:$0xf]
    %v3697 = vld [vmem:[#allocation17 + $0x78] sm:$0xf]
    %v3698 = vld [vmem:[#allocation17 + $0x7c] sm:$0xf]
    %s3699 = scalar_lea.vmem [#allocation17], 128
    %v3700 = vld [vmem:[%s3699] sm:$0xf]
    %v3701 = vld [vmem:[%s3699 + $0x4] sm:$0xf]
    %v3702 = vld [vmem:[%s3699 + $0x8] sm:$0xf]
    %v3703 = vld [vmem:[%s3699 + $0xc] sm:$0xf]
    %v3704 = vld [vmem:[%s3699 + $0x10] sm:$0xf]
    %v3705 = vld [vmem:[%s3699 + $0x14] sm:$0xf]
    %v3706 = vld [vmem:[%s3699 + $0x18] sm:$0xf]
    %v3707 = vld [vmem:[%s3699 + $0x1c] sm:$0xf]
    %v3708 = vld [vmem:[%s3699 + $0x20] sm:$0xf]
    %v3709 = vld [vmem:[%s3699 + $0x24] sm:$0xf]
    %v3710 = vld [vmem:[%s3699 + $0x28] sm:$0xf]
    %v3711 = vld [vmem:[%s3699 + $0x2c] sm:$0xf]
    %v3712 = vld [vmem:[%s3699 + $0x30] sm:$0xf]
    %v3713 = vld [vmem:[%s3699 + $0x34] sm:$0xf]
    %v3714 = vld [vmem:[%s3699 + $0x38] sm:$0xf]
    %v3715 = vld [vmem:[%s3699 + $0x3c] sm:$0xf]
    %v3716 = vld [vmem:[%s3699 + $0x40] sm:$0xf]
    %v3717 = vld [vmem:[%s3699 + $0x44] sm:$0xf]
    %v3718 = vld [vmem:[%s3699 + $0x48] sm:$0xf]
    %v3719 = vld [vmem:[%s3699 + $0x4c] sm:$0xf]
    %v3720 = vld [vmem:[%s3699 + $0x50] sm:$0xf]
    %v3721 = vld [vmem:[%s3699 + $0x54] sm:$0xf]
    %v3722 = vld [vmem:[%s3699 + $0x58] sm:$0xf]
    %v3723 = vld [vmem:[%s3699 + $0x5c] sm:$0xf]
    %v3724 = vld [vmem:[%s3699 + $0x60] sm:$0xf]
    %v3725 = vld [vmem:[%s3699 + $0x64] sm:$0xf]
    %v3726 = vld [vmem:[%s3699 + $0x68] sm:$0xf]
    %v3727 = vld [vmem:[%s3699 + $0x6c] sm:$0xf]
    %v3728 = vld [vmem:[%s3699 + $0x70] sm:$0xf]
    %v3729 = vld [vmem:[%s3699 + $0x74] sm:$0xf]
    %v3730 = vld [vmem:[%s3699 + $0x78] sm:$0xf]
    %v3731 = vld [vmem:[%s3699 + $0x7c] sm:$0xf]
    %v3748 = vunpack.c.l.b16 %v3651
    %v3749 = vunpack.c.l.b16 %v3652
    %v3750 = vunpack.c.l.b16 %v3653
    %v3751 = vunpack.c.l.b16 %v3654
    %v3752 = vunpack.c.l.b16 %v3655
    %v3753 = vunpack.c.l.b16 %v3656
    %v3754 = vunpack.c.l.b16 %v3657
    %v3755 = vunpack.c.l.b16 %v3658
    %v3756 = vunpack.c.l.b16 %v3659
    %v3757 = vunpack.c.l.b16 %v3660
    %v3758 = vunpack.c.l.b16 %v3661
    %v3759 = vunpack.c.l.b16 %v3662
    %v3760 = vunpack.c.l.b16 %v3663
    %v3761 = vunpack.c.l.b16 %v3664
    %v3762 = vunpack.c.l.b16 %v3665
    %v3763 = vunpack.c.l.b16 %v3666
    %v3764 = vrot.slane %v3748, 1
    %vm3765 = vcmask 1041409
    %v3766 = vsel %vm3765, %v3750, %v3764
    %v3767 = vrot.slane %v3752, 7
    %vm3768 = vcmask 1042434
    %v3769 = vsel %vm3768, %v3767, %v3766
    %v3770 = vrot.slane %v3754, 6
    %vm3771 = vcmask 1043459
    %v3772 = vsel %vm3771, %v3770, %v3769
    %v3773 = vrot.slane %v3756, 5
    %vm3774 = vcmask 1044484
    %v3775 = vsel %vm3774, %v3773, %v3772
    %v3776 = vrot.slane %v3758, 4
    %vm3777 = vcmask 1045509
    %v3778 = vsel %vm3777, %v3776, %v3775
    %v3779 = vrot.slane %v3760, 3
    %vm3780 = vcmask 1046534
    %v3781 = vsel %vm3780, %v3779, %v3778
    %v3782 = vrot.slane %v3762, 2
    %vm3783 = vcmask 1047559
    %v3784 = vsel %vm3783, %v3782, %v3781
    %v3785 = vrot.slane %v3749, 1
    %v3786 = vsel %vm3765, %v3751, %v3785
    %v3787 = vrot.slane %v3753, 7
    %v3788 = vsel %vm3768, %v3787, %v3786
    %v3789 = vrot.slane %v3755, 6
    %v3790 = vsel %vm3771, %v3789, %v3788
    %v3791 = vrot.slane %v3757, 5
    %v3792 = vsel %vm3774, %v3791, %v3790
    %v3793 = vrot.slane %v3759, 4
    %v3794 = vsel %vm3777, %v3793, %v3792
    %v3795 = vrot.slane %v3761, 3
    %v3796 = vsel %vm3780, %v3795, %v3794
    %v3797 = vrot.slane %v3763, 2
    %v3798 = vsel %vm3783, %v3797, %v3796
    %v3799 = vpack.c.b16 %v3784, %v3784
    %v3800 = vpack.c.b16 %v3798, %v3798
    %v3835 = vunpack.c.l.b16 %v3700
    %v3836 = vunpack.c.l.b16 %v3701
    %v3837 = vunpack.c.l.b16 %v3702
    %v3838 = vunpack.c.l.b16 %v3703
    %v3839 = vunpack.c.l.b16 %v3704
    %v3840 = vunpack.c.l.b16 %v3705
    %v3841 = vunpack.c.l.b16 %v3706
    %v3842 = vunpack.c.l.b16 %v3707
    %v3843 = vunpack.c.l.b16 %v3708
    %v3844 = vunpack.c.l.b16 %v3709
    %v3845 = vunpack.c.l.b16 %v3710
    %v3846 = vunpack.c.l.b16 %v3711
    %v3847 = vunpack.c.l.b16 %v3712
    %v3848 = vunpack.c.l.b16 %v3713
    %v3849 = vunpack.c.l.b16 %v3714
    %v3850 = vunpack.c.l.b16 %v3715
    %v3851 = vunpack.c.l.b16 %v3716
    %v3852 = vunpack.c.l.b16 %v3717
    %v3853 = vunpack.c.l.b16 %v3718
    %v3854 = vunpack.c.l.b16 %v3719
    %v3855 = vunpack.c.l.b16 %v3720
    %v3856 = vunpack.c.l.b16 %v3721
    %v3857 = vunpack.c.l.b16 %v3722
    %v3858 = vunpack.c.l.b16 %v3723
    %v3859 = vunpack.c.l.b16 %v3724
    %v3860 = vunpack.c.l.b16 %v3725
    %v3861 = vunpack.c.l.b16 %v3726
    %v3862 = vunpack.c.l.b16 %v3727
    %v3863 = vunpack.c.l.b16 %v3728
    %v3864 = vunpack.c.l.b16 %v3729
    %v3865 = vunpack.c.l.b16 %v3730
    %v3866 = vunpack.c.l.b16 %v3731
    %v3867 = vpack.c.b16 %v3836, %v3835
    %v3868 = vpack.c.b16 %v3838, %v3837
    %v3869 = vpack.c.b16 %v3840, %v3839
    %v3870 = vpack.c.b16 %v3842, %v3841
    %v3871 = vpack.c.b16 %v3844, %v3843
    %v3872 = vpack.c.b16 %v3846, %v3845
    %v3873 = vpack.c.b16 %v3848, %v3847
    %v3874 = vpack.c.b16 %v3850, %v3849
    %v3875 = vpack.c.b16 %v3852, %v3851
    %v3876 = vpack.c.b16 %v3854, %v3853
    %v3877 = vpack.c.b16 %v3856, %v3855
    %v3878 = vpack.c.b16 %v3858, %v3857
    %v3879 = vpack.c.b16 %v3860, %v3859
    %v3880 = vpack.c.b16 %v3862, %v3861
    %v3881 = vpack.c.b16 %v3864, %v3863
    %v3882 = vpack.c.b16 %v3866, %v3865
    %3899 = vmatprep.subr.bf16.mxu0 0
    %3900 = vmatpush1.bf16.msra.mxu0 %v3867
    %3901 = vmatprep.subr.bf16.mxu0 0
    %3902 = vmatpush1.bf16.msra.mxu0 %v3868
    %3903 = vmatprep.subr.bf16.mxu0 0
    %3904 = vmatpush1.bf16.msra.mxu0 %v3869
    %3905 = vmatprep.subr.bf16.mxu0 0
    %3906 = vmatpush1.bf16.msra.mxu0 %v3870
    %3907 = vmatprep.subr.bf16.mxu0 0
    %3908 = vmatpush1.bf16.msra.mxu0 %v3871
    %3909 = vmatprep.subr.bf16.mxu0 0
    %3910 = vmatpush1.bf16.msra.mxu0 %v3872
    %3911 = vmatprep.subr.bf16.mxu0 0
    %3912 = vmatpush1.bf16.msra.mxu0 %v3873
    %3913 = vmatprep.subr.bf16.mxu0 0
    %3914 = vmatpush1.bf16.msra.mxu0 %v3874
    %3915 = vmatprep.subr.bf16.mxu0 0
    %3916 = vmatpush1.bf16.msra.mxu0 %v3875
    %3917 = vmatprep.subr.bf16.mxu0 0
    %3918 = vmatpush1.bf16.msra.mxu0 %v3876
    %3919 = vmatprep.subr.bf16.mxu0 0
    %3920 = vmatpush1.bf16.msra.mxu0 %v3877
    %3921 = vmatprep.subr.bf16.mxu0 0
    %3922 = vmatpush1.bf16.msra.mxu0 %v3878
    %3923 = vmatprep.subr.bf16.mxu0 0
    %3924 = vmatpush1.bf16.msra.mxu0 %v3879
    %3925 = vmatprep.subr.bf16.mxu0 0
    %3926 = vmatpush1.bf16.msra.mxu0 %v3880
    %3927 = vmatprep.subr.bf16.mxu0 0
    %3928 = vmatpush1.bf16.msra.mxu0 %v3881
    %3929 = vmatprep.subr.bf16.mxu0 0
    %3930 = vmatpush1.bf16.msra.mxu0 %v3882
    %3931 = vmatprep.mubr.bf16.mxu0 %v3800
    %3932 = vmatmul.mubr.bf16.gmra.mrb[0].mxu0 %v3799
    %v3933 = vpop.f32.mrb[0].mxu0
    %v3934 = vadd.f32 0.0, %v3933
    %v3935 = vpop.f32.mrb[0].mxu0
    %v3936 = vpop.f32.mrb[0].mxu0
    %v3937 = vpop.f32.mrb[0].mxu0
    %3938 = vdwg.mxu0
    %v3939 = vrot.slane %v3750, 7
    %v3940 = vsel %vm3765, %v3939, %v3748
    %v3941 = vrot.slane %v3752, 6
    %v3942 = vsel %vm3768, %v3941, %v3940
    %v3943 = vrot.slane %v3754, 5
    %v3944 = vsel %vm3771, %v3943, %v3942
    %v3945 = vrot.slane %v3756, 4
    %v3946 = vsel %vm3774, %v3945, %v3944
    %v3947 = vrot.slane %v3758, 3
    %v3948 = vsel %vm3777, %v3947, %v3946
    %v3949 = vrot.slane %v3760, 2
    %v3950 = vsel %vm3780, %v3949, %v3948
    %v3951 = vrot.slane %v3762, 1
    %v3952 = vsel %vm3783, %v3951, %v3950
    %v3953 = vrot.slane %v3751, 7
    %v3954 = vsel %vm3765, %v3953, %v3749
    %v3955 = vrot.slane %v3753, 6
    %v3956 = vsel %vm3768, %v3955, %v3954
    %v3957 = vrot.slane %v3755, 5
    %v3958 = vsel %vm3771, %v3957, %v3956
    %v3959 = vrot.slane %v3757, 4
    %v3960 = vsel %vm3774, %v3959, %v3958
    %v3961 = vrot.slane %v3759, 3
    %v3962 = vsel %vm3777, %v3961, %v3960
    %v3963 = vrot.slane %v3761, 2
    %v3964 = vsel %vm3780, %v3963, %v3962
    %v3965 = vrot.slane %v3763, 1
    %v3966 = vsel %vm3783, %v3965, %v3964
    %v3967 = vpack.c.b16 %v3952, %v3952
    %v3968 = vpack.c.b16 %v3966, %v3966
    %v4003 = vunpack.c.l.b16 %v3667
    %v4004 = vunpack.c.l.b16 %v3668
    %v4005 = vunpack.c.l.b16 %v3669
    %v4006 = vunpack.c.l.b16 %v3670
    %v4007 = vunpack.c.l.b16 %v3671
    %v4008 = vunpack.c.l.b16 %v3672
    %v4009 = vunpack.c.l.b16 %v3673
    %v4010 = vunpack.c.l.b16 %v3674
    %v4011 = vunpack.c.l.b16 %v3675
    %v4012 = vunpack.c.l.b16 %v3676
    %v4013 = vunpack.c.l.b16 %v3677
    %v4014 = vunpack.c.l.b16 %v3678
    %v4015 = vunpack.c.l.b16 %v3679
    %v4016 = vunpack.c.l.b16 %v3680
    %v4017 = vunpack.c.l.b16 %v3681
    %v4018 = vunpack.c.l.b16 %v3682
    %v4019 = vunpack.c.l.b16 %v3683
    %v4020 = vunpack.c.l.b16 %v3684
    %v4021 = vunpack.c.l.b16 %v3685
    %v4022 = vunpack.c.l.b16 %v3686
    %v4023 = vunpack.c.l.b16 %v3687
    %v4024 = vunpack.c.l.b16 %v3688
    %v4025 = vunpack.c.l.b16 %v3689
    %v4026 = vunpack.c.l.b16 %v3690
    %v4027 = vunpack.c.l.b16 %v3691
    %v4028 = vunpack.c.l.b16 %v3692
    %v4029 = vunpack.c.l.b16 %v3693
    %v4030 = vunpack.c.l.b16 %v3694
    %v4031 = vunpack.c.l.b16 %v3695
    %v4032 = vunpack.c.l.b16 %v3696
    %v4033 = vunpack.c.l.b16 %v3697
    %v4034 = vunpack.c.l.b16 %v3698
    %v4035 = vpack.c.b16 %v4004, %v4003
    %v4036 = vpack.c.b16 %v4006, %v4005
    %v4037 = vpack.c.b16 %v4008, %v4007
    %v4038 = vpack.c.b16 %v4010, %v4009
    %v4039 = vpack.c.b16 %v4012, %v4011
    %v4040 = vpack.c.b16 %v4014, %v4013
    %v4041 = vpack.c.b16 %v4016, %v4015
    %v4042 = vpack.c.b16 %v4018, %v4017
    %v4043 = vpack.c.b16 %v4020, %v4019
    %v4044 = vpack.c.b16 %v4022, %v4021
    %v4045 = vpack.c.b16 %v4024, %v4023
    %v4046 = vpack.c.b16 %v4026, %v4025
    %v4047 = vpack.c.b16 %v4028, %v4027
    %v4048 = vpack.c.b16 %v4030, %v4029
    %v4049 = vpack.c.b16 %v4032, %v4031
    %v4050 = vpack.c.b16 %v4034, %v4033
    %4067 = vmatprep.subr.bf16.mxu0 0
    %4068 = vmatpush1.bf16.msra.mxu0 %v4035
    %4069 = vmatprep.subr.bf16.mxu0 0
    %4070 = vmatpush1.bf16.msra.mxu0 %v4036
    %4071 = vmatprep.subr.bf16.mxu0 0
    %4072 = vmatpush1.bf16.msra.mxu0 %v4037
    %4073 = vmatprep.subr.bf16.mxu0 0
    %4074 = vmatpush1.bf16.msra.mxu0 %v4038
    %4075 = vmatprep.subr.bf16.mxu0 0
    %4076 = vmatpush1.bf16.msra.mxu0 %v4039
    %4077 = vmatprep.subr.bf16.mxu0 0
    %4078 = vmatpush1.bf16.msra.mxu0 %v4040
    %4079 = vmatprep.subr.bf16.mxu0 0
    %4080 = vmatpush1.bf16.msra.mxu0 %v4041
    %4081 = vmatprep.subr.bf16.mxu0 0
    %4082 = vmatpush1.bf16.msra.mxu0 %v4042
    %4083 = vmatprep.subr.bf16.mxu0 0
    %4084 = vmatpush1.bf16.msra.mxu0 %v4043
    %4085 = vmatprep.subr.bf16.mxu0 0
    %4086 = vmatpush1.bf16.msra.mxu0 %v4044
    %4087 = vmatprep.subr.bf16.mxu0 0
    %4088 = vmatpush1.bf16.msra.mxu0 %v4045
    %4089 = vmatprep.subr.bf16.mxu0 0
    %4090 = vmatpush1.bf16.msra.mxu0 %v4046
    %4091 = vmatprep.subr.bf16.mxu0 0
    %4092 = vmatpush1.bf16.msra.mxu0 %v4047
    %4093 = vmatprep.subr.bf16.mxu0 0
    %4094 = vmatpush1.bf16.msra.mxu0 %v4048
    %4095 = vmatprep.subr.bf16.mxu0 0
    %4096 = vmatpush1.bf16.msra.mxu0 %v4049
    %4097 = vmatprep.subr.bf16.mxu0 0
    %4098 = vmatpush1.bf16.msra.mxu0 %v4050
    %4099 = vmatprep.mubr.bf16.mxu0 %v3968
    %4100 = vmatmul.mubr.bf16.gmra.mrb[0].mxu0 %v3967
    %v4101 = vpop.f32.mrb[0].mxu0
    %v4102 = vadd.f32 %v3934, %v4101
    %v4103 = vpop.f32.mrb[0].mxu0
    %v4104 = vpop.f32.mrb[0].mxu0
    %v4105 = vpop.f32.mrb[0].mxu0
    %4106 = vdwg.mxu0
    %s4107 = scalar_lea.vmem [#allocation17], 256
    %v4108 = vld [vmem:[%s4107] sm:$0xf]
    %v4109 = vld [vmem:[%s4107 + $0x4] sm:$0xf]
    %v4110 = vld [vmem:[%s4107 + $0x8] sm:$0xf]
    %v4111 = vld [vmem:[%s4107 + $0xc] sm:$0xf]
    %v4112 = vld [vmem:[%s4107 + $0x10] sm:$0xf]
    %v4113 = vld [vmem:[%s4107 + $0x14] sm:$0xf]
    %v4114 = vld [vmem:[%s4107 + $0x18] sm:$0xf]
    %v4115 = vld [vmem:[%s4107 + $0x1c] sm:$0xf]
    %v4116 = vld [vmem:[%s4107 + $0x20] sm:$0xf]
    %v4117 = vld [vmem:[%s4107 + $0x24] sm:$0xf]
    %v4118 = vld [vmem:[%s4107 + $0x28] sm:$0xf]
    %v4119 = vld [vmem:[%s4107 + $0x2c] sm:$0xf]
    %v4120 = vld [vmem:[%s4107 + $0x30] sm:$0xf]
    %v4121 = vld [vmem:[%s4107 + $0x34] sm:$0xf]
    %v4122 = vld [vmem:[%s4107 + $0x38] sm:$0xf]
    %v4123 = vld [vmem:[%s4107 + $0x3c] sm:$0xf]
    %v4124 = vld [vmem:[%s4107 + $0x40] sm:$0xf]
    %v4125 = vld [vmem:[%s4107 + $0x44] sm:$0xf]
    %v4126 = vld [vmem:[%s4107 + $0x48] sm:$0xf]
    %v4127 = vld [vmem:[%s4107 + $0x4c] sm:$0xf]
    %v4128 = vld [vmem:[%s4107 + $0x50] sm:$0xf]
    %v4129 = vld [vmem:[%s4107 + $0x54] sm:$0xf]
    %v4130 = vld [vmem:[%s4107 + $0x58] sm:$0xf]
    %v4131 = vld [vmem:[%s4107 + $0x5c] sm:$0xf]
    %v4132 = vld [vmem:[%s4107 + $0x60] sm:$0xf]
    %v4133 = vld [vmem:[%s4107 + $0x64] sm:$0xf]
    %v4134 = vld [vmem:[%s4107 + $0x68] sm:$0xf]
    %v4135 = vld [vmem:[%s4107 + $0x6c] sm:$0xf]
    %v4136 = vld [vmem:[%s4107 + $0x70] sm:$0xf]
    %v4137 = vld [vmem:[%s4107 + $0x74] sm:$0xf]
    %v4138 = vld [vmem:[%s4107 + $0x78] sm:$0xf]
    %v4139 = vld [vmem:[%s4107 + $0x7c] sm:$0xf]
    %v4140 = vrot.slane %v3748, 2
    %v4141 = vrot.slane %v3750, 1
    %v4142 = vsel %vm3765, %v4141, %v4140
    %v4143 = vsel %vm3768, %v3752, %v4142
    %v4144 = vrot.slane %v3754, 7
    %v4145 = vsel %vm3771, %v4144, %v4143
    %v4146 = vrot.slane %v3756, 6
    %v4147 = vsel %vm3774, %v4146, %v4145
    %v4148 = vrot.slane %v3758, 5
    %v4149 = vsel %vm3777, %v4148, %v4147
    %v4150 = vrot.slane %v3760, 4
    %v4151 = vsel %vm3780, %v4150, %v4149
    %v4152 = vrot.slane %v3762, 3
    %v4153 = vsel %vm3783, %v4152, %v4151
    %v4154 = vrot.slane %v3749, 2
    %v4155 = vrot.slane %v3751, 1
    %v4156 = vsel %vm3765, %v4155, %v4154
    %v4157 = vsel %vm3768, %v3753, %v4156
    %v4158 = vrot.slane %v3755, 7
    %v4159 = vsel %vm3771, %v4158, %v4157
    %v4160 = vrot.slane %v3757, 6
    %v4161 = vsel %vm3774, %v4160, %v4159
    %v4162 = vrot.slane %v3759, 5
    %v4163 = vsel %vm3777, %v4162, %v4161
    %v4164 = vrot.slane %v3761, 4
    %v4165 = vsel %vm3780, %v4164, %v4163
    %v4166 = vrot.slane %v3763, 3
    %v4167 = vsel %vm3783, %v4166, %v4165
    %v4168 = vpack.c.b16 %v4153, %v4153
    %v4169 = vpack.c.b16 %v4167, %v4167
    %v4204 = vunpack.c.l.b16 %v4108
    %v4205 = vunpack.c.l.b16 %v4109
    %v4206 = vunpack.c.l.b16 %v4110
    %v4207 = vunpack.c.l.b16 %v4111
    %v4208 = vunpack.c.l.b16 %v4112
    %v4209 = vunpack.c.l.b16 %v4113
    %v4210 = vunpack.c.l.b16 %v4114
    %v4211 = vunpack.c.l.b16 %v4115
    %v4212 = vunpack.c.l.b16 %v4116
    %v4213 = vunpack.c.l.b16 %v4117
    %v4214 = vunpack.c.l.b16 %v4118
    %v4215 = vunpack.c.l.b16 %v4119
    %v4216 = vunpack.c.l.b16 %v4120
    %v4217 = vunpack.c.l.b16 %v4121
    %v4218 = vunpack.c.l.b16 %v4122
    %v4219 = vunpack.c.l.b16 %v4123
    %v4220 = vunpack.c.l.b16 %v4124
    %v4221 = vunpack.c.l.b16 %v4125
    %v4222 = vunpack.c.l.b16 %v4126
    %v4223 = vunpack.c.l.b16 %v4127
    %v4224 = vunpack.c.l.b16 %v4128
    %v4225 = vunpack.c.l.b16 %v4129
    %v4226 = vunpack.c.l.b16 %v4130
    %v4227 = vunpack.c.l.b16 %v4131
    %v4228 = vunpack.c.l.b16 %v4132
    %v4229 = vunpack.c.l.b16 %v4133
    %v4230 = vunpack.c.l.b16 %v4134
    %v4231 = vunpack.c.l.b16 %v4135
    %v4232 = vunpack.c.l.b16 %v4136
    %v4233 = vunpack.c.l.b16 %v4137
    %v4234 = vunpack.c.l.b16 %v4138
    %v4235 = vunpack.c.l.b16 %v4139
    %v4236 = vpack.c.b16 %v4205, %v4204
    %v4237 = vpack.c.b16 %v4207, %v4206
    %v4238 = vpack.c.b16 %v4209, %v4208
    %v4239 = vpack.c.b16 %v4211, %v4210
    %v4240 = vpack.c.b16 %v4213, %v4212
    %v4241 = vpack.c.b16 %v4215, %v4214
    %v4242 = vpack.c.b16 %v4217, %v4216
    %v4243 = vpack.c.b16 %v4219, %v4218
    %v4244 = vpack.c.b16 %v4221, %v4220
    %v4245 = vpack.c.b16 %v4223, %v4222
    %v4246 = vpack.c.b16 %v4225, %v4224
    %v4247 = vpack.c.b16 %v4227, %v4226
    %v4248 = vpack.c.b16 %v4229, %v4228
    %v4249 = vpack.c.b16 %v4231, %v4230
    %v4250 = vpack.c.b16 %v4233, %v4232
    %v4251 = vpack.c.b16 %v4235, %v4234
    %4268 = vmatprep.subr.bf16.mxu0 0
    %4269 = vmatpush1.bf16.msra.mxu0 %v4236
    %4270 = vmatprep.subr.bf16.mxu0 0
    %4271 = vmatpush1.bf16.msra.mxu0 %v4237
    %4272 = vmatprep.subr.bf16.mxu0 0
    %4273 = vmatpush1.bf16.msra.mxu0 %v4238
    %4274 = vmatprep.subr.bf16.mxu0 0
    %4275 = vmatpush1.bf16.msra.mxu0 %v4239
    %4276 = vmatprep.subr.bf16.mxu0 0
    %4277 = vmatpush1.bf16.msra.mxu0 %v4240
    %4278 = vmatprep.subr.bf16.mxu0 0
    %4279 = vmatpush1.bf16.msra.mxu0 %v4241
    %4280 = vmatprep.subr.bf16.mxu0 0
    %4281 = vmatpush1.bf16.msra.mxu0 %v4242
    %4282 = vmatprep.subr.bf16.mxu0 0
    %4283 = vmatpush1.bf16.msra.mxu0 %v4243
    %4284 = vmatprep.subr.bf16.mxu0 0
    %4285 = vmatpush1.bf16.msra.mxu0 %v4244
    %4286 = vmatprep.subr.bf16.mxu0 0
    %4287 = vmatpush1.bf16.msra.mxu0 %v4245
    %4288 = vmatprep.subr.bf16.mxu0 0
    %4289 = vmatpush1.bf16.msra.mxu0 %v4246
    %4290 = vmatprep.subr.bf16.mxu0 0
    %4291 = vmatpush1.bf16.msra.mxu0 %v4247
    %4292 = vmatprep.subr.bf16.mxu0 0
    %4293 = vmatpush1.bf16.msra.mxu0 %v4248
    %4294 = vmatprep.subr.bf16.mxu0 0
    %4295 = vmatpush1.bf16.msra.mxu0 %v4249
    %4296 = vmatprep.subr.bf16.mxu0 0
    %4297 = vmatpush1.bf16.msra.mxu0 %v4250
    %4298 = vmatprep.subr.bf16.mxu0 0
    %4299 = vmatpush1.bf16.msra.mxu0 %v4251
    %4300 = vmatprep.mubr.bf16.mxu0 %v4169
    %4301 = vmatmul.mubr.bf16.gmra.mrb[0].mxu0 %v4168
    %v4302 = vpop.f32.mrb[0].mxu0
    %v4303 = vadd.f32 0.0, %v4302
    %v4304 = vpop.f32.mrb[0].mxu0
    %v4305 = vpop.f32.mrb[0].mxu0
    %v4306 = vpop.f32.mrb[0].mxu0
    %4307 = vdwg.mxu0
    %v4308 = vadd.f32 %v4102, %v4303
    %s4309 = scalar_lea.vmem [#allocation17], 384
    %v4310 = vld [vmem:[%s4309] sm:$0xf]
    %v4311 = vld [vmem:[%s4309 + $0x4] sm:$0xf]
    %v4312 = vld [vmem:[%s4309 + $0x8] sm:$0xf]
    %v4313 = vld [vmem:[%s4309 + $0xc] sm:$0xf]
    %v4314 = vld [vmem:[%s4309 + $0x10] sm:$0xf]
    %v4315 = vld [vmem:[%s4309 + $0x14] sm:$0xf]
    %v4316 = vld [vmem:[%s4309 + $0x18] sm:$0xf]
    %v4317 = vld [vmem:[%s4309 + $0x1c] sm:$0xf]
    %v4318 = vld [vmem:[%s4309 + $0x20] sm:$0xf]
    %v4319 = vld [vmem:[%s4309 + $0x24] sm:$0xf]
    %v4320 = vld [vmem:[%s4309 + $0x28] sm:$0xf]
    %v4321 = vld [vmem:[%s4309 + $0x2c] sm:$0xf]
    %v4322 = vld [vmem:[%s4309 + $0x30] sm:$0xf]
    %v4323 = vld [vmem:[%s4309 + $0x34] sm:$0xf]
    %v4324 = vld [vmem:[%s4309 + $0x38] sm:$0xf]
    %v4325 = vld [vmem:[%s4309 + $0x3c] sm:$0xf]
    %v4326 = vld [vmem:[%s4309 + $0x40] sm:$0xf]
    %v4327 = vld [vmem:[%s4309 + $0x44] sm:$0xf]
    %v4328 = vld [vmem:[%s4309 + $0x48] sm:$0xf]
    %v4329 = vld [vmem:[%s4309 + $0x4c] sm:$0xf]
    %v4330 = vld [vmem:[%s4309 + $0x50] sm:$0xf]
    %v4331 = vld [vmem:[%s4309 + $0x54] sm:$0xf]
    %v4332 = vld [vmem:[%s4309 + $0x58] sm:$0xf]
    %v4333 = vld [vmem:[%s4309 + $0x5c] sm:$0xf]
    %v4334 = vld [vmem:[%s4309 + $0x60] sm:$0xf]
    %v4335 = vld [vmem:[%s4309 + $0x64] sm:$0xf]
    %v4336 = vld [vmem:[%s4309 + $0x68] sm:$0xf]
    %v4337 = vld [vmem:[%s4309 + $0x6c] sm:$0xf]
    %v4338 = vld [vmem:[%s4309 + $0x70] sm:$0xf]
    %v4339 = vld [vmem:[%s4309 + $0x74] sm:$0xf]
    %v4340 = vld [vmem:[%s4309 + $0x78] sm:$0xf]
    %v4341 = vld [vmem:[%s4309 + $0x7c] sm:$0xf]
    %v4342 = vrot.slane %v3748, 3
    %v4343 = vrot.slane %v3750, 2
    %v4344 = vsel %vm3765, %v4343, %v4342
    %v4345 = vrot.slane %v3752, 1
    %v4346 = vsel %vm3768, %v4345, %v4344
    %v4347 = vsel %vm3771, %v3754, %v4346
    %v4348 = vrot.slane %v3756, 7
    %v4349 = vsel %vm3774, %v4348, %v4347
    %v4350 = vrot.slane %v3758, 6
    %v4351 = vsel %vm3777, %v4350, %v4349
    %v4352 = vrot.slane %v3760, 5
    %v4353 = vsel %vm3780, %v4352, %v4351
    %v4354 = vrot.slane %v3762, 4
    %v4355 = vsel %vm3783, %v4354, %v4353
    %v4356 = vrot.slane %v3749, 3
    %v4357 = vrot.slane %v3751, 2
    %v4358 = vsel %vm3765, %v4357, %v4356
    %v4359 = vrot.slane %v3753, 1
    %v4360 = vsel %vm3768, %v4359, %v4358
    %v4361 = vsel %vm3771, %v3755, %v4360
    %v4362 = vrot.slane %v3757, 7
    %v4363 = vsel %vm3774, %v4362, %v4361
    %v4364 = vrot.slane %v3759, 6
    %v4365 = vsel %vm3777, %v4364, %v4363
    %v4366 = vrot.slane %v3761, 5
    %v4367 = vsel %vm3780, %v4366, %v4365
    %v4368 = vrot.slane %v3763, 4
    %v4369 = vsel %vm3783, %v4368, %v4367
    %v4370 = vpack.c.b16 %v4355, %v4355
    %v4371 = vpack.c.b16 %v4369, %v4369
    %v4406 = vunpack.c.l.b16 %v4310
    %v4407 = vunpack.c.l.b16 %v4311
    %v4408 = vunpack.c.l.b16 %v4312
    %v4409 = vunpack.c.l.b16 %v4313
    %v4410 = vunpack.c.l.b16 %v4314
    %v4411 = vunpack.c.l.b16 %v4315
    %v4412 = vunpack.c.l.b16 %v4316
    %v4413 = vunpack.c.l.b16 %v4317
    %v4414 = vunpack.c.l.b16 %v4318
    %v4415 = vunpack.c.l.b16 %v4319
    %v4416 = vunpack.c.l.b16 %v4320
    %v4417 = vunpack.c.l.b16 %v4321
    %v4418 = vunpack.c.l.b16 %v4322
    %v4419 = vunpack.c.l.b16 %v4323
    %v4420 = vunpack.c.l.b16 %v4324
    %v4421 = vunpack.c.l.b16 %v4325
    %v4422 = vunpack.c.l.b16 %v4326
    %v4423 = vunpack.c.l.b16 %v4327
    %v4424 = vunpack.c.l.b16 %v4328
    %v4425 = vunpack.c.l.b16 %v4329
    %v4426 = vunpack.c.l.b16 %v4330
    %v4427 = vunpack.c.l.b16 %v4331
    %v4428 = vunpack.c.l.b16 %v4332
    %v4429 = vunpack.c.l.b16 %v4333
    %v4430 = vunpack.c.l.b16 %v4334
    %v4431 = vunpack.c.l.b16 %v4335
    %v4432 = vunpack.c.l.b16 %v4336
    %v4433 = vunpack.c.l.b16 %v4337
    %v4434 = vunpack.c.l.b16 %v4338
    %v4435 = vunpack.c.l.b16 %v4339
    %v4436 = vunpack.c.l.b16 %v4340
    %v4437 = vunpack.c.l.b16 %v4341
    %v4438 = vpack.c.b16 %v4407, %v4406
    %v4439 = vpack.c.b16 %v4409, %v4408
    %v4440 = vpack.c.b16 %v4411, %v4410
    %v4441 = vpack.c.b16 %v4413, %v4412
    %v4442 = vpack.c.b16 %v4415, %v4414
    %v4443 = vpack.c.b16 %v4417, %v4416
    %v4444 = vpack.c.b16 %v4419, %v4418
    %v4445 = vpack.c.b16 %v4421, %v4420
    %v4446 = vpack.c.b16 %v4423, %v4422
    %v4447 = vpack.c.b16 %v4425, %v4424
    %v4448 = vpack.c.b16 %v4427, %v4426
    %v4449 = vpack.c.b16 %v4429, %v4428
    %v4450 = vpack.c.b16 %v4431, %v4430
    %v4451 = vpack.c.b16 %v4433, %v4432
    %v4452 = vpack.c.b16 %v4435, %v4434
    %v4453 = vpack.c.b16 %v4437, %v4436
    %4470 = vmatprep.subr.bf16.mxu0 0
    %4471 = vmatpush1.bf16.msra.mxu0 %v4438
    %4472 = vmatprep.subr.bf16.mxu0 0
    %4473 = vmatpush1.bf16.msra.mxu0 %v4439
    %4474 = vmatprep.subr.bf16.mxu0 0
    %4475 = vmatpush1.bf16.msra.mxu0 %v4440
    %4476 = vmatprep.subr.bf16.mxu0 0
    %4477 = vmatpush1.bf16.msra.mxu0 %v4441
    %4478 = vmatprep.subr.bf16.mxu0 0
    %4479 = vmatpush1.bf16.msra.mxu0 %v4442
    %4480 = vmatprep.subr.bf16.mxu0 0
    %4481 = vmatpush1.bf16.msra.mxu0 %v4443
    %4482 = vmatprep.subr.bf16.mxu0 0
    %4483 = vmatpush1.bf16.msra.mxu0 %v4444
    %4484 = vmatprep.subr.bf16.mxu0 0
    %4485 = vmatpush1.bf16.msra.mxu0 %v4445
    %4486 = vmatprep.subr.bf16.mxu0 0
    %4487 = vmatpush1.bf16.msra.mxu0 %v4446
    %4488 = vmatprep.subr.bf16.mxu0 0
    %4489 = vmatpush1.bf16.msra.mxu0 %v4447
    %4490 = vmatprep.subr.bf16.mxu0 0
    %4491 = vmatpush1.bf16.msra.mxu0 %v4448
    %4492 = vmatprep.subr.bf16.mxu0 0
    %4493 = vmatpush1.bf16.msra.mxu0 %v4449
    %4494 = vmatprep.subr.bf16.mxu0 0
    %4495 = vmatpush1.bf16.msra.mxu0 %v4450
    %4496 = vmatprep.subr.bf16.mxu0 0
    %4497 = vmatpush1.bf16.msra.mxu0 %v4451
    %4498 = vmatprep.subr.bf16.mxu0 0
    %4499 = vmatpush1.bf16.msra.mxu0 %v4452
    %4500 = vmatprep.subr.bf16.mxu0 0
    %4501 = vmatpush1.bf16.msra.mxu0 %v4453
    %4502 = vmatprep.mubr.bf16.mxu0 %v4371
    %4503 = vmatmul.mubr.bf16.gmra.mrb[0].mxu0 %v4370
    %v4504 = vpop.f32.mrb[0].mxu0
    %v4505 = vadd.f32 0.0, %v4504
    %v4506 = vpop.f32.mrb[0].mxu0
    %v4507 = vpop.f32.mrb[0].mxu0
    %v4508 = vpop.f32.mrb[0].mxu0
    %4509 = vdwg.mxu0
    %v4510 = vadd.f32 %v4308, %v4505
    %s4511 = scalar_lea.vmem [#allocation17], 512
    %v4512 = vld [vmem:[%s4511] sm:$0xf]
    %v4513 = vld [vmem:[%s4511 + $0x4] sm:$0xf]
    %v4514 = vld [vmem:[%s4511 + $0x8] sm:$0xf]
    %v4515 = vld [vmem:[%s4511 + $0xc] sm:$0xf]
    %v4516 = vld [vmem:[%s4511 + $0x10] sm:$0xf]
    %v4517 = vld [vmem:[%s4511 + $0x14] sm:$0xf]
    %v4518 = vld [vmem:[%s4511 + $0x18] sm:$0xf]
    %v4519 = vld [vmem:[%s4511 + $0x1c] sm:$0xf]
    %v4520 = vld [vmem:[%s4511 + $0x20] sm:$0xf]
    %v4521 = vld [vmem:[%s4511 + $0x24] sm:$0xf]
    %v4522 = vld [vmem:[%s4511 + $0x28] sm:$0xf]
    %v4523 = vld [vmem:[%s4511 + $0x2c] sm:$0xf]
    %v4524 = vld [vmem:[%s4511 + $0x30] sm:$0xf]
    %v4525 = vld [vmem:[%s4511 + $0x34] sm:$0xf]
    %v4526 = vld [vmem:[%s4511 + $0x38] sm:$0xf]
    %v4527 = vld [vmem:[%s4511 + $0x3c] sm:$0xf]
    %v4528 = vld [vmem:[%s4511 + $0x40] sm:$0xf]
    %v4529 = vld [vmem:[%s4511 + $0x44] sm:$0xf]
    %v4530 = vld [vmem:[%s4511 + $0x48] sm:$0xf]
    %v4531 = vld [vmem:[%s4511 + $0x4c] sm:$0xf]
    %v4532 = vld [vmem:[%s4511 + $0x50] sm:$0xf]
    %v4533 = vld [vmem:[%s4511 + $0x54] sm:$0xf]
    %v4534 = vld [vmem:[%s4511 + $0x58] sm:$0xf]
    %v4535 = vld [vmem:[%s4511 + $0x5c] sm:$0xf]
    %v4536 = vld [vmem:[%s4511 + $0x60] sm:$0xf]
    %v4537 = vld [vmem:[%s4511 + $0x64] sm:$0xf]
    %v4538 = vld [vmem:[%s4511 + $0x68] sm:$0xf]
    %v4539 = vld [vmem:[%s4511 + $0x6c] sm:$0xf]
    %v4540 = vld [vmem:[%s4511 + $0x70] sm:$0xf]
    %v4541 = vld [vmem:[%s4511 + $0x74] sm:$0xf]
    %v4542 = vld [vmem:[%s4511 + $0x78] sm:$0xf]
    %v4543 = vld [vmem:[%s4511 + $0x7c] sm:$0xf]
    %v4544 = vrot.slane %v3748, 4
    %v4545 = vrot.slane %v3750, 3
    %v4546 = vsel %vm3765, %v4545, %v4544
    %v4547 = vrot.slane %v3752, 2
    %v4548 = vsel %vm3768, %v4547, %v4546
    %v4549 = vrot.slane %v3754, 1
    %v4550 = vsel %vm3771, %v4549, %v4548
    %v4551 = vsel %vm3774, %v3756, %v4550
    %v4552 = vrot.slane %v3758, 7
    %v4553 = vsel %vm3777, %v4552, %v4551
    %v4554 = vrot.slane %v3760, 6
    %v4555 = vsel %vm3780, %v4554, %v4553
    %v4556 = vrot.slane %v3762, 5
    %v4557 = vsel %vm3783, %v4556, %v4555
    %v4558 = vrot.slane %v3749, 4
    %v4559 = vrot.slane %v3751, 3
    %v4560 = vsel %vm3765, %v4559, %v4558
    %v4561 = vrot.slane %v3753, 2
    %v4562 = vsel %vm3768, %v4561, %v4560
    %v4563 = vrot.slane %v3755, 1
    %v4564 = vsel %vm3771, %v4563, %v4562
    %v4565 = vsel %vm3774, %v3757, %v4564
    %v4566 = vrot.slane %v3759, 7
    %v4567 = vsel %vm3777, %v4566, %v4565
    %v4568 = vrot.slane %v3761, 6
    %v4569 = vsel %vm3780, %v4568, %v4567
    %v4570 = vrot.slane %v3763, 5
    %v4571 = vsel %vm3783, %v4570, %v4569
    %v4572 = vpack.c.b16 %v4557, %v4557
    %v4573 = vpack.c.b16 %v4571, %v4571
    %v4608 = vunpack.c.l.b16 %v4512
    %v4609 = vunpack.c.l.b16 %v4513
    %v4610 = vunpack.c.l.b16 %v4514
    %v4611 = vunpack.c.l.b16 %v4515
    %v4612 = vunpack.c.l.b16 %v4516
    %v4613 = vunpack.c.l.b16 %v4517
    %v4614 = vunpack.c.l.b16 %v4518
    %v4615 = vunpack.c.l.b16 %v4519
    %v4616 = vunpack.c.l.b16 %v4520
    %v4617 = vunpack.c.l.b16 %v4521
    %v4618 = vunpack.c.l.b16 %v4522
    %v4619 = vunpack.c.l.b16 %v4523
    %v4620 = vunpack.c.l.b16 %v4524
    %v4621 = vunpack.c.l.b16 %v4525
    %v4622 = vunpack.c.l.b16 %v4526
    %v4623 = vunpack.c.l.b16 %v4527
    %v4624 = vunpack.c.l.b16 %v4528
    %v4625 = vunpack.c.l.b16 %v4529
    %v4626 = vunpack.c.l.b16 %v4530
    %v4627 = vunpack.c.l.b16 %v4531
    %v4628 = vunpack.c.l.b16 %v4532
    %v4629 = vunpack.c.l.b16 %v4533
    %v4630 = vunpack.c.l.b16 %v4534
    %v4631 = vunpack.c.l.b16 %v4535
    %v4632 = vunpack.c.l.b16 %v4536
    %v4633 = vunpack.c.l.b16 %v4537
    %v4634 = vunpack.c.l.b16 %v4538
    %v4635 = vunpack.c.l.b16 %v4539
    %v4636 = vunpack.c.l.b16 %v4540
    %v4637 = vunpack.c.l.b16 %v4541
    %v4638 = vunpack.c.l.b16 %v4542
    %v4639 = vunpack.c.l.b16 %v4543
    %v4640 = vpack.c.b16 %v4609, %v4608
    %v4641 = vpack.c.b16 %v4611, %v4610
    %v4642 = vpack.c.b16 %v4613, %v4612
    %v4643 = vpack.c.b16 %v4615, %v4614
    %v4644 = vpack.c.b16 %v4617, %v4616
    %v4645 = vpack.c.b16 %v4619, %v4618
    %v4646 = vpack.c.b16 %v4621, %v4620
    %v4647 = vpack.c.b16 %v4623, %v4622
    %v4648 = vpack.c.b16 %v4625, %v4624
    %v4649 = vpack.c.b16 %v4627, %v4626
    %v4650 = vpack.c.b16 %v4629, %v4628
    %v4651 = vpack.c.b16 %v4631, %v4630
    %v4652 = vpack.c.b16 %v4633, %v4632
    %v4653 = vpack.c.b16 %v4635, %v4634
    %v4654 = vpack.c.b16 %v4637, %v4636
    %v4655 = vpack.c.b16 %v4639, %v4638
    %4672 = vmatprep.subr.bf16.mxu0 0
    %4673 = vmatpush1.bf16.msra.mxu0 %v4640
    %4674 = vmatprep.subr.bf16.mxu0 0
    %4675 = vmatpush1.bf16.msra.mxu0 %v4641
    %4676 = vmatprep.subr.bf16.mxu0 0
    %4677 = vmatpush1.bf16.msra.mxu0 %v4642
    %4678 = vmatprep.subr.bf16.mxu0 0
    %4679 = vmatpush1.bf16.msra.mxu0 %v4643
    %4680 = vmatprep.subr.bf16.mxu0 0
    %4681 = vmatpush1.bf16.msra.mxu0 %v4644
    %4682 = vmatprep.subr.bf16.mxu0 0
    %4683 = vmatpush1.bf16.msra.mxu0 %v4645
    %4684 = vmatprep.subr.bf16.mxu0 0
    %4685 = vmatpush1.bf16.msra.mxu0 %v4646
    %4686 = vmatprep.subr.bf16.mxu0 0
    %4687 = vmatpush1.bf16.msra.mxu0 %v4647
    %4688 = vmatprep.subr.bf16.mxu0 0
    %4689 = vmatpush1.bf16.msra.mxu0 %v4648
    %4690 = vmatprep.subr.bf16.mxu0 0
    %4691 = vmatpush1.bf16.msra.mxu0 %v4649
    %4692 = vmatprep.subr.bf16.mxu0 0
    %4693 = vmatpush1.bf16.msra.mxu0 %v4650
    %4694 = vmatprep.subr.bf16.mxu0 0
    %4695 = vmatpush1.bf16.msra.mxu0 %v4651
    %4696 = vmatprep.subr.bf16.mxu0 0
    %4697 = vmatpush1.bf16.msra.mxu0 %v4652
    %4698 = vmatprep.subr.bf16.mxu0 0
    %4699 = vmatpush1.bf16.msra.mxu0 %v4653
    %4700 = vmatprep.subr.bf16.mxu0 0
    %4701 = vmatpush1.bf16.msra.mxu0 %v4654
    %4702 = vmatprep.subr.bf16.mxu0 0
    %4703 = vmatpush1.bf16.msra.mxu0 %v4655
    %4704 = vmatprep.mubr.bf16.mxu0 %v4573
    %4705 = vmatmul.mubr.bf16.gmra.mrb[0].mxu0 %v4572
    %v4706 = vpop.f32.mrb[0].mxu0
    %v4707 = vadd.f32 0.0, %v4706
    %v4708 = vpop.f32.mrb[0].mxu0
    %v4709 = vpop.f32.mrb[0].mxu0
    %v4710 = vpop.f32.mrb[0].mxu0
    %4711 = vdwg.mxu0
    %v4712 = vadd.f32 %v4510, %v4707
    %s4713 = scalar_lea.vmem [#allocation17], 640
    %v4714 = vld [vmem:[%s4713] sm:$0xf]
    %v4715 = vld [vmem:[%s4713 + $0x4] sm:$0xf]
    %v4716 = vld [vmem:[%s4713 + $0x8] sm:$0xf]
    %v4717 = vld [vmem:[%s4713 + $0xc] sm:$0xf]
    %v4718 = vld [vmem:[%s4713 + $0x10] sm:$0xf]
    %v4719 = vld [vmem:[%s4713 + $0x14] sm:$0xf]
    %v4720 = vld [vmem:[%s4713 + $0x18] sm:$0xf]
    %v4721 = vld [vmem:[%s4713 + $0x1c] sm:$0xf]
    %v4722 = vld [vmem:[%s4713 + $0x20] sm:$0xf]
    %v4723 = vld [vmem:[%s4713 + $0x24] sm:$0xf]
    %v4724 = vld [vmem:[%s4713 + $0x28] sm:$0xf]
    %v4725 = vld [vmem:[%s4713 + $0x2c] sm:$0xf]
    %v4726 = vld [vmem:[%s4713 + $0x30] sm:$0xf]
    %v4727 = vld [vmem:[%s4713 + $0x34] sm:$0xf]
    %v4728 = vld [vmem:[%s4713 + $0x38] sm:$0xf]
    %v4729 = vld [vmem:[%s4713 + $0x3c] sm:$0xf]
    %v4730 = vld [vmem:[%s4713 + $0x40] sm:$0xf]
    %v4731 = vld [vmem:[%s4713 + $0x44] sm:$0xf]
    %v4732 = vld [vmem:[%s4713 + $0x48] sm:$0xf]
    %v4733 = vld [vmem:[%s4713 + $0x4c] sm:$0xf]
    %v4734 = vld [vmem:[%s4713 + $0x50] sm:$0xf]
    %v4735 = vld [vmem:[%s4713 + $0x54] sm:$0xf]
    %v4736 = vld [vmem:[%s4713 + $0x58] sm:$0xf]
    %v4737 = vld [vmem:[%s4713 + $0x5c] sm:$0xf]
    %v4738 = vld [vmem:[%s4713 + $0x60] sm:$0xf]
    %v4739 = vld [vmem:[%s4713 + $0x64] sm:$0xf]
    %v4740 = vld [vmem:[%s4713 + $0x68] sm:$0xf]
    %v4741 = vld [vmem:[%s4713 + $0x6c] sm:$0xf]
    %v4742 = vld [vmem:[%s4713 + $0x70] sm:$0xf]
    %v4743 = vld [vmem:[%s4713 + $0x74] sm:$0xf]
    %v4744 = vld [vmem:[%s4713 + $0x78] sm:$0xf]
    %v4745 = vld [vmem:[%s4713 + $0x7c] sm:$0xf]
    %v4746 = vrot.slane %v3748, 5
    %v4747 = vrot.slane %v3750, 4
    %v4748 = vsel %vm3765, %v4747, %v4746
    %v4749 = vrot.slane %v3752, 3
    %v4750 = vsel %vm3768, %v4749, %v4748
    %v4751 = vrot.slane %v3754, 2
    %v4752 = vsel %vm3771, %v4751, %v4750
    %v4753 = vrot.slane %v3756, 1
    %v4754 = vsel %vm3774, %v4753, %v4752
    %v4755 = vsel %vm3777, %v3758, %v4754
    %v4756 = vrot.slane %v3760, 7
    %v4757 = vsel %vm3780, %v4756, %v4755
    %v4758 = vrot.slane %v3762, 6
    %v4759 = vsel %vm3783, %v4758, %v4757
    %v4760 = vrot.slane %v3749, 5
    %v4761 = vrot.slane %v3751, 4
    %v4762 = vsel %vm3765, %v4761, %v4760
    %v4763 = vrot.slane %v3753, 3
    %v4764 = vsel %vm3768, %v4763, %v4762
    %v4765 = vrot.slane %v3755, 2
    %v4766 = vsel %vm3771, %v4765, %v4764
    %v4767 = vrot.slane %v3757, 1
    %v4768 = vsel %vm3774, %v4767, %v4766
    %v4769 = vsel %vm3777, %v3759, %v4768
    %v4770 = vrot.slane %v3761, 7
    %v4771 = vsel %vm3780, %v4770, %v4769
    %v4772 = vrot.slane %v3763, 6
    %v4773 = vsel %vm3783, %v4772, %v4771
    %v4774 = vpack.c.b16 %v4759, %v4759
    %v4775 = vpack.c.b16 %v4773, %v4773
    %v4810 = vunpack.c.l.b16 %v4714
    %v4811 = vunpack.c.l.b16 %v4715
    %v4812 = vunpack.c.l.b16 %v4716
    %v4813 = vunpack.c.l.b16 %v4717
    %v4814 = vunpack.c.l.b16 %v4718
    %v4815 = vunpack.c.l.b16 %v4719
    %v4816 = vunpack.c.l.b16 %v4720
    %v4817 = vunpack.c.l.b16 %v4721
    %v4818 = vunpack.c.l.b16 %v4722
    %v4819 = vunpack.c.l.b16 %v4723
    %v4820 = vunpack.c.l.b16 %v4724
    %v4821 = vunpack.c.l.b16 %v4725
    %v4822 = vunpack.c.l.b16 %v4726
    %v4823 = vunpack.c.l.b16 %v4727
    %v4824 = vunpack.c.l.b16 %v4728
    %v4825 = vunpack.c.l.b16 %v4729
    %v4826 = vunpack.c.l.b16 %v4730
    %v4827 = vunpack.c.l.b16 %v4731
    %v4828 = vunpack.c.l.b16 %v4732
    %v4829 = vunpack.c.l.b16 %v4733
    %v4830 = vunpack.c.l.b16 %v4734
    %v4831 = vunpack.c.l.b16 %v4735
    %v4832 = vunpack.c.l.b16 %v4736
    %v4833 = vunpack.c.l.b16 %v4737
    %v4834 = vunpack.c.l.b16 %v4738
    %v4835 = vunpack.c.l.b16 %v4739
    %v4836 = vunpack.c.l.b16 %v4740
    %v4837 = vunpack.c.l.b16 %v4741
    %v4838 = vunpack.c.l.b16 %v4742
    %v4839 = vunpack.c.l.b16 %v4743
    %v4840 = vunpack.c.l.b16 %v4744
    %v4841 = vunpack.c.l.b16 %v4745
    %v4842 = vpack.c.b16 %v4811, %v4810
    %v4843 = vpack.c.b16 %v4813, %v4812
    %v4844 = vpack.c.b16 %v4815, %v4814
    %v4845 = vpack.c.b16 %v4817, %v4816
    %v4846 = vpack.c.b16 %v4819, %v4818
    %v4847 = vpack.c.b16 %v4821, %v4820
    %v4848 = vpack.c.b16 %v4823, %v4822
    %v4849 = vpack.c.b16 %v4825, %v4824
    %v4850 = vpack.c.b16 %v4827, %v4826
    %v4851 = vpack.c.b16 %v4829, %v4828
    %v4852 = vpack.c.b16 %v4831, %v4830
    %v4853 = vpack.c.b16 %v4833, %v4832
    %v4854 = vpack.c.b16 %v4835, %v4834
    %v4855 = vpack.c.b16 %v4837, %v4836
    %v4856 = vpack.c.b16 %v4839, %v4838
    %v4857 = vpack.c.b16 %v4841, %v4840
    %4874 = vmatprep.subr.bf16.mxu0 0
    %4875 = vmatpush1.bf16.msra.mxu0 %v4842
    %4876 = vmatprep.subr.bf16.mxu0 0
    %4877 = vmatpush1.bf16.msra.mxu0 %v4843
    %4878 = vmatprep.subr.bf16.mxu0 0
    %4879 = vmatpush1.bf16.msra.mxu0 %v4844
    %4880 = vmatprep.subr.bf16.mxu0 0
    %4881 = vmatpush1.bf16.msra.mxu0 %v4845
    %4882 = vmatprep.subr.bf16.mxu0 0
    %4883 = vmatpush1.bf16.msra.mxu0 %v4846
    %4884 = vmatprep.subr.bf16.mxu0 0
    %4885 = vmatpush1.bf16.msra.mxu0 %v4847
    %4886 = vmatprep.subr.bf16.mxu0 0
    %4887 = vmatpush1.bf16.msra.mxu0 %v4848
    %4888 = vmatprep.subr.bf16.mxu0 0
    %4889 = vmatpush1.bf16.msra.mxu0 %v4849
    %4890 = vmatprep.subr.bf16.mxu0 0
    %4891 = vmatpush1.bf16.msra.mxu0 %v4850
    %4892 = vmatprep.subr.bf16.mxu0 0
    %4893 = vmatpush1.bf16.msra.mxu0 %v4851
    %4894 = vmatprep.subr.bf16.mxu0 0
    %4895 = vmatpush1.bf16.msra.mxu0 %v4852
    %4896 = vmatprep.subr.bf16.mxu0 0
    %4897 = vmatpush1.bf16.msra.mxu0 %v4853
    %4898 = vmatprep.subr.bf16.mxu0 0
    %4899 = vmatpush1.bf16.msra.mxu0 %v4854
    %4900 = vmatprep.subr.bf16.mxu0 0
    %4901 = vmatpush1.bf16.msra.mxu0 %v4855
    %4902 = vmatprep.subr.bf16.mxu0 0
    %4903 = vmatpush1.bf16.msra.mxu0 %v4856
    %4904 = vmatprep.subr.bf16.mxu0 0
    %4905 = vmatpush1.bf16.msra.mxu0 %v4857
    %4906 = vmatprep.mubr.bf16.mxu0 %v4775
    %4907 = vmatmul.mubr.bf16.gmra.mrb[0].mxu0 %v4774
    %v4908 = vpop.f32.mrb[0].mxu0
    %v4909 = vadd.f32 0.0, %v4908
    %v4910 = vpop.f32.mrb[0].mxu0
    %v4911 = vpop.f32.mrb[0].mxu0
    %v4912 = vpop.f32.mrb[0].mxu0
    %4913 = vdwg.mxu0
    %v4914 = vadd.f32 %v4712, %v4909
    %s4915 = scalar_lea.vmem [#allocation17], 768
    %v4916 = vld [vmem:[%s4915] sm:$0xf]
    %v4917 = vld [vmem:[%s4915 + $0x4] sm:$0xf]
    %v4918 = vld [vmem:[%s4915 + $0x8] sm:$0xf]
    %v4919 = vld [vmem:[%s4915 + $0xc] sm:$0xf]
    %v4920 = vld [vmem:[%s4915 + $0x10] sm:$0xf]
    %v4921 = vld [vmem:[%s4915 + $0x14] sm:$0xf]
    %v4922 = vld [vmem:[%s4915 + $0x18] sm:$0xf]
    %v4923 = vld [vmem:[%s4915 + $0x1c] sm:$0xf]
    %v4924 = vld [vmem:[%s4915 + $0x20] sm:$0xf]
    %v4925 = vld [vmem:[%s4915 + $0x24] sm:$0xf]
    %v4926 = vld [vmem:[%s4915 + $0x28] sm:$0xf]
    %v4927 = vld [vmem:[%s4915 + $0x2c] sm:$0xf]
    %v4928 = vld [vmem:[%s4915 + $0x30] sm:$0xf]
    %v4929 = vld [vmem:[%s4915 + $0x34] sm:$0xf]
    %v4930 = vld [vmem:[%s4915 + $0x38] sm:$0xf]
    %v4931 = vld [vmem:[%s4915 + $0x3c] sm:$0xf]
    %v4932 = vld [vmem:[%s4915 + $0x40] sm:$0xf]
    %v4933 = vld [vmem:[%s4915 + $0x44] sm:$0xf]
    %v4934 = vld [vmem:[%s4915 + $0x48] sm:$0xf]
    %v4935 = vld [vmem:[%s4915 + $0x4c] sm:$0xf]
    %v4936 = vld [vmem:[%s4915 + $0x50] sm:$0xf]
    %v4937 = vld [vmem:[%s4915 + $0x54] sm:$0xf]
    %v4938 = vld [vmem:[%s4915 + $0x58] sm:$0xf]
    %v4939 = vld [vmem:[%s4915 + $0x5c] sm:$0xf]
    %v4940 = vld [vmem:[%s4915 + $0x60] sm:$0xf]
    %v4941 = vld [vmem:[%s4915 + $0x64] sm:$0xf]
    %v4942 = vld [vmem:[%s4915 + $0x68] sm:$0xf]
    %v4943 = vld [vmem:[%s4915 + $0x6c] sm:$0xf]
    %v4944 = vld [vmem:[%s4915 + $0x70] sm:$0xf]
    %v4945 = vld [vmem:[%s4915 + $0x74] sm:$0xf]
    %v4946 = vld [vmem:[%s4915 + $0x78] sm:$0xf]
    %v4947 = vld [vmem:[%s4915 + $0x7c] sm:$0xf]
    %v4948 = vrot.slane %v3748, 6
    %v4949 = vrot.slane %v3750, 5
    %v4950 = vsel %vm3765, %v4949, %v4948
    %v4951 = vrot.slane %v3752, 4
    %v4952 = vsel %vm3768, %v4951, %v4950
    %v4953 = vrot.slane %v3754, 3
    %v4954 = vsel %vm3771, %v4953, %v4952
    %v4955 = vrot.slane %v3756, 2
    %v4956 = vsel %vm3774, %v4955, %v4954
    %v4957 = vrot.slane %v3758, 1
    %v4958 = vsel %vm3777, %v4957, %v4956
    %v4959 = vsel %vm3780, %v3760, %v4958
    %v4960 = vrot.slane %v3762, 7
    %v4961 = vsel %vm3783, %v4960, %v4959
    %v4962 = vrot.slane %v3749, 6
    %v4963 = vrot.slane %v3751, 5
    %v4964 = vsel %vm3765, %v4963, %v4962
    %v4965 = vrot.slane %v3753, 4
    %v4966 = vsel %vm3768, %v4965, %v4964
    %v4967 = vrot.slane %v3755, 3
    %v4968 = vsel %vm3771, %v4967, %v4966
    %v4969 = vrot.slane %v3757, 2
    %v4970 = vsel %vm3774, %v4969, %v4968
    %v4971 = vrot.slane %v3759, 1
    %v4972 = vsel %vm3777, %v4971, %v4970
    %v4973 = vsel %vm3780, %v3761, %v4972
    %v4974 = vrot.slane %v3763, 7
    %v4975 = vsel %vm3783, %v4974, %v4973
    %v4976 = vpack.c.b16 %v4961, %v4961
    %v4977 = vpack.c.b16 %v4975, %v4975
    %v5012 = vunpack.c.l.b16 %v4916
    %v5013 = vunpack.c.l.b16 %v4917
    %v5014 = vunpack.c.l.b16 %v4918
    %v5015 = vunpack.c.l.b16 %v4919
    %v5016 = vunpack.c.l.b16 %v4920
    %v5017 = vunpack.c.l.b16 %v4921
    %v5018 = vunpack.c.l.b16 %v4922
    %v5019 = vunpack.c.l.b16 %v4923
    %v5020 = vunpack.c.l.b16 %v4924
    %v5021 = vunpack.c.l.b16 %v4925
    %v5022 = vunpack.c.l.b16 %v4926
    %v5023 = vunpack.c.l.b16 %v4927
    %v5024 = vunpack.c.l.b16 %v4928
    %v5025 = vunpack.c.l.b16 %v4929
    %v5026 = vunpack.c.l.b16 %v4930
    %v5027 = vunpack.c.l.b16 %v4931
    %v5028 = vunpack.c.l.b16 %v4932
    %v5029 = vunpack.c.l.b16 %v4933
    %v5030 = vunpack.c.l.b16 %v4934
    %v5031 = vunpack.c.l.b16 %v4935
    %v5032 = vunpack.c.l.b16 %v4936
    %v5033 = vunpack.c.l.b16 %v4937
    %v5034 = vunpack.c.l.b16 %v4938
    %v5035 = vunpack.c.l.b16 %v4939
    %v5036 = vunpack.c.l.b16 %v4940
    %v5037 = vunpack.c.l.b16 %v4941
    %v5038 = vunpack.c.l.b16 %v4942
    %v5039 = vunpack.c.l.b16 %v4943
    %v5040 = vunpack.c.l.b16 %v4944
    %v5041 = vunpack.c.l.b16 %v4945
    %v5042 = vunpack.c.l.b16 %v4946
    %v5043 = vunpack.c.l.b16 %v4947
    %v5044 = vpack.c.b16 %v5013, %v5012
    %v5045 = vpack.c.b16 %v5015, %v5014
    %v5046 = vpack.c.b16 %v5017, %v5016
    %v5047 = vpack.c.b16 %v5019, %v5018
    %v5048 = vpack.c.b16 %v5021, %v5020
    %v5049 = vpack.c.b16 %v5023, %v5022
    %v5050 = vpack.c.b16 %v5025, %v5024
    %v5051 = vpack.c.b16 %v5027, %v5026
    %v5052 = vpack.c.b16 %v5029, %v5028
    %v5053 = vpack.c.b16 %v5031, %v5030
    %v5054 = vpack.c.b16 %v5033, %v5032
    %v5055 = vpack.c.b16 %v5035, %v5034
    %v5056 = vpack.c.b16 %v5037, %v5036
    %v5057 = vpack.c.b16 %v5039, %v5038
    %v5058 = vpack.c.b16 %v5041, %v5040
    %v5059 = vpack.c.b16 %v5043, %v5042
    %5076 = vmatprep.subr.bf16.mxu0 0
    %5077 = vmatpush1.bf16.msra.mxu0 %v5044
    %5078 = vmatprep.subr.bf16.mxu0 0
    %5079 = vmatpush1.bf16.msra.mxu0 %v5045
    %5080 = vmatprep.subr.bf16.mxu0 0
    %5081 = vmatpush1.bf16.msra.mxu0 %v5046
    %5082 = vmatprep.subr.bf16.mxu0 0
    %5083 = vmatpush1.bf16.msra.mxu0 %v5047
    %5084 = vmatprep.subr.bf16.mxu0 0
    %5085 = vmatpush1.bf16.msra.mxu0 %v5048
    %5086 = vmatprep.subr.bf16.mxu0 0
    %5087 = vmatpush1.bf16.msra.mxu0 %v5049
    %5088 = vmatprep.subr.bf16.mxu0 0
    %5089 = vmatpush1.bf16.msra.mxu0 %v5050
    %5090 = vmatprep.subr.bf16.mxu0 0
    %5091 = vmatpush1.bf16.msra.mxu0 %v5051
    %5092 = vmatprep.subr.bf16.mxu0 0
    %5093 = vmatpush1.bf16.msra.mxu0 %v5052
    %5094 = vmatprep.subr.bf16.mxu0 0
    %5095 = vmatpush1.bf16.msra.mxu0 %v5053
    %5096 = vmatprep.subr.bf16.mxu0 0
    %5097 = vmatpush1.bf16.msra.mxu0 %v5054
    %5098 = vmatprep.subr.bf16.mxu0 0
    %5099 = vmatpush1.bf16.msra.mxu0 %v5055
    %5100 = vmatprep.subr.bf16.mxu0 0
    %5101 = vmatpush1.bf16.msra.mxu0 %v5056
    %5102 = vmatprep.subr.bf16.mxu0 0
    %5103 = vmatpush1.bf16.msra.mxu0 %v5057
    %5104 = vmatprep.subr.bf16.mxu0 0
    %5105 = vmatpush1.bf16.msra.mxu0 %v5058
    %5106 = vmatprep.subr.bf16.mxu0 0
    %5107 = vmatpush1.bf16.msra.mxu0 %v5059
    %5108 = vmatprep.mubr.bf16.mxu0 %v4977
    %5109 = vmatmul.mubr.bf16.gmra.mrb[0].mxu0 %v4976
    %v5110 = vpop.f32.mrb[0].mxu0
    %v5111 = vadd.f32 0.0, %v5110
    %v5112 = vpop.f32.mrb[0].mxu0
    %v5113 = vpop.f32.mrb[0].mxu0
    %v5114 = vpop.f32.mrb[0].mxu0
    %5115 = vdwg.mxu0
    %v5116 = vadd.f32 %v4914, %v5111
    %s5117 = scalar_lea.vmem [#allocation17], 896
    %v5118 = vld [vmem:[%s5117] sm:$0xf]
    %v5119 = vld [vmem:[%s5117 + $0x4] sm:$0xf]
    %v5120 = vld [vmem:[%s5117 + $0x8] sm:$0xf]
    %v5121 = vld [vmem:[%s5117 + $0xc] sm:$0xf]
    %v5122 = vld [vmem:[%s5117 + $0x10] sm:$0xf]
    %v5123 = vld [vmem:[%s5117 + $0x14] sm:$0xf]
    %v5124 = vld [vmem:[%s5117 + $0x18] sm:$0xf]
    %v5125 = vld [vmem:[%s5117 + $0x1c] sm:$0xf]
    %v5126 = vld [vmem:[%s5117 + $0x20] sm:$0xf]
    %v5127 = vld [vmem:[%s5117 + $0x24] sm:$0xf]
    %v5128 = vld [vmem:[%s5117 + $0x28] sm:$0xf]
    %v5129 = vld [vmem:[%s5117 + $0x2c] sm:$0xf]
    %v5130 = vld [vmem:[%s5117 + $0x30] sm:$0xf]
    %v5131 = vld [vmem:[%s5117 + $0x34] sm:$0xf]
    %v5132 = vld [vmem:[%s5117 + $0x38] sm:$0xf]
    %v5133 = vld [vmem:[%s5117 + $0x3c] sm:$0xf]
    %v5134 = vld [vmem:[%s5117 + $0x40] sm:$0xf]
    %v5135 = vld [vmem:[%s5117 + $0x44] sm:$0xf]
    %v5136 = vld [vmem:[%s5117 + $0x48] sm:$0xf]
    %v5137 = vld [vmem:[%s5117 + $0x4c] sm:$0xf]
    %v5138 = vld [vmem:[%s5117 + $0x50] sm:$0xf]
    %v5139 = vld [vmem:[%s5117 + $0x54] sm:$0xf]
    %v5140 = vld [vmem:[%s5117 + $0x58] sm:$0xf]
    %v5141 = vld [vmem:[%s5117 + $0x5c] sm:$0xf]
    %v5142 = vld [vmem:[%s5117 + $0x60] sm:$0xf]
    %v5143 = vld [vmem:[%s5117 + $0x64] sm:$0xf]
    %v5144 = vld [vmem:[%s5117 + $0x68] sm:$0xf]
    %v5145 = vld [vmem:[%s5117 + $0x6c] sm:$0xf]
    %v5146 = vld [vmem:[%s5117 + $0x70] sm:$0xf]
    %v5147 = vld [vmem:[%s5117 + $0x74] sm:$0xf]
    %v5148 = vld [vmem:[%s5117 + $0x78] sm:$0xf]
    %v5149 = vld [vmem:[%s5117 + $0x7c] sm:$0xf]
    %v5150 = vrot.slane %v3748, 7
    %v5151 = vrot.slane %v3750, 6
    %v5152 = vsel %vm3765, %v5151, %v5150
    %v5153 = vrot.slane %v3752, 5
    %v5154 = vsel %vm3768, %v5153, %v5152
    %v5155 = vrot.slane %v3754, 4
    %v5156 = vsel %vm3771, %v5155, %v5154
    %v5157 = vrot.slane %v3756, 3
    %v5158 = vsel %vm3774, %v5157, %v5156
    %v5159 = vrot.slane %v3758, 2
    %v5160 = vsel %vm3777, %v5159, %v5158
    %v5161 = vrot.slane %v3760, 1
    %v5162 = vsel %vm3780, %v5161, %v5160
    %v5163 = vsel %vm3783, %v3762, %v5162
    %v5164 = vrot.slane %v3749, 7
    %v5165 = vrot.slane %v3751, 6
    %v5166 = vsel %vm3765, %v5165, %v5164
    %v5167 = vrot.slane %v3753, 5
    %v5168 = vsel %vm3768, %v5167, %v5166
    %v5169 = vrot.slane %v3755, 4
    %v5170 = vsel %vm3771, %v5169, %v5168
    %v5171 = vrot.slane %v3757, 3
    %v5172 = vsel %vm3774, %v5171, %v5170
    %v5173 = vrot.slane %v3759, 2
    %v5174 = vsel %vm3777, %v5173, %v5172
    %v5175 = vrot.slane %v3761, 1
    %v5176 = vsel %vm3780, %v5175, %v5174
    %v5177 = vsel %vm3783, %v3763, %v5176
    %v5178 = vpack.c.b16 %v5163, %v5163
    %v5179 = vpack.c.b16 %v5177, %v5177
    %v5214 = vunpack.c.l.b16 %v5118
    %v5215 = vunpack.c.l.b16 %v5119
    %v5216 = vunpack.c.l.b16 %v5120
    %v5217 = vunpack.c.l.b16 %v5121
    %v5218 = vunpack.c.l.b16 %v5122
    %v5219 = vunpack.c.l.b16 %v5123
    %v5220 = vunpack.c.l.b16 %v5124
    %v5221 = vunpack.c.l.b16 %v5125
    %v5222 = vunpack.c.l.b16 %v5126
    %v5223 = vunpack.c.l.b16 %v5127
    %v5224 = vunpack.c.l.b16 %v5128
    %v5225 = vunpack.c.l.b16 %v5129
    %v5226 = vunpack.c.l.b16 %v5130
    %v5227 = vunpack.c.l.b16 %v5131
    %v5228 = vunpack.c.l.b16 %v5132
    %v5229 = vunpack.c.l.b16 %v5133
    %v5230 = vunpack.c.l.b16 %v5134
    %v5231 = vunpack.c.l.b16 %v5135
    %v5232 = vunpack.c.l.b16 %v5136
    %v5233 = vunpack.c.l.b16 %v5137
    %v5234 = vunpack.c.l.b16 %v5138
    %v5235 = vunpack.c.l.b16 %v5139
    %v5236 = vunpack.c.l.b16 %v5140
    %v5237 = vunpack.c.l.b16 %v5141
    %v5238 = vunpack.c.l.b16 %v5142
    %v5239 = vunpack.c.l.b16 %v5143
    %v5240 = vunpack.c.l.b16 %v5144
    %v5241 = vunpack.c.l.b16 %v5145
    %v5242 = vunpack.c.l.b16 %v5146
    %v5243 = vunpack.c.l.b16 %v5147
    %v5244 = vunpack.c.l.b16 %v5148
    %v5245 = vunpack.c.l.b16 %v5149
    %v5246 = vpack.c.b16 %v5215, %v5214
    %v5247 = vpack.c.b16 %v5217, %v5216
    %v5248 = vpack.c.b16 %v5219, %v5218
    %v5249 = vpack.c.b16 %v5221, %v5220
    %v5250 = vpack.c.b16 %v5223, %v5222
    %v5251 = vpack.c.b16 %v5225, %v5224
    %v5252 = vpack.c.b16 %v5227, %v5226
    %v5253 = vpack.c.b16 %v5229, %v5228
    %v5254 = vpack.c.b16 %v5231, %v5230
    %v5255 = vpack.c.b16 %v5233, %v5232
    %v5256 = vpack.c.b16 %v5235, %v5234
    %v5257 = vpack.c.b16 %v5237, %v5236
    %v5258 = vpack.c.b16 %v5239, %v5238
    %v5259 = vpack.c.b16 %v5241, %v5240
    %v5260 = vpack.c.b16 %v5243, %v5242
    %v5261 = vpack.c.b16 %v5245, %v5244
    %5278 = vmatprep.subr.bf16.mxu0 0
    %5279 = vmatpush1.bf16.msra.mxu0 %v5246
    %5280 = vmatprep.subr.bf16.mxu0 0
    %5281 = vmatpush1.bf16.msra.mxu0 %v5247
    %5282 = vmatprep.subr.bf16.mxu0 0
    %5283 = vmatpush1.bf16.msra.mxu0 %v5248
    %5284 = vmatprep.subr.bf16.mxu0 0
    %5285 = vmatpush1.bf16.msra.mxu0 %v5249
    %5286 = vmatprep.subr.bf16.mxu0 0
    %5287 = vmatpush1.bf16.msra.mxu0 %v5250
    %5288 = vmatprep.subr.bf16.mxu0 0
    %5289 = vmatpush1.bf16.msra.mxu0 %v5251
    %5290 = vmatprep.subr.bf16.mxu0 0
    %5291 = vmatpush1.bf16.msra.mxu0 %v5252
    %5292 = vmatprep.subr.bf16.mxu0 0
    %5293 = vmatpush1.bf16.msra.mxu0 %v5253
    %5294 = vmatprep.subr.bf16.mxu0 0
    %5295 = vmatpush1.bf16.msra.mxu0 %v5254
    %5296 = vmatprep.subr.bf16.mxu0 0
    %5297 = vmatpush1.bf16.msra.mxu0 %v5255
    %5298 = vmatprep.subr.bf16.mxu0 0
    %5299 = vmatpush1.bf16.msra.mxu0 %v5256
    %5300 = vmatprep.subr.bf16.mxu0 0
    %5301 = vmatpush1.bf16.msra.mxu0 %v5257
    %5302 = vmatprep.subr.bf16.mxu0 0
    %5303 = vmatpush1.bf16.msra.mxu0 %v5258
    %5304 = vmatprep.subr.bf16.mxu0 0
    %5305 = vmatpush1.bf16.msra.mxu0 %v5259
    %5306 = vmatprep.subr.bf16.mxu0 0
    %5307 = vmatpush1.bf16.msra.mxu0 %v5260
    %5308 = vmatprep.subr.bf16.mxu0 0
    %5309 = vmatpush1.bf16.msra.mxu0 %v5261
    %5310 = vmatprep.mubr.bf16.mxu0 %v5179
    %5311 = vmatmul.mubr.bf16.gmra.mrb[0].mxu0 %v5178
    %v5312 = vpop.f32.mrb[0].mxu0
    %v5313 = vadd.f32 0.0, %v5312
    %v5314 = vpop.f32.mrb[0].mxu0
    %v5315 = vpop.f32.mrb[0].mxu0
    %v5316 = vpop.f32.mrb[0].mxu0
    %5317 = vdwg.mxu0
    %v5318 = vadd.f32 %v5116, %v5313
    %v5319 = vld [vmem:[#allocation19] sm:$0x1]
    %v5321 = vlaneseq
    %v5322 = vshrl.u32 %v5321, 7
    %v5323 = vsub.s32 0, %v5322
    %v5324 = vrot.slane %v5319, %v5323
    %v5326 = vadd.f32 %v5318, %v5324
    %v5327 = vmax.f32 %v5326, 0.0
    %5328 = vst [vmem:[#allocation20] sm:$0xff] %v5327
    // Predicated region
    $region90: #{tpu_custom_call.1} parent=1 // pred_check
      _
    $region91: #{tpu_custom_call.1} parent=1 // pred_check_branch
      %5330 = sbr.rel (0) target = $region93
    $region92: #{tpu_custom_call.1} parent=1 // pred_region
      %s5332 = ssub.s32 128, 128
      %5333 = vsyncadd [#allocation4], %s5332
      %s5335 = sshll.u32 [#allocation20], 4
      %s5336 = int_to_ptr.vmem [resolvable:$true] %s5335
      %5338 = dma.vmem_to_hbm [thread:$0]  %s5336, 128, %s11, [#allocation4]
    $region93: #{tpu_custom_call.1} parent=1 // pred_fallthru
      _
    // Predicated region
    $region94: #{tpu_custom_call.1} parent=1 // pred_check
      _
    $region95: #{tpu_custom_call.1} parent=1 // pred_check_branch
      %5340 = sbr.rel (0) target = $region97
    $region96: #{tpu_custom_call.1} parent=1 // pred_region
      %5341 = dma.done [#allocation4], 128
    $region97: #{tpu_custom_call.1} parent=1 // pred_fallthru
      _
    %5342 = vsyncpa [#allocation3], 1
    %5343 = vsyncpa [#allocation6], 1
    %5344 = vsyncpa [#allocation9], 1
    %5345 = vsyncpa [#allocation12], 1
    %5346 = vsyncpa [#allocation15], 1
    %5347 = vsyncpa [#allocation18], 1
    %5348 = vsyncpa [#allocation4], 1

// kernel: tpu_custom_call.1
$region0: #{tpu_custom_call.1}
  #allocation0 [shape = 'u32[]', space=smem, size = 0x4, offset = 0x4, fixed_abs, tag = 'smem constant byte address 0x4 - core index']
  #allocation1 [shape = 'u32[144,128]{1,0:T(1,128)}', space=vmem, size = 0x12000, scoped, tag = 'internal scratch']
  %s0 = inlined_call_operand.hbm [shape: bf16[8,8,128], index: 0, kind: input, shape index: {}]
  %s1 = inlined_call_operand.hbm [shape: bf16[3,128,256], index: 1, kind: input, shape index: {}]
  %s2 = inlined_call_operand.hbm [shape: bf16[3,256,256], index: 2, kind: input, shape index: {}]
  %s3 = inlined_call_operand.hbm [shape: bf16[3,256,256], index: 3, kind: input, shape index: {}]
  %s4 = inlined_call_operand.hbm [shape: bf16[3,256,256], index: 4, kind: input, shape index: {}]
  %s5 = inlined_call_operand.hbm [shape: f32[1,256], index: 5, kind: input, shape index: {}]
  %s6 = inlined_call_operand.hbm [shape: f32[1,256], index: 6, kind: input, shape index: {}]
  %s7 = inlined_call_operand.hbm [shape: f32[1,256], index: 7, kind: input, shape index: {}]
  %s8 = inlined_call_operand.hbm [shape: f32[1,256], index: 8, kind: input, shape index: {}]
  %s9 = inlined_call_operand.hbm [shape: bf16[8,256,128], index: 9, kind: input, shape index: {}]
  %s10 = inlined_call_operand.hbm [shape: f32[1,128], index: 10, kind: input, shape index: {}]
  %s11 = inlined_call_operand.hbm [shape: f32[8,128], index: 11, kind: output, shape index: {}]
  %s12 = sld [smem:[#allocation0]]
  $region98: #{tpu_custom_call.1} parent=0
    _
  %s14 = ssub.s32 1, %s12
  %s15 = scalar_select 0, %s14, %s12
  $region1: #{tpu_custom_call.1} parent=0
    #allocation2 [shape = 'u8[16384]{0}', space=vmem, size = 0x4000, scoped, tag = 'input window, operand 0, single buffered']
    #allocation3 [shape = 's32[1]{0}', space=sflag, size = 0x4, scoped, tag = 'scoped memory for tpu_custom_call.1']
    #allocation4 [shape = 's32[1]{0}', space=sflag, size = 0x4, scoped, tag = 'scoped memory for tpu_custom_call.1']
    #allocation5 [shape = 'u8[196608]{0}', space=vmem, size = 0x30000, scoped, tag = 'input window, operand 1, single buffered']
    #allocation6 [shape = 's32[1]{0}', space=sflag, size = 0x4, scoped, tag = 'scoped memory for tpu_custom_call.1']
    #allocation7 [shape = 'u8[393216]{0}', space=vmem, size = 0x60000, scoped, tag = 'input window, operand 2, single buffered']
    #allocation8 [shape = 'u8[393216]{0}', space=vmem, size = 0x60000, scoped, tag = 'input window, operand 3, single buffered']
    #allocation9 [shape = 's32[1]{0}', space=sflag, size = 0x4, scoped, tag = 'scoped memory for tpu_custom_call.1']
    #allocation10 [shape = 'u8[393216]{0}', space=vmem, size = 0x60000, scoped, tag = 'input window, operand 4, single buffered']
    #allocation11 [shape = 'u8[1024]{0}', space=vmem, size = 0x400, scoped, tag = 'input window, operand 5, single buffered']
    #allocation12 [shape = 's32[1]{0}', space=sflag, size = 0x4, scoped, tag = 'scoped memory for tpu_custom_call.1']
    #allocation13 [shape = 'u8[1024]{0}', space=vmem, size = 0x400, scoped, tag = 'input window, operand 6, single buffered']
    #allocation14 [shape = 'u8[1024]{0}', space=vmem, size = 0x400, scoped, tag = 'input window, operand 7, single buffered']
    #allocation15 [shape = 's32[1]{0}', space=sflag, size = 0x4, scoped, tag = 'scoped memory for tpu_custom_call.1']
    #allocation16 [shape = 'u8[1024]{0}', space=vmem, size = 0x400, scoped, tag = 'input window, operand 8, single buffered']
    #allocation17 [shape = 'u8[524288]{0}', space=vmem, size = 0x80000, scoped, tag = 'input window, operand 9, single buffered']
    #allocation18 [shape = 's32[1]{0}', space=sflag, size = 0x4, scoped, tag = 'scoped memory for tpu_custom_call.1']
    #allocation19 [shape = 'u8[512]{0}', space=vmem, size = 0x400, scoped, tag = 'input window, operand 10, single buffered']
    #allocation20 [shape = 'u8[4096]{0}', space=vmem, size = 0x1000, scoped, tag = 'output window, operand 0, single buffered']
    %16 = vsyncpa [#allocation3], 0
    %17 = vsyncpa [#allocation6], 0
    %18 = vsyncpa [#allocation9], 0
    %19 = vsyncpa [#allocation12], 0
    %20 = vsyncpa [#allocation15], 0
    %21 = vsyncpa [#allocation18], 0
    %22 = vsyncpa [#allocation4], 0
    // Predicated region
    $region2: #{tpu_custom_call.1} parent=1 // pred_check
      _
    $region3: #{tpu_custom_call.1} parent=1 // pred_check_branch
      %24 = sbr.rel (0) target = $region5
    $region4: #{tpu_custom_call.1} parent=1 // pred_region
      %s26 = ssub.s32 512, 512
      %27 = vsyncadd [#allocation3], %s26
      %s28 = sshll.u32 [#allocation2], 4
      %s29 = int_to_ptr.vmem [resolvable:$true] %s28
      %34 = dma.hbm_to_vmem [thread:$0]  %s0, 512, %s29, [#allocation3], 64, 64, 4
    $region5: #{tpu_custom_call.1} parent=1 // pred_fallthru
      _
    // Predicated region
    $region6: #{tpu_custom_call.1} parent=1 // pred_check
      _
    $region7: #{tpu_custom_call.1} parent=1 // pred_check_branch
      %36 = sbr.rel (0) target = $region9
    $region8: #{tpu_custom_call.1} parent=1 // pred_region
      %s38 = ssub.s32 6144, 6144
      %39 = vsyncadd [#allocation6], %s38
      %s40 = sshll.u32 [#allocation5], 4
      %s41 = int_to_ptr.vmem [resolvable:$true] %s40
      %46 = dma.hbm_to_vmem [thread:$0]  %s1, 6144, %s41, [#allocation6], 128, 128, 8
    $region9: #{tpu_custom_call.1} parent=1 // pred_fallthru
      _
    // Predicated region
    $region10: #{tpu_custom_call.1} parent=1 // pred_check
      _
    $region11: #{tpu_custom_call.1} parent=1 // pred_check_branch
      %48 = sbr.rel (0) target = $region13
    $region12: #{tpu_custom_call.1} parent=1 // pred_region
      %s50 = ssub.s32 12288, 12288
      %51 = vsyncadd [#allocation6], %s50
      %s52 = sshll.u32 [#allocation7], 4
      %s53 = int_to_ptr.vmem [resolvable:$true] %s52
      %58 = dma.hbm_to_vmem [thread:$0]  %s2, 12288, %s53, [#allocation6], 128, 128, 8
    $region13: #{tpu_custom_call.1} parent=1 // pred_fallthru
      _
    // Predicated region
    $region14: #{tpu_custom_call.1} parent=1 // pred_check
      _
    $region15: #{tpu_custom_call.1} parent=1 // pred_check_branch
      %60 = sbr.rel (0) target = $region17
    $region16: #{tpu_custom_call.1} parent=1 // pred_region
      %s62 = ssub.s32 12288, 12288
      %63 = vsyncadd [#allocation9], %s62
      %s64 = sshll.u32 [#allocation8], 4
      %s65 = int_to_ptr.vmem [resolvable:$true] %s64
      %70 = dma.hbm_to_vmem [thread:$0]  %s3, 12288, %s65, [#allocation9], 128, 128, 8
    $region17: #{tpu_custom_call.1} parent=1 // pred_fallthru
      _
    // Predicated region
    $region18: #{tpu_custom_call.1} parent=1 // pred_check
      _
    $region19: #{tpu_custom_call.1} parent=1 // pred_check_branch
      %72 = sbr.rel (0) target = $region21
    $region20: #{tpu_custom_call.1} parent=1 // pred_region
      %s74 = ssub.s32 12288, 12288
      %75 = vsyncadd [#allocation9], %s74
      %s76 = sshll.u32 [#allocation10], 4
      %s77 = int_to_ptr.vmem [resolvable:$true] %s76
      %82 = dma.hbm_to_vmem [thread:$0]  %s4, 12288, %s77, [#allocation9], 128, 128, 8
    $region21: #{tpu_custom_call.1} parent=1 // pred_fallthru
      _
    // Predicated region
    $region22: #{tpu_custom_call.1} parent=1 // pred_check
      _
    $region23: #{tpu_custom_call.1} parent=1 // pred_check_branch
      %84 = sbr.rel (0) target = $region25
    $region24: #{tpu_custom_call.1} parent=1 // pred_region
      %s86 = ssub.s32 32, 32
      %87 = vsyncadd [#allocation12], %s86
      %s89 = sshll.u32 [#allocation11], 4
      %s90 = int_to_ptr.vmem [resolvable:$true] %s89
      %92 = dma.hbm_to_vmem [thread:$0]  %s5, 32, %s90, [#allocation12]
    $region25: #{tpu_custom_call.1} parent=1 // pred_fallthru
      _
    // Predicated region
    $region26: #{tpu_custom_call.1} parent=1 // pred_check
      _
    $region27: #{tpu_custom_call.1} parent=1 // pred_check_branch
      %94 = sbr.rel (0) target = $region29
    $region28: #{tpu_custom_call.1} parent=1 // pred_region
      %s96 = ssub.s32 32, 32
      %97 = vsyncadd [#allocation12], %s96
      %s99 = sshll.u32 [#allocation13], 4
      %s100 = int_to_ptr.vmem [resolvable:$true] %s99
      %102 = dma.hbm_to_vmem [thread:$0]  %s6, 32, %s100, [#allocation12]
    $region29: #{tpu_custom_call.1} parent=1 // pred_fallthru
      _
    // Predicated region
    $region30: #{tpu_custom_call.1} parent=1 // pred_check
      _
    $region31: #{tpu_custom_call.1} parent=1 // pred_check_branch
      %104 = sbr.rel (0) target = $region33
    $region32: #{tpu_custom_call.1} parent=1 // pred_region
      %s106 = ssub.s32 32, 32
      %107 = vsyncadd [#allocation15], %s106
      %s109 = sshll.u32 [#allocation14], 4
      %s110 = int_to_ptr.vmem [resolvable:$true] %s109
      %112 = dma.hbm_to_vmem [thread:$0]  %s7, 32, %s110, [#allocation15]
    $region33: #{tpu_custom_call.1} parent=1 // pred_fallthru
      _
    // Predicated region
    $region34: #{tpu_custom_call.1} parent=1 // pred_check
      _
    $region35: #{tpu_custom_call.1} parent=1 // pred_check_branch
      %114 = sbr.rel (0) target = $region37
    $region36: #{tpu_custom_call.1} parent=1 // pred_region
      %s116 = ssub.s32 32, 32
      %117 = vsyncadd [#allocation15], %s116
      %s119 = sshll.u32 [#allocation16], 4
      %s120 = int_to_ptr.vmem [resolvable:$true] %s119
      %122 = dma.hbm_to_vmem [thread:$0]  %s8, 32, %s120, [#allocation15]
    $region37: #{tpu_custom_call.1} parent=1 // pred_fallthru
      _
    // Predicated region
    $region38: #{tpu_custom_call.1} parent=1 // pred_check
      _
    $region39: #{tpu_custom_call.1} parent=1 // pred_check_branch
      %124 = sbr.rel (0) target = $region41
    $region40: #{tpu_custom_call.1} parent=1 // pred_region
      %s126 = ssub.s32 16384, 16384
      %127 = vsyncadd [#allocation18], %s126
      %s128 = sshll.u32 [#allocation17], 4
      %s129 = int_to_ptr.vmem [resolvable:$true] %s128
      %134 = dma.hbm_to_vmem [thread:$0]  %s9, 16384, %s129, [#allocation18], 64, 64, 4
    $region41: #{tpu_custom_call.1} parent=1 // pred_fallthru
      _
    // Predicated region
    $region42: #{tpu_custom_call.1} parent=1 // pred_check
      _
    $region43: #{tpu_custom_call.1} parent=1 // pred_check_branch
      %136 = sbr.rel (0) target = $region45
    $region44: #{tpu_custom_call.1} parent=1 // pred_region
      %s138 = ssub.s32 16, 16
      %139 = vsyncadd [#allocation18], %s138
      %s141 = sshll.u32 [#allocation19], 4
      %s142 = int_to_ptr.vmem [resolvable:$true] %s141
      %144 = dma.hbm_to_vmem [thread:$0]  %s10, 16, %s142, [#allocation18]
    $region45: #{tpu_custom_call.1} parent=1 // pred_fallthru
      _
    // Predicated region
    $region46: #{tpu_custom_call.1} parent=1 // pred_check
      _
    $region47: #{tpu_custom_call.1} parent=1 // pred_check_branch
      %146 = sbr.rel (0) target = $region49
    $region48: #{tpu_custom_call.1} parent=1 // pred_region
      %147 = dma.done [#allocation3], 512
    $region49: #{tpu_custom_call.1} parent=1 // pred_fallthru
      _
    // Predicated region
    $region50: #{tpu_custom_call.1} parent=1 // pred_check
      _
    $region51: #{tpu_custom_call.1} parent=1 // pred_check_branch
      %149 = sbr.rel (0) target = $region53
    $region52: #{tpu_custom_call.1} parent=1 // pred_region
      %150 = dma.done [#allocation6], 6144
    $region53: #{tpu_custom_call.1} parent=1 // pred_fallthru
      _
    // Predicated region
    $region54: #{tpu_custom_call.1} parent=1 // pred_check
      _
    $region55: #{tpu_custom_call.1} parent=1 // pred_check_branch
      %152 = sbr.rel (0) target = $region57
    $region56: #{tpu_custom_call.1} parent=1 // pred_region
      %153 = dma.done [#allocation6], 12288
    $region57: #{tpu_custom_call.1} parent=1 // pred_fallthru
      _
    // Predicated region
    $region58: #{tpu_custom_call.1} parent=1 // pred_check
      _
    $region59: #{tpu_custom_call.1} parent=1 // pred_check_branch
      %155 = sbr.rel (0) target = $region61
    $region60: #{tpu_custom_call.1} parent=1 // pred_region
      %156 = dma.done [#allocation9], 12288
    $region61: #{tpu_custom_call.1} parent=1 // pred_fallthru
      _
    // Predicated region
    $region62: #{tpu_custom_call.1} parent=1 // pred_check
      _
    $region63: #{tpu_custom_call.1} parent=1 // pred_check_branch
      %158 = sbr.rel (0) target = $region65
    $region64: #{tpu_custom_call.1} parent=1 // pred_region
      %159 = dma.done [#allocation9], 12288
    $region65: #{tpu_custom_call.1} parent=1 // pred_fallthru
      _
    // Predicated region
    $region66: #{tpu_custom_call.1} parent=1 // pred_check
      _
    $region67: #{tpu_custom_call.1} parent=1 // pred_check_branch
      %161 = sbr.rel (0) target = $region69
    $region68: #{tpu_custom_call.1} parent=1 // pred_region
      %162 = dma.done [#allocation12], 32
    $region69: #{tpu_custom_call.1} parent=1 // pred_fallthru
      _
    // Predicated region
    $region70: #{tpu_custom_call.1} parent=1 // pred_check
      _
    $region71: #{tpu_custom_call.1} parent=1 // pred_check_branch
      %164 = sbr.rel (0) target = $region73
    $region72: #{tpu_custom_call.1} parent=1 // pred_region
      %165 = dma.done [#allocation12], 32
    $region73: #{tpu_custom_call.1} parent=1 // pred_fallthru
      _
    // Predicated region
    $region74: #{tpu_custom_call.1} parent=1 // pred_check
      _
    $region75: #{tpu_custom_call.1} parent=1 // pred_check_branch
      %167 = sbr.rel (0) target = $region77
    $region76: #{tpu_custom_call.1} parent=1 // pred_region
      %168 = dma.done [#allocation15], 32
    $region77: #{tpu_custom_call.1} parent=1 // pred_fallthru
      _
    // Predicated region
    $region78: #{tpu_custom_call.1} parent=1 // pred_check
      _
    $region79: #{tpu_custom_call.1} parent=1 // pred_check_branch
      %170 = sbr.rel (0) target = $region81
    $region80: #{tpu_custom_call.1} parent=1 // pred_region
      %171 = dma.done [#allocation15], 32
    $region81: #{tpu_custom_call.1} parent=1 // pred_fallthru
      _
    // Predicated region
    $region82: #{tpu_custom_call.1} parent=1 // pred_check
      _
    $region83: #{tpu_custom_call.1} parent=1 // pred_check_branch
      %173 = sbr.rel (0) target = $region85
    $region84: #{tpu_custom_call.1} parent=1 // pred_region
      %174 = dma.done [#allocation18], 16384
    $region85: #{tpu_custom_call.1} parent=1 // pred_fallthru
      _
    // Predicated region
    $region86: #{tpu_custom_call.1} parent=1 // pred_check
      _
    $region87: #{tpu_custom_call.1} parent=1 // pred_check_branch
      %176 = sbr.rel (0) target = $region89
    $region88: #{tpu_custom_call.1} parent=1 // pred_region
      %177 = dma.done [#allocation18], 16
    $region89: #{tpu_custom_call.1} parent=1 // pred_fallthru
      _
    %v179 = vlaneseq
    %v180 = vshrl.u32 %v179, 7
    %vm181 = vcmp.ge.s32.totalorder %v180, 1
    %vm182 = vcmp.lt.s32.totalorder %v180, 7
    %v183 = vld [vmem:[#allocation2] sm:$0xf]
    %v184 = vld [vmem:[#allocation2 + $0x4] sm:$0xf]
    %v185 = vld [vmem:[#allocation2 + $0x8] sm:$0xf]
    %v186 = vld [vmem:[#allocation2 + $0xc] sm:$0xf]
    %v187 = vld [vmem:[#allocation2 + $0x10] sm:$0xf]
    %v188 = vld [vmem:[#allocation2 + $0x14] sm:$0xf]
    %v189 = vld [vmem:[#allocation2 + $0x18] sm:$0xf]
    %v190 = vld [vmem:[#allocation2 + $0x1c] sm:$0xf]
    %v191 = vunpack.c.l.bf16 %v183
    %v192 = vunpack.c.l.bf16 %v184
    %v193 = vunpack.c.l.bf16 %v185
    %v194 = vunpack.c.l.bf16 %v186
    %v195 = vunpack.c.l.bf16 %v187
    %v196 = vunpack.c.l.bf16 %v188
    %v197 = vunpack.c.l.bf16 %v189
    %v198 = vunpack.c.l.bf16 %v190
    %v199 = vpack.c.bf16 %v192, %v191
    %v200 = vpack.c.bf16 %v194, %v193
    %v201 = vpack.c.bf16 %v196, %v195
    %v202 = vpack.c.bf16 %v198, %v197
    %s203 = scalar_lea.vmem [#allocation5], 128
    %v204 = vld [vmem:[%s203] sm:$0xff]
    %v205 = vld [vmem:[%s203 + $0x8] sm:$0xff]
    %v206 = vld [vmem:[%s203 + $0x10] sm:$0xff]
    %v207 = vld [vmem:[%s203 + $0x18] sm:$0xff]
    %v208 = vld [vmem:[%s203 + $0x20] sm:$0xff]
    %v209 = vld [vmem:[%s203 + $0x28] sm:$0xff]
    %v210 = vld [vmem:[%s203 + $0x30] sm:$0xff]
    %v211 = vld [vmem:[%s203 + $0x38] sm:$0xff]
    %v212 = vld [vmem:[%s203 + $0x40] sm:$0xff]
    %v213 = vld [vmem:[%s203 + $0x48] sm:$0xff]
    %v214 = vld [vmem:[%s203 + $0x50] sm:$0xff]
    %v215 = vld [vmem:[%s203 + $0x58] sm:$0xff]
    %v216 = vld [vmem:[%s203 + $0x60] sm:$0xff]
    %v217 = vld [vmem:[%s203 + $0x68] sm:$0xff]
    %v218 = vld [vmem:[%s203 + $0x70] sm:$0xff]
    %v219 = vld [vmem:[%s203 + $0x78] sm:$0xff]
    %v220 = vrot.slane %v191, 7
    %v221 = vrot.slane %v192, 7
    %v222 = vrot.slane %v193, 7
    %v223 = vrot.slane %v194, 7
    %v224 = vrot.slane %v195, 7
    %v225 = vrot.slane %v196, 7
    %v226 = vrot.slane %v197, 7
    %v227 = vrot.slane %v198, 7
    %v228 = vsel %vm181, 1, 0
    %vm229 = vcmp.eq.s32.totalorder %v228, 1
    %v230 = vsel %vm229, %v220, 0.0
    %v231 = vsel %vm229, %v221, 0.0
    %v232 = vsel %vm229, %v222, 0.0
    %v233 = vsel %vm229, %v223, 0.0
    %v234 = vsel %vm229, %v224, 0.0
    %v235 = vsel %vm229, %v225, 0.0
    %v236 = vsel %vm229, %v226, 0.0
    %v237 = vsel %vm229, %v227, 0.0
    %v238 = vpack.c.bf16 %v231, %v230
    %v239 = vpack.c.bf16 %v233, %v232
    %v240 = vpack.c.bf16 %v235, %v234
    %v241 = vpack.c.bf16 %v237, %v236
    %v242 = vld [vmem:[#allocation5] sm:$0xff]
    %v243 = vld [vmem:[#allocation5 + $0x8] sm:$0xff]
    %v244 = vld [vmem:[#allocation5 + $0x10] sm:$0xff]
    %v245 = vld [vmem:[#allocation5 + $0x18] sm:$0xff]
    %v246 = vld [vmem:[#allocation5 + $0x20] sm:$0xff]
    %v247 = vld [vmem:[#allocation5 + $0x28] sm:$0xff]
    %v248 = vld [vmem:[#allocation5 + $0x30] sm:$0xff]
    %v249 = vld [vmem:[#allocation5 + $0x38] sm:$0xff]
    %v250 = vld [vmem:[#allocation5 + $0x40] sm:$0xff]
    %v251 = vld [vmem:[#allocation5 + $0x48] sm:$0xff]
    %v252 = vld [vmem:[#allocation5 + $0x50] sm:$0xff]
    %v253 = vld [vmem:[#allocation5 + $0x58] sm:$0xff]
    %v254 = vld [vmem:[#allocation5 + $0x60] sm:$0xff]
    %v255 = vld [vmem:[#allocation5 + $0x68] sm:$0xff]
    %v256 = vld [vmem:[#allocation5 + $0x70] sm:$0xff]
    %v257 = vld [vmem:[#allocation5 + $0x78] sm:$0xff]
    %v274 = vunpack.c.l.b16 %v242
    %v275 = vunpack.c.h.b16 %v242
    %v276 = vunpack.c.l.b16 %v243
    %v277 = vunpack.c.h.b16 %v243
    %v278 = vunpack.c.l.b16 %v244
    %v279 = vunpack.c.h.b16 %v244
    %v280 = vunpack.c.l.b16 %v245
    %v281 = vunpack.c.h.b16 %v245
    %v282 = vunpack.c.l.b16 %v246
    %v283 = vunpack.c.h.b16 %v246
    %v284 = vunpack.c.l.b16 %v247
    %v285 = vunpack.c.h.b16 %v247
    %v286 = vunpack.c.l.b16 %v248
    %v287 = vunpack.c.h.b16 %v248
    %v288 = vunpack.c.l.b16 %v249
    %v289 = vunpack.c.h.b16 %v249
    %v290 = vunpack.c.l.b16 %v250
    %v291 = vunpack.c.h.b16 %v250
    %v292 = vunpack.c.l.b16 %v251
    %v293 = vunpack.c.h.b16 %v251
    %v294 = vunpack.c.l.b16 %v252
    %v295 = vunpack.c.h.b16 %v252
    %v296 = vunpack.c.l.b16 %v253
    %v297 = vunpack.c.h.b16 %v253
    %v298 = vunpack.c.l.b16 %v254
    %v299 = vunpack.c.h.b16 %v254
    %v300 = vunpack.c.l.b16 %v255
    %v301 = vunpack.c.h.b16 %v255
    %v302 = vunpack.c.l.b16 %v256
    %v303 = vunpack.c.h.b16 %v256
    %v304 = vunpack.c.l.b16 %v257
    %v305 = vunpack.c.h.b16 %v257
    %v306 = vpack.c.b16 %v276, %v274
    %v307 = vpack.c.b16 %v277, %v275
    %v308 = vpack.c.b16 %v280, %v278
    %v309 = vpack.c.b16 %v281, %v279
    %v310 = vpack.c.b16 %v284, %v282
    %v311 = vpack.c.b16 %v285, %v283
    %v312 = vpack.c.b16 %v288, %v286
    %v313 = vpack.c.b16 %v289, %v287
    %v314 = vpack.c.b16 %v292, %v290
    %v315 = vpack.c.b16 %v293, %v291
    %v316 = vpack.c.b16 %v296, %v294
    %v317 = vpack.c.b16 %v297, %v295
    %v318 = vpack.c.b16 %v300, %v298
    %v319 = vpack.c.b16 %v301, %v299
    %v320 = vpack.c.b16 %v304, %v302
    %v321 = vpack.c.b16 %v305, %v303
    %338 = vmatprep.subr.bf16.mxu0 %v307
    %339 = vmatpush1.bf16.msra.mxu0 %v306
    %340 = vmatprep.subr.bf16.mxu0 %v309
    %341 = vmatpush1.bf16.msra.mxu0 %v308
    %342 = vmatprep.subr.bf16.mxu0 %v311
    %343 = vmatpush1.bf16.msra.mxu0 %v310
    %344 = vmatprep.subr.bf16.mxu0 %v313
    %345 = vmatpush1.bf16.msra.mxu0 %v312
    %346 = vmatprep.subr.bf16.mxu0 %v315
    %347 = vmatpush1.bf16.msra.mxu0 %v314
    %348 = vmatprep.subr.bf16.mxu0 %v317
    %349 = vmatpush1.bf16.msra.mxu0 %v316
    %350 = vmatprep.subr.bf16.mxu0 %v319
    %351 = vmatpush1.bf16.msra.mxu0 %v318
    %352 = vmatprep.subr.bf16.mxu0 %v321
    %353 = vmatpush1.bf16.msra.mxu0 %v320
    %354 = vmatprep.subr.bf16.mxu0 0
    %355 = vmatpush1.bf16.msra.mxu0 0
    %356 = vmatprep.subr.bf16.mxu0 0
    %357 = vmatpush1.bf16.msra.mxu0 0
    %358 = vmatprep.subr.bf16.mxu0 0
    %359 = vmatpush1.bf16.msra.mxu0 0
    %360 = vmatprep.subr.bf16.mxu0 0
    %361 = vmatpush1.bf16.msra.mxu0 0
    %362 = vmatprep.subr.bf16.mxu0 0
    %363 = vmatpush1.bf16.msra.mxu0 0
    %364 = vmatprep.subr.bf16.mxu0 0
    %365 = vmatpush1.bf16.msra.mxu0 0
    %366 = vmatprep.subr.bf16.mxu0 0
    %367 = vmatpush1.bf16.msra.mxu0 0
    %368 = vmatprep.subr.bf16.mxu0 0
    %369 = vmatpush1.bf16.msra.mxu0 0
    %370 = vmatprep.mubr.bf16.mxu0 0
    %371 = vmatmul.mubr.bf16.gmra.mrb[0].mxu0 %v238
    %v372 = vpop.f32.mrb[0].mxu0
    %v373 = vadd.f32 0.0, %v372
    %v374 = vpop.f32.mrb[0].mxu0
    %v375 = vadd.f32 0.0, %v374
    %v376 = vpop.f32.mrb[0].mxu0
    %v377 = vadd.f32 0.0, %v376
    %v378 = vpop.f32.mrb[0].mxu0
    %v379 = vadd.f32 0.0, %v378
    %380 = vmatprep.mubr.bf16.mxu0 0
    %381 = vmatmul.mubr.bf16.gmra.mrb[0].mxu0 %v239
    %v382 = vpop.f32.mrb[0].mxu0
    %v383 = vadd.f32 0.0, %v382
    %v384 = vpop.f32.mrb[0].mxu0
    %v385 = vadd.f32 0.0, %v384
    %v386 = vpop.f32.mrb[0].mxu0
    %v387 = vadd.f32 0.0, %v386
    %v388 = vpop.f32.mrb[0].mxu0
    %v389 = vadd.f32 0.0, %v388
    %390 = vmatprep.mubr.bf16.mxu0 0
    %391 = vmatmul.mubr.bf16.gmra.mrb[0].mxu0 %v240
    %v392 = vpop.f32.mrb[0].mxu0
    %v393 = vadd.f32 0.0, %v392
    %v394 = vpop.f32.mrb[0].mxu0
    %v395 = vadd.f32 0.0, %v394
    %v396 = vpop.f32.mrb[0].mxu0
    %v397 = vadd.f32 0.0, %v396
    %v398 = vpop.f32.mrb[0].mxu0
    %v399 = vadd.f32 0.0, %v398
    %400 = vmatprep.mubr.bf16.mxu0 0
    %401 = vmatmul.mubr.bf16.gmra.mrb[0].mxu0 %v241
    %v402 = vpop.f32.mrb[0].mxu0
    %v403 = vadd.f32 0.0, %v402
    %v404 = vpop.f32.mrb[0].mxu0
    %v405 = vadd.f32 0.0, %v404
    %v406 = vpop.f32.mrb[0].mxu0
    %v407 = vadd.f32 0.0, %v406
    %v408 = vpop.f32.mrb[0].mxu0
    %v409 = vadd.f32 0.0, %v408
    %410 = vdwg.mxu0
    %v427 = vunpack.c.l.b16 %v204
    %v428 = vunpack.c.h.b16 %v204
    %v429 = vunpack.c.l.b16 %v205
    %v430 = vunpack.c.h.b16 %v205
    %v431 = vunpack.c.l.b16 %v206
    %v432 = vunpack.c.h.b16 %v206
    %v433 = vunpack.c.l.b16 %v207
    %v434 = vunpack.c.h.b16 %v207
    %v435 = vunpack.c.l.b16 %v208
    %v436 = vunpack.c.h.b16 %v208
    %v437 = vunpack.c.l.b16 %v209
    %v438 = vunpack.c.h.b16 %v209
    %v439 = vunpack.c.l.b16 %v210
    %v440 = vunpack.c.h.b16 %v210
    %v441 = vunpack.c.l.b16 %v211
    %v442 = vunpack.c.h.b16 %v211
    %v443 = vunpack.c.l.b16 %v212
    %v444 = vunpack.c.h.b16 %v212
    %v445 = vunpack.c.l.b16 %v213
    %v446 = vunpack.c.h.b16 %v213
    %v447 = vunpack.c.l.b16 %v214
    %v448 = vunpack.c.h.b16 %v214
    %v449 = vunpack.c.l.b16 %v215
    %v450 = vunpack.c.h.b16 %v215
    %v451 = vunpack.c.l.b16 %v216
    %v452 = vunpack.c.h.b16 %v216
    %v453 = vunpack.c.l.b16 %v217
    %v454 = vunpack.c.h.b16 %v217
    %v455 = vunpack.c.l.b16 %v218
    %v456 = vunpack.c.h.b16 %v218
    %v457 = vunpack.c.l.b16 %v219
    %v458 = vunpack.c.h.b16 %v219
    %v459 = vpack.c.b16 %v429, %v427
    %v460 = vpack.c.b16 %v430, %v428
    %v461 = vpack.c.b16 %v433, %v431
    %v462 = vpack.c.b16 %v434, %v432
    %v463 = vpack.c.b16 %v437, %v435
    %v464 = vpack.c.b16 %v438, %v436
    %v465 = vpack.c.b16 %v441, %v439
    %v466 = vpack.c.b16 %v442, %v440
    %v467 = vpack.c.b16 %v445, %v443
    %v468 = vpack.c.b16 %v446, %v444
    %v469 = vpack.c.b16 %v449, %v447
    %v470 = vpack.c.b16 %v450, %v448
    %v471 = vpack.c.b16 %v453, %v451
    %v472 = vpack.c.b16 %v454, %v452
    %v473 = vpack.c.b16 %v457, %v455
    %v474 = vpack.c.b16 %v458, %v456
    %491 = vmatprep.subr.bf16.mxu0 %v460
    %492 = vmatpush1.bf16.msra.mxu0 %v459
    %493 = vmatprep.subr.bf16.mxu0 %v462
    %494 = vmatpush1.bf16.msra.mxu0 %v461
    %495 = vmatprep.subr.bf16.mxu0 %v464
    %496 = vmatpush1.bf16.msra.mxu0 %v463
    %497 = vmatprep.subr.bf16.mxu0 %v466
    %498 = vmatpush1.bf16.msra.mxu0 %v465
    %499 = vmatprep.subr.bf16.mxu0 %v468
    %500 = vmatpush1.bf16.msra.mxu0 %v467
    %501 = vmatprep.subr.bf16.mxu0 %v470
    %502 = vmatpush1.bf16.msra.mxu0 %v469
    %503 = vmatprep.subr.bf16.mxu0 %v472
    %504 = vmatpush1.bf16.msra.mxu0 %v471
    %505 = vmatprep.subr.bf16.mxu0 %v474
    %506 = vmatpush1.bf16.msra.mxu0 %v473
    %507 = vmatprep.subr.bf16.mxu0 0
    %508 = vmatpush1.bf16.msra.mxu0 0
    %509 = vmatprep.subr.bf16.mxu0 0
    %510 = vmatpush1.bf16.msra.mxu0 0
    %511 = vmatprep.subr.bf16.mxu0 0
    %512 = vmatpush1.bf16.msra.mxu0 0
    %513 = vmatprep.subr.bf16.mxu0 0
    %514 = vmatpush1.bf16.msra.mxu0 0
    %515 = vmatprep.subr.bf16.mxu0 0
    %516 = vmatpush1.bf16.msra.mxu0 0
    %517 = vmatprep.subr.bf16.mxu0 0
    %518 = vmatpush1.bf16.msra.mxu0 0
    %519 = vmatprep.subr.bf16.mxu0 0
    %520 = vmatpush1.bf16.msra.mxu0 0
    %521 = vmatprep.subr.bf16.mxu0 0
    %522 = vmatpush1.bf16.msra.mxu0 0
    %523 = vmatprep.mubr.bf16.mxu0 0
    %524 = vmatmul.mubr.bf16.gmra.mrb[0].mxu0 %v199
    %v525 = vpop.f32.mrb[0].mxu0
    %v526 = vadd.f32 %v373, %v525
    %v527 = vpop.f32.mrb[0].mxu0
    %v528 = vadd.f32 %v375, %v527
    %v529 = vpop.f32.mrb[0].mxu0
    %v530 = vadd.f32 %v377, %v529
    %v531 = vpop.f32.mrb[0].mxu0
    %v532 = vadd.f32 %v379, %v531
    %533 = vmatprep.mubr.bf16.mxu0 0
    %534 = vmatmul.mubr.bf16.gmra.mrb[0].mxu0 %v200
    %v535 = vpop.f32.mrb[0].mxu0
    %v536 = vadd.f32 %v383, %v535
    %v537 = vpop.f32.mrb[0].mxu0
    %v538 = vadd.f32 %v385, %v537
    %v539 = vpop.f32.mrb[0].mxu0
    %v540 = vadd.f32 %v387, %v539
    %v541 = vpop.f32.mrb[0].mxu0
    %v542 = vadd.f32 %v389, %v541
    %543 = vmatprep.mubr.bf16.mxu0 0
    %544 = vmatmul.mubr.bf16.gmra.mrb[0].mxu0 %v201
    %v545 = vpop.f32.mrb[0].mxu0
    %v546 = vadd.f32 %v393, %v545
    %v547 = vpop.f32.mrb[0].mxu0
    %v548 = vadd.f32 %v395, %v547
    %v549 = vpop.f32.mrb[0].mxu0
    %v550 = vadd.f32 %v397, %v549
    %v551 = vpop.f32.mrb[0].mxu0
    %v552 = vadd.f32 %v399, %v551
    %553 = vmatprep.mubr.bf16.mxu0 0
    %554 = vmatmul.mubr.bf16.gmra.mrb[0].mxu0 %v202
    %v555 = vpop.f32.mrb[0].mxu0
    %v556 = vadd.f32 %v403, %v555
    %v557 = vpop.f32.mrb[0].mxu0
    %v558 = vadd.f32 %v405, %v557
    %v559 = vpop.f32.mrb[0].mxu0
    %v560 = vadd.f32 %v407, %v559
    %v561 = vpop.f32.mrb[0].mxu0
    %v562 = vadd.f32 %v409, %v561
    %563 = vdwg.mxu0
    %v564 = vrot.slane %v191, 1
    %v565 = vrot.slane %v192, 1
    %v566 = vrot.slane %v193, 1
    %v567 = vrot.slane %v194, 1
    %v568 = vrot.slane %v195, 1
    %v569 = vrot.slane %v196, 1
    %v570 = vrot.slane %v197, 1
    %v571 = vrot.slane %v198, 1
    %v572 = vsel %vm182, 1, 0
    %vm573 = vcmp.eq.s32.totalorder %v572, 1
    %v574 = vsel %vm573, %v564, 0.0
    %v575 = vsel %vm573, %v565, 0.0
    %v576 = vsel %vm573, %v566, 0.0
    %v577 = vsel %vm573, %v567, 0.0
    %v578 = vsel %vm573, %v568, 0.0
    %v579 = vsel %vm573, %v569, 0.0
    %v580 = vsel %vm573, %v570, 0.0
    %v581 = vsel %vm573, %v571, 0.0
    %v582 = vpack.c.bf16 %v575, %v574
    %v583 = vpack.c.bf16 %v577, %v576
    %v584 = vpack.c.bf16 %v579, %v578
    %v585 = vpack.c.bf16 %v581, %v580
    %s586 = scalar_lea.vmem [#allocation5], 256
    %v587 = vld [vmem:[%s586] sm:$0xff]
    %v588 = vld [vmem:[%s586 + $0x8] sm:$0xff]
    %v589 = vld [vmem:[%s586 + $0x10] sm:$0xff]
    %v590 = vld [vmem:[%s586 + $0x18] sm:$0xff]
    %v591 = vld [vmem:[%s586 + $0x20] sm:$0xff]
    %v592 = vld [vmem:[%s586 + $0x28] sm:$0xff]
    %v593 = vld [vmem:[%s586 + $0x30] sm:$0xff]
    %v594 = vld [vmem:[%s586 + $0x38] sm:$0xff]
    %v595 = vld [vmem:[%s586 + $0x40] sm:$0xff]
    %v596 = vld [vmem:[%s586 + $0x48] sm:$0xff]
    %v597 = vld [vmem:[%s586 + $0x50] sm:$0xff]
    %v598 = vld [vmem:[%s586 + $0x58] sm:$0xff]
    %v599 = vld [vmem:[%s586 + $0x60] sm:$0xff]
    %v600 = vld [vmem:[%s586 + $0x68] sm:$0xff]
    %v601 = vld [vmem:[%s586 + $0x70] sm:$0xff]
    %v602 = vld [vmem:[%s586 + $0x78] sm:$0xff]
    %v619 = vunpack.c.l.b16 %v587
    %v620 = vunpack.c.h.b16 %v587
    %v621 = vunpack.c.l.b16 %v588
    %v622 = vunpack.c.h.b16 %v588
    %v623 = vunpack.c.l.b16 %v589
    %v624 = vunpack.c.h.b16 %v589
    %v625 = vunpack.c.l.b16 %v590
    %v626 = vunpack.c.h.b16 %v590
    %v627 = vunpack.c.l.b16 %v591
    %v628 = vunpack.c.h.b16 %v591
    %v629 = vunpack.c.l.b16 %v592
    %v630 = vunpack.c.h.b16 %v592
    %v631 = vunpack.c.l.b16 %v593
    %v632 = vunpack.c.h.b16 %v593
    %v633 = vunpack.c.l.b16 %v594
    %v634 = vunpack.c.h.b16 %v594
    %v635 = vunpack.c.l.b16 %v595
    %v636 = vunpack.c.h.b16 %v595
    %v637 = vunpack.c.l.b16 %v596
    %v638 = vunpack.c.h.b16 %v596
    %v639 = vunpack.c.l.b16 %v597
    %v640 = vunpack.c.h.b16 %v597
    %v641 = vunpack.c.l.b16 %v598
    %v642 = vunpack.c.h.b16 %v598
    %v643 = vunpack.c.l.b16 %v599
    %v644 = vunpack.c.h.b16 %v599
    %v645 = vunpack.c.l.b16 %v600
    %v646 = vunpack.c.h.b16 %v600
    %v647 = vunpack.c.l.b16 %v601
    %v648 = vunpack.c.h.b16 %v601
    %v649 = vunpack.c.l.b16 %v602
    %v650 = vunpack.c.h.b16 %v602
    %v651 = vpack.c.b16 %v621, %v619
    %v652 = vpack.c.b16 %v622, %v620
    %v653 = vpack.c.b16 %v625, %v623
    %v654 = vpack.c.b16 %v626, %v624
    %v655 = vpack.c.b16 %v629, %v627
    %v656 = vpack.c.b16 %v630, %v628
    %v657 = vpack.c.b16 %v633, %v631
    %v658 = vpack.c.b16 %v634, %v632
    %v659 = vpack.c.b16 %v637, %v635
    %v660 = vpack.c.b16 %v638, %v636
    %v661 = vpack.c.b16 %v641, %v639
    %v662 = vpack.c.b16 %v642, %v640
    %v663 = vpack.c.b16 %v645, %v643
    %v664 = vpack.c.b16 %v646, %v644
    %v665 = vpack.c.b16 %v649, %v647
    %v666 = vpack.c.b16 %v650, %v648
    %683 = vmatprep.subr.bf16.mxu0 %v652
    %684 = vmatpush1.bf16.msra.mxu0 %v651
    %685 = vmatprep.subr.bf16.mxu0 %v654
    %686 = vmatpush1.bf16.msra.mxu0 %v653
    %687 = vmatprep.subr.bf16.mxu0 %v656
    %688 = vmatpush1.bf16.msra.mxu0 %v655
    %689 = vmatprep.subr.bf16.mxu0 %v658
    %690 = vmatpush1.bf16.msra.mxu0 %v657
    %691 = vmatprep.subr.bf16.mxu0 %v660
    %692 = vmatpush1.bf16.msra.mxu0 %v659
    %693 = vmatprep.subr.bf16.mxu0 %v662
    %694 = vmatpush1.bf16.msra.mxu0 %v661
    %695 = vmatprep.subr.bf16.mxu0 %v664
    %696 = vmatpush1.bf16.msra.mxu0 %v663
    %697 = vmatprep.subr.bf16.mxu0 %v666
    %698 = vmatpush1.bf16.msra.mxu0 %v665
    %699 = vmatprep.subr.bf16.mxu0 0
    %700 = vmatpush1.bf16.msra.mxu0 0
    %701 = vmatprep.subr.bf16.mxu0 0
    %702 = vmatpush1.bf16.msra.mxu0 0
    %703 = vmatprep.subr.bf16.mxu0 0
    %704 = vmatpush1.bf16.msra.mxu0 0
    %705 = vmatprep.subr.bf16.mxu0 0
    %706 = vmatpush1.bf16.msra.mxu0 0
    %707 = vmatprep.subr.bf16.mxu0 0
    %708 = vmatpush1.bf16.msra.mxu0 0
    %709 = vmatprep.subr.bf16.mxu0 0
    %710 = vmatpush1.bf16.msra.mxu0 0
    %711 = vmatprep.subr.bf16.mxu0 0
    %712 = vmatpush1.bf16.msra.mxu0 0
    %713 = vmatprep.subr.bf16.mxu0 0
    %714 = vmatpush1.bf16.msra.mxu0 0
    %715 = vmatprep.mubr.bf16.mxu0 0
    %716 = vmatmul.mubr.bf16.gmra.mrb[0].mxu0 %v582
    %v717 = vpop.f32.mrb[0].mxu0
    %v718 = vadd.f32 0.0, %v717
    %v719 = vpop.f32.mrb[0].mxu0
    %v720 = vadd.f32 0.0, %v719
    %v721 = vpop.f32.mrb[0].mxu0
    %v722 = vadd.f32 0.0, %v721
    %v723 = vpop.f32.mrb[0].mxu0
    %v724 = vadd.f32 0.0, %v723
    %725 = vmatprep.mubr.bf16.mxu0 0
    %726 = vmatmul.mubr.bf16.gmra.mrb[0].mxu0 %v583
    %v727 = vpop.f32.mrb[0].mxu0
    %v728 = vadd.f32 0.0, %v727
    %v729 = vpop.f32.mrb[0].mxu0
    %v730 = vadd.f32 0.0, %v729
    %v731 = vpop.f32.mrb[0].mxu0
    %v732 = vadd.f32 0.0, %v731
    %v733 = vpop.f32.mrb[0].mxu0
    %v734 = vadd.f32 0.0, %v733
    %735 = vmatprep.mubr.bf16.mxu0 0
    %736 = vmatmul.mubr.bf16.gmra.mrb[0].mxu0 %v584
    %v737 = vpop.f32.mrb[0].mxu0
    %v738 = vadd.f32 0.0, %v737
    %v739 = vpop.f32.mrb[0].mxu0
    %v740 = vadd.f32 0.0, %v739
    %v741 = vpop.f32.mrb[0].mxu0
    %v742 = vadd.f32 0.0, %v741
    %v743 = vpop.f32.mrb[0].mxu0
    %v744 = vadd.f32 0.0, %v743
    %745 = vmatprep.mubr.bf16.mxu0 0
    %746 = vmatmul.mubr.bf16.gmra.mrb[0].mxu0 %v585
    %v747 = vpop.f32.mrb[0].mxu0
    %v748 = vadd.f32 0.0, %v747
    %v749 = vpop.f32.mrb[0].mxu0
    %v750 = vadd.f32 0.0, %v749
    %v751 = vpop.f32.mrb[0].mxu0
    %v752 = vadd.f32 0.0, %v751
    %v753 = vpop.f32.mrb[0].mxu0
    %v754 = vadd.f32 0.0, %v753
    %755 = vdwg.mxu0
    %v756 = vadd.f32 %v526, %v718
    %v757 = vadd.f32 %v528, %v720
    %v758 = vadd.f32 %v530, %v722
    %v759 = vadd.f32 %v532, %v724
    %v760 = vadd.f32 %v536, %v728
    %v761 = vadd.f32 %v538, %v730
    %v762 = vadd.f32 %v540, %v732
    %v763 = vadd.f32 %v542, %v734
    %v764 = vadd.f32 %v546, %v738
    %v765 = vadd.f32 %v548, %v740
    %v766 = vadd.f32 %v550, %v742
    %v767 = vadd.f32 %v552, %v744
    %v768 = vadd.f32 %v556, %v748
    %v769 = vadd.f32 %v558, %v750
    %v770 = vadd.f32 %v560, %v752
    %v771 = vadd.f32 %v562, %v754
    %v772 = vld [vmem:[#allocation11] sm:$0x3]
    %v774 = vlaneseq
    %v775 = vshrl.u32 %v774, 7
    %v776 = vsub.s32 0, %v775
    %v777 = vrot.slane %v772, %v776
    %v778 = vlaneseq
    %v779 = vshrl.u32 %v778, 7
    %v780 = vsub.s32 1, %v779
    %v781 = vrot.slane %v772, %v780
    %v784 = vadd.f32 %v756, %v777
    %v785 = vadd.f32 %v757, %v781
    %v786 = vadd.f32 %v758, %v777
    %v787 = vadd.f32 %v759, %v781
    %v788 = vadd.f32 %v760, %v777
    %v789 = vadd.f32 %v761, %v781
    %v790 = vadd.f32 %v762, %v777
    %v791 = vadd.f32 %v763, %v781
    %v792 = vadd.f32 %v764, %v777
    %v793 = vadd.f32 %v765, %v781
    %v794 = vadd.f32 %v766, %v777
    %v795 = vadd.f32 %v767, %v781
    %v796 = vadd.f32 %v768, %v777
    %v797 = vadd.f32 %v769, %v781
    %v798 = vadd.f32 %v770, %v777
    %v799 = vadd.f32 %v771, %v781
    %v800 = vmax.f32 %v784, 0.0
    %v801 = vmax.f32 %v785, 0.0
    %v802 = vmax.f32 %v786, 0.0
    %v803 = vmax.f32 %v787, 0.0
    %v804 = vmax.f32 %v788, 0.0
    %v805 = vmax.f32 %v789, 0.0
    %v806 = vmax.f32 %v790, 0.0
    %v807 = vmax.f32 %v791, 0.0
    %v808 = vmax.f32 %v792, 0.0
    %v809 = vmax.f32 %v793, 0.0
    %v810 = vmax.f32 %v794, 0.0
    %v811 = vmax.f32 %v795, 0.0
    %v812 = vmax.f32 %v796, 0.0
    %v813 = vmax.f32 %v797, 0.0
    %v814 = vmax.f32 %v798, 0.0
    %v815 = vmax.f32 %v799, 0.0
    %v816 = vpack.c.bf16 %v802, %v800
    %v817 = vpack.c.bf16 %v803, %v801
    %v818 = vpack.c.bf16 %v806, %v804
    %v819 = vpack.c.bf16 %v807, %v805
    %v820 = vpack.c.bf16 %v810, %v808
    %v821 = vpack.c.bf16 %v811, %v809
    %v822 = vpack.c.bf16 %v814, %v812
    %v823 = vpack.c.bf16 %v815, %v813
    %s824 = scalar_lea.vmem [#allocation7], 256
    %v825 = vld [vmem:[%s824] sm:$0xff]
    %v826 = vld [vmem:[%s824 + $0x8] sm:$0xff]
    %v827 = vld [vmem:[%s824 + $0x10] sm:$0xff]
    %v828 = vld [vmem:[%s824 + $0x18] sm:$0xff]
    %v829 = vld [vmem:[%s824 + $0x20] sm:$0xff]
    %v830 = vld [vmem:[%s824 + $0x28] sm:$0xff]
    %v831 = vld [vmem:[%s824 + $0x30] sm:$0xff]
    %v832 = vld [vmem:[%s824 + $0x38] sm:$0xff]
    %v833 = vld [vmem:[%s824 + $0x40] sm:$0xff]
    %v834 = vld [vmem:[%s824 + $0x48] sm:$0xff]
    %v835 = vld [vmem:[%s824 + $0x50] sm:$0xff]
    %v836 = vld [vmem:[%s824 + $0x58] sm:$0xff]
    %v837 = vld [vmem:[%s824 + $0x60] sm:$0xff]
    %v838 = vld [vmem:[%s824 + $0x68] sm:$0xff]
    %v839 = vld [vmem:[%s824 + $0x70] sm:$0xff]
    %v840 = vld [vmem:[%s824 + $0x78] sm:$0xff]
    %v841 = vld [vmem:[%s824 + $0x80] sm:$0xff]
    %v842 = vld [vmem:[%s824 + $0x88] sm:$0xff]
    %v843 = vld [vmem:[%s824 + $0x90] sm:$0xff]
    %v844 = vld [vmem:[%s824 + $0x98] sm:$0xff]
    %v845 = vld [vmem:[%s824 + $0xa0] sm:$0xff]
    %v846 = vld [vmem:[%s824 + $0xa8] sm:$0xff]
    %v847 = vld [vmem:[%s824 + $0xb0] sm:$0xff]
    %v848 = vld [vmem:[%s824 + $0xb8] sm:$0xff]
    %v849 = vld [vmem:[%s824 + $0xc0] sm:$0xff]
    %v850 = vld [vmem:[%s824 + $0xc8] sm:$0xff]
    %v851 = vld [vmem:[%s824 + $0xd0] sm:$0xff]
    %v852 = vld [vmem:[%s824 + $0xd8] sm:$0xff]
    %v853 = vld [vmem:[%s824 + $0xe0] sm:$0xff]
    %v854 = vld [vmem:[%s824 + $0xe8] sm:$0xff]
    %v855 = vld [vmem:[%s824 + $0xf0] sm:$0xff]
    %v856 = vld [vmem:[%s824 + $0xf8] sm:$0xff]
    %v857 = vrot.slane %v800, 7
    %v858 = vrot.slane %v801, 7
    %v859 = vrot.slane %v802, 7
    %v860 = vrot.slane %v803, 7
    %v861 = vrot.slane %v804, 7
    %v862 = vrot.slane %v805, 7
    %v863 = vrot.slane %v806, 7
    %v864 = vrot.slane %v807, 7
    %v865 = vrot.slane %v808, 7
    %v866 = vrot.slane %v809, 7
    %v867 = vrot.slane %v810, 7
    %v868 = vrot.slane %v811, 7
    %v869 = vrot.slane %v812, 7
    %v870 = vrot.slane %v813, 7
    %v871 = vrot.slane %v814, 7
    %v872 = vrot.slane %v815, 7
    %v873 = vsel %vm229, %v857, 0.0
    %v874 = vsel %vm229, %v858, 0.0
    %v875 = vsel %vm229, %v859, 0.0
    %v876 = vsel %vm229, %v860, 0.0
    %v877 = vsel %vm229, %v861, 0.0
    %v878 = vsel %vm229, %v862, 0.0
    %v879 = vsel %vm229, %v863, 0.0
    %v880 = vsel %vm229, %v864, 0.0
    %v881 = vsel %vm229, %v865, 0.0
    %v882 = vsel %vm229, %v866, 0.0
    %v883 = vsel %vm229, %v867, 0.0
    %v884 = vsel %vm229, %v868, 0.0
    %v885 = vsel %vm229, %v869, 0.0
    %v886 = vsel %vm229, %v870, 0.0
    %v887 = vsel %vm229, %v871, 0.0
    %v888 = vsel %vm229, %v872, 0.0
    %v889 = vpack.c.bf16 %v875, %v873
    %v890 = vpack.c.bf16 %v876, %v874
    %v891 = vpack.c.bf16 %v879, %v877
    %v892 = vpack.c.bf16 %v880, %v878
    %v893 = vpack.c.bf16 %v883, %v881
    %v894 = vpack.c.bf16 %v884, %v882
    %v895 = vpack.c.bf16 %v887, %v885
    %v896 = vpack.c.bf16 %v888, %v886
    %v897 = vld [vmem:[#allocation7] sm:$0xff]
    %v898 = vld [vmem:[#allocation7 + $0x8] sm:$0xff]
    %v899 = vld [vmem:[#allocation7 + $0x10] sm:$0xff]
    %v900 = vld [vmem:[#allocation7 + $0x18] sm:$0xff]
    %v901 = vld [vmem:[#allocation7 + $0x20] sm:$0xff]
    %v902 = vld [vmem:[#allocation7 + $0x28] sm:$0xff]
    %v903 = vld [vmem:[#allocation7 + $0x30] sm:$0xff]
    %v904 = vld [vmem:[#allocation7 + $0x38] sm:$0xff]
    %v905 = vld [vmem:[#allocation7 + $0x40] sm:$0xff]
    %v906 = vld [vmem:[#allocation7 + $0x48] sm:$0xff]
    %v907 = vld [vmem:[#allocation7 + $0x50] sm:$0xff]
    %v908 = vld [vmem:[#allocation7 + $0x58] sm:$0xff]
    %v909 = vld [vmem:[#allocation7 + $0x60] sm:$0xff]
    %v910 = vld [vmem:[#allocation7 + $0x68] sm:$0xff]
    %v911 = vld [vmem:[#allocation7 + $0x70] sm:$0xff]
    %v912 = vld [vmem:[#allocation7 + $0x78] sm:$0xff]
    %v913 = vld [vmem:[#allocation7 + $0x80] sm:$0xff]
    %v914 = vld [vmem:[#allocation7 + $0x88] sm:$0xff]
    %v915 = vld [vmem:[#allocation7 + $0x90] sm:$0xff]
    %v916 = vld [vmem:[#allocation7 + $0x98] sm:$0xff]
    %v917 = vld [vmem:[#allocation7 + $0xa0] sm:$0xff]
    %v918 = vld [vmem:[#allocation7 + $0xa8] sm:$0xff]
    %v919 = vld [vmem:[#allocation7 + $0xb0] sm:$0xff]
    %v920 = vld [vmem:[#allocation7 + $0xb8] sm:$0xff]
    %v921 = vld [vmem:[#allocation7 + $0xc0] sm:$0xff]
    %v922 = vld [vmem:[#allocation7 + $0xc8] sm:$0xff]
    %v923 = vld [vmem:[#allocation7 + $0xd0] sm:$0xff]
    %v924 = vld [vmem:[#allocation7 + $0xd8] sm:$0xff]
    %v925 = vld [vmem:[#allocation7 + $0xe0] sm:$0xff]
    %v926 = vld [vmem:[#allocation7 + $0xe8] sm:$0xff]
    %v927 = vld [vmem:[#allocation7 + $0xf0] sm:$0xff]
    %v928 = vld [vmem:[#allocation7 + $0xf8] sm:$0xff]
    %v961 = vunpack.c.l.b16 %v897
    %v962 = vunpack.c.h.b16 %v897
    %v963 = vunpack.c.l.b16 %v898
    %v964 = vunpack.c.h.b16 %v898
    %v965 = vunpack.c.l.b16 %v899
    %v966 = vunpack.c.h.b16 %v899
    %v967 = vunpack.c.l.b16 %v900
    %v968 = vunpack.c.h.b16 %v900
    %v969 = vunpack.c.l.b16 %v901
    %v970 = vunpack.c.h.b16 %v901
    %v971 = vunpack.c.l.b16 %v902
    %v972 = vunpack.c.h.b16 %v902
    %v973 = vunpack.c.l.b16 %v903
    %v974 = vunpack.c.h.b16 %v903
    %v975 = vunpack.c.l.b16 %v904
    %v976 = vunpack.c.h.b16 %v904
    %v977 = vunpack.c.l.b16 %v905
    %v978 = vunpack.c.h.b16 %v905
    %v979 = vunpack.c.l.b16 %v906
    %v980 = vunpack.c.h.b16 %v906
    %v981 = vunpack.c.l.b16 %v907
    %v982 = vunpack.c.h.b16 %v907
    %v983 = vunpack.c.l.b16 %v908
    %v984 = vunpack.c.h.b16 %v908
    %v985 = vunpack.c.l.b16 %v909
    %v986 = vunpack.c.h.b16 %v909
    %v987 = vunpack.c.l.b16 %v910
    %v988 = vunpack.c.h.b16 %v910
    %v989 = vunpack.c.l.b16 %v911
    %v990 = vunpack.c.h.b16 %v911
    %v991 = vunpack.c.l.b16 %v912
    %v992 = vunpack.c.h.b16 %v912
    %v993 = vunpack.c.l.b16 %v913
    %v994 = vunpack.c.h.b16 %v913
    %v995 = vunpack.c.l.b16 %v914
    %v996 = vunpack.c.h.b16 %v914
    %v997 = vunpack.c.l.b16 %v915
    %v998 = vunpack.c.h.b16 %v915
    %v999 = vunpack.c.l.b16 %v916
    %v1000 = vunpack.c.h.b16 %v916
    %v1001 = vunpack.c.l.b16 %v917
    %v1002 = vunpack.c.h.b16 %v917
    %v1003 = vunpack.c.l.b16 %v918
    %v1004 = vunpack.c.h.b16 %v918
    %v1005 = vunpack.c.l.b16 %v919
    %v1006 = vunpack.c.h.b16 %v919
    %v1007 = vunpack.c.l.b16 %v920
    %v1008 = vunpack.c.h.b16 %v920
    %v1009 = vunpack.c.l.b16 %v921
    %v1010 = vunpack.c.h.b16 %v921
    %v1011 = vunpack.c.l.b16 %v922
    %v1012 = vunpack.c.h.b16 %v922
    %v1013 = vunpack.c.l.b16 %v923
    %v1014 = vunpack.c.h.b16 %v923
    %v1015 = vunpack.c.l.b16 %v924
    %v1016 = vunpack.c.h.b16 %v924
    %v1017 = vunpack.c.l.b16 %v925
    %v1018 = vunpack.c.h.b16 %v925
    %v1019 = vunpack.c.l.b16 %v926
    %v1020 = vunpack.c.h.b16 %v926
    %v1021 = vunpack.c.l.b16 %v927
    %v1022 = vunpack.c.h.b16 %v927
    %v1023 = vunpack.c.l.b16 %v928
    %v1024 = vunpack.c.h.b16 %v928
    %v1025 = vpack.c.b16 %v963, %v961
    %v1026 = vpack.c.b16 %v964, %v962
    %v1027 = vpack.c.b16 %v967, %v965
    %v1028 = vpack.c.b16 %v968, %v966
    %v1029 = vpack.c.b16 %v971, %v969
    %v1030 = vpack.c.b16 %v972, %v970
    %v1031 = vpack.c.b16 %v975, %v973
    %v1032 = vpack.c.b16 %v976, %v974
    %v1033 = vpack.c.b16 %v979, %v977
    %v1034 = vpack.c.b16 %v980, %v978
    %v1035 = vpack.c.b16 %v983, %v981
    %v1036 = vpack.c.b16 %v984, %v982
    %v1037 = vpack.c.b16 %v987, %v985
    %v1038 = vpack.c.b16 %v988, %v986
    %v1039 = vpack.c.b16 %v991, %v989
    %v1040 = vpack.c.b16 %v992, %v990
    %v1041 = vpack.c.b16 %v995, %v993
    %v1042 = vpack.c.b16 %v996, %v994
    %v1043 = vpack.c.b16 %v999, %v997
    %v1044 = vpack.c.b16 %v1000, %v998
    %v1045 = vpack.c.b16 %v1003, %v1001
    %v1046 = vpack.c.b16 %v1004, %v1002
    %v1047 = vpack.c.b16 %v1007, %v1005
    %v1048 = vpack.c.b16 %v1008, %v1006
    %v1049 = vpack.c.b16 %v1011, %v1009
    %v1050 = vpack.c.b16 %v1012, %v1010
    %v1051 = vpack.c.b16 %v1015, %v1013
    %v1052 = vpack.c.b16 %v1016, %v1014
    %v1053 = vpack.c.b16 %v1019, %v1017
    %v1054 = vpack.c.b16 %v1020, %v1018
    %v1055 = vpack.c.b16 %v1023, %v1021
    %v1056 = vpack.c.b16 %v1024, %v1022
    %1089 = vmatprep.subr.bf16.mxu0 %v1026
    %1090 = vmatpush1.bf16.msra.mxu0 %v1025
    %1091 = vmatprep.subr.bf16.mxu0 %v1028
    %1092 = vmatpush1.bf16.msra.mxu0 %v1027
    %1093 = vmatprep.subr.bf16.mxu0 %v1030
    %1094 = vmatpush1.bf16.msra.mxu0 %v1029
    %1095 = vmatprep.subr.bf16.mxu0 %v1032
    %1096 = vmatpush1.bf16.msra.mxu0 %v1031
    %1097 = vmatprep.subr.bf16.mxu0 %v1034
    %1098 = vmatpush1.bf16.msra.mxu0 %v1033
    %1099 = vmatprep.subr.bf16.mxu0 %v1036
    %1100 = vmatpush1.bf16.msra.mxu0 %v1035
    %1101 = vmatprep.subr.bf16.mxu0 %v1038
    %1102 = vmatpush1.bf16.msra.mxu0 %v1037
    %1103 = vmatprep.subr.bf16.mxu0 %v1040
    %1104 = vmatpush1.bf16.msra.mxu0 %v1039
    %1105 = vmatprep.subr.bf16.mxu0 %v1042
    %1106 = vmatpush1.bf16.msra.mxu0 %v1041
    %1107 = vmatprep.subr.bf16.mxu0 %v1044
    %1108 = vmatpush1.bf16.msra.mxu0 %v1043
    %1109 = vmatprep.subr.bf16.mxu0 %v1046
    %1110 = vmatpush1.bf16.msra.mxu0 %v1045
    %1111 = vmatprep.subr.bf16.mxu0 %v1048
    %1112 = vmatpush1.bf16.msra.mxu0 %v1047
    %1113 = vmatprep.subr.bf16.mxu0 %v1050
    %1114 = vmatpush1.bf16.msra.mxu0 %v1049
    %1115 = vmatprep.subr.bf16.mxu0 %v1052
    %1116 = vmatpush1.bf16.msra.mxu0 %v1051
    %1117 = vmatprep.subr.bf16.mxu0 %v1054
    %1118 = vmatpush1.bf16.msra.mxu0 %v1053
    %1119 = vmatprep.subr.bf16.mxu0 %v1056
    %1120 = vmatpush1.bf16.msra.mxu0 %v1055
    %1121 = vmatprep.mubr.bf16.mxu0 %v890
    %1122 = vmatmul.mubr.bf16.gmra.mrb[0].mxu0 %v889
    %v1123 = vpop.f32.mrb[0].mxu0
    %v1124 = vadd.f32 0.0, %v1123
    %v1125 = vpop.f32.mrb[0].mxu0
    %v1126 = vadd.f32 0.0, %v1125
    %v1127 = vpop.f32.mrb[0].mxu0
    %v1128 = vadd.f32 0.0, %v1127
    %v1129 = vpop.f32.mrb[0].mxu0
    %v1130 = vadd.f32 0.0, %v1129
    %1131 = vmatprep.mubr.bf16.mxu0 %v892
    %1132 = vmatmul.mubr.bf16.gmra.mrb[0].mxu0 %v891
    %v1133 = vpop.f32.mrb[0].mxu0
    %v1134 = vadd.f32 0.0, %v1133
    %v1135 = vpop.f32.mrb[0].mxu0
    %v1136 = vadd.f32 0.0, %v1135
    %v1137 = vpop.f32.mrb[0].mxu0
    %v1138 = vadd.f32 0.0, %v1137
    %v1139 = vpop.f32.mrb[0].mxu0
    %v1140 = vadd.f32 0.0, %v1139
    %1141 = vmatprep.mubr.bf16.mxu0 %v894
    %1142 = vmatmul.mubr.bf16.gmra.mrb[0].mxu0 %v893
    %v1143 = vpop.f32.mrb[0].mxu0
    %v1144 = vadd.f32 0.0, %v1143
    %v1145 = vpop.f32.mrb[0].mxu0
    %v1146 = vadd.f32 0.0, %v1145
    %v1147 = vpop.f32.mrb[0].mxu0
    %v1148 = vadd.f32 0.0, %v1147
    %v1149 = vpop.f32.mrb[0].mxu0
    %v1150 = vadd.f32 0.0, %v1149
    %1151 = vmatprep.mubr.bf16.mxu0 %v896
    %1152 = vmatmul.mubr.bf16.gmra.mrb[0].mxu0 %v895
    %v1153 = vpop.f32.mrb[0].mxu0
    %v1154 = vadd.f32 0.0, %v1153
    %v1155 = vpop.f32.mrb[0].mxu0
    %v1156 = vadd.f32 0.0, %v1155
    %v1157 = vpop.f32.mrb[0].mxu0
    %v1158 = vadd.f32 0.0, %v1157
    %v1159 = vpop.f32.mrb[0].mxu0
    %v1160 = vadd.f32 0.0, %v1159
    %1161 = vdwg.mxu0
    %v1194 = vunpack.c.l.b16 %v825
    %v1195 = vunpack.c.h.b16 %v825
    %v1196 = vunpack.c.l.b16 %v826
    %v1197 = vunpack.c.h.b16 %v826
    %v1198 = vunpack.c.l.b16 %v827
    %v1199 = vunpack.c.h.b16 %v827
    %v1200 = vunpack.c.l.b16 %v828
    %v1201 = vunpack.c.h.b16 %v828
    %v1202 = vunpack.c.l.b16 %v829
    %v1203 = vunpack.c.h.b16 %v829
    %v1204 = vunpack.c.l.b16 %v830
    %v1205 = vunpack.c.h.b16 %v830
    %v1206 = vunpack.c.l.b16 %v831
    %v1207 = vunpack.c.h.b16 %v831
    %v1208 = vunpack.c.l.b16 %v832
    %v1209 = vunpack.c.h.b16 %v832
    %v1210 = vunpack.c.l.b16 %v833
    %v1211 = vunpack.c.h.b16 %v833
    %v1212 = vunpack.c.l.b16 %v834
    %v1213 = vunpack.c.h.b16 %v834
    %v1214 = vunpack.c.l.b16 %v835
    %v1215 = vunpack.c.h.b16 %v835
    %v1216 = vunpack.c.l.b16 %v836
    %v1217 = vunpack.c.h.b16 %v836
    %v1218 = vunpack.c.l.b16 %v837
    %v1219 = vunpack.c.h.b16 %v837
    %v1220 = vunpack.c.l.b16 %v838
    %v1221 = vunpack.c.h.b16 %v838
    %v1222 = vunpack.c.l.b16 %v839
    %v1223 = vunpack.c.h.b16 %v839
    %v1224 = vunpack.c.l.b16 %v840
    %v1225 = vunpack.c.h.b16 %v840
    %v1226 = vunpack.c.l.b16 %v841
    %v1227 = vunpack.c.h.b16 %v841
    %v1228 = vunpack.c.l.b16 %v842
    %v1229 = vunpack.c.h.b16 %v842
    %v1230 = vunpack.c.l.b16 %v843
    %v1231 = vunpack.c.h.b16 %v843
    %v1232 = vunpack.c.l.b16 %v844
    %v1233 = vunpack.c.h.b16 %v844
    %v1234 = vunpack.c.l.b16 %v845
    %v1235 = vunpack.c.h.b16 %v845
    %v1236 = vunpack.c.l.b16 %v846
    %v1237 = vunpack.c.h.b16 %v846
    %v1238 = vunpack.c.l.b16 %v847
    %v1239 = vunpack.c.h.b16 %v847
    %v1240 = vunpack.c.l.b16 %v848
    %v1241 = vunpack.c.h.b16 %v848
    %v1242 = vunpack.c.l.b16 %v849
    %v1243 = vunpack.c.h.b16 %v849
    %v1244 = vunpack.c.l.b16 %v850
    %v1245 = vunpack.c.h.b16 %v850
    %v1246 = vunpack.c.l.b16 %v851
    %v1247 = vunpack.c.h.b16 %v851
    %v1248 = vunpack.c.l.b16 %v852
    %v1249 = vunpack.c.h.b16 %v852
    %v1250 = vunpack.c.l.b16 %v853
    %v1251 = vunpack.c.h.b16 %v853
    %v1252 = vunpack.c.l.b16 %v854
    %v1253 = vunpack.c.h.b16 %v854
    %v1254 = vunpack.c.l.b16 %v855
    %v1255 = vunpack.c.h.b16 %v855
    %v1256 = vunpack.c.l.b16 %v856
    %v1257 = vunpack.c.h.b16 %v856
    %v1258 = vpack.c.b16 %v1196, %v1194
    %v1259 = vpack.c.b16 %v1197, %v1195
    %v1260 = vpack.c.b16 %v1200, %v1198
    %v1261 = vpack.c.b16 %v1201, %v1199
    %v1262 = vpack.c.b16 %v1204, %v1202
    %v1263 = vpack.c.b16 %v1205, %v1203
    %v1264 = vpack.c.b16 %v1208, %v1206
    %v1265 = vpack.c.b16 %v1209, %v1207
    %v1266 = vpack.c.b16 %v1212, %v1210
    %v1267 = vpack.c.b16 %v1213, %v1211
    %v1268 = vpack.c.b16 %v1216, %v1214
    %v1269 = vpack.c.b16 %v1217, %v1215
    %v1270 = vpack.c.b16 %v1220, %v1218
    %v1271 = vpack.c.b16 %v1221, %v1219
    %v1272 = vpack.c.b16 %v1224, %v1222
    %v1273 = vpack.c.b16 %v1225, %v1223
    %v1274 = vpack.c.b16 %v1228, %v1226
    %v1275 = vpack.c.b16 %v1229, %v1227
    %v1276 = vpack.c.b16 %v1232, %v1230
    %v1277 = vpack.c.b16 %v1233, %v1231
    %v1278 = vpack.c.b16 %v1236, %v1234
    %v1279 = vpack.c.b16 %v1237, %v1235
    %v1280 = vpack.c.b16 %v1240, %v1238
    %v1281 = vpack.c.b16 %v1241, %v1239
    %v1282 = vpack.c.b16 %v1244, %v1242
    %v1283 = vpack.c.b16 %v1245, %v1243
    %v1284 = vpack.c.b16 %v1248, %v1246
    %v1285 = vpack.c.b16 %v1249, %v1247
    %v1286 = vpack.c.b16 %v1252, %v1250
    %v1287 = vpack.c.b16 %v1253, %v1251
    %v1288 = vpack.c.b16 %v1256, %v1254
    %v1289 = vpack.c.b16 %v1257, %v1255
    %1322 = vmatprep.subr.bf16.mxu0 %v1259
    %1323 = vmatpush1.bf16.msra.mxu0 %v1258
    %1324 = vmatprep.subr.bf16.mxu0 %v1261
    %1325 = vmatpush1.bf16.msra.mxu0 %v1260
    %1326 = vmatprep.subr.bf16.mxu0 %v1263
    %1327 = vmatpush1.bf16.msra.mxu0 %v1262
    %1328 = vmatprep.subr.bf16.mxu0 %v1265
    %1329 = vmatpush1.bf16.msra.mxu0 %v1264
    %1330 = vmatprep.subr.bf16.mxu0 %v1267
    %1331 = vmatpush1.bf16.msra.mxu0 %v1266
    %1332 = vmatprep.subr.bf16.mxu0 %v1269
    %1333 = vmatpush1.bf16.msra.mxu0 %v1268
    %1334 = vmatprep.subr.bf16.mxu0 %v1271
    %1335 = vmatpush1.bf16.msra.mxu0 %v1270
    %1336 = vmatprep.subr.bf16.mxu0 %v1273
    %1337 = vmatpush1.bf16.msra.mxu0 %v1272
    %1338 = vmatprep.subr.bf16.mxu0 %v1275
    %1339 = vmatpush1.bf16.msra.mxu0 %v1274
    %1340 = vmatprep.subr.bf16.mxu0 %v1277
    %1341 = vmatpush1.bf16.msra.mxu0 %v1276
    %1342 = vmatprep.subr.bf16.mxu0 %v1279
    %1343 = vmatpush1.bf16.msra.mxu0 %v1278
    %1344 = vmatprep.subr.bf16.mxu0 %v1281
    %1345 = vmatpush1.bf16.msra.mxu0 %v1280
    %1346 = vmatprep.subr.bf16.mxu0 %v1283
    %1347 = vmatpush1.bf16.msra.mxu0 %v1282
    %1348 = vmatprep.subr.bf16.mxu0 %v1285
    %1349 = vmatpush1.bf16.msra.mxu0 %v1284
    %1350 = vmatprep.subr.bf16.mxu0 %v1287
    %1351 = vmatpush1.bf16.msra.mxu0 %v1286
    %1352 = vmatprep.subr.bf16.mxu0 %v1289
    %1353 = vmatpush1.bf16.msra.mxu0 %v1288
    %1354 = vmatprep.mubr.bf16.mxu0 %v817
    %1355 = vmatmul.mubr.bf16.gmra.mrb[0].mxu0 %v816
    %v1356 = vpop.f32.mrb[0].mxu0
    %v1357 = vadd.f32 %v1124, %v1356
    %v1358 = vpop.f32.mrb[0].mxu0
    %v1359 = vadd.f32 %v1126, %v1358
    %v1360 = vpop.f32.mrb[0].mxu0
    %v1361 = vadd.f32 %v1128, %v1360
    %v1362 = vpop.f32.mrb[0].mxu0
    %v1363 = vadd.f32 %v1130, %v1362
    %1364 = vmatprep.mubr.bf16.mxu0 %v819
    %1365 = vmatmul.mubr.bf16.gmra.mrb[0].mxu0 %v818
    %v1366 = vpop.f32.mrb[0].mxu0
    %v1367 = vadd.f32 %v1134, %v1366
    %v1368 = vpop.f32.mrb[0].mxu0
    %v1369 = vadd.f32 %v1136, %v1368
    %v1370 = vpop.f32.mrb[0].mxu0
    %v1371 = vadd.f32 %v1138, %v1370
    %v1372 = vpop.f32.mrb[0].mxu0
    %v1373 = vadd.f32 %v1140, %v1372
    %1374 = vmatprep.mubr.bf16.mxu0 %v821
    %1375 = vmatmul.mubr.bf16.gmra.mrb[0].mxu0 %v820
    %v1376 = vpop.f32.mrb[0].mxu0
    %v1377 = vadd.f32 %v1144, %v1376
    %v1378 = vpop.f32.mrb[0].mxu0
    %v1379 = vadd.f32 %v1146, %v1378
    %v1380 = vpop.f32.mrb[0].mxu0
    %v1381 = vadd.f32 %v1148, %v1380
    %v1382 = vpop.f32.mrb[0].mxu0
    %v1383 = vadd.f32 %v1150, %v1382
    %1384 = vmatprep.mubr.bf16.mxu0 %v823
    %1385 = vmatmul.mubr.bf16.gmra.mrb[0].mxu0 %v822
    %v1386 = vpop.f32.mrb[0].mxu0
    %v1387 = vadd.f32 %v1154, %v1386
    %v1388 = vpop.f32.mrb[0].mxu0
    %v1389 = vadd.f32 %v1156, %v1388
    %v1390 = vpop.f32.mrb[0].mxu0
    %v1391 = vadd.f32 %v1158, %v1390
    %v1392 = vpop.f32.mrb[0].mxu0
    %v1393 = vadd.f32 %v1160, %v1392
    %1394 = vdwg.mxu0
    %v1395 = vrot.slane %v800, 1
    %v1396 = vrot.slane %v801, 1
    %v1397 = vrot.slane %v802, 1
    %v1398 = vrot.slane %v803, 1
    %v1399 = vrot.slane %v804, 1
    %v1400 = vrot.slane %v805, 1
    %v1401 = vrot.slane %v806, 1
    %v1402 = vrot.slane %v807, 1
    %v1403 = vrot.slane %v808, 1
    %v1404 = vrot.slane %v809, 1
    %v1405 = vrot.slane %v810, 1
    %v1406 = vrot.slane %v811, 1
    %v1407 = vrot.slane %v812, 1
    %v1408 = vrot.slane %v813, 1
    %v1409 = vrot.slane %v814, 1
    %v1410 = vrot.slane %v815, 1
    %v1411 = vsel %vm573, %v1395, 0.0
    %v1412 = vsel %vm573, %v1396, 0.0
    %v1413 = vsel %vm573, %v1397, 0.0
    %v1414 = vsel %vm573, %v1398, 0.0
    %v1415 = vsel %vm573, %v1399, 0.0
    %v1416 = vsel %vm573, %v1400, 0.0
    %v1417 = vsel %vm573, %v1401, 0.0
    %v1418 = vsel %vm573, %v1402, 0.0
    %v1419 = vsel %vm573, %v1403, 0.0
    %v1420 = vsel %vm573, %v1404, 0.0
    %v1421 = vsel %vm573, %v1405, 0.0
    %v1422 = vsel %vm573, %v1406, 0.0
    %v1423 = vsel %vm573, %v1407, 0.0
    %v1424 = vsel %vm573, %v1408, 0.0
    %v1425 = vsel %vm573, %v1409, 0.0
    %v1426 = vsel %vm573, %v1410, 0.0
    %v1427 = vpack.c.bf16 %v1413, %v1411
    %v1428 = vpack.c.bf16 %v1414, %v1412
    %v1429 = vpack.c.bf16 %v1417, %v1415
    %v1430 = vpack.c.bf16 %v1418, %v1416
    %v1431 = vpack.c.bf16 %v1421, %v1419
    %v1432 = vpack.c.bf16 %v1422, %v1420
    %v1433 = vpack.c.bf16 %v1425, %v1423
    %v1434 = vpack.c.bf16 %v1426, %v1424
    %s1435 = scalar_lea.vmem [#allocation7], 512
    %v1436 = vld [vmem:[%s1435] sm:$0xff]
    %v1437 = vld [vmem:[%s1435 + $0x8] sm:$0xff]
    %v1438 = vld [vmem:[%s1435 + $0x10] sm:$0xff]
    %v1439 = vld [vmem:[%s1435 + $0x18] sm:$0xff]
    %v1440 = vld [vmem:[%s1435 + $0x20] sm:$0xff]
    %v1441 = vld [vmem:[%s1435 + $0x28] sm:$0xff]
    %v1442 = vld [vmem:[%s1435 + $0x30] sm:$0xff]
    %v1443 = vld [vmem:[%s1435 + $0x38] sm:$0xff]
    %v1444 = vld [vmem:[%s1435 + $0x40] sm:$0xff]
    %v1445 = vld [vmem:[%s1435 + $0x48] sm:$0xff]
    %v1446 = vld [vmem:[%s1435 + $0x50] sm:$0xff]
    %v1447 = vld [vmem:[%s1435 + $0x58] sm:$0xff]
    %v1448 = vld [vmem:[%s1435 + $0x60] sm:$0xff]
    %v1449 = vld [vmem:[%s1435 + $0x68] sm:$0xff]
    %v1450 = vld [vmem:[%s1435 + $0x70] sm:$0xff]
    %v1451 = vld [vmem:[%s1435 + $0x78] sm:$0xff]
    %v1452 = vld [vmem:[%s1435 + $0x80] sm:$0xff]
    %v1453 = vld [vmem:[%s1435 + $0x88] sm:$0xff]
    %v1454 = vld [vmem:[%s1435 + $0x90] sm:$0xff]
    %v1455 = vld [vmem:[%s1435 + $0x98] sm:$0xff]
    %v1456 = vld [vmem:[%s1435 + $0xa0] sm:$0xff]
    %v1457 = vld [vmem:[%s1435 + $0xa8] sm:$0xff]
    %v1458 = vld [vmem:[%s1435 + $0xb0] sm:$0xff]
    %v1459 = vld [vmem:[%s1435 + $0xb8] sm:$0xff]
    %v1460 = vld [vmem:[%s1435 + $0xc0] sm:$0xff]
    %v1461 = vld [vmem:[%s1435 + $0xc8] sm:$0xff]
    %v1462 = vld [vmem:[%s1435 + $0xd0] sm:$0xff]
    %v1463 = vld [vmem:[%s1435 + $0xd8] sm:$0xff]
    %v1464 = vld [vmem:[%s1435 + $0xe0] sm:$0xff]
    %v1465 = vld [vmem:[%s1435 + $0xe8] sm:$0xff]
    %v1466 = vld [vmem:[%s1435 + $0xf0] sm:$0xff]
    %v1467 = vld [vmem:[%s1435 + $0xf8] sm:$0xff]
    %v1500 = vunpack.c.l.b16 %v1436
    %v1501 = vunpack.c.h.b16 %v1436
    %v1502 = vunpack.c.l.b16 %v1437
    %v1503 = vunpack.c.h.b16 %v1437
    %v1504 = vunpack.c.l.b16 %v1438
    %v1505 = vunpack.c.h.b16 %v1438
    %v1506 = vunpack.c.l.b16 %v1439
    %v1507 = vunpack.c.h.b16 %v1439
    %v1508 = vunpack.c.l.b16 %v1440
    %v1509 = vunpack.c.h.b16 %v1440
    %v1510 = vunpack.c.l.b16 %v1441
    %v1511 = vunpack.c.h.b16 %v1441
    %v1512 = vunpack.c.l.b16 %v1442
    %v1513 = vunpack.c.h.b16 %v1442
    %v1514 = vunpack.c.l.b16 %v1443
    %v1515 = vunpack.c.h.b16 %v1443
    %v1516 = vunpack.c.l.b16 %v1444
    %v1517 = vunpack.c.h.b16 %v1444
    %v1518 = vunpack.c.l.b16 %v1445
    %v1519 = vunpack.c.h.b16 %v1445
    %v1520 = vunpack.c.l.b16 %v1446
    %v1521 = vunpack.c.h.b16 %v1446
    %v1522 = vunpack.c.l.b16 %v1447
    %v1523 = vunpack.c.h.b16 %v1447
    %v1524 = vunpack.c.l.b16 %v1448
    %v1525 = vunpack.c.h.b16 %v1448
    %v1526 = vunpack.c.l.b16 %v1449
    %v1527 = vunpack.c.h.b16 %v1449
    %v1528 = vunpack.c.l.b16 %v1450
    %v1529 = vunpack.c.h.b16 %v1450
    %v1530 = vunpack.c.l.b16 %v1451
    %v1531 = vunpack.c.h.b16 %v1451
    %v1532 = vunpack.c.l.b16 %v1452
    %v1533 = vunpack.c.h.b16 %v1452
    %v1534 = vunpack.c.l.b16 %v1453
    %v1535 = vunpack.c.h.b16 %v1453
    %v1536 = vunpack.c.l.b16 %v1454
    %v1537 = vunpack.c.h.b16 %v1454
    %v1538 = vunpack.c.l.b16 %v1455
    %v1539 = vunpack.c.h.b16 %v1455
    %v1540 = vunpack.c.l.b16 %v1456
    %v1541 = vunpack.c.h.b16 %v1456
    %v1542 = vunpack.c.l.b16 %v1457
    %v1543 = vunpack.c.h.b16 %v1457
    %v1544 = vunpack.c.l.b16 %v1458
    %v1545 = vunpack.c.h.b16 %v1458
    %v1546 = vunpack.c.l.b16 %v1459
    %v1547 = vunpack.c.h.b16 %v1459
    %v1548 = vunpack.c.l.b16 %v1460
    %v1549 = vunpack.c.h.b16 %v1460
    %v1550 = vunpack.c.l.b16 %v1461
    %v1551 = vunpack.c.h.b16 %v1461
    %v1552 = vunpack.c.l.b16 %v1462
    %v1553 = vunpack.c.h.b16 %v1462
    %v1554 = vunpack.c.l.b16 %v1463
    %v1555 = vunpack.c.h.b16 %v1463
    %v1556 = vunpack.c.l.b16 %v1464
    %v1557 = vunpack.c.h.b16 %v1464
    %v1558 = vunpack.c.l.b16 %v1465
    %v1559 = vunpack.c.h.b16 %v1465
    %v1560 = vunpack.c.l.b16 %v1466
    %v1561 = vunpack.c.h.b16 %v1466
    %v1562 = vunpack.c.l.b16 %v1467
    %v1563 = vunpack.c.h.b16 %v1467
    %v1564 = vpack.c.b16 %v1502, %v1500
    %v1565 = vpack.c.b16 %v1503, %v1501
    %v1566 = vpack.c.b16 %v1506, %v1504
    %v1567 = vpack.c.b16 %v1507, %v1505
    %v1568 = vpack.c.b16 %v1510, %v1508
    %v1569 = vpack.c.b16 %v1511, %v1509
    %v1570 = vpack.c.b16 %v1514, %v1512
    %v1571 = vpack.c.b16 %v1515, %v1513
    %v1572 = vpack.c.b16 %v1518, %v1516
    %v1573 = vpack.c.b16 %v1519, %v1517
    %v1574 = vpack.c.b16 %v1522, %v1520
    %v1575 = vpack.c.b16 %v1523, %v1521
    %v1576 = vpack.c.b16 %v1526, %v1524
    %v1577 = vpack.c.b16 %v1527, %v1525
    %v1578 = vpack.c.b16 %v1530, %v1528
    %v1579 = vpack.c.b16 %v1531, %v1529
    %v1580 = vpack.c.b16 %v1534, %v1532
    %v1581 = vpack.c.b16 %v1535, %v1533
    %v1582 = vpack.c.b16 %v1538, %v1536
    %v1583 = vpack.c.b16 %v1539, %v1537
    %v1584 = vpack.c.b16 %v1542, %v1540
    %v1585 = vpack.c.b16 %v1543, %v1541
    %v1586 = vpack.c.b16 %v1546, %v1544
    %v1587 = vpack.c.b16 %v1547, %v1545
    %v1588 = vpack.c.b16 %v1550, %v1548
    %v1589 = vpack.c.b16 %v1551, %v1549
    %v1590 = vpack.c.b16 %v1554, %v1552
    %v1591 = vpack.c.b16 %v1555, %v1553
    %v1592 = vpack.c.b16 %v1558, %v1556
    %v1593 = vpack.c.b16 %v1559, %v1557
    %v1594 = vpack.c.b16 %v1562, %v1560
    %v1595 = vpack.c.b16 %v1563, %v1561
    %1628 = vmatprep.subr.bf16.mxu0 %v1565
    %1629 = vmatpush1.bf16.msra.mxu0 %v1564
    %1630 = vmatprep.subr.bf16.mxu0 %v1567
    %1631 = vmatpush1.bf16.msra.mxu0 %v1566
    %1632 = vmatprep.subr.bf16.mxu0 %v1569
    %1633 = vmatpush1.bf16.msra.mxu0 %v1568
    %1634 = vmatprep.subr.bf16.mxu0 %v1571
    %1635 = vmatpush1.bf16.msra.mxu0 %v1570
    %1636 = vmatprep.subr.bf16.mxu0 %v1573
    %1637 = vmatpush1.bf16.msra.mxu0 %v1572
    %1638 = vmatprep.subr.bf16.mxu0 %v1575
    %1639 = vmatpush1.bf16.msra.mxu0 %v1574
    %1640 = vmatprep.subr.bf16.mxu0 %v1577
    %1641 = vmatpush1.bf16.msra.mxu0 %v1576
    %1642 = vmatprep.subr.bf16.mxu0 %v1579
    %1643 = vmatpush1.bf16.msra.mxu0 %v1578
    %1644 = vmatprep.subr.bf16.mxu0 %v1581
    %1645 = vmatpush1.bf16.msra.mxu0 %v1580
    %1646 = vmatprep.subr.bf16.mxu0 %v1583
    %1647 = vmatpush1.bf16.msra.mxu0 %v1582
    %1648 = vmatprep.subr.bf16.mxu0 %v1585
    %1649 = vmatpush1.bf16.msra.mxu0 %v1584
    %1650 = vmatprep.subr.bf16.mxu0 %v1587
    %1651 = vmatpush1.bf16.msra.mxu0 %v1586
    %1652 = vmatprep.subr.bf16.mxu0 %v1589
    %1653 = vmatpush1.bf16.msra.mxu0 %v1588
    %1654 = vmatprep.subr.bf16.mxu0 %v1591
    %1655 = vmatpush1.bf16.msra.mxu0 %v1590
    %1656 = vmatprep.subr.bf16.mxu0 %v1593
    %1657 = vmatpush1.bf16.msra.mxu0 %v1592
    %1658 = vmatprep.subr.bf16.mxu0 %v1595
    %1659 = vmatpush1.bf16.msra.mxu0 %v1594
    %1660 = vmatprep.mubr.bf16.mxu0 %v1428
    %1661 = vmatmul.mubr.bf16.gmra.mrb[0].mxu0 %v1427
    %v1662 = vpop.f32.mrb[0].mxu0
    %v1663 = vadd.f32 0.0, %v1662
    %v1664 = vpop.f32.mrb[0].mxu0
    %v1665 = vadd.f32 0.0, %v1664
    %v1666 = vpop.f32.mrb[0].mxu0
    %v1667 = vadd.f32 0.0, %v1666
    %v1668 = vpop.f32.mrb[0].mxu0
    %v1669 = vadd.f32 0.0, %v1668
    %1670 = vmatprep.mubr.bf16.mxu0 %v1430
    %1671 = vmatmul.mubr.bf16.gmra.mrb[0].mxu0 %v1429
    %v1672 = vpop.f32.mrb[0].mxu0
    %v1673 = vadd.f32 0.0, %v1672
    %v1674 = vpop.f32.mrb[0].mxu0
    %v1675 = vadd.f32 0.0, %v1674
    %v1676 = vpop.f32.mrb[0].mxu0
    %v1677 = vadd.f32 0.0, %v1676
    %v1678 = vpop.f32.mrb[0].mxu0
    %v1679 = vadd.f32 0.0, %v1678
    %1680 = vmatprep.mubr.bf16.mxu0 %v1432
    %1681 = vmatmul.mubr.bf16.gmra.mrb[0].mxu0 %v1431
    %v1682 = vpop.f32.mrb[0].mxu0
    %v1683 = vadd.f32 0.0, %v1682
    %v1684 = vpop.f32.mrb[0].mxu0
    %v1685 = vadd.f32 0.0, %v1684
    %v1686 = vpop.f32.mrb[0].mxu0
    %v1687 = vadd.f32 0.0, %v1686
    %v1688 = vpop.f32.mrb[0].mxu0
    %v1689 = vadd.f32 0.0, %v1688
    %1690 = vmatprep.mubr.bf16.mxu0 %v1434
    %1691 = vmatmul.mubr.bf16.gmra.mrb[0].mxu0 %v1433
    %v1692 = vpop.f32.mrb[0].mxu0
    %v1693 = vadd.f32 0.0, %v1692
    %v1694 = vpop.f32.mrb[0].mxu0
    %v1695 = vadd.f32 0.0, %v1694
    %v1696 = vpop.f32.mrb[0].mxu0
    %v1697 = vadd.f32 0.0, %v1696
    %v1698 = vpop.f32.mrb[0].mxu0
    %v1699 = vadd.f32 0.0, %v1698
    %1700 = vdwg.mxu0
    %v1701 = vadd.f32 %v1357, %v1663
    %v1702 = vadd.f32 %v1359, %v1665
    %v1703 = vadd.f32 %v1361, %v1667
    %v1704 = vadd.f32 %v1363, %v1669
    %v1705 = vadd.f32 %v1367, %v1673
    %v1706 = vadd.f32 %v1369, %v1675
    %v1707 = vadd.f32 %v1371, %v1677
    %v1708 = vadd.f32 %v1373, %v1679
    %v1709 = vadd.f32 %v1377, %v1683
    %v1710 = vadd.f32 %v1379, %v1685
    %v1711 = vadd.f32 %v1381, %v1687
    %v1712 = vadd.f32 %v1383, %v1689
    %v1713 = vadd.f32 %v1387, %v1693
    %v1714 = vadd.f32 %v1389, %v1695
    %v1715 = vadd.f32 %v1391, %v1697
    %v1716 = vadd.f32 %v1393, %v1699
    %v1717 = vld [vmem:[#allocation13] sm:$0x3]
    %v1719 = vlaneseq
    %v1720 = vshrl.u32 %v1719, 7
    %v1721 = vsub.s32 0, %v1720
    %v1722 = vrot.slane %v1717, %v1721
    %v1723 = vlaneseq
    %v1724 = vshrl.u32 %v1723, 7
    %v1725 = vsub.s32 1, %v1724
    %v1726 = vrot.slane %v1717, %v1725
    %v1729 = vadd.f32 %v1701, %v1722
    %v1730 = vadd.f32 %v1702, %v1726
    %v1731 = vadd.f32 %v1703, %v1722
    %v1732 = vadd.f32 %v1704, %v1726
    %v1733 = vadd.f32 %v1705, %v1722
    %v1734 = vadd.f32 %v1706, %v1726
    %v1735 = vadd.f32 %v1707, %v1722
    %v1736 = vadd.f32 %v1708, %v1726
    %v1737 = vadd.f32 %v1709, %v1722
    %v1738 = vadd.f32 %v1710, %v1726
    %v1739 = vadd.f32 %v1711, %v1722
    %v1740 = vadd.f32 %v1712, %v1726
    %v1741 = vadd.f32 %v1713, %v1722
    %v1742 = vadd.f32 %v1714, %v1726
    %v1743 = vadd.f32 %v1715, %v1722
    %v1744 = vadd.f32 %v1716, %v1726
    %v1745 = vmax.f32 %v1729, 0.0
    %v1746 = vmax.f32 %v1730, 0.0
    %v1747 = vmax.f32 %v1731, 0.0
    %v1748 = vmax.f32 %v1732, 0.0
    %v1749 = vmax.f32 %v1733, 0.0
    %v1750 = vmax.f32 %v1734, 0.0
    %v1751 = vmax.f32 %v1735, 0.0
    %v1752 = vmax.f32 %v1736, 0.0
    %v1753 = vmax.f32 %v1737, 0.0
    %v1754 = vmax.f32 %v1738, 0.0
    %v1755 = vmax.f32 %v1739, 0.0
    %v1756 = vmax.f32 %v1740, 0.0
    %v1757 = vmax.f32 %v1741, 0.0
    %v1758 = vmax.f32 %v1742, 0.0
    %v1759 = vmax.f32 %v1743, 0.0
    %v1760 = vmax.f32 %v1744, 0.0
    %v1761 = vpack.c.bf16 %v1747, %v1745
    %v1762 = vpack.c.bf16 %v1748, %v1746
    %v1763 = vpack.c.bf16 %v1751, %v1749
    %v1764 = vpack.c.bf16 %v1752, %v1750
    %v1765 = vpack.c.bf16 %v1755, %v1753
    %v1766 = vpack.c.bf16 %v1756, %v1754
    %v1767 = vpack.c.bf16 %v1759, %v1757
    %v1768 = vpack.c.bf16 %v1760, %v1758
    %s1769 = scalar_lea.vmem [#allocation8], 256
    %v1770 = vld [vmem:[%s1769] sm:$0xff]
    %v1771 = vld [vmem:[%s1769 + $0x8] sm:$0xff]
    %v1772 = vld [vmem:[%s1769 + $0x10] sm:$0xff]
    %v1773 = vld [vmem:[%s1769 + $0x18] sm:$0xff]
    %v1774 = vld [vmem:[%s1769 + $0x20] sm:$0xff]
    %v1775 = vld [vmem:[%s1769 + $0x28] sm:$0xff]
    %v1776 = vld [vmem:[%s1769 + $0x30] sm:$0xff]
    %v1777 = vld [vmem:[%s1769 + $0x38] sm:$0xff]
    %v1778 = vld [vmem:[%s1769 + $0x40] sm:$0xff]
    %v1779 = vld [vmem:[%s1769 + $0x48] sm:$0xff]
    %v1780 = vld [vmem:[%s1769 + $0x50] sm:$0xff]
    %v1781 = vld [vmem:[%s1769 + $0x58] sm:$0xff]
    %v1782 = vld [vmem:[%s1769 + $0x60] sm:$0xff]
    %v1783 = vld [vmem:[%s1769 + $0x68] sm:$0xff]
    %v1784 = vld [vmem:[%s1769 + $0x70] sm:$0xff]
    %v1785 = vld [vmem:[%s1769 + $0x78] sm:$0xff]
    %v1786 = vld [vmem:[%s1769 + $0x80] sm:$0xff]
    %v1787 = vld [vmem:[%s1769 + $0x88] sm:$0xff]
    %v1788 = vld [vmem:[%s1769 + $0x90] sm:$0xff]
    %v1789 = vld [vmem:[%s1769 + $0x98] sm:$0xff]
    %v1790 = vld [vmem:[%s1769 + $0xa0] sm:$0xff]
    %v1791 = vld [vmem:[%s1769 + $0xa8] sm:$0xff]
    %v1792 = vld [vmem:[%s1769 + $0xb0] sm:$0xff]
    %v1793 = vld [vmem:[%s1769 + $0xb8] sm:$0xff]
    %v1794 = vld [vmem:[%s1769 + $0xc0] sm:$0xff]
    %v1795 = vld [vmem:[%s1769 + $0xc8] sm:$0xff]
    %v1796 = vld [vmem:[%s1769 + $0xd0] sm:$0xff]
    %v1797 = vld [vmem:[%s1769 + $0xd8] sm:$0xff]
    %v1798 = vld [vmem:[%s1769 + $0xe0] sm:$0xff]
    %v1799 = vld [vmem:[%s1769 + $0xe8] sm:$0xff]
    %v1800 = vld [vmem:[%s1769 + $0xf0] sm:$0xff]
    %v1801 = vld [vmem:[%s1769 + $0xf8] sm:$0xff]
    %v1802 = vrot.slane %v1745, 7
    %v1803 = vrot.slane %v1746, 7
    %v1804 = vrot.slane %v1747, 7
    %v1805 = vrot.slane %v1748, 7
    %v1806 = vrot.slane %v1749, 7
    %v1807 = vrot.slane %v1750, 7
    %v1808 = vrot.slane %v1751, 7
    %v1809 = vrot.slane %v1752, 7
    %v1810 = vrot.slane %v1753, 7
    %v1811 = vrot.slane %v1754, 7
    %v1812 = vrot.slane %v1755, 7
    %v1813 = vrot.slane %v1756, 7
    %v1814 = vrot.slane %v1757, 7
    %v1815 = vrot.slane %v1758, 7
    %v1816 = vrot.slane %v1759, 7
    %v1817 = vrot.slane %v1760, 7
    %v1818 = vsel %vm229, %v1802, 0.0
    %v1819 = vsel %vm229, %v1803, 0.0
    %v1820 = vsel %vm229, %v1804, 0.0
    %v1821 = vsel %vm229, %v1805, 0.0
    %v1822 = vsel %vm229, %v1806, 0.0
    %v1823 = vsel %vm229, %v1807, 0.0
    %v1824 = vsel %vm229, %v1808, 0.0
    %v1825 = vsel %vm229, %v1809, 0.0
    %v1826 = vsel %vm229, %v1810, 0.0
    %v1827 = vsel %vm229, %v1811, 0.0
    %v1828 = vsel %vm229, %v1812, 0.0
    %v1829 = vsel %vm229, %v1813, 0.0
    %v1830 = vsel %vm229, %v1814, 0.0
    %v1831 = vsel %vm229, %v1815, 0.0
    %v1832 = vsel %vm229, %v1816, 0.0
    %v1833 = vsel %vm229, %v1817, 0.0
    %v1834 = vpack.c.bf16 %v1820, %v1818
    %v1835 = vpack.c.bf16 %v1821, %v1819
    %v1836 = vpack.c.bf16 %v1824, %v1822
    %v1837 = vpack.c.bf16 %v1825, %v1823
    %v1838 = vpack.c.bf16 %v1828, %v1826
    %v1839 = vpack.c.bf16 %v1829, %v1827
    %v1840 = vpack.c.bf16 %v1832, %v1830
    %v1841 = vpack.c.bf16 %v1833, %v1831
    %v1842 = vld [vmem:[#allocation8] sm:$0xff]
    %v1843 = vld [vmem:[#allocation8 + $0x8] sm:$0xff]
    %v1844 = vld [vmem:[#allocation8 + $0x10] sm:$0xff]
    %v1845 = vld [vmem:[#allocation8 + $0x18] sm:$0xff]
    %v1846 = vld [vmem:[#allocation8 + $0x20] sm:$0xff]
    %v1847 = vld [vmem:[#allocation8 + $0x28] sm:$0xff]
    %v1848 = vld [vmem:[#allocation8 + $0x30] sm:$0xff]
    %v1849 = vld [vmem:[#allocation8 + $0x38] sm:$0xff]
    %v1850 = vld [vmem:[#allocation8 + $0x40] sm:$0xff]
    %v1851 = vld [vmem:[#allocation8 + $0x48] sm:$0xff]
    %v1852 = vld [vmem:[#allocation8 + $0x50] sm:$0xff]
    %v1853 = vld [vmem:[#allocation8 + $0x58] sm:$0xff]
    %v1854 = vld [vmem:[#allocation8 + $0x60] sm:$0xff]
    %v1855 = vld [vmem:[#allocation8 + $0x68] sm:$0xff]
    %v1856 = vld [vmem:[#allocation8 + $0x70] sm:$0xff]
    %v1857 = vld [vmem:[#allocation8 + $0x78] sm:$0xff]
    %v1858 = vld [vmem:[#allocation8 + $0x80] sm:$0xff]
    %v1859 = vld [vmem:[#allocation8 + $0x88] sm:$0xff]
    %v1860 = vld [vmem:[#allocation8 + $0x90] sm:$0xff]
    %v1861 = vld [vmem:[#allocation8 + $0x98] sm:$0xff]
    %v1862 = vld [vmem:[#allocation8 + $0xa0] sm:$0xff]
    %v1863 = vld [vmem:[#allocation8 + $0xa8] sm:$0xff]
    %v1864 = vld [vmem:[#allocation8 + $0xb0] sm:$0xff]
    %v1865 = vld [vmem:[#allocation8 + $0xb8] sm:$0xff]
    %v1866 = vld [vmem:[#allocation8 + $0xc0] sm:$0xff]
    %v1867 = vld [vmem:[#allocation8 + $0xc8] sm:$0xff]
    %v1868 = vld [vmem:[#allocation8 + $0xd0] sm:$0xff]
    %v1869 = vld [vmem:[#allocation8 + $0xd8] sm:$0xff]
    %v1870 = vld [vmem:[#allocation8 + $0xe0] sm:$0xff]
    %v1871 = vld [vmem:[#allocation8 + $0xe8] sm:$0xff]
    %v1872 = vld [vmem:[#allocation8 + $0xf0] sm:$0xff]
    %v1873 = vld [vmem:[#allocation8 + $0xf8] sm:$0xff]
    %v1906 = vunpack.c.l.b16 %v1842
    %v1907 = vunpack.c.h.b16 %v1842
    %v1908 = vunpack.c.l.b16 %v1843
    %v1909 = vunpack.c.h.b16 %v1843
    %v1910 = vunpack.c.l.b16 %v1844
    %v1911 = vunpack.c.h.b16 %v1844
    %v1912 = vunpack.c.l.b16 %v1845
    %v1913 = vunpack.c.h.b16 %v1845
    %v1914 = vunpack.c.l.b16 %v1846
    %v1915 = vunpack.c.h.b16 %v1846
    %v1916 = vunpack.c.l.b16 %v1847
    %v1917 = vunpack.c.h.b16 %v1847
    %v1918 = vunpack.c.l.b16 %v1848
    %v1919 = vunpack.c.h.b16 %v1848
    %v1920 = vunpack.c.l.b16 %v1849
    %v1921 = vunpack.c.h.b16 %v1849
    %v1922 = vunpack.c.l.b16 %v1850
    %v1923 = vunpack.c.h.b16 %v1850
    %v1924 = vunpack.c.l.b16 %v1851
    %v1925 = vunpack.c.h.b16 %v1851
    %v1926 = vunpack.c.l.b16 %v1852
    %v1927 = vunpack.c.h.b16 %v1852
    %v1928 = vunpack.c.l.b16 %v1853
    %v1929 = vunpack.c.h.b16 %v1853
    %v1930 = vunpack.c.l.b16 %v1854
    %v1931 = vunpack.c.h.b16 %v1854
    %v1932 = vunpack.c.l.b16 %v1855
    %v1933 = vunpack.c.h.b16 %v1855
    %v1934 = vunpack.c.l.b16 %v1856
    %v1935 = vunpack.c.h.b16 %v1856
    %v1936 = vunpack.c.l.b16 %v1857
    %v1937 = vunpack.c.h.b16 %v1857
    %v1938 = vunpack.c.l.b16 %v1858
    %v1939 = vunpack.c.h.b16 %v1858
    %v1940 = vunpack.c.l.b16 %v1859
    %v1941 = vunpack.c.h.b16 %v1859
    %v1942 = vunpack.c.l.b16 %v1860
    %v1943 = vunpack.c.h.b16 %v1860
    %v1944 = vunpack.c.l.b16 %v1861
    %v1945 = vunpack.c.h.b16 %v1861
    %v1946 = vunpack.c.l.b16 %v1862
    %v1947 = vunpack.c.h.b16 %v1862
    %v1948 = vunpack.c.l.b16 %v1863
    %v1949 = vunpack.c.h.b16 %v1863
    %v1950 = vunpack.c.l.b16 %v1864
    %v1951 = vunpack.c.h.b16 %v1864
    %v1952 = vunpack.c.l.b16 %v1865
    %v1953 = vunpack.c.h.b16 %v1865
    %v1954 = vunpack.c.l.b16 %v1866
    %v1955 = vunpack.c.h.b16 %v1866
    %v1956 = vunpack.c.l.b16 %v1867
    %v1957 = vunpack.c.h.b16 %v1867
    %v1958 = vunpack.c.l.b16 %v1868
    %v1959 = vunpack.c.h.b16 %v1868
    %v1960 = vunpack.c.l.b16 %v1869
    %v1961 = vunpack.c.h.b16 %v1869
    %v1962 = vunpack.c.l.b16 %v1870
    %v1963 = vunpack.c.h.b16 %v1870
    %v1964 = vunpack.c.l.b16 %v1871
    %v1965 = vunpack.c.h.b16 %v1871
    %v1966 = vunpack.c.l.b16 %v1872
    %v1967 = vunpack.c.h.b16 %v1872
    %v1968 = vunpack.c.l.b16 %v1873
    %v1969 = vunpack.c.h.b16 %v1873
    %v1970 = vpack.c.b16 %v1908, %v1906
    %v1971 = vpack.c.b16 %v1909, %v1907
    %v1972 = vpack.c.b16 %v1912, %v1910
    %v1973 = vpack.c.b16 %v1913, %v1911
    %v1974 = vpack.c.b16 %v1916, %v1914
    %v1975 = vpack.c.b16 %v1917, %v1915
    %v1976 = vpack.c.b16 %v1920, %v1918
    %v1977 = vpack.c.b16 %v1921, %v1919
    %v1978 = vpack.c.b16 %v1924, %v1922
    %v1979 = vpack.c.b16 %v1925, %v1923
    %v1980 = vpack.c.b16 %v1928, %v1926
    %v1981 = vpack.c.b16 %v1929, %v1927
    %v1982 = vpack.c.b16 %v1932, %v1930
    %v1983 = vpack.c.b16 %v1933, %v1931
    %v1984 = vpack.c.b16 %v1936, %v1934
    %v1985 = vpack.c.b16 %v1937, %v1935
    %v1986 = vpack.c.b16 %v1940, %v1938
    %v1987 = vpack.c.b16 %v1941, %v1939
    %v1988 = vpack.c.b16 %v1944, %v1942
    %v1989 = vpack.c.b16 %v1945, %v1943
    %v1990 = vpack.c.b16 %v1948, %v1946
    %v1991 = vpack.c.b16 %v1949, %v1947
    %v1992 = vpack.c.b16 %v1952, %v1950
    %v1993 = vpack.c.b16 %v1953, %v1951
    %v1994 = vpack.c.b16 %v1956, %v1954
    %v1995 = vpack.c.b16 %v1957, %v1955
    %v1996 = vpack.c.b16 %v1960, %v1958
    %v1997 = vpack.c.b16 %v1961, %v1959
    %v1998 = vpack.c.b16 %v1964, %v1962
    %v1999 = vpack.c.b16 %v1965, %v1963
    %v2000 = vpack.c.b16 %v1968, %v1966
    %v2001 = vpack.c.b16 %v1969, %v1967
    %2034 = vmatprep.subr.bf16.mxu0 %v1971
    %2035 = vmatpush1.bf16.msra.mxu0 %v1970
    %2036 = vmatprep.subr.bf16.mxu0 %v1973
    %2037 = vmatpush1.bf16.msra.mxu0 %v1972
    %2038 = vmatprep.subr.bf16.mxu0 %v1975
    %2039 = vmatpush1.bf16.msra.mxu0 %v1974
    %2040 = vmatprep.subr.bf16.mxu0 %v1977
    %2041 = vmatpush1.bf16.msra.mxu0 %v1976
    %2042 = vmatprep.subr.bf16.mxu0 %v1979
    %2043 = vmatpush1.bf16.msra.mxu0 %v1978
    %2044 = vmatprep.subr.bf16.mxu0 %v1981
    %2045 = vmatpush1.bf16.msra.mxu0 %v1980
    %2046 = vmatprep.subr.bf16.mxu0 %v1983
    %2047 = vmatpush1.bf16.msra.mxu0 %v1982
    %2048 = vmatprep.subr.bf16.mxu0 %v1985
    %2049 = vmatpush1.bf16.msra.mxu0 %v1984
    %2050 = vmatprep.subr.bf16.mxu0 %v1987
    %2051 = vmatpush1.bf16.msra.mxu0 %v1986
    %2052 = vmatprep.subr.bf16.mxu0 %v1989
    %2053 = vmatpush1.bf16.msra.mxu0 %v1988
    %2054 = vmatprep.subr.bf16.mxu0 %v1991
    %2055 = vmatpush1.bf16.msra.mxu0 %v1990
    %2056 = vmatprep.subr.bf16.mxu0 %v1993
    %2057 = vmatpush1.bf16.msra.mxu0 %v1992
    %2058 = vmatprep.subr.bf16.mxu0 %v1995
    %2059 = vmatpush1.bf16.msra.mxu0 %v1994
    %2060 = vmatprep.subr.bf16.mxu0 %v1997
    %2061 = vmatpush1.bf16.msra.mxu0 %v1996
    %2062 = vmatprep.subr.bf16.mxu0 %v1999
    %2063 = vmatpush1.bf16.msra.mxu0 %v1998
    %2064 = vmatprep.subr.bf16.mxu0 %v2001
    %2065 = vmatpush1.bf16.msra.mxu0 %v2000
    %2066 = vmatprep.mubr.bf16.mxu0 %v1835
    %2067 = vmatmul.mubr.bf16.gmra.mrb[0].mxu0 %v1834
    %v2068 = vpop.f32.mrb[0].mxu0
    %v2069 = vadd.f32 0.0, %v2068
    %v2070 = vpop.f32.mrb[0].mxu0
    %v2071 = vadd.f32 0.0, %v2070
    %v2072 = vpop.f32.mrb[0].mxu0
    %v2073 = vadd.f32 0.0, %v2072
    %v2074 = vpop.f32.mrb[0].mxu0
    %v2075 = vadd.f32 0.0, %v2074
    %2076 = vmatprep.mubr.bf16.mxu0 %v1837
    %2077 = vmatmul.mubr.bf16.gmra.mrb[0].mxu0 %v1836
    %v2078 = vpop.f32.mrb[0].mxu0
    %v2079 = vadd.f32 0.0, %v2078
    %v2080 = vpop.f32.mrb[0].mxu0
    %v2081 = vadd.f32 0.0, %v2080
    %v2082 = vpop.f32.mrb[0].mxu0
    %v2083 = vadd.f32 0.0, %v2082
    %v2084 = vpop.f32.mrb[0].mxu0
    %v2085 = vadd.f32 0.0, %v2084
    %2086 = vmatprep.mubr.bf16.mxu0 %v1839
    %2087 = vmatmul.mubr.bf16.gmra.mrb[0].mxu0 %v1838
    %v2088 = vpop.f32.mrb[0].mxu0
    %v2089 = vadd.f32 0.0, %v2088
    %v2090 = vpop.f32.mrb[0].mxu0
    %v2091 = vadd.f32 0.0, %v2090
    %v2092 = vpop.f32.mrb[0].mxu0
    %v2093 = vadd.f32 0.0, %v2092
    %v2094 = vpop.f32.mrb[0].mxu0
    %v2095 = vadd.f32 0.0, %v2094
    %2096 = vmatprep.mubr.bf16.mxu0 %v1841
    %2097 = vmatmul.mubr.bf16.gmra.mrb[0].mxu0 %v1840
    %v2098 = vpop.f32.mrb[0].mxu0
    %v2099 = vadd.f32 0.0, %v2098
    %v2100 = vpop.f32.mrb[0].mxu0
    %v2101 = vadd.f32 0.0, %v2100
    %v2102 = vpop.f32.mrb[0].mxu0
    %v2103 = vadd.f32 0.0, %v2102
    %v2104 = vpop.f32.mrb[0].mxu0
    %v2105 = vadd.f32 0.0, %v2104
    %2106 = vdwg.mxu0
    %v2139 = vunpack.c.l.b16 %v1770
    %v2140 = vunpack.c.h.b16 %v1770
    %v2141 = vunpack.c.l.b16 %v1771
    %v2142 = vunpack.c.h.b16 %v1771
    %v2143 = vunpack.c.l.b16 %v1772
    %v2144 = vunpack.c.h.b16 %v1772
    %v2145 = vunpack.c.l.b16 %v1773
    %v2146 = vunpack.c.h.b16 %v1773
    %v2147 = vunpack.c.l.b16 %v1774
    %v2148 = vunpack.c.h.b16 %v1774
    %v2149 = vunpack.c.l.b16 %v1775
    %v2150 = vunpack.c.h.b16 %v1775
    %v2151 = vunpack.c.l.b16 %v1776
    %v2152 = vunpack.c.h.b16 %v1776
    %v2153 = vunpack.c.l.b16 %v1777
    %v2154 = vunpack.c.h.b16 %v1777
    %v2155 = vunpack.c.l.b16 %v1778
    %v2156 = vunpack.c.h.b16 %v1778
    %v2157 = vunpack.c.l.b16 %v1779
    %v2158 = vunpack.c.h.b16 %v1779
    %v2159 = vunpack.c.l.b16 %v1780
    %v2160 = vunpack.c.h.b16 %v1780
    %v2161 = vunpack.c.l.b16 %v1781
    %v2162 = vunpack.c.h.b16 %v1781
    %v2163 = vunpack.c.l.b16 %v1782
    %v2164 = vunpack.c.h.b16 %v1782
    %v2165 = vunpack.c.l.b16 %v1783
    %v2166 = vunpack.c.h.b16 %v1783
    %v2167 = vunpack.c.l.b16 %v1784
    %v2168 = vunpack.c.h.b16 %v1784
    %v2169 = vunpack.c.l.b16 %v1785
    %v2170 = vunpack.c.h.b16 %v1785
    %v2171 = vunpack.c.l.b16 %v1786
    %v2172 = vunpack.c.h.b16 %v1786
    %v2173 = vunpack.c.l.b16 %v1787
    %v2174 = vunpack.c.h.b16 %v1787
    %v2175 = vunpack.c.l.b16 %v1788
    %v2176 = vunpack.c.h.b16 %v1788
    %v2177 = vunpack.c.l.b16 %v1789
    %v2178 = vunpack.c.h.b16 %v1789
    %v2179 = vunpack.c.l.b16 %v1790
    %v2180 = vunpack.c.h.b16 %v1790
    %v2181 = vunpack.c.l.b16 %v1791
    %v2182 = vunpack.c.h.b16 %v1791
    %v2183 = vunpack.c.l.b16 %v1792
    %v2184 = vunpack.c.h.b16 %v1792
    %v2185 = vunpack.c.l.b16 %v1793
    %v2186 = vunpack.c.h.b16 %v1793
    %v2187 = vunpack.c.l.b16 %v1794
    %v2188 = vunpack.c.h.b16 %v1794
    %v2189 = vunpack.c.l.b16 %v1795
    %v2190 = vunpack.c.h.b16 %v1795
    %v2191 = vunpack.c.l.b16 %v1796
    %v2192 = vunpack.c.h.b16 %v1796
    %v2193 = vunpack.c.l.b16 %v1797
    %v2194 = vunpack.c.h.b16 %v1797
    %v2195 = vunpack.c.l.b16 %v1798
    %v2196 = vunpack.c.h.b16 %v1798
    %v2197 = vunpack.c.l.b16 %v1799
    %v2198 = vunpack.c.h.b16 %v1799
    %v2199 = vunpack.c.l.b16 %v1800
    %v2200 = vunpack.c.h.b16 %v1800
    %v2201 = vunpack.c.l.b16 %v1801
    %v2202 = vunpack.c.h.b16 %v1801
    %v2203 = vpack.c.b16 %v2141, %v2139
    %v2204 = vpack.c.b16 %v2142, %v2140
    %v2205 = vpack.c.b16 %v2145, %v2143
    %v2206 = vpack.c.b16 %v2146, %v2144
    %v2207 = vpack.c.b16 %v2149, %v2147
    %v2208 = vpack.c.b16 %v2150, %v2148
    %v2209 = vpack.c.b16 %v2153, %v2151
    %v2210 = vpack.c.b16 %v2154, %v2152
    %v2211 = vpack.c.b16 %v2157, %v2155
    %v2212 = vpack.c.b16 %v2158, %v2156
    %v2213 = vpack.c.b16 %v2161, %v2159
    %v2214 = vpack.c.b16 %v2162, %v2160
    %v2215 = vpack.c.b16 %v2165, %v2163
    %v2216 = vpack.c.b16 %v2166, %v2164
    %v2217 = vpack.c.b16 %v2169, %v2167
    %v2218 = vpack.c.b16 %v2170, %v2168
    %v2219 = vpack.c.b16 %v2173, %v2171
    %v2220 = vpack.c.b16 %v2174, %v2172
    %v2221 = vpack.c.b16 %v2177, %v2175
    %v2222 = vpack.c.b16 %v2178, %v2176
    %v2223 = vpack.c.b16 %v2181, %v2179
    %v2224 = vpack.c.b16 %v2182, %v2180
    %v2225 = vpack.c.b16 %v2185, %v2183
    %v2226 = vpack.c.b16 %v2186, %v2184
    %v2227 = vpack.c.b16 %v2189, %v2187
    %v2228 = vpack.c.b16 %v2190, %v2188
    %v2229 = vpack.c.b16 %v2193, %v2191
    %v2230 = vpack.c.b16 %v2194, %v2192
    %v2231 = vpack.c.b16 %v2197, %v2195
    %v2232 = vpack.c.b16 %v2198, %v2196
    %v2233 = vpack.c.b16 %v2201, %v2199
    %v2234 = vpack.c.b16 %v2202, %v2200
    %2267 = vmatprep.subr.bf16.mxu0 %v2204
    %2268 = vmatpush1.bf16.msra.mxu0 %v2203
    %2269 = vmatprep.subr.bf16.mxu0 %v2206
    %2270 = vmatpush1.bf16.msra.mxu0 %v2205
    %2271 = vmatprep.subr.bf16.mxu0 %v2208
    %2272 = vmatpush1.bf16.msra.mxu0 %v2207
    %2273 = vmatprep.subr.bf16.mxu0 %v2210
    %2274 = vmatpush1.bf16.msra.mxu0 %v2209
    %2275 = vmatprep.subr.bf16.mxu0 %v2212
    %2276 = vmatpush1.bf16.msra.mxu0 %v2211
    %2277 = vmatprep.subr.bf16.mxu0 %v2214
    %2278 = vmatpush1.bf16.msra.mxu0 %v2213
    %2279 = vmatprep.subr.bf16.mxu0 %v2216
    %2280 = vmatpush1.bf16.msra.mxu0 %v2215
    %2281 = vmatprep.subr.bf16.mxu0 %v2218
    %2282 = vmatpush1.bf16.msra.mxu0 %v2217
    %2283 = vmatprep.subr.bf16.mxu0 %v2220
    %2284 = vmatpush1.bf16.msra.mxu0 %v2219
    %2285 = vmatprep.subr.bf16.mxu0 %v2222
    %2286 = vmatpush1.bf16.msra.mxu0 %v2221
    %2287 = vmatprep.subr.bf16.mxu0 %v2224
    %2288 = vmatpush1.bf16.msra.mxu0 %v2223
    %2289 = vmatprep.subr.bf16.mxu0 %v2226
    %2290 = vmatpush1.bf16.msra.mxu0 %v2225
    %2291 = vmatprep.subr.bf16.mxu0 %v2228
    %2292 = vmatpush1.bf16.msra.mxu0 %v2227
    %2293 = vmatprep.subr.bf16.mxu0 %v2230
    %2294 = vmatpush1.bf16.msra.mxu0 %v2229
    %2295 = vmatprep.subr.bf16.mxu0 %v2232
    %2296 = vmatpush1.bf16.msra.mxu0 %v2231
    %2297 = vmatprep.subr.bf16.mxu0 %v2234
    %2298 = vmatpush1.bf16.msra.mxu0 %v2233
    %2299 = vmatprep.mubr.bf16.mxu0 %v1762
    %2300 = vmatmul.mubr.bf16.gmra.mrb[0].mxu0 %v1761
    %v2301 = vpop.f32.mrb[0].mxu0
    %v2302 = vadd.f32 %v2069, %v2301
    %v2303 = vpop.f32.mrb[0].mxu0
    %v2304 = vadd.f32 %v2071, %v2303
    %v2305 = vpop.f32.mrb[0].mxu0
    %v2306 = vadd.f32 %v2073, %v2305
    %v2307 = vpop.f32.mrb[0].mxu0
    %v2308 = vadd.f32 %v2075, %v2307
    %2309 = vmatprep.mubr.bf16.mxu0 %v1764
    %2310 = vmatmul.mubr.bf16.gmra.mrb[0].mxu0 %v1763
    %v2311 = vpop.f32.mrb[0].mxu0
    %v2312 = vadd.f32 %v2079, %v2311
    %v2313 = vpop.f32.mrb[0].mxu0
    %v2314 = vadd.f32 %v2081, %v2313
    %v2315 = vpop.f32.mrb[0].mxu0
    %v2316 = vadd.f32 %v2083, %v2315
    %v2317 = vpop.f32.mrb[0].mxu0
    %v2318 = vadd.f32 %v2085, %v2317
    %2319 = vmatprep.mubr.bf16.mxu0 %v1766
    %2320 = vmatmul.mubr.bf16.gmra.mrb[0].mxu0 %v1765
    %v2321 = vpop.f32.mrb[0].mxu0
    %v2322 = vadd.f32 %v2089, %v2321
    %v2323 = vpop.f32.mrb[0].mxu0
    %v2324 = vadd.f32 %v2091, %v2323
    %v2325 = vpop.f32.mrb[0].mxu0
    %v2326 = vadd.f32 %v2093, %v2325
    %v2327 = vpop.f32.mrb[0].mxu0
    %v2328 = vadd.f32 %v2095, %v2327
    %2329 = vmatprep.mubr.bf16.mxu0 %v1768
    %2330 = vmatmul.mubr.bf16.gmra.mrb[0].mxu0 %v1767
    %v2331 = vpop.f32.mrb[0].mxu0
    %v2332 = vadd.f32 %v2099, %v2331
    %v2333 = vpop.f32.mrb[0].mxu0
    %v2334 = vadd.f32 %v2101, %v2333
    %v2335 = vpop.f32.mrb[0].mxu0
    %v2336 = vadd.f32 %v2103, %v2335
    %v2337 = vpop.f32.mrb[0].mxu0
    %v2338 = vadd.f32 %v2105, %v2337
    %2339 = vdwg.mxu0
    %v2340 = vrot.slane %v1745, 1
    %v2341 = vrot.slane %v1746, 1
    %v2342 = vrot.slane %v1747, 1
    %v2343 = vrot.slane %v1748, 1
    %v2344 = vrot.slane %v1749, 1
    %v2345 = vrot.slane %v1750, 1
    %v2346 = vrot.slane %v1751, 1
    %v2347 = vrot.slane %v1752, 1
    %v2348 = vrot.slane %v1753, 1
    %v2349 = vrot.slane %v1754, 1
    %v2350 = vrot.slane %v1755, 1
    %v2351 = vrot.slane %v1756, 1
    %v2352 = vrot.slane %v1757, 1
    %v2353 = vrot.slane %v1758, 1
    %v2354 = vrot.slane %v1759, 1
    %v2355 = vrot.slane %v1760, 1
    %v2356 = vsel %vm573, %v2340, 0.0
    %v2357 = vsel %vm573, %v2341, 0.0
    %v2358 = vsel %vm573, %v2342, 0.0
    %v2359 = vsel %vm573, %v2343, 0.0
    %v2360 = vsel %vm573, %v2344, 0.0
    %v2361 = vsel %vm573, %v2345, 0.0
    %v2362 = vsel %vm573, %v2346, 0.0
    %v2363 = vsel %vm573, %v2347, 0.0
    %v2364 = vsel %vm573, %v2348, 0.0
    %v2365 = vsel %vm573, %v2349, 0.0
    %v2366 = vsel %vm573, %v2350, 0.0
    %v2367 = vsel %vm573, %v2351, 0.0
    %v2368 = vsel %vm573, %v2352, 0.0
    %v2369 = vsel %vm573, %v2353, 0.0
    %v2370 = vsel %vm573, %v2354, 0.0
    %v2371 = vsel %vm573, %v2355, 0.0
    %v2372 = vpack.c.bf16 %v2358, %v2356
    %v2373 = vpack.c.bf16 %v2359, %v2357
    %v2374 = vpack.c.bf16 %v2362, %v2360
    %v2375 = vpack.c.bf16 %v2363, %v2361
    %v2376 = vpack.c.bf16 %v2366, %v2364
    %v2377 = vpack.c.bf16 %v2367, %v2365
    %v2378 = vpack.c.bf16 %v2370, %v2368
    %v2379 = vpack.c.bf16 %v2371, %v2369
    %s2380 = scalar_lea.vmem [#allocation8], 512
    %v2381 = vld [vmem:[%s2380] sm:$0xff]
    %v2382 = vld [vmem:[%s2380 + $0x8] sm:$0xff]
    %v2383 = vld [vmem:[%s2380 + $0x10] sm:$0xff]
    %v2384 = vld [vmem:[%s2380 + $0x18] sm:$0xff]
    %v2385 = vld [vmem:[%s2380 + $0x20] sm:$0xff]
    %v2386 = vld [vmem:[%s2380 + $0x28] sm:$0xff]
    %v2387 = vld [vmem:[%s2380 + $0x30] sm:$0xff]
    %v2388 = vld [vmem:[%s2380 + $0x38] sm:$0xff]
    %v2389 = vld [vmem:[%s2380 + $0x40] sm:$0xff]
    %v2390 = vld [vmem:[%s2380 + $0x48] sm:$0xff]
    %v2391 = vld [vmem:[%s2380 + $0x50] sm:$0xff]
    %v2392 = vld [vmem:[%s2380 + $0x58] sm:$0xff]
    %v2393 = vld [vmem:[%s2380 + $0x60] sm:$0xff]
    %v2394 = vld [vmem:[%s2380 + $0x68] sm:$0xff]
    %v2395 = vld [vmem:[%s2380 + $0x70] sm:$0xff]
    %v2396 = vld [vmem:[%s2380 + $0x78] sm:$0xff]
    %v2397 = vld [vmem:[%s2380 + $0x80] sm:$0xff]
    %v2398 = vld [vmem:[%s2380 + $0x88] sm:$0xff]
    %v2399 = vld [vmem:[%s2380 + $0x90] sm:$0xff]
    %v2400 = vld [vmem:[%s2380 + $0x98] sm:$0xff]
    %v2401 = vld [vmem:[%s2380 + $0xa0] sm:$0xff]
    %v2402 = vld [vmem:[%s2380 + $0xa8] sm:$0xff]
    %v2403 = vld [vmem:[%s2380 + $0xb0] sm:$0xff]
    %v2404 = vld [vmem:[%s2380 + $0xb8] sm:$0xff]
    %v2405 = vld [vmem:[%s2380 + $0xc0] sm:$0xff]
    %v2406 = vld [vmem:[%s2380 + $0xc8] sm:$0xff]
    %v2407 = vld [vmem:[%s2380 + $0xd0] sm:$0xff]
    %v2408 = vld [vmem:[%s2380 + $0xd8] sm:$0xff]
    %v2409 = vld [vmem:[%s2380 + $0xe0] sm:$0xff]
    %v2410 = vld [vmem:[%s2380 + $0xe8] sm:$0xff]
    %v2411 = vld [vmem:[%s2380 + $0xf0] sm:$0xff]
    %v2412 = vld [vmem:[%s2380 + $0xf8] sm:$0xff]
    %v2445 = vunpack.c.l.b16 %v2381
    %v2446 = vunpack.c.h.b16 %v2381
    %v2447 = vunpack.c.l.b16 %v2382
    %v2448 = vunpack.c.h.b16 %v2382
    %v2449 = vunpack.c.l.b16 %v2383
    %v2450 = vunpack.c.h.b16 %v2383
    %v2451 = vunpack.c.l.b16 %v2384
    %v2452 = vunpack.c.h.b16 %v2384
    %v2453 = vunpack.c.l.b16 %v2385
    %v2454 = vunpack.c.h.b16 %v2385
    %v2455 = vunpack.c.l.b16 %v2386
    %v2456 = vunpack.c.h.b16 %v2386
    %v2457 = vunpack.c.l.b16 %v2387
    %v2458 = vunpack.c.h.b16 %v2387
    %v2459 = vunpack.c.l.b16 %v2388
    %v2460 = vunpack.c.h.b16 %v2388
    %v2461 = vunpack.c.l.b16 %v2389
    %v2462 = vunpack.c.h.b16 %v2389
    %v2463 = vunpack.c.l.b16 %v2390
    %v2464 = vunpack.c.h.b16 %v2390
    %v2465 = vunpack.c.l.b16 %v2391
    %v2466 = vunpack.c.h.b16 %v2391
    %v2467 = vunpack.c.l.b16 %v2392
    %v2468 = vunpack.c.h.b16 %v2392
    %v2469 = vunpack.c.l.b16 %v2393
    %v2470 = vunpack.c.h.b16 %v2393
    %v2471 = vunpack.c.l.b16 %v2394
    %v2472 = vunpack.c.h.b16 %v2394
    %v2473 = vunpack.c.l.b16 %v2395
    %v2474 = vunpack.c.h.b16 %v2395
    %v2475 = vunpack.c.l.b16 %v2396
    %v2476 = vunpack.c.h.b16 %v2396
    %v2477 = vunpack.c.l.b16 %v2397
    %v2478 = vunpack.c.h.b16 %v2397
    %v2479 = vunpack.c.l.b16 %v2398
    %v2480 = vunpack.c.h.b16 %v2398
    %v2481 = vunpack.c.l.b16 %v2399
    %v2482 = vunpack.c.h.b16 %v2399
    %v2483 = vunpack.c.l.b16 %v2400
    %v2484 = vunpack.c.h.b16 %v2400
    %v2485 = vunpack.c.l.b16 %v2401
    %v2486 = vunpack.c.h.b16 %v2401
    %v2487 = vunpack.c.l.b16 %v2402
    %v2488 = vunpack.c.h.b16 %v2402
    %v2489 = vunpack.c.l.b16 %v2403
    %v2490 = vunpack.c.h.b16 %v2403
    %v2491 = vunpack.c.l.b16 %v2404
    %v2492 = vunpack.c.h.b16 %v2404
    %v2493 = vunpack.c.l.b16 %v2405
    %v2494 = vunpack.c.h.b16 %v2405
    %v2495 = vunpack.c.l.b16 %v2406
    %v2496 = vunpack.c.h.b16 %v2406
    %v2497 = vunpack.c.l.b16 %v2407
    %v2498 = vunpack.c.h.b16 %v2407
    %v2499 = vunpack.c.l.b16 %v2408
    %v2500 = vunpack.c.h.b16 %v2408
    %v2501 = vunpack.c.l.b16 %v2409
    %v2502 = vunpack.c.h.b16 %v2409
    %v2503 = vunpack.c.l.b16 %v2410
    %v2504 = vunpack.c.h.b16 %v2410
    %v2505 = vunpack.c.l.b16 %v2411
    %v2506 = vunpack.c.h.b16 %v2411
    %v2507 = vunpack.c.l.b16 %v2412
    %v2508 = vunpack.c.h.b16 %v2412
    %v2509 = vpack.c.b16 %v2447, %v2445
    %v2510 = vpack.c.b16 %v2448, %v2446
    %v2511 = vpack.c.b16 %v2451, %v2449
    %v2512 = vpack.c.b16 %v2452, %v2450
    %v2513 = vpack.c.b16 %v2455, %v2453
    %v2514 = vpack.c.b16 %v2456, %v2454
    %v2515 = vpack.c.b16 %v2459, %v2457
    %v2516 = vpack.c.b16 %v2460, %v2458
    %v2517 = vpack.c.b16 %v2463, %v2461
    %v2518 = vpack.c.b16 %v2464, %v2462
    %v2519 = vpack.c.b16 %v2467, %v2465
    %v2520 = vpack.c.b16 %v2468, %v2466
    %v2521 = vpack.c.b16 %v2471, %v2469
    %v2522 = vpack.c.b16 %v2472, %v2470
    %v2523 = vpack.c.b16 %v2475, %v2473
    %v2524 = vpack.c.b16 %v2476, %v2474
    %v2525 = vpack.c.b16 %v2479, %v2477
    %v2526 = vpack.c.b16 %v2480, %v2478
    %v2527 = vpack.c.b16 %v2483, %v2481
    %v2528 = vpack.c.b16 %v2484, %v2482
    %v2529 = vpack.c.b16 %v2487, %v2485
    %v2530 = vpack.c.b16 %v2488, %v2486
    %v2531 = vpack.c.b16 %v2491, %v2489
    %v2532 = vpack.c.b16 %v2492, %v2490
    %v2533 = vpack.c.b16 %v2495, %v2493
    %v2534 = vpack.c.b16 %v2496, %v2494
    %v2535 = vpack.c.b16 %v2499, %v2497
    %v2536 = vpack.c.b16 %v2500, %v2498
    %v2537 = vpack.c.b16 %v2503, %v2501
    %v2538 = vpack.c.b16 %v2504, %v2502
    %v2539 = vpack.c.b16 %v2507, %v2505
    %v2540 = vpack.c.b16 %v2508, %v2506
    %2573 = vmatprep.subr.bf16.mxu0 %v2510
    %2574 = vmatpush1.bf16.msra.mxu0 %v2509
    %2575 = vmatprep.subr.bf16.mxu0 %v2512
    %2576 = vmatpush1.bf16.msra.mxu0 %v2511
    %2577 = vmatprep.subr.bf16.mxu0 %v2514
    %2578 = vmatpush1.bf16.msra.mxu0 %v2513
    %2579 = vmatprep.subr.bf16.mxu0 %v2516
    %2580 = vmatpush1.bf16.msra.mxu0 %v2515
    %2581 = vmatprep.subr.bf16.mxu0 %v2518
    %2582 = vmatpush1.bf16.msra.mxu0 %v2517
    %2583 = vmatprep.subr.bf16.mxu0 %v2520
    %2584 = vmatpush1.bf16.msra.mxu0 %v2519
    %2585 = vmatprep.subr.bf16.mxu0 %v2522
    %2586 = vmatpush1.bf16.msra.mxu0 %v2521
    %2587 = vmatprep.subr.bf16.mxu0 %v2524
    %2588 = vmatpush1.bf16.msra.mxu0 %v2523
    %2589 = vmatprep.subr.bf16.mxu0 %v2526
    %2590 = vmatpush1.bf16.msra.mxu0 %v2525
    %2591 = vmatprep.subr.bf16.mxu0 %v2528
    %2592 = vmatpush1.bf16.msra.mxu0 %v2527
    %2593 = vmatprep.subr.bf16.mxu0 %v2530
    %2594 = vmatpush1.bf16.msra.mxu0 %v2529
    %2595 = vmatprep.subr.bf16.mxu0 %v2532
    %2596 = vmatpush1.bf16.msra.mxu0 %v2531
    %2597 = vmatprep.subr.bf16.mxu0 %v2534
    %2598 = vmatpush1.bf16.msra.mxu0 %v2533
    %2599 = vmatprep.subr.bf16.mxu0 %v2536
    %2600 = vmatpush1.bf16.msra.mxu0 %v2535
    %2601 = vmatprep.subr.bf16.mxu0 %v2538
    %2602 = vmatpush1.bf16.msra.mxu0 %v2537
    %2603 = vmatprep.subr.bf16.mxu0 %v2540
    %2604 = vmatpush1.bf16.msra.mxu0 %v2539
    %2605 = vmatprep.mubr.bf16.mxu0 %v2373
    %2606 = vmatmul.mubr.bf16.gmra.mrb[0].mxu0 %v2372
    %v2607 = vpop.f32.mrb[0].mxu0
    %v2608 = vadd.f32 0.0, %v2607
    %v2609 = vpop.f32.mrb[0].mxu0
    %v2610 = vadd.f32 0.0, %v2609
    %v2611 = vpop.f32.mrb[0].mxu0
    %v2612 = vadd.f32 0.0, %v2611
    %v2613 = vpop.f32.mrb[0].mxu0
    %v2614 = vadd.f32 0.0, %v2613
    %2615 = vmatprep.mubr.bf16.mxu0 %v2375
    %2616 = vmatmul.mubr.bf16.gmra.mrb[0].mxu0 %v2374
    %v2617 = vpop.f32.mrb[0].mxu0
    %v2618 = vadd.f32 0.0, %v2617
    %v2619 = vpop.f32.mrb[0].mxu0
    %v2620 = vadd.f32 0.0, %v2619
    %v2621 = vpop.f32.mrb[0].mxu0
    %v2622 = vadd.f32 0.0, %v2621
    %v2623 = vpop.f32.mrb[0].mxu0
    %v2624 = vadd.f32 0.0, %v2623
    %2625 = vmatprep.mubr.bf16.mxu0 %v2377
    %2626 = vmatmul.mubr.bf16.gmra.mrb[0].mxu0 %v2376
    %v2627 = vpop.f32.mrb[0].mxu0
    %v2628 = vadd.f32 0.0, %v2627
    %v2629 = vpop.f32.mrb[0].mxu0
    %v2630 = vadd.f32 0.0, %v2629
    %v2631 = vpop.f32.mrb[0].mxu0
    %v2632 = vadd.f32 0.0, %v2631
    %v2633 = vpop.f32.mrb[0].mxu0
    %v2634 = vadd.f32 0.0, %v2633
    %2635 = vmatprep.mubr.bf16.mxu0 %v2379
    %2636 = vmatmul.mubr.bf16.gmra.mrb[0].mxu0 %v2378
    %v2637 = vpop.f32.mrb[0].mxu0
    %v2638 = vadd.f32 0.0, %v2637
    %v2639 = vpop.f32.mrb[0].mxu0
    %v2640 = vadd.f32 0.0, %v2639
    %v2641 = vpop.f32.mrb[0].mxu0
    %v2642 = vadd.f32 0.0, %v2641
    %v2643 = vpop.f32.mrb[0].mxu0
    %v2644 = vadd.f32 0.0, %v2643
    %2645 = vdwg.mxu0
    %v2646 = vadd.f32 %v2302, %v2608
    %v2647 = vadd.f32 %v2304, %v2610
    %v2648 = vadd.f32 %v2306, %v2612
    %v2649 = vadd.f32 %v2308, %v2614
    %v2650 = vadd.f32 %v2312, %v2618
    %v2651 = vadd.f32 %v2314, %v2620
    %v2652 = vadd.f32 %v2316, %v2622
    %v2653 = vadd.f32 %v2318, %v2624
    %v2654 = vadd.f32 %v2322, %v2628
    %v2655 = vadd.f32 %v2324, %v2630
    %v2656 = vadd.f32 %v2326, %v2632
    %v2657 = vadd.f32 %v2328, %v2634
    %v2658 = vadd.f32 %v2332, %v2638
    %v2659 = vadd.f32 %v2334, %v2640
    %v2660 = vadd.f32 %v2336, %v2642
    %v2661 = vadd.f32 %v2338, %v2644
    %v2662 = vld [vmem:[#allocation14] sm:$0x3]
    %v2664 = vlaneseq
    %v2665 = vshrl.u32 %v2664, 7
    %v2666 = vsub.s32 0, %v2665
    %v2667 = vrot.slane %v2662, %v2666
    %v2668 = vlaneseq
    %v2669 = vshrl.u32 %v2668, 7
    %v2670 = vsub.s32 1, %v2669
    %v2671 = vrot.slane %v2662, %v2670
    %v2674 = vadd.f32 %v2646, %v2667
    %v2675 = vadd.f32 %v2647, %v2671
    %v2676 = vadd.f32 %v2648, %v2667
    %v2677 = vadd.f32 %v2649, %v2671
    %v2678 = vadd.f32 %v2650, %v2667
    %v2679 = vadd.f32 %v2651, %v2671
    %v2680 = vadd.f32 %v2652, %v2667
    %v2681 = vadd.f32 %v2653, %v2671
    %v2682 = vadd.f32 %v2654, %v2667
    %v2683 = vadd.f32 %v2655, %v2671
    %v2684 = vadd.f32 %v2656, %v2667
    %v2685 = vadd.f32 %v2657, %v2671
    %v2686 = vadd.f32 %v2658, %v2667
    %v2687 = vadd.f32 %v2659, %v2671
    %v2688 = vadd.f32 %v2660, %v2667
    %v2689 = vadd.f32 %v2661, %v2671
    %v2690 = vmax.f32 %v2674, 0.0
    %v2691 = vmax.f32 %v2675, 0.0
    %v2692 = vmax.f32 %v2676, 0.0
    %v2693 = vmax.f32 %v2677, 0.0
    %v2694 = vmax.f32 %v2678, 0.0
    %v2695 = vmax.f32 %v2679, 0.0
    %v2696 = vmax.f32 %v2680, 0.0
    %v2697 = vmax.f32 %v2681, 0.0
    %v2698 = vmax.f32 %v2682, 0.0
    %v2699 = vmax.f32 %v2683, 0.0
    %v2700 = vmax.f32 %v2684, 0.0
    %v2701 = vmax.f32 %v2685, 0.0
    %v2702 = vmax.f32 %v2686, 0.0
    %v2703 = vmax.f32 %v2687, 0.0
    %v2704 = vmax.f32 %v2688, 0.0
    %v2705 = vmax.f32 %v2689, 0.0
    %v2706 = vpack.c.bf16 %v2692, %v2690
    %v2707 = vpack.c.bf16 %v2693, %v2691
    %v2708 = vpack.c.bf16 %v2696, %v2694
    %v2709 = vpack.c.bf16 %v2697, %v2695
    %v2710 = vpack.c.bf16 %v2700, %v2698
    %v2711 = vpack.c.bf16 %v2701, %v2699
    %v2712 = vpack.c.bf16 %v2704, %v2702
    %v2713 = vpack.c.bf16 %v2705, %v2703
    %s2714 = scalar_lea.vmem [#allocation10], 256
    %v2715 = vld [vmem:[%s2714] sm:$0xff]
    %v2716 = vld [vmem:[%s2714 + $0x8] sm:$0xff]
    %v2717 = vld [vmem:[%s2714 + $0x10] sm:$0xff]
    %v2718 = vld [vmem:[%s2714 + $0x18] sm:$0xff]
    %v2719 = vld [vmem:[%s2714 + $0x20] sm:$0xff]
    %v2720 = vld [vmem:[%s2714 + $0x28] sm:$0xff]
    %v2721 = vld [vmem:[%s2714 + $0x30] sm:$0xff]
    %v2722 = vld [vmem:[%s2714 + $0x38] sm:$0xff]
    %v2723 = vld [vmem:[%s2714 + $0x40] sm:$0xff]
    %v2724 = vld [vmem:[%s2714 + $0x48] sm:$0xff]
    %v2725 = vld [vmem:[%s2714 + $0x50] sm:$0xff]
    %v2726 = vld [vmem:[%s2714 + $0x58] sm:$0xff]
    %v2727 = vld [vmem:[%s2714 + $0x60] sm:$0xff]
    %v2728 = vld [vmem:[%s2714 + $0x68] sm:$0xff]
    %v2729 = vld [vmem:[%s2714 + $0x70] sm:$0xff]
    %v2730 = vld [vmem:[%s2714 + $0x78] sm:$0xff]
    %v2731 = vld [vmem:[%s2714 + $0x80] sm:$0xff]
    %v2732 = vld [vmem:[%s2714 + $0x88] sm:$0xff]
    %v2733 = vld [vmem:[%s2714 + $0x90] sm:$0xff]
    %v2734 = vld [vmem:[%s2714 + $0x98] sm:$0xff]
    %v2735 = vld [vmem:[%s2714 + $0xa0] sm:$0xff]
    %v2736 = vld [vmem:[%s2714 + $0xa8] sm:$0xff]
    %v2737 = vld [vmem:[%s2714 + $0xb0] sm:$0xff]
    %v2738 = vld [vmem:[%s2714 + $0xb8] sm:$0xff]
    %v2739 = vld [vmem:[%s2714 + $0xc0] sm:$0xff]
    %v2740 = vld [vmem:[%s2714 + $0xc8] sm:$0xff]
    %v2741 = vld [vmem:[%s2714 + $0xd0] sm:$0xff]
    %v2742 = vld [vmem:[%s2714 + $0xd8] sm:$0xff]
    %v2743 = vld [vmem:[%s2714 + $0xe0] sm:$0xff]
    %v2744 = vld [vmem:[%s2714 + $0xe8] sm:$0xff]
    %v2745 = vld [vmem:[%s2714 + $0xf0] sm:$0xff]
    %v2746 = vld [vmem:[%s2714 + $0xf8] sm:$0xff]
    %v2747 = vrot.slane %v2690, 7
    %v2748 = vrot.slane %v2691, 7
    %v2749 = vrot.slane %v2692, 7
    %v2750 = vrot.slane %v2693, 7
    %v2751 = vrot.slane %v2694, 7
    %v2752 = vrot.slane %v2695, 7
    %v2753 = vrot.slane %v2696, 7
    %v2754 = vrot.slane %v2697, 7
    %v2755 = vrot.slane %v2698, 7
    %v2756 = vrot.slane %v2699, 7
    %v2757 = vrot.slane %v2700, 7
    %v2758 = vrot.slane %v2701, 7
    %v2759 = vrot.slane %v2702, 7
    %v2760 = vrot.slane %v2703, 7
    %v2761 = vrot.slane %v2704, 7
    %v2762 = vrot.slane %v2705, 7
    %v2763 = vsel %vm229, %v2747, 0.0
    %v2764 = vsel %vm229, %v2748, 0.0
    %v2765 = vsel %vm229, %v2749, 0.0
    %v2766 = vsel %vm229, %v2750, 0.0
    %v2767 = vsel %vm229, %v2751, 0.0
    %v2768 = vsel %vm229, %v2752, 0.0
    %v2769 = vsel %vm229, %v2753, 0.0
    %v2770 = vsel %vm229, %v2754, 0.0
    %v2771 = vsel %vm229, %v2755, 0.0
    %v2772 = vsel %vm229, %v2756, 0.0
    %v2773 = vsel %vm229, %v2757, 0.0
    %v2774 = vsel %vm229, %v2758, 0.0
    %v2775 = vsel %vm229, %v2759, 0.0
    %v2776 = vsel %vm229, %v2760, 0.0
    %v2777 = vsel %vm229, %v2761, 0.0
    %v2778 = vsel %vm229, %v2762, 0.0
    %v2779 = vpack.c.bf16 %v2765, %v2763
    %v2780 = vpack.c.bf16 %v2766, %v2764
    %v2781 = vpack.c.bf16 %v2769, %v2767
    %v2782 = vpack.c.bf16 %v2770, %v2768
    %v2783 = vpack.c.bf16 %v2773, %v2771
    %v2784 = vpack.c.bf16 %v2774, %v2772
    %v2785 = vpack.c.bf16 %v2777, %v2775
    %v2786 = vpack.c.bf16 %v2778, %v2776
    %v2787 = vld [vmem:[#allocation10] sm:$0xff]
    %v2788 = vld [vmem:[#allocation10 + $0x8] sm:$0xff]
    %v2789 = vld [vmem:[#allocation10 + $0x10] sm:$0xff]
    %v2790 = vld [vmem:[#allocation10 + $0x18] sm:$0xff]
    %v2791 = vld [vmem:[#allocation10 + $0x20] sm:$0xff]
    %v2792 = vld [vmem:[#allocation10 + $0x28] sm:$0xff]
    %v2793 = vld [vmem:[#allocation10 + $0x30] sm:$0xff]
    %v2794 = vld [vmem:[#allocation10 + $0x38] sm:$0xff]
    %v2795 = vld [vmem:[#allocation10 + $0x40] sm:$0xff]
    %v2796 = vld [vmem:[#allocation10 + $0x48] sm:$0xff]
    %v2797 = vld [vmem:[#allocation10 + $0x50] sm:$0xff]
    %v2798 = vld [vmem:[#allocation10 + $0x58] sm:$0xff]
    %v2799 = vld [vmem:[#allocation10 + $0x60] sm:$0xff]
    %v2800 = vld [vmem:[#allocation10 + $0x68] sm:$0xff]
    %v2801 = vld [vmem:[#allocation10 + $0x70] sm:$0xff]
    %v2802 = vld [vmem:[#allocation10 + $0x78] sm:$0xff]
    %v2803 = vld [vmem:[#allocation10 + $0x80] sm:$0xff]
    %v2804 = vld [vmem:[#allocation10 + $0x88] sm:$0xff]
    %v2805 = vld [vmem:[#allocation10 + $0x90] sm:$0xff]
    %v2806 = vld [vmem:[#allocation10 + $0x98] sm:$0xff]
    %v2807 = vld [vmem:[#allocation10 + $0xa0] sm:$0xff]
    %v2808 = vld [vmem:[#allocation10 + $0xa8] sm:$0xff]
    %v2809 = vld [vmem:[#allocation10 + $0xb0] sm:$0xff]
    %v2810 = vld [vmem:[#allocation10 + $0xb8] sm:$0xff]
    %v2811 = vld [vmem:[#allocation10 + $0xc0] sm:$0xff]
    %v2812 = vld [vmem:[#allocation10 + $0xc8] sm:$0xff]
    %v2813 = vld [vmem:[#allocation10 + $0xd0] sm:$0xff]
    %v2814 = vld [vmem:[#allocation10 + $0xd8] sm:$0xff]
    %v2815 = vld [vmem:[#allocation10 + $0xe0] sm:$0xff]
    %v2816 = vld [vmem:[#allocation10 + $0xe8] sm:$0xff]
    %v2817 = vld [vmem:[#allocation10 + $0xf0] sm:$0xff]
    %v2818 = vld [vmem:[#allocation10 + $0xf8] sm:$0xff]
    %v2851 = vunpack.c.l.b16 %v2787
    %v2852 = vunpack.c.h.b16 %v2787
    %v2853 = vunpack.c.l.b16 %v2788
    %v2854 = vunpack.c.h.b16 %v2788
    %v2855 = vunpack.c.l.b16 %v2789
    %v2856 = vunpack.c.h.b16 %v2789
    %v2857 = vunpack.c.l.b16 %v2790
    %v2858 = vunpack.c.h.b16 %v2790
    %v2859 = vunpack.c.l.b16 %v2791
    %v2860 = vunpack.c.h.b16 %v2791
    %v2861 = vunpack.c.l.b16 %v2792
    %v2862 = vunpack.c.h.b16 %v2792
    %v2863 = vunpack.c.l.b16 %v2793
    %v2864 = vunpack.c.h.b16 %v2793
    %v2865 = vunpack.c.l.b16 %v2794
    %v2866 = vunpack.c.h.b16 %v2794
    %v2867 = vunpack.c.l.b16 %v2795
    %v2868 = vunpack.c.h.b16 %v2795
    %v2869 = vunpack.c.l.b16 %v2796
    %v2870 = vunpack.c.h.b16 %v2796
    %v2871 = vunpack.c.l.b16 %v2797
    %v2872 = vunpack.c.h.b16 %v2797
    %v2873 = vunpack.c.l.b16 %v2798
    %v2874 = vunpack.c.h.b16 %v2798
    %v2875 = vunpack.c.l.b16 %v2799
    %v2876 = vunpack.c.h.b16 %v2799
    %v2877 = vunpack.c.l.b16 %v2800
    %v2878 = vunpack.c.h.b16 %v2800
    %v2879 = vunpack.c.l.b16 %v2801
    %v2880 = vunpack.c.h.b16 %v2801
    %v2881 = vunpack.c.l.b16 %v2802
    %v2882 = vunpack.c.h.b16 %v2802
    %v2883 = vunpack.c.l.b16 %v2803
    %v2884 = vunpack.c.h.b16 %v2803
    %v2885 = vunpack.c.l.b16 %v2804
    %v2886 = vunpack.c.h.b16 %v2804
    %v2887 = vunpack.c.l.b16 %v2805
    %v2888 = vunpack.c.h.b16 %v2805
    %v2889 = vunpack.c.l.b16 %v2806
    %v2890 = vunpack.c.h.b16 %v2806
    %v2891 = vunpack.c.l.b16 %v2807
    %v2892 = vunpack.c.h.b16 %v2807
    %v2893 = vunpack.c.l.b16 %v2808
    %v2894 = vunpack.c.h.b16 %v2808
    %v2895 = vunpack.c.l.b16 %v2809
    %v2896 = vunpack.c.h.b16 %v2809
    %v2897 = vunpack.c.l.b16 %v2810
    %v2898 = vunpack.c.h.b16 %v2810
    %v2899 = vunpack.c.l.b16 %v2811
    %v2900 = vunpack.c.h.b16 %v2811
    %v2901 = vunpack.c.l.b16 %v2812
    %v2902 = vunpack.c.h.b16 %v2812
    %v2903 = vunpack.c.l.b16 %v2813
    %v2904 = vunpack.c.h.b16 %v2813
    %v2905 = vunpack.c.l.b16 %v2814
    %v2906 = vunpack.c.h.b16 %v2814
    %v2907 = vunpack.c.l.b16 %v2815
    %v2908 = vunpack.c.h.b16 %v2815
    %v2909 = vunpack.c.l.b16 %v2816
    %v2910 = vunpack.c.h.b16 %v2816
    %v2911 = vunpack.c.l.b16 %v2817
    %v2912 = vunpack.c.h.b16 %v2817
    %v2913 = vunpack.c.l.b16 %v2818
    %v2914 = vunpack.c.h.b16 %v2818
    %v2915 = vpack.c.b16 %v2853, %v2851
    %v2916 = vpack.c.b16 %v2854, %v2852
    %v2917 = vpack.c.b16 %v2857, %v2855
    %v2918 = vpack.c.b16 %v2858, %v2856
    %v2919 = vpack.c.b16 %v2861, %v2859
    %v2920 = vpack.c.b16 %v2862, %v2860
    %v2921 = vpack.c.b16 %v2865, %v2863
    %v2922 = vpack.c.b16 %v2866, %v2864
    %v2923 = vpack.c.b16 %v2869, %v2867
    %v2924 = vpack.c.b16 %v2870, %v2868
    %v2925 = vpack.c.b16 %v2873, %v2871
    %v2926 = vpack.c.b16 %v2874, %v2872
    %v2927 = vpack.c.b16 %v2877, %v2875
    %v2928 = vpack.c.b16 %v2878, %v2876
    %v2929 = vpack.c.b16 %v2881, %v2879
    %v2930 = vpack.c.b16 %v2882, %v2880
    %v2931 = vpack.c.b16 %v2885, %v2883
    %v2932 = vpack.c.b16 %v2886, %v2884
    %v2933 = vpack.c.b16 %v2889, %v2887
    %v2934 = vpack.c.b16 %v2890, %v2888
    %v2935 = vpack.c.b16 %v2893, %v2891
    %v2936 = vpack.c.b16 %v2894, %v2892
    %v2937 = vpack.c.b16 %v2897, %v2895
    %v2938 = vpack.c.b16 %v2898, %v2896
    %v2939 = vpack.c.b16 %v2901, %v2899
    %v2940 = vpack.c.b16 %v2902, %v2900
    %v2941 = vpack.c.b16 %v2905, %v2903
    %v2942 = vpack.c.b16 %v2906, %v2904
    %v2943 = vpack.c.b16 %v2909, %v2907
    %v2944 = vpack.c.b16 %v2910, %v2908
    %v2945 = vpack.c.b16 %v2913, %v2911
    %v2946 = vpack.c.b16 %v2914, %v2912
    %2979 = vmatprep.subr.bf16.mxu0 %v2916
    %2980 = vmatpush1.bf16.msra.mxu0 %v2915
    %2981 = vmatprep.subr.bf16.mxu0 %v2918
    %2982 = vmatpush1.bf16.msra.mxu0 %v2917
    %2983 = vmatprep.subr.bf16.mxu0 %v2920
    %2984 = vmatpush1.bf16.msra.mxu0 %v2919
    %2985 = vmatprep.subr.bf16.mxu0 %v2922
    %2986 = vmatpush1.bf16.msra.mxu0 %v2921
    %2987 = vmatprep.subr.bf16.mxu0 %v2924
    %2988 = vmatpush1.bf16.msra.mxu0 %v2923
    %2989 = vmatprep.subr.bf16.mxu0 %v2926
    %2990 = vmatpush1.bf16.msra.mxu0 %v2925
    %2991 = vmatprep.subr.bf16.mxu0 %v2928
    %2992 = vmatpush1.bf16.msra.mxu0 %v2927
    %2993 = vmatprep.subr.bf16.mxu0 %v2930
    %2994 = vmatpush1.bf16.msra.mxu0 %v2929
    %2995 = vmatprep.subr.bf16.mxu0 %v2932
    %2996 = vmatpush1.bf16.msra.mxu0 %v2931
    %2997 = vmatprep.subr.bf16.mxu0 %v2934
    %2998 = vmatpush1.bf16.msra.mxu0 %v2933
    %2999 = vmatprep.subr.bf16.mxu0 %v2936
    %3000 = vmatpush1.bf16.msra.mxu0 %v2935
    %3001 = vmatprep.subr.bf16.mxu0 %v2938
    %3002 = vmatpush1.bf16.msra.mxu0 %v2937
    %3003 = vmatprep.subr.bf16.mxu0 %v2940
    %3004 = vmatpush1.bf16.msra.mxu0 %v2939
    %3005 = vmatprep.subr.bf16.mxu0 %v2942
    %3006 = vmatpush1.bf16.msra.mxu0 %v2941
    %3007 = vmatprep.subr.bf16.mxu0 %v2944
    %3008 = vmatpush1.bf16.msra.mxu0 %v2943
    %3009 = vmatprep.subr.bf16.mxu0 %v2946
    %3010 = vmatpush1.bf16.msra.mxu0 %v2945
    %3011 = vmatprep.mubr.bf16.mxu0 %v2780
    %3012 = vmatmul.mubr.bf16.gmra.mrb[0].mxu0 %v2779
    %v3013 = vpop.f32.mrb[0].mxu0
    %v3014 = vadd.f32 0.0, %v3013
    %v3015 = vpop.f32.mrb[0].mxu0
    %v3016 = vadd.f32 0.0, %v3015
    %v3017 = vpop.f32.mrb[0].mxu0
    %v3018 = vadd.f32 0.0, %v3017
    %v3019 = vpop.f32.mrb[0].mxu0
    %v3020 = vadd.f32 0.0, %v3019
    %3021 = vmatprep.mubr.bf16.mxu0 %v2782
    %3022 = vmatmul.mubr.bf16.gmra.mrb[0].mxu0 %v2781
    %v3023 = vpop.f32.mrb[0].mxu0
    %v3024 = vadd.f32 0.0, %v3023
    %v3025 = vpop.f32.mrb[0].mxu0
    %v3026 = vadd.f32 0.0, %v3025
    %v3027 = vpop.f32.mrb[0].mxu0
    %v3028 = vadd.f32 0.0, %v3027
    %v3029 = vpop.f32.mrb[0].mxu0
    %v3030 = vadd.f32 0.0, %v3029
    %3031 = vmatprep.mubr.bf16.mxu0 %v2784
    %3032 = vmatmul.mubr.bf16.gmra.mrb[0].mxu0 %v2783
    %v3033 = vpop.f32.mrb[0].mxu0
    %v3034 = vadd.f32 0.0, %v3033
    %v3035 = vpop.f32.mrb[0].mxu0
    %v3036 = vadd.f32 0.0, %v3035
    %v3037 = vpop.f32.mrb[0].mxu0
    %v3038 = vadd.f32 0.0, %v3037
    %v3039 = vpop.f32.mrb[0].mxu0
    %v3040 = vadd.f32 0.0, %v3039
    %3041 = vmatprep.mubr.bf16.mxu0 %v2786
    %3042 = vmatmul.mubr.bf16.gmra.mrb[0].mxu0 %v2785
    %v3043 = vpop.f32.mrb[0].mxu0
    %v3044 = vadd.f32 0.0, %v3043
    %v3045 = vpop.f32.mrb[0].mxu0
    %v3046 = vadd.f32 0.0, %v3045
    %v3047 = vpop.f32.mrb[0].mxu0
    %v3048 = vadd.f32 0.0, %v3047
    %v3049 = vpop.f32.mrb[0].mxu0
    %v3050 = vadd.f32 0.0, %v3049
    %3051 = vdwg.mxu0
    %v3084 = vunpack.c.l.b16 %v2715
    %v3085 = vunpack.c.h.b16 %v2715
    %v3086 = vunpack.c.l.b16 %v2716
    %v3087 = vunpack.c.h.b16 %v2716
    %v3088 = vunpack.c.l.b16 %v2717
    %v3089 = vunpack.c.h.b16 %v2717
    %v3090 = vunpack.c.l.b16 %v2718
    %v3091 = vunpack.c.h.b16 %v2718
    %v3092 = vunpack.c.l.b16 %v2719
    %v3093 = vunpack.c.h.b16 %v2719
    %v3094 = vunpack.c.l.b16 %v2720
    %v3095 = vunpack.c.h.b16 %v2720
    %v3096 = vunpack.c.l.b16 %v2721
    %v3097 = vunpack.c.h.b16 %v2721
    %v3098 = vunpack.c.l.b16 %v2722
    %v3099 = vunpack.c.h.b16 %v2722
    %v3100 = vunpack.c.l.b16 %v2723
    %v3101 = vunpack.c.h.b16 %v2723
    %v3102 = vunpack.c.l.b16 %v2724
    %v3103 = vunpack.c.h.b16 %v2724
    %v3104 = vunpack.c.l.b16 %v2725
    %v3105 = vunpack.c.h.b16 %v2725
    %v3106 = vunpack.c.l.b16 %v2726
    %v3107 = vunpack.c.h.b16 %v2726
    %v3108 = vunpack.c.l.b16 %v2727
    %v3109 = vunpack.c.h.b16 %v2727
    %v3110 = vunpack.c.l.b16 %v2728
    %v3111 = vunpack.c.h.b16 %v2728
    %v3112 = vunpack.c.l.b16 %v2729
    %v3113 = vunpack.c.h.b16 %v2729
    %v3114 = vunpack.c.l.b16 %v2730
    %v3115 = vunpack.c.h.b16 %v2730
    %v3116 = vunpack.c.l.b16 %v2731
    %v3117 = vunpack.c.h.b16 %v2731
    %v3118 = vunpack.c.l.b16 %v2732
    %v3119 = vunpack.c.h.b16 %v2732
    %v3120 = vunpack.c.l.b16 %v2733
    %v3121 = vunpack.c.h.b16 %v2733
    %v3122 = vunpack.c.l.b16 %v2734
    %v3123 = vunpack.c.h.b16 %v2734
    %v3124 = vunpack.c.l.b16 %v2735
    %v3125 = vunpack.c.h.b16 %v2735
    %v3126 = vunpack.c.l.b16 %v2736
    %v3127 = vunpack.c.h.b16 %v2736
    %v3128 = vunpack.c.l.b16 %v2737
    %v3129 = vunpack.c.h.b16 %v2737
    %v3130 = vunpack.c.l.b16 %v2738
    %v3131 = vunpack.c.h.b16 %v2738
    %v3132 = vunpack.c.l.b16 %v2739
    %v3133 = vunpack.c.h.b16 %v2739
    %v3134 = vunpack.c.l.b16 %v2740
    %v3135 = vunpack.c.h.b16 %v2740
    %v3136 = vunpack.c.l.b16 %v2741
    %v3137 = vunpack.c.h.b16 %v2741
    %v3138 = vunpack.c.l.b16 %v2742
    %v3139 = vunpack.c.h.b16 %v2742
    %v3140 = vunpack.c.l.b16 %v2743
    %v3141 = vunpack.c.h.b16 %v2743
    %v3142 = vunpack.c.l.b16 %v2744
    %v3143 = vunpack.c.h.b16 %v2744
    %v3144 = vunpack.c.l.b16 %v2745
    %v3145 = vunpack.c.h.b16 %v2745
    %v3146 = vunpack.c.l.b16 %v2746
    %v3147 = vunpack.c.h.b16 %v2746
    %v3148 = vpack.c.b16 %v3086, %v3084
    %v3149 = vpack.c.b16 %v3087, %v3085
    %v3150 = vpack.c.b16 %v3090, %v3088
    %v3151 = vpack.c.b16 %v3091, %v3089
    %v3152 = vpack.c.b16 %v3094, %v3092
    %v3153 = vpack.c.b16 %v3095, %v3093
    %v3154 = vpack.c.b16 %v3098, %v3096
    %v3155 = vpack.c.b16 %v3099, %v3097
    %v3156 = vpack.c.b16 %v3102, %v3100
    %v3157 = vpack.c.b16 %v3103, %v3101
    %v3158 = vpack.c.b16 %v3106, %v3104
    %v3159 = vpack.c.b16 %v3107, %v3105
    %v3160 = vpack.c.b16 %v3110, %v3108
    %v3161 = vpack.c.b16 %v3111, %v3109
    %v3162 = vpack.c.b16 %v3114, %v3112
    %v3163 = vpack.c.b16 %v3115, %v3113
    %v3164 = vpack.c.b16 %v3118, %v3116
    %v3165 = vpack.c.b16 %v3119, %v3117
    %v3166 = vpack.c.b16 %v3122, %v3120
    %v3167 = vpack.c.b16 %v3123, %v3121
    %v3168 = vpack.c.b16 %v3126, %v3124
    %v3169 = vpack.c.b16 %v3127, %v3125
    %v3170 = vpack.c.b16 %v3130, %v3128
    %v3171 = vpack.c.b16 %v3131, %v3129
    %v3172 = vpack.c.b16 %v3134, %v3132
    %v3173 = vpack.c.b16 %v3135, %v3133
    %v3174 = vpack.c.b16 %v3138, %v3136
    %v3175 = vpack.c.b16 %v3139, %v3137
    %v3176 = vpack.c.b16 %v3142, %v3140
    %v3177 = vpack.c.b16 %v3143, %v3141
    %v3178 = vpack.c.b16 %v3146, %v3144
    %v3179 = vpack.c.b16 %v3147, %v3145
    %3212 = vmatprep.subr.bf16.mxu0 %v3149
    %3213 = vmatpush1.bf16.msra.mxu0 %v3148
    %3214 = vmatprep.subr.bf16.mxu0 %v3151
    %3215 = vmatpush1.bf16.msra.mxu0 %v3150
    %3216 = vmatprep.subr.bf16.mxu0 %v3153
    %3217 = vmatpush1.bf16.msra.mxu0 %v3152
    %3218 = vmatprep.subr.bf16.mxu0 %v3155
    %3219 = vmatpush1.bf16.msra.mxu0 %v3154
    %3220 = vmatprep.subr.bf16.mxu0 %v3157
    %3221 = vmatpush1.bf16.msra.mxu0 %v3156
    %3222 = vmatprep.subr.bf16.mxu0 %v3159
    %3223 = vmatpush1.bf16.msra.mxu0 %v3158
    %3224 = vmatprep.subr.bf16.mxu0 %v3161
    %3225 = vmatpush1.bf16.msra.mxu0 %v3160
    %3226 = vmatprep.subr.bf16.mxu0 %v3163
    %3227 = vmatpush1.bf16.msra.mxu0 %v3162
    %3228 = vmatprep.subr.bf16.mxu0 %v3165
    %3229 = vmatpush1.bf16.msra.mxu0 %v3164
    %3230 = vmatprep.subr.bf16.mxu0 %v3167
    %3231 = vmatpush1.bf16.msra.mxu0 %v3166
    %3232 = vmatprep.subr.bf16.mxu0 %v3169
    %3233 = vmatpush1.bf16.msra.mxu0 %v3168
    %3234 = vmatprep.subr.bf16.mxu0 %v3171
    %3235 = vmatpush1.bf16.msra.mxu0 %v3170
    %3236 = vmatprep.subr.bf16.mxu0 %v3173
    %3237 = vmatpush1.bf16.msra.mxu0 %v3172
    %3238 = vmatprep.subr.bf16.mxu0 %v3175
    %3239 = vmatpush1.bf16.msra.mxu0 %v3174
    %3240 = vmatprep.subr.bf16.mxu0 %v3177
    %3241 = vmatpush1.bf16.msra.mxu0 %v3176
    %3242 = vmatprep.subr.bf16.mxu0 %v3179
    %3243 = vmatpush1.bf16.msra.mxu0 %v3178
    %3244 = vmatprep.mubr.bf16.mxu0 %v2707
    %3245 = vmatmul.mubr.bf16.gmra.mrb[0].mxu0 %v2706
    %v3246 = vpop.f32.mrb[0].mxu0
    %v3247 = vadd.f32 %v3014, %v3246
    %v3248 = vpop.f32.mrb[0].mxu0
    %v3249 = vadd.f32 %v3016, %v3248
    %v3250 = vpop.f32.mrb[0].mxu0
    %v3251 = vadd.f32 %v3018, %v3250
    %v3252 = vpop.f32.mrb[0].mxu0
    %v3253 = vadd.f32 %v3020, %v3252
    %3254 = vmatprep.mubr.bf16.mxu0 %v2709
    %3255 = vmatmul.mubr.bf16.gmra.mrb[0].mxu0 %v2708
    %v3256 = vpop.f32.mrb[0].mxu0
    %v3257 = vadd.f32 %v3024, %v3256
    %v3258 = vpop.f32.mrb[0].mxu0
    %v3259 = vadd.f32 %v3026, %v3258
    %v3260 = vpop.f32.mrb[0].mxu0
    %v3261 = vadd.f32 %v3028, %v3260
    %v3262 = vpop.f32.mrb[0].mxu0
    %v3263 = vadd.f32 %v3030, %v3262
    %3264 = vmatprep.mubr.bf16.mxu0 %v2711
    %3265 = vmatmul.mubr.bf16.gmra.mrb[0].mxu0 %v2710
    %v3266 = vpop.f32.mrb[0].mxu0
    %v3267 = vadd.f32 %v3034, %v3266
    %v3268 = vpop.f32.mrb[0].mxu0
    %v3269 = vadd.f32 %v3036, %v3268
    %v3270 = vpop.f32.mrb[0].mxu0
    %v3271 = vadd.f32 %v3038, %v3270
    %v3272 = vpop.f32.mrb[0].mxu0
    %v3273 = vadd.f32 %v3040, %v3272
    %3274 = vmatprep.mubr.bf16.mxu0 %v2713
    %3275 = vmatmul.mubr.bf16.gmra.mrb[0].mxu0 %v2712
    %v3276 = vpop.f32.mrb[0].mxu0
    %v3277 = vadd.f32 %v3044, %v3276
    %v3278 = vpop.f32.mrb[0].mxu0
    %v3279 = vadd.f32 %v3046, %v3278
    %v3280 = vpop.f32.mrb[0].mxu0
    %v3281 = vadd.f32 %v3048, %v3280
    %v3282 = vpop.f32.mrb[0].mxu0
    %v3283 = vadd.f32 %v3050, %v3282
    %3284 = vdwg.mxu0
    %v3285 = vrot.slane %v2690, 1
    %v3286 = vrot.slane %v2691, 1
    %v3287 = vrot.slane %v2692, 1
    %v3288 = vrot.slane %v2693, 1
    %v3289 = vrot.slane %v2694, 1
    %v3290 = vrot.slane %v2695, 1
    %v3291 = vrot.slane %v2696, 1
    %v3292 = vrot.slane %v2697, 1
    %v3293 = vrot.slane %v2698, 1
    %v3294 = vrot.slane %v2699, 1
    %v3295 = vrot.slane %v2700, 1
    %v3296 = vrot.slane %v2701, 1
    %v3297 = vrot.slane %v2702, 1
    %v3298 = vrot.slane %v2703, 1
    %v3299 = vrot.slane %v2704, 1
    %v3300 = vrot.slane %v2705, 1
    %v3301 = vsel %vm573, %v3285, 0.0
    %v3302 = vsel %vm573, %v3286, 0.0
    %v3303 = vsel %vm573, %v3287, 0.0
    %v3304 = vsel %vm573, %v3288, 0.0
    %v3305 = vsel %vm573, %v3289, 0.0
    %v3306 = vsel %vm573, %v3290, 0.0
    %v3307 = vsel %vm573, %v3291, 0.0
    %v3308 = vsel %vm573, %v3292, 0.0
    %v3309 = vsel %vm573, %v3293, 0.0
    %v3310 = vsel %vm573, %v3294, 0.0
    %v3311 = vsel %vm573, %v3295, 0.0
    %v3312 = vsel %vm573, %v3296, 0.0
    %v3313 = vsel %vm573, %v3297, 0.0
    %v3314 = vsel %vm573, %v3298, 0.0
    %v3315 = vsel %vm573, %v3299, 0.0
    %v3316 = vsel %vm573, %v3300, 0.0
    %v3317 = vpack.c.bf16 %v3303, %v3301
    %v3318 = vpack.c.bf16 %v3304, %v3302
    %v3319 = vpack.c.bf16 %v3307, %v3305
    %v3320 = vpack.c.bf16 %v3308, %v3306
    %v3321 = vpack.c.bf16 %v3311, %v3309
    %v3322 = vpack.c.bf16 %v3312, %v3310
    %v3323 = vpack.c.bf16 %v3315, %v3313
    %v3324 = vpack.c.bf16 %v3316, %v3314
    %s3325 = scalar_lea.vmem [#allocation10], 512
    %v3326 = vld [vmem:[%s3325] sm:$0xff]
    %v3327 = vld [vmem:[%s3325 + $0x8] sm:$0xff]
    %v3328 = vld [vmem:[%s3325 + $0x10] sm:$0xff]
    %v3329 = vld [vmem:[%s3325 + $0x18] sm:$0xff]
    %v3330 = vld [vmem:[%s3325 + $0x20] sm:$0xff]
    %v3331 = vld [vmem:[%s3325 + $0x28] sm:$0xff]
    %v3332 = vld [vmem:[%s3325 + $0x30] sm:$0xff]
    %v3333 = vld [vmem:[%s3325 + $0x38] sm:$0xff]
    %v3334 = vld [vmem:[%s3325 + $0x40] sm:$0xff]
    %v3335 = vld [vmem:[%s3325 + $0x48] sm:$0xff]
    %v3336 = vld [vmem:[%s3325 + $0x50] sm:$0xff]
    %v3337 = vld [vmem:[%s3325 + $0x58] sm:$0xff]
    %v3338 = vld [vmem:[%s3325 + $0x60] sm:$0xff]
    %v3339 = vld [vmem:[%s3325 + $0x68] sm:$0xff]
    %v3340 = vld [vmem:[%s3325 + $0x70] sm:$0xff]
    %v3341 = vld [vmem:[%s3325 + $0x78] sm:$0xff]
    %v3342 = vld [vmem:[%s3325 + $0x80] sm:$0xff]
    %v3343 = vld [vmem:[%s3325 + $0x88] sm:$0xff]
    %v3344 = vld [vmem:[%s3325 + $0x90] sm:$0xff]
    %v3345 = vld [vmem:[%s3325 + $0x98] sm:$0xff]
    %v3346 = vld [vmem:[%s3325 + $0xa0] sm:$0xff]
    %v3347 = vld [vmem:[%s3325 + $0xa8] sm:$0xff]
    %v3348 = vld [vmem:[%s3325 + $0xb0] sm:$0xff]
    %v3349 = vld [vmem:[%s3325 + $0xb8] sm:$0xff]
    %v3350 = vld [vmem:[%s3325 + $0xc0] sm:$0xff]
    %v3351 = vld [vmem:[%s3325 + $0xc8] sm:$0xff]
    %v3352 = vld [vmem:[%s3325 + $0xd0] sm:$0xff]
    %v3353 = vld [vmem:[%s3325 + $0xd8] sm:$0xff]
    %v3354 = vld [vmem:[%s3325 + $0xe0] sm:$0xff]
    %v3355 = vld [vmem:[%s3325 + $0xe8] sm:$0xff]
    %v3356 = vld [vmem:[%s3325 + $0xf0] sm:$0xff]
    %v3357 = vld [vmem:[%s3325 + $0xf8] sm:$0xff]
    %v3390 = vunpack.c.l.b16 %v3326
    %v3391 = vunpack.c.h.b16 %v3326
    %v3392 = vunpack.c.l.b16 %v3327
    %v3393 = vunpack.c.h.b16 %v3327
    %v3394 = vunpack.c.l.b16 %v3328
    %v3395 = vunpack.c.h.b16 %v3328
    %v3396 = vunpack.c.l.b16 %v3329
    %v3397 = vunpack.c.h.b16 %v3329
    %v3398 = vunpack.c.l.b16 %v3330
    %v3399 = vunpack.c.h.b16 %v3330
    %v3400 = vunpack.c.l.b16 %v3331
    %v3401 = vunpack.c.h.b16 %v3331
    %v3402 = vunpack.c.l.b16 %v3332
    %v3403 = vunpack.c.h.b16 %v3332
    %v3404 = vunpack.c.l.b16 %v3333
    %v3405 = vunpack.c.h.b16 %v3333
    %v3406 = vunpack.c.l.b16 %v3334
    %v3407 = vunpack.c.h.b16 %v3334
    %v3408 = vunpack.c.l.b16 %v3335
    %v3409 = vunpack.c.h.b16 %v3335
    %v3410 = vunpack.c.l.b16 %v3336
    %v3411 = vunpack.c.h.b16 %v3336
    %v3412 = vunpack.c.l.b16 %v3337
    %v3413 = vunpack.c.h.b16 %v3337
    %v3414 = vunpack.c.l.b16 %v3338
    %v3415 = vunpack.c.h.b16 %v3338
    %v3416 = vunpack.c.l.b16 %v3339
    %v3417 = vunpack.c.h.b16 %v3339
    %v3418 = vunpack.c.l.b16 %v3340
    %v3419 = vunpack.c.h.b16 %v3340
    %v3420 = vunpack.c.l.b16 %v3341
    %v3421 = vunpack.c.h.b16 %v3341
    %v3422 = vunpack.c.l.b16 %v3342
    %v3423 = vunpack.c.h.b16 %v3342
    %v3424 = vunpack.c.l.b16 %v3343
    %v3425 = vunpack.c.h.b16 %v3343
    %v3426 = vunpack.c.l.b16 %v3344
    %v3427 = vunpack.c.h.b16 %v3344
    %v3428 = vunpack.c.l.b16 %v3345
    %v3429 = vunpack.c.h.b16 %v3345
    %v3430 = vunpack.c.l.b16 %v3346
    %v3431 = vunpack.c.h.b16 %v3346
    %v3432 = vunpack.c.l.b16 %v3347
    %v3433 = vunpack.c.h.b16 %v3347
    %v3434 = vunpack.c.l.b16 %v3348
    %v3435 = vunpack.c.h.b16 %v3348
    %v3436 = vunpack.c.l.b16 %v3349
    %v3437 = vunpack.c.h.b16 %v3349
    %v3438 = vunpack.c.l.b16 %v3350
    %v3439 = vunpack.c.h.b16 %v3350
    %v3440 = vunpack.c.l.b16 %v3351
    %v3441 = vunpack.c.h.b16 %v3351
    %v3442 = vunpack.c.l.b16 %v3352
    %v3443 = vunpack.c.h.b16 %v3352
    %v3444 = vunpack.c.l.b16 %v3353
    %v3445 = vunpack.c.h.b16 %v3353
    %v3446 = vunpack.c.l.b16 %v3354
    %v3447 = vunpack.c.h.b16 %v3354
    %v3448 = vunpack.c.l.b16 %v3355
    %v3449 = vunpack.c.h.b16 %v3355
    %v3450 = vunpack.c.l.b16 %v3356
    %v3451 = vunpack.c.h.b16 %v3356
    %v3452 = vunpack.c.l.b16 %v3357
    %v3453 = vunpack.c.h.b16 %v3357
    %v3454 = vpack.c.b16 %v3392, %v3390
    %v3455 = vpack.c.b16 %v3393, %v3391
    %v3456 = vpack.c.b16 %v3396, %v3394
    %v3457 = vpack.c.b16 %v3397, %v3395
    %v3458 = vpack.c.b16 %v3400, %v3398
    %v3459 = vpack.c.b16 %v3401, %v3399
    %v3460 = vpack.c.b16 %v3404, %v3402
    %v3461 = vpack.c.b16 %v3405, %v3403
    %v3462 = vpack.c.b16 %v3408, %v3406
    %v3463 = vpack.c.b16 %v3409, %v3407
    %v3464 = vpack.c.b16 %v3412, %v3410
    %v3465 = vpack.c.b16 %v3413, %v3411
    %v3466 = vpack.c.b16 %v3416, %v3414
    %v3467 = vpack.c.b16 %v3417, %v3415
    %v3468 = vpack.c.b16 %v3420, %v3418
    %v3469 = vpack.c.b16 %v3421, %v3419
    %v3470 = vpack.c.b16 %v3424, %v3422
    %v3471 = vpack.c.b16 %v3425, %v3423
    %v3472 = vpack.c.b16 %v3428, %v3426
    %v3473 = vpack.c.b16 %v3429, %v3427
    %v3474 = vpack.c.b16 %v3432, %v3430
    %v3475 = vpack.c.b16 %v3433, %v3431
    %v3476 = vpack.c.b16 %v3436, %v3434
    %v3477 = vpack.c.b16 %v3437, %v3435
    %v3478 = vpack.c.b16 %v3440, %v3438
    %v3479 = vpack.c.b16 %v3441, %v3439
    %v3480 = vpack.c.b16 %v3444, %v3442
    %v3481 = vpack.c.b16 %v3445, %v3443
    %v3482 = vpack.c.b16 %v3448, %v3446
    %v3483 = vpack.c.b16 %v3449, %v3447
    %v3484 = vpack.c.b16 %v3452, %v3450
    %v3485 = vpack.c.b16 %v3453, %v3451
    %3518 = vmatprep.subr.bf16.mxu0 %v3455
    %3519 = vmatpush1.bf16.msra.mxu0 %v3454
    %3520 = vmatprep.subr.bf16.mxu0 %v3457
    %3521 = vmatpush1.bf16.msra.mxu0 %v3456
    %3522 = vmatprep.subr.bf16.mxu0 %v3459
    %3523 = vmatpush1.bf16.msra.mxu0 %v3458
    %3524 = vmatprep.subr.bf16.mxu0 %v3461
    %3525 = vmatpush1.bf16.msra.mxu0 %v3460
    %3526 = vmatprep.subr.bf16.mxu0 %v3463
    %3527 = vmatpush1.bf16.msra.mxu0 %v3462
    %3528 = vmatprep.subr.bf16.mxu0 %v3465
    %3529 = vmatpush1.bf16.msra.mxu0 %v3464
    %3530 = vmatprep.subr.bf16.mxu0 %v3467
    %3531 = vmatpush1.bf16.msra.mxu0 %v3466
    %3532 = vmatprep.subr.bf16.mxu0 %v3469
    %3533 = vmatpush1.bf16.msra.mxu0 %v3468
    %3534 = vmatprep.subr.bf16.mxu0 %v3471
    %3535 = vmatpush1.bf16.msra.mxu0 %v3470
    %3536 = vmatprep.subr.bf16.mxu0 %v3473
    %3537 = vmatpush1.bf16.msra.mxu0 %v3472
    %3538 = vmatprep.subr.bf16.mxu0 %v3475
    %3539 = vmatpush1.bf16.msra.mxu0 %v3474
    %3540 = vmatprep.subr.bf16.mxu0 %v3477
    %3541 = vmatpush1.bf16.msra.mxu0 %v3476
    %3542 = vmatprep.subr.bf16.mxu0 %v3479
    %3543 = vmatpush1.bf16.msra.mxu0 %v3478
    %3544 = vmatprep.subr.bf16.mxu0 %v3481
    %3545 = vmatpush1.bf16.msra.mxu0 %v3480
    %3546 = vmatprep.subr.bf16.mxu0 %v3483
    %3547 = vmatpush1.bf16.msra.mxu0 %v3482
    %3548 = vmatprep.subr.bf16.mxu0 %v3485
    %3549 = vmatpush1.bf16.msra.mxu0 %v3484
    %3550 = vmatprep.mubr.bf16.mxu0 %v3318
    %3551 = vmatmul.mubr.bf16.gmra.mrb[0].mxu0 %v3317
    %v3552 = vpop.f32.mrb[0].mxu0
    %v3553 = vadd.f32 0.0, %v3552
    %v3554 = vpop.f32.mrb[0].mxu0
    %v3555 = vadd.f32 0.0, %v3554
    %v3556 = vpop.f32.mrb[0].mxu0
    %v3557 = vadd.f32 0.0, %v3556
    %v3558 = vpop.f32.mrb[0].mxu0
    %v3559 = vadd.f32 0.0, %v3558
    %3560 = vmatprep.mubr.bf16.mxu0 %v3320
    %3561 = vmatmul.mubr.bf16.gmra.mrb[0].mxu0 %v3319
    %v3562 = vpop.f32.mrb[0].mxu0
    %v3563 = vadd.f32 0.0, %v3562
    %v3564 = vpop.f32.mrb[0].mxu0
    %v3565 = vadd.f32 0.0, %v3564
    %v3566 = vpop.f32.mrb[0].mxu0
    %v3567 = vadd.f32 0.0, %v3566
    %v3568 = vpop.f32.mrb[0].mxu0
    %v3569 = vadd.f32 0.0, %v3568
    %3570 = vmatprep.mubr.bf16.mxu0 %v3322
    %3571 = vmatmul.mubr.bf16.gmra.mrb[0].mxu0 %v3321
    %v3572 = vpop.f32.mrb[0].mxu0
    %v3573 = vadd.f32 0.0, %v3572
    %v3574 = vpop.f32.mrb[0].mxu0
    %v3575 = vadd.f32 0.0, %v3574
    %v3576 = vpop.f32.mrb[0].mxu0
    %v3577 = vadd.f32 0.0, %v3576
    %v3578 = vpop.f32.mrb[0].mxu0
    %v3579 = vadd.f32 0.0, %v3578
    %3580 = vmatprep.mubr.bf16.mxu0 %v3324
    %3581 = vmatmul.mubr.bf16.gmra.mrb[0].mxu0 %v3323
    %v3582 = vpop.f32.mrb[0].mxu0
    %v3583 = vadd.f32 0.0, %v3582
    %v3584 = vpop.f32.mrb[0].mxu0
    %v3585 = vadd.f32 0.0, %v3584
    %v3586 = vpop.f32.mrb[0].mxu0
    %v3587 = vadd.f32 0.0, %v3586
    %v3588 = vpop.f32.mrb[0].mxu0
    %v3589 = vadd.f32 0.0, %v3588
    %3590 = vdwg.mxu0
    %v3591 = vadd.f32 %v3247, %v3553
    %v3592 = vadd.f32 %v3249, %v3555
    %v3593 = vadd.f32 %v3251, %v3557
    %v3594 = vadd.f32 %v3253, %v3559
    %v3595 = vadd.f32 %v3257, %v3563
    %v3596 = vadd.f32 %v3259, %v3565
    %v3597 = vadd.f32 %v3261, %v3567
    %v3598 = vadd.f32 %v3263, %v3569
    %v3599 = vadd.f32 %v3267, %v3573
    %v3600 = vadd.f32 %v3269, %v3575
    %v3601 = vadd.f32 %v3271, %v3577
    %v3602 = vadd.f32 %v3273, %v3579
    %v3603 = vadd.f32 %v3277, %v3583
    %v3604 = vadd.f32 %v3279, %v3585
    %v3605 = vadd.f32 %v3281, %v3587
    %v3606 = vadd.f32 %v3283, %v3589
    %v3607 = vld [vmem:[#allocation16] sm:$0x3]
    %v3609 = vlaneseq
    %v3610 = vshrl.u32 %v3609, 7
    %v3611 = vsub.s32 0, %v3610
    %v3612 = vrot.slane %v3607, %v3611
    %v3613 = vlaneseq
    %v3614 = vshrl.u32 %v3613, 7
    %v3615 = vsub.s32 1, %v3614
    %v3616 = vrot.slane %v3607, %v3615
    %v3619 = vadd.f32 %v3591, %v3612
    %v3620 = vadd.f32 %v3592, %v3616
    %v3621 = vadd.f32 %v3593, %v3612
    %v3622 = vadd.f32 %v3594, %v3616
    %v3623 = vadd.f32 %v3595, %v3612
    %v3624 = vadd.f32 %v3596, %v3616
    %v3625 = vadd.f32 %v3597, %v3612
    %v3626 = vadd.f32 %v3598, %v3616
    %v3627 = vadd.f32 %v3599, %v3612
    %v3628 = vadd.f32 %v3600, %v3616
    %v3629 = vadd.f32 %v3601, %v3612
    %v3630 = vadd.f32 %v3602, %v3616
    %v3631 = vadd.f32 %v3603, %v3612
    %v3632 = vadd.f32 %v3604, %v3616
    %v3633 = vadd.f32 %v3605, %v3612
    %v3634 = vadd.f32 %v3606, %v3616
    %v3635 = vmax.f32 %v3619, 0.0
    %v3636 = vmax.f32 %v3620, 0.0
    %v3637 = vmax.f32 %v3621, 0.0
    %v3638 = vmax.f32 %v3622, 0.0
    %v3639 = vmax.f32 %v3623, 0.0
    %v3640 = vmax.f32 %v3624, 0.0
    %v3641 = vmax.f32 %v3625, 0.0
    %v3642 = vmax.f32 %v3626, 0.0
    %v3643 = vmax.f32 %v3627, 0.0
    %v3644 = vmax.f32 %v3628, 0.0
    %v3645 = vmax.f32 %v3629, 0.0
    %v3646 = vmax.f32 %v3630, 0.0
    %v3647 = vmax.f32 %v3631, 0.0
    %v3648 = vmax.f32 %v3632, 0.0
    %v3649 = vmax.f32 %v3633, 0.0
    %v3650 = vmax.f32 %v3634, 0.0
    %v3651 = vpack.c.bf16 %v3635, %v3635
    %v3652 = vpack.c.bf16 %v3636, %v3636
    %v3653 = vpack.c.bf16 %v3637, %v3637
    %v3654 = vpack.c.bf16 %v3638, %v3638
    %v3655 = vpack.c.bf16 %v3639, %v3639
    %v3656 = vpack.c.bf16 %v3640, %v3640
    %v3657 = vpack.c.bf16 %v3641, %v3641
    %v3658 = vpack.c.bf16 %v3642, %v3642
    %v3659 = vpack.c.bf16 %v3643, %v3643
    %v3660 = vpack.c.bf16 %v3644, %v3644
    %v3661 = vpack.c.bf16 %v3645, %v3645
    %v3662 = vpack.c.bf16 %v3646, %v3646
    %v3663 = vpack.c.bf16 %v3647, %v3647
    %v3664 = vpack.c.bf16 %v3648, %v3648
    %v3665 = vpack.c.bf16 %v3649, %v3649
    %v3666 = vpack.c.bf16 %v3650, %v3650
    %v3667 = vld [vmem:[#allocation17] sm:$0xf]
    %v3668 = vld [vmem:[#allocation17 + $0x4] sm:$0xf]
    %v3669 = vld [vmem:[#allocation17 + $0x8] sm:$0xf]
    %v3670 = vld [vmem:[#allocation17 + $0xc] sm:$0xf]
    %v3671 = vld [vmem:[#allocation17 + $0x10] sm:$0xf]
    %v3672 = vld [vmem:[#allocation17 + $0x14] sm:$0xf]
    %v3673 = vld [vmem:[#allocation17 + $0x18] sm:$0xf]
    %v3674 = vld [vmem:[#allocation17 + $0x1c] sm:$0xf]
    %v3675 = vld [vmem:[#allocation17 + $0x20] sm:$0xf]
    %v3676 = vld [vmem:[#allocation17 + $0x24] sm:$0xf]
    %v3677 = vld [vmem:[#allocation17 + $0x28] sm:$0xf]
    %v3678 = vld [vmem:[#allocation17 + $0x2c] sm:$0xf]
    %v3679 = vld [vmem:[#allocation17 + $0x30] sm:$0xf]
    %v3680 = vld [vmem:[#allocation17 + $0x34] sm:$0xf]
    %v3681 = vld [vmem:[#allocation17 + $0x38] sm:$0xf]
    %v3682 = vld [vmem:[#allocation17 + $0x3c] sm:$0xf]
    %v3683 = vld [vmem:[#allocation17 + $0x40] sm:$0xf]
    %v3684 = vld [vmem:[#allocation17 + $0x44] sm:$0xf]
    %v3685 = vld [vmem:[#allocation17 + $0x48] sm:$0xf]
    %v3686 = vld [vmem:[#allocation17 + $0x4c] sm:$0xf]
    %v3687 = vld [vmem:[#allocation17 + $0x50] sm:$0xf]
    %v3688 = vld [vmem:[#allocation17 + $0x54] sm:$0xf]
    %v3689 = vld [vmem:[#allocation17 + $0x58] sm:$0xf]
    %v3690 = vld [vmem:[#allocation17 + $0x5c] sm:$0xf]
    %v3691 = vld [vmem:[#allocation17 + $0x60] sm:$0xf]
    %v3692 = vld [vmem:[#allocation17 + $0x64] sm:$0xf]
    %v3693 = vld [vmem:[#allocation17 + $0x68] sm:$0xf]
    %v3694 = vld [vmem:[#allocation17 + $0x6c] sm:$0xf]
    %v3695 = vld [vmem:[#allocation17 + $0x70] sm:$0xf]
    %v3696 = vld [vmem:[#allocation17 + $0x74] sm:$0xf]
    %v3697 = vld [vmem:[#allocation17 + $0x78] sm:$0xf]
    %v3698 = vld [vmem:[#allocation17 + $0x7c] sm:$0xf]
    %s3699 = scalar_lea.vmem [#allocation17], 128
    %v3700 = vld [vmem:[%s3699] sm:$0xf]
    %v3701 = vld [vmem:[%s3699 + $0x4] sm:$0xf]
    %v3702 = vld [vmem:[%s3699 + $0x8] sm:$0xf]
    %v3703 = vld [vmem:[%s3699 + $0xc] sm:$0xf]
    %v3704 = vld [vmem:[%s3699 + $0x10] sm:$0xf]
    %v3705 = vld [vmem:[%s3699 + $0x14] sm:$0xf]
    %v3706 = vld [vmem:[%s3699 + $0x18] sm:$0xf]
    %v3707 = vld [vmem:[%s3699 + $0x1c] sm:$0xf]
    %v3708 = vld [vmem:[%s3699 + $0x20] sm:$0xf]
    %v3709 = vld [vmem:[%s3699 + $0x24] sm:$0xf]
    %v3710 = vld [vmem:[%s3699 + $0x28] sm:$0xf]
    %v3711 = vld [vmem:[%s3699 + $0x2c] sm:$0xf]
    %v3712 = vld [vmem:[%s3699 + $0x30] sm:$0xf]
    %v3713 = vld [vmem:[%s3699 + $0x34] sm:$0xf]
    %v3714 = vld [vmem:[%s3699 + $0x38] sm:$0xf]
    %v3715 = vld [vmem:[%s3699 + $0x3c] sm:$0xf]
    %v3716 = vld [vmem:[%s3699 + $0x40] sm:$0xf]
    %v3717 = vld [vmem:[%s3699 + $0x44] sm:$0xf]
    %v3718 = vld [vmem:[%s3699 + $0x48] sm:$0xf]
    %v3719 = vld [vmem:[%s3699 + $0x4c] sm:$0xf]
    %v3720 = vld [vmem:[%s3699 + $0x50] sm:$0xf]
    %v3721 = vld [vmem:[%s3699 + $0x54] sm:$0xf]
    %v3722 = vld [vmem:[%s3699 + $0x58] sm:$0xf]
    %v3723 = vld [vmem:[%s3699 + $0x5c] sm:$0xf]
    %v3724 = vld [vmem:[%s3699 + $0x60] sm:$0xf]
    %v3725 = vld [vmem:[%s3699 + $0x64] sm:$0xf]
    %v3726 = vld [vmem:[%s3699 + $0x68] sm:$0xf]
    %v3727 = vld [vmem:[%s3699 + $0x6c] sm:$0xf]
    %v3728 = vld [vmem:[%s3699 + $0x70] sm:$0xf]
    %v3729 = vld [vmem:[%s3699 + $0x74] sm:$0xf]
    %v3730 = vld [vmem:[%s3699 + $0x78] sm:$0xf]
    %v3731 = vld [vmem:[%s3699 + $0x7c] sm:$0xf]
    %v3748 = vunpack.c.l.b16 %v3651
    %v3749 = vunpack.c.l.b16 %v3652
    %v3750 = vunpack.c.l.b16 %v3653
    %v3751 = vunpack.c.l.b16 %v3654
    %v3752 = vunpack.c.l.b16 %v3655
    %v3753 = vunpack.c.l.b16 %v3656
    %v3754 = vunpack.c.l.b16 %v3657
    %v3755 = vunpack.c.l.b16 %v3658
    %v3756 = vunpack.c.l.b16 %v3659
    %v3757 = vunpack.c.l.b16 %v3660
    %v3758 = vunpack.c.l.b16 %v3661
    %v3759 = vunpack.c.l.b16 %v3662
    %v3760 = vunpack.c.l.b16 %v3663
    %v3761 = vunpack.c.l.b16 %v3664
    %v3762 = vunpack.c.l.b16 %v3665
    %v3763 = vunpack.c.l.b16 %v3666
    %v3764 = vrot.slane %v3748, 1
    %vm3765 = vcmask 1041409
    %v3766 = vsel %vm3765, %v3750, %v3764
    %v3767 = vrot.slane %v3752, 7
    %vm3768 = vcmask 1042434
    %v3769 = vsel %vm3768, %v3767, %v3766
    %v3770 = vrot.slane %v3754, 6
    %vm3771 = vcmask 1043459
    %v3772 = vsel %vm3771, %v3770, %v3769
    %v3773 = vrot.slane %v3756, 5
    %vm3774 = vcmask 1044484
    %v3775 = vsel %vm3774, %v3773, %v3772
    %v3776 = vrot.slane %v3758, 4
    %vm3777 = vcmask 1045509
    %v3778 = vsel %vm3777, %v3776, %v3775
    %v3779 = vrot.slane %v3760, 3
    %vm3780 = vcmask 1046534
    %v3781 = vsel %vm3780, %v3779, %v3778
    %v3782 = vrot.slane %v3762, 2
    %vm3783 = vcmask 1047559
    %v3784 = vsel %vm3783, %v3782, %v3781
    %v3785 = vrot.slane %v3749, 1
    %v3786 = vsel %vm3765, %v3751, %v3785
    %v3787 = vrot.slane %v3753, 7
    %v3788 = vsel %vm3768, %v3787, %v3786
    %v3789 = vrot.slane %v3755, 6
    %v3790 = vsel %vm3771, %v3789, %v3788
    %v3791 = vrot.slane %v3757, 5
    %v3792 = vsel %vm3774, %v3791, %v3790
    %v3793 = vrot.slane %v3759, 4
    %v3794 = vsel %vm3777, %v3793, %v3792
    %v3795 = vrot.slane %v3761, 3
    %v3796 = vsel %vm3780, %v3795, %v3794
    %v3797 = vrot.slane %v3763, 2
    %v3798 = vsel %vm3783, %v3797, %v3796
    %v3799 = vpack.c.b16 %v3784, %v3784
    %v3800 = vpack.c.b16 %v3798, %v3798
    %v3835 = vunpack.c.l.b16 %v3700
    %v3836 = vunpack.c.l.b16 %v3701
    %v3837 = vunpack.c.l.b16 %v3702
    %v3838 = vunpack.c.l.b16 %v3703
    %v3839 = vunpack.c.l.b16 %v3704
    %v3840 = vunpack.c.l.b16 %v3705
    %v3841 = vunpack.c.l.b16 %v3706
    %v3842 = vunpack.c.l.b16 %v3707
    %v3843 = vunpack.c.l.b16 %v3708
    %v3844 = vunpack.c.l.b16 %v3709
    %v3845 = vunpack.c.l.b16 %v3710
    %v3846 = vunpack.c.l.b16 %v3711
    %v3847 = vunpack.c.l.b16 %v3712
    %v3848 = vunpack.c.l.b16 %v3713
    %v3849 = vunpack.c.l.b16 %v3714
    %v3850 = vunpack.c.l.b16 %v3715
    %v3851 = vunpack.c.l.b16 %v3716
    %v3852 = vunpack.c.l.b16 %v3717
    %v3853 = vunpack.c.l.b16 %v3718
    %v3854 = vunpack.c.l.b16 %v3719
    %v3855 = vunpack.c.l.b16 %v3720
    %v3856 = vunpack.c.l.b16 %v3721
    %v3857 = vunpack.c.l.b16 %v3722
    %v3858 = vunpack.c.l.b16 %v3723
    %v3859 = vunpack.c.l.b16 %v3724
    %v3860 = vunpack.c.l.b16 %v3725
    %v3861 = vunpack.c.l.b16 %v3726
    %v3862 = vunpack.c.l.b16 %v3727
    %v3863 = vunpack.c.l.b16 %v3728
    %v3864 = vunpack.c.l.b16 %v3729
    %v3865 = vunpack.c.l.b16 %v3730
    %v3866 = vunpack.c.l.b16 %v3731
    %v3867 = vpack.c.b16 %v3836, %v3835
    %v3868 = vpack.c.b16 %v3838, %v3837
    %v3869 = vpack.c.b16 %v3840, %v3839
    %v3870 = vpack.c.b16 %v3842, %v3841
    %v3871 = vpack.c.b16 %v3844, %v3843
    %v3872 = vpack.c.b16 %v3846, %v3845
    %v3873 = vpack.c.b16 %v3848, %v3847
    %v3874 = vpack.c.b16 %v3850, %v3849
    %v3875 = vpack.c.b16 %v3852, %v3851
    %v3876 = vpack.c.b16 %v3854, %v3853
    %v3877 = vpack.c.b16 %v3856, %v3855
    %v3878 = vpack.c.b16 %v3858, %v3857
    %v3879 = vpack.c.b16 %v3860, %v3859
    %v3880 = vpack.c.b16 %v3862, %v3861
    %v3881 = vpack.c.b16 %v3864, %v3863
    %v3882 = vpack.c.b16 %v3866, %v3865
    %3899 = vmatprep.subr.bf16.mxu0 0
    %3900 = vmatpush1.bf16.msra.mxu0 %v3867
    %3901 = vmatprep.subr.bf16.mxu0 0
    %3902 = vmatpush1.bf16.msra.mxu0 %v3868
    %3903 = vmatprep.subr.bf16.mxu0 0
    %3904 = vmatpush1.bf16.msra.mxu0 %v3869
    %3905 = vmatprep.subr.bf16.mxu0 0
    %3906 = vmatpush1.bf16.msra.mxu0 %v3870
    %3907 = vmatprep.subr.bf16.mxu0 0
    %3908 = vmatpush1.bf16.msra.mxu0 %v3871
    %3909 = vmatprep.subr.bf16.mxu0 0
    %3910 = vmatpush1.bf16.msra.mxu0 %v3872
    %3911 = vmatprep.subr.bf16.mxu0 0
    %3912 = vmatpush1.bf16.msra.mxu0 %v3873
    %3913 = vmatprep.subr.bf16.mxu0 0
    %3914 = vmatpush1.bf16.msra.mxu0 %v3874
    %3915 = vmatprep.subr.bf16.mxu0 0
    %3916 = vmatpush1.bf16.msra.mxu0 %v3875
    %3917 = vmatprep.subr.bf16.mxu0 0
    %3918 = vmatpush1.bf16.msra.mxu0 %v3876
    %3919 = vmatprep.subr.bf16.mxu0 0
    %3920 = vmatpush1.bf16.msra.mxu0 %v3877
    %3921 = vmatprep.subr.bf16.mxu0 0
    %3922 = vmatpush1.bf16.msra.mxu0 %v3878
    %3923 = vmatprep.subr.bf16.mxu0 0
    %3924 = vmatpush1.bf16.msra.mxu0 %v3879
    %3925 = vmatprep.subr.bf16.mxu0 0
    %3926 = vmatpush1.bf16.msra.mxu0 %v3880
    %3927 = vmatprep.subr.bf16.mxu0 0
    %3928 = vmatpush1.bf16.msra.mxu0 %v3881
    %3929 = vmatprep.subr.bf16.mxu0 0
    %3930 = vmatpush1.bf16.msra.mxu0 %v3882
    %3931 = vmatprep.mubr.bf16.mxu0 %v3800
    %3932 = vmatmul.mubr.bf16.gmra.mrb[0].mxu0 %v3799
    %v3933 = vpop.f32.mrb[0].mxu0
    %v3934 = vadd.f32 0.0, %v3933
    %v3935 = vpop.f32.mrb[0].mxu0
    %v3936 = vpop.f32.mrb[0].mxu0
    %v3937 = vpop.f32.mrb[0].mxu0
    %3938 = vdwg.mxu0
    %v3939 = vrot.slane %v3750, 7
    %v3940 = vsel %vm3765, %v3939, %v3748
    %v3941 = vrot.slane %v3752, 6
    %v3942 = vsel %vm3768, %v3941, %v3940
    %v3943 = vrot.slane %v3754, 5
    %v3944 = vsel %vm3771, %v3943, %v3942
    %v3945 = vrot.slane %v3756, 4
    %v3946 = vsel %vm3774, %v3945, %v3944
    %v3947 = vrot.slane %v3758, 3
    %v3948 = vsel %vm3777, %v3947, %v3946
    %v3949 = vrot.slane %v3760, 2
    %v3950 = vsel %vm3780, %v3949, %v3948
    %v3951 = vrot.slane %v3762, 1
    %v3952 = vsel %vm3783, %v3951, %v3950
    %v3953 = vrot.slane %v3751, 7
    %v3954 = vsel %vm3765, %v3953, %v3749
    %v3955 = vrot.slane %v3753, 6
    %v3956 = vsel %vm3768, %v3955, %v3954
    %v3957 = vrot.slane %v3755, 5
    %v3958 = vsel %vm3771, %v3957, %v3956
    %v3959 = vrot.slane %v3757, 4
    %v3960 = vsel %vm3774, %v3959, %v3958
    %v3961 = vrot.slane %v3759, 3
    %v3962 = vsel %vm3777, %v3961, %v3960
    %v3963 = vrot.slane %v3761, 2
    %v3964 = vsel %vm3780, %v3963, %v3962
    %v3965 = vrot.slane %v3763, 1
    %v3966 = vsel %vm3783, %v3965, %v3964
    %v3967 = vpack.c.b16 %v3952, %v3952
    %v3968 = vpack.c.b16 %v3966, %v3966
    %v4003 = vunpack.c.l.b16 %v3667
    %v4004 = vunpack.c.l.b16 %v3668
    %v4005 = vunpack.c.l.b16 %v3669
    %v4006 = vunpack.c.l.b16 %v3670
    %v4007 = vunpack.c.l.b16 %v3671
    %v4008 = vunpack.c.l.b16 %v3672
    %v4009 = vunpack.c.l.b16 %v3673
    %v4010 = vunpack.c.l.b16 %v3674
    %v4011 = vunpack.c.l.b16 %v3675
    %v4012 = vunpack.c.l.b16 %v3676
    %v4013 = vunpack.c.l.b16 %v3677
    %v4014 = vunpack.c.l.b16 %v3678
    %v4015 = vunpack.c.l.b16 %v3679
    %v4016 = vunpack.c.l.b16 %v3680
    %v4017 = vunpack.c.l.b16 %v3681
    %v4018 = vunpack.c.l.b16 %v3682
    %v4019 = vunpack.c.l.b16 %v3683
    %v4020 = vunpack.c.l.b16 %v3684
    %v4021 = vunpack.c.l.b16 %v3685
    %v4022 = vunpack.c.l.b16 %v3686
    %v4023 = vunpack.c.l.b16 %v3687
    %v4024 = vunpack.c.l.b16 %v3688
    %v4025 = vunpack.c.l.b16 %v3689
    %v4026 = vunpack.c.l.b16 %v3690
    %v4027 = vunpack.c.l.b16 %v3691
    %v4028 = vunpack.c.l.b16 %v3692
    %v4029 = vunpack.c.l.b16 %v3693
    %v4030 = vunpack.c.l.b16 %v3694
    %v4031 = vunpack.c.l.b16 %v3695
    %v4032 = vunpack.c.l.b16 %v3696
    %v4033 = vunpack.c.l.b16 %v3697
    %v4034 = vunpack.c.l.b16 %v3698
    %v4035 = vpack.c.b16 %v4004, %v4003
    %v4036 = vpack.c.b16 %v4006, %v4005
    %v4037 = vpack.c.b16 %v4008, %v4007
    %v4038 = vpack.c.b16 %v4010, %v4009
    %v4039 = vpack.c.b16 %v4012, %v4011
    %v4040 = vpack.c.b16 %v4014, %v4013
    %v4041 = vpack.c.b16 %v4016, %v4015
    %v4042 = vpack.c.b16 %v4018, %v4017
    %v4043 = vpack.c.b16 %v4020, %v4019
    %v4044 = vpack.c.b16 %v4022, %v4021
    %v4045 = vpack.c.b16 %v4024, %v4023
    %v4046 = vpack.c.b16 %v4026, %v4025
    %v4047 = vpack.c.b16 %v4028, %v4027
    %v4048 = vpack.c.b16 %v4030, %v4029
    %v4049 = vpack.c.b16 %v4032, %v4031
    %v4050 = vpack.c.b16 %v4034, %v4033
    %4067 = vmatprep.subr.bf16.mxu0 0
    %4068 = vmatpush1.bf16.msra.mxu0 %v4035
    %4069 = vmatprep.subr.bf16.mxu0 0
    %4070 = vmatpush1.bf16.msra.mxu0 %v4036
    %4071 = vmatprep.subr.bf16.mxu0 0
    %4072 = vmatpush1.bf16.msra.mxu0 %v4037
    %4073 = vmatprep.subr.bf16.mxu0 0
    %4074 = vmatpush1.bf16.msra.mxu0 %v4038
    %4075 = vmatprep.subr.bf16.mxu0 0
    %4076 = vmatpush1.bf16.msra.mxu0 %v4039
    %4077 = vmatprep.subr.bf16.mxu0 0
    %4078 = vmatpush1.bf16.msra.mxu0 %v4040
    %4079 = vmatprep.subr.bf16.mxu0 0
    %4080 = vmatpush1.bf16.msra.mxu0 %v4041
    %4081 = vmatprep.subr.bf16.mxu0 0
    %4082 = vmatpush1.bf16.msra.mxu0 %v4042
    %4083 = vmatprep.subr.bf16.mxu0 0
    %4084 = vmatpush1.bf16.msra.mxu0 %v4043
    %4085 = vmatprep.subr.bf16.mxu0 0
    %4086 = vmatpush1.bf16.msra.mxu0 %v4044
    %4087 = vmatprep.subr.bf16.mxu0 0
    %4088 = vmatpush1.bf16.msra.mxu0 %v4045
    %4089 = vmatprep.subr.bf16.mxu0 0
    %4090 = vmatpush1.bf16.msra.mxu0 %v4046
    %4091 = vmatprep.subr.bf16.mxu0 0
    %4092 = vmatpush1.bf16.msra.mxu0 %v4047
    %4093 = vmatprep.subr.bf16.mxu0 0
    %4094 = vmatpush1.bf16.msra.mxu0 %v4048
    %4095 = vmatprep.subr.bf16.mxu0 0
    %4096 = vmatpush1.bf16.msra.mxu0 %v4049
    %4097 = vmatprep.subr.bf16.mxu0 0
    %4098 = vmatpush1.bf16.msra.mxu0 %v4050
    %4099 = vmatprep.mubr.bf16.mxu0 %v3968
    %4100 = vmatmul.mubr.bf16.gmra.mrb[0].mxu0 %v3967
    %v4101 = vpop.f32.mrb[0].mxu0
    %v4102 = vadd.f32 %v3934, %v4101
    %v4103 = vpop.f32.mrb[0].mxu0
    %v4104 = vpop.f32.mrb[0].mxu0
    %v4105 = vpop.f32.mrb[0].mxu0
    %4106 = vdwg.mxu0
    %s4107 = scalar_lea.vmem [#allocation17], 256
    %v4108 = vld [vmem:[%s4107] sm:$0xf]
    %v4109 = vld [vmem:[%s4107 + $0x4] sm:$0xf]
    %v4110 = vld [vmem:[%s4107 + $0x8] sm:$0xf]
    %v4111 = vld [vmem:[%s4107 + $0xc] sm:$0xf]
    %v4112 = vld [vmem:[%s4107 + $0x10] sm:$0xf]
    %v4113 = vld [vmem:[%s4107 + $0x14] sm:$0xf]
    %v4114 = vld [vmem:[%s4107 + $0x18] sm:$0xf]
    %v4115 = vld [vmem:[%s4107 + $0x1c] sm:$0xf]
    %v4116 = vld [vmem:[%s4107 + $0x20] sm:$0xf]
    %v4117 = vld [vmem:[%s4107 + $0x24] sm:$0xf]
    %v4118 = vld [vmem:[%s4107 + $0x28] sm:$0xf]
    %v4119 = vld [vmem:[%s4107 + $0x2c] sm:$0xf]
    %v4120 = vld [vmem:[%s4107 + $0x30] sm:$0xf]
    %v4121 = vld [vmem:[%s4107 + $0x34] sm:$0xf]
    %v4122 = vld [vmem:[%s4107 + $0x38] sm:$0xf]
    %v4123 = vld [vmem:[%s4107 + $0x3c] sm:$0xf]
    %v4124 = vld [vmem:[%s4107 + $0x40] sm:$0xf]
    %v4125 = vld [vmem:[%s4107 + $0x44] sm:$0xf]
    %v4126 = vld [vmem:[%s4107 + $0x48] sm:$0xf]
    %v4127 = vld [vmem:[%s4107 + $0x4c] sm:$0xf]
    %v4128 = vld [vmem:[%s4107 + $0x50] sm:$0xf]
    %v4129 = vld [vmem:[%s4107 + $0x54] sm:$0xf]
    %v4130 = vld [vmem:[%s4107 + $0x58] sm:$0xf]
    %v4131 = vld [vmem:[%s4107 + $0x5c] sm:$0xf]
    %v4132 = vld [vmem:[%s4107 + $0x60] sm:$0xf]
    %v4133 = vld [vmem:[%s4107 + $0x64] sm:$0xf]
    %v4134 = vld [vmem:[%s4107 + $0x68] sm:$0xf]
    %v4135 = vld [vmem:[%s4107 + $0x6c] sm:$0xf]
    %v4136 = vld [vmem:[%s4107 + $0x70] sm:$0xf]
    %v4137 = vld [vmem:[%s4107 + $0x74] sm:$0xf]
    %v4138 = vld [vmem:[%s4107 + $0x78] sm:$0xf]
    %v4139 = vld [vmem:[%s4107 + $0x7c] sm:$0xf]
    %v4140 = vrot.slane %v3748, 2
    %v4141 = vrot.slane %v3750, 1
    %v4142 = vsel %vm3765, %v4141, %v4140
    %v4143 = vsel %vm3768, %v3752, %v4142
    %v4144 = vrot.slane %v3754, 7
    %v4145 = vsel %vm3771, %v4144, %v4143
    %v4146 = vrot.slane %v3756, 6
    %v4147 = vsel %vm3774, %v4146, %v4145
    %v4148 = vrot.slane %v3758, 5
    %v4149 = vsel %vm3777, %v4148, %v4147
    %v4150 = vrot.slane %v3760, 4
    %v4151 = vsel %vm3780, %v4150, %v4149
    %v4152 = vrot.slane %v3762, 3
    %v4153 = vsel %vm3783, %v4152, %v4151
    %v4154 = vrot.slane %v3749, 2
    %v4155 = vrot.slane %v3751, 1
    %v4156 = vsel %vm3765, %v4155, %v4154
    %v4157 = vsel %vm3768, %v3753, %v4156
    %v4158 = vrot.slane %v3755, 7
    %v4159 = vsel %vm3771, %v4158, %v4157
    %v4160 = vrot.slane %v3757, 6
    %v4161 = vsel %vm3774, %v4160, %v4159
    %v4162 = vrot.slane %v3759, 5
    %v4163 = vsel %vm3777, %v4162, %v4161
    %v4164 = vrot.slane %v3761, 4
    %v4165 = vsel %vm3780, %v4164, %v4163
    %v4166 = vrot.slane %v3763, 3
    %v4167 = vsel %vm3783, %v4166, %v4165
    %v4168 = vpack.c.b16 %v4153, %v4153
    %v4169 = vpack.c.b16 %v4167, %v4167
    %v4204 = vunpack.c.l.b16 %v4108
    %v4205 = vunpack.c.l.b16 %v4109
    %v4206 = vunpack.c.l.b16 %v4110
    %v4207 = vunpack.c.l.b16 %v4111
    %v4208 = vunpack.c.l.b16 %v4112
    %v4209 = vunpack.c.l.b16 %v4113
    %v4210 = vunpack.c.l.b16 %v4114
    %v4211 = vunpack.c.l.b16 %v4115
    %v4212 = vunpack.c.l.b16 %v4116
    %v4213 = vunpack.c.l.b16 %v4117
    %v4214 = vunpack.c.l.b16 %v4118
    %v4215 = vunpack.c.l.b16 %v4119
    %v4216 = vunpack.c.l.b16 %v4120
    %v4217 = vunpack.c.l.b16 %v4121
    %v4218 = vunpack.c.l.b16 %v4122
    %v4219 = vunpack.c.l.b16 %v4123
    %v4220 = vunpack.c.l.b16 %v4124
    %v4221 = vunpack.c.l.b16 %v4125
    %v4222 = vunpack.c.l.b16 %v4126
    %v4223 = vunpack.c.l.b16 %v4127
    %v4224 = vunpack.c.l.b16 %v4128
    %v4225 = vunpack.c.l.b16 %v4129
    %v4226 = vunpack.c.l.b16 %v4130
    %v4227 = vunpack.c.l.b16 %v4131
    %v4228 = vunpack.c.l.b16 %v4132
    %v4229 = vunpack.c.l.b16 %v4133
    %v4230 = vunpack.c.l.b16 %v4134
    %v4231 = vunpack.c.l.b16 %v4135
    %v4232 = vunpack.c.l.b16 %v4136
    %v4233 = vunpack.c.l.b16 %v4137
    %v4234 = vunpack.c.l.b16 %v4138
    %v4235 = vunpack.c.l.b16 %v4139
    %v4236 = vpack.c.b16 %v4205, %v4204
    %v4237 = vpack.c.b16 %v4207, %v4206
    %v4238 = vpack.c.b16 %v4209, %v4208
    %v4239 = vpack.c.b16 %v4211, %v4210
    %v4240 = vpack.c.b16 %v4213, %v4212
    %v4241 = vpack.c.b16 %v4215, %v4214
    %v4242 = vpack.c.b16 %v4217, %v4216
    %v4243 = vpack.c.b16 %v4219, %v4218
    %v4244 = vpack.c.b16 %v4221, %v4220
    %v4245 = vpack.c.b16 %v4223, %v4222
    %v4246 = vpack.c.b16 %v4225, %v4224
    %v4247 = vpack.c.b16 %v4227, %v4226
    %v4248 = vpack.c.b16 %v4229, %v4228
    %v4249 = vpack.c.b16 %v4231, %v4230
    %v4250 = vpack.c.b16 %v4233, %v4232
    %v4251 = vpack.c.b16 %v4235, %v4234
    %4268 = vmatprep.subr.bf16.mxu0 0
    %4269 = vmatpush1.bf16.msra.mxu0 %v4236
    %4270 = vmatprep.subr.bf16.mxu0 0
    %4271 = vmatpush1.bf16.msra.mxu0 %v4237
    %4272 = vmatprep.subr.bf16.mxu0 0
    %4273 = vmatpush1.bf16.msra.mxu0 %v4238
    %4274 = vmatprep.subr.bf16.mxu0 0
    %4275 = vmatpush1.bf16.msra.mxu0 %v4239
    %4276 = vmatprep.subr.bf16.mxu0 0
    %4277 = vmatpush1.bf16.msra.mxu0 %v4240
    %4278 = vmatprep.subr.bf16.mxu0 0
    %4279 = vmatpush1.bf16.msra.mxu0 %v4241
    %4280 = vmatprep.subr.bf16.mxu0 0
    %4281 = vmatpush1.bf16.msra.mxu0 %v4242
    %4282 = vmatprep.subr.bf16.mxu0 0
    %4283 = vmatpush1.bf16.msra.mxu0 %v4243
    %4284 = vmatprep.subr.bf16.mxu0 0
    %4285 = vmatpush1.bf16.msra.mxu0 %v4244
    %4286 = vmatprep.subr.bf16.mxu0 0
    %4287 = vmatpush1.bf16.msra.mxu0 %v4245
    %4288 = vmatprep.subr.bf16.mxu0 0
    %4289 = vmatpush1.bf16.msra.mxu0 %v4246
    %4290 = vmatprep.subr.bf16.mxu0 0
    %4291 = vmatpush1.bf16.msra.mxu0 %v4247
    %4292 = vmatprep.subr.bf16.mxu0 0
    %4293 = vmatpush1.bf16.msra.mxu0 %v4248
    %4294 = vmatprep.subr.bf16.mxu0 0
    %4295 = vmatpush1.bf16.msra.mxu0 %v4249
    %4296 = vmatprep.subr.bf16.mxu0 0
    %4297 = vmatpush1.bf16.msra.mxu0 %v4250
    %4298 = vmatprep.subr.bf16.mxu0 0
    %4299 = vmatpush1.bf16.msra.mxu0 %v4251
    %4300 = vmatprep.mubr.bf16.mxu0 %v4169
    %4301 = vmatmul.mubr.bf16.gmra.mrb[0].mxu0 %v4168
    %v4302 = vpop.f32.mrb[0].mxu0
    %v4303 = vadd.f32 0.0, %v4302
    %v4304 = vpop.f32.mrb[0].mxu0
    %v4305 = vpop.f32.mrb[0].mxu0
    %v4306 = vpop.f32.mrb[0].mxu0
    %4307 = vdwg.mxu0
    %v4308 = vadd.f32 %v4102, %v4303
    %s4309 = scalar_lea.vmem [#allocation17], 384
    %v4310 = vld [vmem:[%s4309] sm:$0xf]
    %v4311 = vld [vmem:[%s4309 + $0x4] sm:$0xf]
    %v4312 = vld [vmem:[%s4309 + $0x8] sm:$0xf]
    %v4313 = vld [vmem:[%s4309 + $0xc] sm:$0xf]
    %v4314 = vld [vmem:[%s4309 + $0x10] sm:$0xf]
    %v4315 = vld [vmem:[%s4309 + $0x14] sm:$0xf]
    %v4316 = vld [vmem:[%s4309 + $0x18] sm:$0xf]
    %v4317 = vld [vmem:[%s4309 + $0x1c] sm:$0xf]
    %v4318 = vld [vmem:[%s4309 + $0x20] sm:$0xf]
    %v4319 = vld [vmem:[%s4309 + $0x24] sm:$0xf]
    %v4320 = vld [vmem:[%s4309 + $0x28] sm:$0xf]
    %v4321 = vld [vmem:[%s4309 + $0x2c] sm:$0xf]
    %v4322 = vld [vmem:[%s4309 + $0x30] sm:$0xf]
    %v4323 = vld [vmem:[%s4309 + $0x34] sm:$0xf]
    %v4324 = vld [vmem:[%s4309 + $0x38] sm:$0xf]
    %v4325 = vld [vmem:[%s4309 + $0x3c] sm:$0xf]
    %v4326 = vld [vmem:[%s4309 + $0x40] sm:$0xf]
    %v4327 = vld [vmem:[%s4309 + $0x44] sm:$0xf]
    %v4328 = vld [vmem:[%s4309 + $0x48] sm:$0xf]
    %v4329 = vld [vmem:[%s4309 + $0x4c] sm:$0xf]
    %v4330 = vld [vmem:[%s4309 + $0x50] sm:$0xf]
    %v4331 = vld [vmem:[%s4309 + $0x54] sm:$0xf]
    %v4332 = vld [vmem:[%s4309 + $0x58] sm:$0xf]
    %v4333 = vld [vmem:[%s4309 + $0x5c] sm:$0xf]
    %v4334 = vld [vmem:[%s4309 + $0x60] sm:$0xf]
    %v4335 = vld [vmem:[%s4309 + $0x64] sm:$0xf]
    %v4336 = vld [vmem:[%s4309 + $0x68] sm:$0xf]
    %v4337 = vld [vmem:[%s4309 + $0x6c] sm:$0xf]
    %v4338 = vld [vmem:[%s4309 + $0x70] sm:$0xf]
    %v4339 = vld [vmem:[%s4309 + $0x74] sm:$0xf]
    %v4340 = vld [vmem:[%s4309 + $0x78] sm:$0xf]
    %v4341 = vld [vmem:[%s4309 + $0x7c] sm:$0xf]
    %v4342 = vrot.slane %v3748, 3
    %v4343 = vrot.slane %v3750, 2
    %v4344 = vsel %vm3765, %v4343, %v4342
    %v4345 = vrot.slane %v3752, 1
    %v4346 = vsel %vm3768, %v4345, %v4344
    %v4347 = vsel %vm3771, %v3754, %v4346
    %v4348 = vrot.slane %v3756, 7
    %v4349 = vsel %vm3774, %v4348, %v4347
    %v4350 = vrot.slane %v3758, 6
    %v4351 = vsel %vm3777, %v4350, %v4349
    %v4352 = vrot.slane %v3760, 5
    %v4353 = vsel %vm3780, %v4352, %v4351
    %v4354 = vrot.slane %v3762, 4
    %v4355 = vsel %vm3783, %v4354, %v4353
    %v4356 = vrot.slane %v3749, 3
    %v4357 = vrot.slane %v3751, 2
    %v4358 = vsel %vm3765, %v4357, %v4356
    %v4359 = vrot.slane %v3753, 1
    %v4360 = vsel %vm3768, %v4359, %v4358
    %v4361 = vsel %vm3771, %v3755, %v4360
    %v4362 = vrot.slane %v3757, 7
    %v4363 = vsel %vm3774, %v4362, %v4361
    %v4364 = vrot.slane %v3759, 6
    %v4365 = vsel %vm3777, %v4364, %v4363
    %v4366 = vrot.slane %v3761, 5
    %v4367 = vsel %vm3780, %v4366, %v4365
    %v4368 = vrot.slane %v3763, 4
    %v4369 = vsel %vm3783, %v4368, %v4367
    %v4370 = vpack.c.b16 %v4355, %v4355
    %v4371 = vpack.c.b16 %v4369, %v4369
    %v4406 = vunpack.c.l.b16 %v4310
    %v4407 = vunpack.c.l.b16 %v4311
    %v4408 = vunpack.c.l.b16 %v4312
    %v4409 = vunpack.c.l.b16 %v4313
    %v4410 = vunpack.c.l.b16 %v4314
    %v4411 = vunpack.c.l.b16 %v4315
    %v4412 = vunpack.c.l.b16 %v4316
    %v4413 = vunpack.c.l.b16 %v4317
    %v4414 = vunpack.c.l.b16 %v4318
    %v4415 = vunpack.c.l.b16 %v4319
    %v4416 = vunpack.c.l.b16 %v4320
    %v4417 = vunpack.c.l.b16 %v4321
    %v4418 = vunpack.c.l.b16 %v4322
    %v4419 = vunpack.c.l.b16 %v4323
    %v4420 = vunpack.c.l.b16 %v4324
    %v4421 = vunpack.c.l.b16 %v4325
    %v4422 = vunpack.c.l.b16 %v4326
    %v4423 = vunpack.c.l.b16 %v4327
    %v4424 = vunpack.c.l.b16 %v4328
    %v4425 = vunpack.c.l.b16 %v4329
    %v4426 = vunpack.c.l.b16 %v4330
    %v4427 = vunpack.c.l.b16 %v4331
    %v4428 = vunpack.c.l.b16 %v4332
    %v4429 = vunpack.c.l.b16 %v4333
    %v4430 = vunpack.c.l.b16 %v4334
    %v4431 = vunpack.c.l.b16 %v4335
    %v4432 = vunpack.c.l.b16 %v4336
    %v4433 = vunpack.c.l.b16 %v4337
    %v4434 = vunpack.c.l.b16 %v4338
    %v4435 = vunpack.c.l.b16 %v4339
    %v4436 = vunpack.c.l.b16 %v4340
    %v4437 = vunpack.c.l.b16 %v4341
    %v4438 = vpack.c.b16 %v4407, %v4406
    %v4439 = vpack.c.b16 %v4409, %v4408
    %v4440 = vpack.c.b16 %v4411, %v4410
    %v4441 = vpack.c.b16 %v4413, %v4412
    %v4442 = vpack.c.b16 %v4415, %v4414
    %v4443 = vpack.c.b16 %v4417, %v4416
    %v4444 = vpack.c.b16 %v4419, %v4418
    %v4445 = vpack.c.b16 %v4421, %v4420
    %v4446 = vpack.c.b16 %v4423, %v4422
    %v4447 = vpack.c.b16 %v4425, %v4424
    %v4448 = vpack.c.b16 %v4427, %v4426
    %v4449 = vpack.c.b16 %v4429, %v4428
    %v4450 = vpack.c.b16 %v4431, %v4430
    %v4451 = vpack.c.b16 %v4433, %v4432
    %v4452 = vpack.c.b16 %v4435, %v4434
    %v4453 = vpack.c.b16 %v4437, %v4436
    %4470 = vmatprep.subr.bf16.mxu0 0
    %4471 = vmatpush1.bf16.msra.mxu0 %v4438
    %4472 = vmatprep.subr.bf16.mxu0 0
    %4473 = vmatpush1.bf16.msra.mxu0 %v4439
    %4474 = vmatprep.subr.bf16.mxu0 0
    %4475 = vmatpush1.bf16.msra.mxu0 %v4440
    %4476 = vmatprep.subr.bf16.mxu0 0
    %4477 = vmatpush1.bf16.msra.mxu0 %v4441
    %4478 = vmatprep.subr.bf16.mxu0 0
    %4479 = vmatpush1.bf16.msra.mxu0 %v4442
    %4480 = vmatprep.subr.bf16.mxu0 0
    %4481 = vmatpush1.bf16.msra.mxu0 %v4443
    %4482 = vmatprep.subr.bf16.mxu0 0
    %4483 = vmatpush1.bf16.msra.mxu0 %v4444
    %4484 = vmatprep.subr.bf16.mxu0 0
    %4485 = vmatpush1.bf16.msra.mxu0 %v4445
    %4486 = vmatprep.subr.bf16.mxu0 0
    %4487 = vmatpush1.bf16.msra.mxu0 %v4446
    %4488 = vmatprep.subr.bf16.mxu0 0
    %4489 = vmatpush1.bf16.msra.mxu0 %v4447
    %4490 = vmatprep.subr.bf16.mxu0 0
    %4491 = vmatpush1.bf16.msra.mxu0 %v4448
    %4492 = vmatprep.subr.bf16.mxu0 0
    %4493 = vmatpush1.bf16.msra.mxu0 %v4449
    %4494 = vmatprep.subr.bf16.mxu0 0
    %4495 = vmatpush1.bf16.msra.mxu0 %v4450
    %4496 = vmatprep.subr.bf16.mxu0 0
    %4497 = vmatpush1.bf16.msra.mxu0 %v4451
    %4498 = vmatprep.subr.bf16.mxu0 0
    %4499 = vmatpush1.bf16.msra.mxu0 %v4452
    %4500 = vmatprep.subr.bf16.mxu0 0
    %4501 = vmatpush1.bf16.msra.mxu0 %v4453
    %4502 = vmatprep.mubr.bf16.mxu0 %v4371
    %4503 = vmatmul.mubr.bf16.gmra.mrb[0].mxu0 %v4370
    %v4504 = vpop.f32.mrb[0].mxu0
    %v4505 = vadd.f32 0.0, %v4504
    %v4506 = vpop.f32.mrb[0].mxu0
    %v4507 = vpop.f32.mrb[0].mxu0
    %v4508 = vpop.f32.mrb[0].mxu0
    %4509 = vdwg.mxu0
    %v4510 = vadd.f32 %v4308, %v4505
    %s4511 = scalar_lea.vmem [#allocation17], 512
    %v4512 = vld [vmem:[%s4511] sm:$0xf]
    %v4513 = vld [vmem:[%s4511 + $0x4] sm:$0xf]
    %v4514 = vld [vmem:[%s4511 + $0x8] sm:$0xf]
    %v4515 = vld [vmem:[%s4511 + $0xc] sm:$0xf]
    %v4516 = vld [vmem:[%s4511 + $0x10] sm:$0xf]
    %v4517 = vld [vmem:[%s4511 + $0x14] sm:$0xf]
    %v4518 = vld [vmem:[%s4511 + $0x18] sm:$0xf]
    %v4519 = vld [vmem:[%s4511 + $0x1c] sm:$0xf]
    %v4520 = vld [vmem:[%s4511 + $0x20] sm:$0xf]
    %v4521 = vld [vmem:[%s4511 + $0x24] sm:$0xf]
    %v4522 = vld [vmem:[%s4511 + $0x28] sm:$0xf]
    %v4523 = vld [vmem:[%s4511 + $0x2c] sm:$0xf]
    %v4524 = vld [vmem:[%s4511 + $0x30] sm:$0xf]
    %v4525 = vld [vmem:[%s4511 + $0x34] sm:$0xf]
    %v4526 = vld [vmem:[%s4511 + $0x38] sm:$0xf]
    %v4527 = vld [vmem:[%s4511 + $0x3c] sm:$0xf]
    %v4528 = vld [vmem:[%s4511 + $0x40] sm:$0xf]
    %v4529 = vld [vmem:[%s4511 + $0x44] sm:$0xf]
    %v4530 = vld [vmem:[%s4511 + $0x48] sm:$0xf]
    %v4531 = vld [vmem:[%s4511 + $0x4c] sm:$0xf]
    %v4532 = vld [vmem:[%s4511 + $0x50] sm:$0xf]
    %v4533 = vld [vmem:[%s4511 + $0x54] sm:$0xf]
    %v4534 = vld [vmem:[%s4511 + $0x58] sm:$0xf]
    %v4535 = vld [vmem:[%s4511 + $0x5c] sm:$0xf]
    %v4536 = vld [vmem:[%s4511 + $0x60] sm:$0xf]
    %v4537 = vld [vmem:[%s4511 + $0x64] sm:$0xf]
    %v4538 = vld [vmem:[%s4511 + $0x68] sm:$0xf]
    %v4539 = vld [vmem:[%s4511 + $0x6c] sm:$0xf]
    %v4540 = vld [vmem:[%s4511 + $0x70] sm:$0xf]
    %v4541 = vld [vmem:[%s4511 + $0x74] sm:$0xf]
    %v4542 = vld [vmem:[%s4511 + $0x78] sm:$0xf]
    %v4543 = vld [vmem:[%s4511 + $0x7c] sm:$0xf]
    %v4544 = vrot.slane %v3748, 4
    %v4545 = vrot.slane %v3750, 3
    %v4546 = vsel %vm3765, %v4545, %v4544
    %v4547 = vrot.slane %v3752, 2
    %v4548 = vsel %vm3768, %v4547, %v4546
    %v4549 = vrot.slane %v3754, 1
    %v4550 = vsel %vm3771, %v4549, %v4548
    %v4551 = vsel %vm3774, %v3756, %v4550
    %v4552 = vrot.slane %v3758, 7
    %v4553 = vsel %vm3777, %v4552, %v4551
    %v4554 = vrot.slane %v3760, 6
    %v4555 = vsel %vm3780, %v4554, %v4553
    %v4556 = vrot.slane %v3762, 5
    %v4557 = vsel %vm3783, %v4556, %v4555
    %v4558 = vrot.slane %v3749, 4
    %v4559 = vrot.slane %v3751, 3
    %v4560 = vsel %vm3765, %v4559, %v4558
    %v4561 = vrot.slane %v3753, 2
    %v4562 = vsel %vm3768, %v4561, %v4560
    %v4563 = vrot.slane %v3755, 1
    %v4564 = vsel %vm3771, %v4563, %v4562
    %v4565 = vsel %vm3774, %v3757, %v4564
    %v4566 = vrot.slane %v3759, 7
    %v4567 = vsel %vm3777, %v4566, %v4565
    %v4568 = vrot.slane %v3761, 6
    %v4569 = vsel %vm3780, %v4568, %v4567
    %v4570 = vrot.slane %v3763, 5
    %v4571 = vsel %vm3783, %v4570, %v4569
    %v4572 = vpack.c.b16 %v4557, %v4557
    %v4573 = vpack.c.b16 %v4571, %v4571
    %v4608 = vunpack.c.l.b16 %v4512
    %v4609 = vunpack.c.l.b16 %v4513
    %v4610 = vunpack.c.l.b16 %v4514
    %v4611 = vunpack.c.l.b16 %v4515
    %v4612 = vunpack.c.l.b16 %v4516
    %v4613 = vunpack.c.l.b16 %v4517
    %v4614 = vunpack.c.l.b16 %v4518
    %v4615 = vunpack.c.l.b16 %v4519
    %v4616 = vunpack.c.l.b16 %v4520
    %v4617 = vunpack.c.l.b16 %v4521
    %v4618 = vunpack.c.l.b16 %v4522
    %v4619 = vunpack.c.l.b16 %v4523
    %v4620 = vunpack.c.l.b16 %v4524
    %v4621 = vunpack.c.l.b16 %v4525
    %v4622 = vunpack.c.l.b16 %v4526
    %v4623 = vunpack.c.l.b16 %v4527
    %v4624 = vunpack.c.l.b16 %v4528
    %v4625 = vunpack.c.l.b16 %v4529
    %v4626 = vunpack.c.l.b16 %v4530
    %v4627 = vunpack.c.l.b16 %v4531
    %v4628 = vunpack.c.l.b16 %v4532
    %v4629 = vunpack.c.l.b16 %v4533
    %v4630 = vunpack.c.l.b16 %v4534
    %v4631 = vunpack.c.l.b16 %v4535
    %v4632 = vunpack.c.l.b16 %v4536
    %v4633 = vunpack.c.l.b16 %v4537
    %v4634 = vunpack.c.l.b16 %v4538
    %v4635 = vunpack.c.l.b16 %v4539
    %v4636 = vunpack.c.l.b16 %v4540
    %v4637 = vunpack.c.l.b16 %v4541
    %v4638 = vunpack.c.l.b16 %v4542
    %v4639 = vunpack.c.l.b16 %v4543
    %v4640 = vpack.c.b16 %v4609, %v4608
    %v4641 = vpack.c.b16 %v4611, %v4610
    %v4642 = vpack.c.b16 %v4613, %v4612
    %v4643 = vpack.c.b16 %v4615, %v4614
    %v4644 = vpack.c.b16 %v4617, %v4616
    %v4645 = vpack.c.b16 %v4619, %v4618
    %v4646 = vpack.c.b16 %v4621, %v4620
    %v4647 = vpack.c.b16 %v4623, %v4622
    %v4648 = vpack.c.b16 %v4625, %v4624
    %v4649 = vpack.c.b16 %v4627, %v4626
    %v4650 = vpack.c.b16 %v4629, %v4628
    %v4651 = vpack.c.b16 %v4631, %v4630
    %v4652 = vpack.c.b16 %v4633, %v4632
    %v4653 = vpack.c.b16 %v4635, %v4634
    %v4654 = vpack.c.b16 %v4637, %v4636
    %v4655 = vpack.c.b16 %v4639, %v4638
    %4672 = vmatprep.subr.bf16.mxu0 0
    %4673 = vmatpush1.bf16.msra.mxu0 %v4640
    %4674 = vmatprep.subr.bf16.mxu0 0
    %4675 = vmatpush1.bf16.msra.mxu0 %v4641
    %4676 = vmatprep.subr.bf16.mxu0 0
    %4677 = vmatpush1.bf16.msra.mxu0 %v4642
    %4678 = vmatprep.subr.bf16.mxu0 0
    %4679 = vmatpush1.bf16.msra.mxu0 %v4643
    %4680 = vmatprep.subr.bf16.mxu0 0
    %4681 = vmatpush1.bf16.msra.mxu0 %v4644
    %4682 = vmatprep.subr.bf16.mxu0 0
    %4683 = vmatpush1.bf16.msra.mxu0 %v4645
    %4684 = vmatprep.subr.bf16.mxu0 0
    %4685 = vmatpush1.bf16.msra.mxu0 %v4646
    %4686 = vmatprep.subr.bf16.mxu0 0
    %4687 = vmatpush1.bf16.msra.mxu0 %v4647
    %4688 = vmatprep.subr.bf16.mxu0 0
    %4689 = vmatpush1.bf16.msra.mxu0 %v4648
    %4690 = vmatprep.subr.bf16.mxu0 0
    %4691 = vmatpush1.bf16.msra.mxu0 %v4649
    %4692 = vmatprep.subr.bf16.mxu0 0
    %4693 = vmatpush1.bf16.msra.mxu0 %v4650
    %4694 = vmatprep.subr.bf16.mxu0 0
    %4695 = vmatpush1.bf16.msra.mxu0 %v4651
    %4696 = vmatprep.subr.bf16.mxu0 0
    %4697 = vmatpush1.bf16.msra.mxu0 %v4652
    %4698 = vmatprep.subr.bf16.mxu0 0
    %4699 = vmatpush1.bf16.msra.mxu0 %v4653
    %4700 = vmatprep.subr.bf16.mxu0 0
    %4701 = vmatpush1.bf16.msra.mxu0 %v4654
    %4702 = vmatprep.subr.bf16.mxu0 0
    %4703 = vmatpush1.bf16.msra.mxu0 %v4655
    %4704 = vmatprep.mubr.bf16.mxu0 %v4573
    %4705 = vmatmul.mubr.bf16.gmra.mrb[0].mxu0 %v4572
    %v4706 = vpop.f32.mrb[0].mxu0
    %v4707 = vadd.f32 0.0, %v4706
    %v4708 = vpop.f32.mrb[0].mxu0
    %v4709 = vpop.f32.mrb[0].mxu0
    %v4710 = vpop.f32.mrb[0].mxu0
    %4711 = vdwg.mxu0
    %v4712 = vadd.f32 %v4510, %v4707
    %s4713 = scalar_lea.vmem [#allocation17], 640
    %v4714 = vld [vmem:[%s4713] sm:$0xf]
    %v4715 = vld [vmem:[%s4713 + $0x4] sm:$0xf]
    %v4716 = vld [vmem:[%s4713 + $0x8] sm:$0xf]
    %v4717 = vld [vmem:[%s4713 + $0xc] sm:$0xf]
    %v4718 = vld [vmem:[%s4713 + $0x10] sm:$0xf]
    %v4719 = vld [vmem:[%s4713 + $0x14] sm:$0xf]
    %v4720 = vld [vmem:[%s4713 + $0x18] sm:$0xf]
    %v4721 = vld [vmem:[%s4713 + $0x1c] sm:$0xf]
    %v4722 = vld [vmem:[%s4713 + $0x20] sm:$0xf]
    %v4723 = vld [vmem:[%s4713 + $0x24] sm:$0xf]
    %v4724 = vld [vmem:[%s4713 + $0x28] sm:$0xf]
    %v4725 = vld [vmem:[%s4713 + $0x2c] sm:$0xf]
    %v4726 = vld [vmem:[%s4713 + $0x30] sm:$0xf]
    %v4727 = vld [vmem:[%s4713 + $0x34] sm:$0xf]
    %v4728 = vld [vmem:[%s4713 + $0x38] sm:$0xf]
    %v4729 = vld [vmem:[%s4713 + $0x3c] sm:$0xf]
    %v4730 = vld [vmem:[%s4713 + $0x40] sm:$0xf]
    %v4731 = vld [vmem:[%s4713 + $0x44] sm:$0xf]
    %v4732 = vld [vmem:[%s4713 + $0x48] sm:$0xf]
    %v4733 = vld [vmem:[%s4713 + $0x4c] sm:$0xf]
    %v4734 = vld [vmem:[%s4713 + $0x50] sm:$0xf]
    %v4735 = vld [vmem:[%s4713 + $0x54] sm:$0xf]
    %v4736 = vld [vmem:[%s4713 + $0x58] sm:$0xf]
    %v4737 = vld [vmem:[%s4713 + $0x5c] sm:$0xf]
    %v4738 = vld [vmem:[%s4713 + $0x60] sm:$0xf]
    %v4739 = vld [vmem:[%s4713 + $0x64] sm:$0xf]
    %v4740 = vld [vmem:[%s4713 + $0x68] sm:$0xf]
    %v4741 = vld [vmem:[%s4713 + $0x6c] sm:$0xf]
    %v4742 = vld [vmem:[%s4713 + $0x70] sm:$0xf]
    %v4743 = vld [vmem:[%s4713 + $0x74] sm:$0xf]
    %v4744 = vld [vmem:[%s4713 + $0x78] sm:$0xf]
    %v4745 = vld [vmem:[%s4713 + $0x7c] sm:$0xf]
    %v4746 = vrot.slane %v3748, 5
    %v4747 = vrot.slane %v3750, 4
    %v4748 = vsel %vm3765, %v4747, %v4746
    %v4749 = vrot.slane %v3752, 3
    %v4750 = vsel %vm3768, %v4749, %v4748
    %v4751 = vrot.slane %v3754, 2
    %v4752 = vsel %vm3771, %v4751, %v4750
    %v4753 = vrot.slane %v3756, 1
    %v4754 = vsel %vm3774, %v4753, %v4752
    %v4755 = vsel %vm3777, %v3758, %v4754
    %v4756 = vrot.slane %v3760, 7
    %v4757 = vsel %vm3780, %v4756, %v4755
    %v4758 = vrot.slane %v3762, 6
    %v4759 = vsel %vm3783, %v4758, %v4757
    %v4760 = vrot.slane %v3749, 5
    %v4761 = vrot.slane %v3751, 4
    %v4762 = vsel %vm3765, %v4761, %v4760
    %v4763 = vrot.slane %v3753, 3
    %v4764 = vsel %vm3768, %v4763, %v4762
    %v4765 = vrot.slane %v3755, 2
    %v4766 = vsel %vm3771, %v4765, %v4764
    %v4767 = vrot.slane %v3757, 1
    %v4768 = vsel %vm3774, %v4767, %v4766
    %v4769 = vsel %vm3777, %v3759, %v4768
    %v4770 = vrot.slane %v3761, 7
    %v4771 = vsel %vm3780, %v4770, %v4769
    %v4772 = vrot.slane %v3763, 6
    %v4773 = vsel %vm3783, %v4772, %v4771
    %v4774 = vpack.c.b16 %v4759, %v4759
    %v4775 = vpack.c.b16 %v4773, %v4773
    %v4810 = vunpack.c.l.b16 %v4714
    %v4811 = vunpack.c.l.b16 %v4715
    %v4812 = vunpack.c.l.b16 %v4716
    %v4813 = vunpack.c.l.b16 %v4717
    %v4814 = vunpack.c.l.b16 %v4718
    %v4815 = vunpack.c.l.b16 %v4719
    %v4816 = vunpack.c.l.b16 %v4720
    %v4817 = vunpack.c.l.b16 %v4721
    %v4818 = vunpack.c.l.b16 %v4722
    %v4819 = vunpack.c.l.b16 %v4723
    %v4820 = vunpack.c.l.b16 %v4724
    %v4821 = vunpack.c.l.b16 %v4725
    %v4822 = vunpack.c.l.b16 %v4726
    %v4823 = vunpack.c.l.b16 %v4727
    %v4824 = vunpack.c.l.b16 %v4728
    %v4825 = vunpack.c.l.b16 %v4729
    %v4826 = vunpack.c.l.b16 %v4730
    %v4827 = vunpack.c.l.b16 %v4731
    %v4828 = vunpack.c.l.b16 %v4732
    %v4829 = vunpack.c.l.b16 %v4733
    %v4830 = vunpack.c.l.b16 %v4734
    %v4831 = vunpack.c.l.b16 %v4735
    %v4832 = vunpack.c.l.b16 %v4736
    %v4833 = vunpack.c.l.b16 %v4737
    %v4834 = vunpack.c.l.b16 %v4738
    %v4835 = vunpack.c.l.b16 %v4739
    %v4836 = vunpack.c.l.b16 %v4740
    %v4837 = vunpack.c.l.b16 %v4741
    %v4838 = vunpack.c.l.b16 %v4742
    %v4839 = vunpack.c.l.b16 %v4743
    %v4840 = vunpack.c.l.b16 %v4744
    %v4841 = vunpack.c.l.b16 %v4745
    %v4842 = vpack.c.b16 %v4811, %v4810
    %v4843 = vpack.c.b16 %v4813, %v4812
    %v4844 = vpack.c.b16 %v4815, %v4814
    %v4845 = vpack.c.b16 %v4817, %v4816
    %v4846 = vpack.c.b16 %v4819, %v4818
    %v4847 = vpack.c.b16 %v4821, %v4820
    %v4848 = vpack.c.b16 %v4823, %v4822
    %v4849 = vpack.c.b16 %v4825, %v4824
    %v4850 = vpack.c.b16 %v4827, %v4826
    %v4851 = vpack.c.b16 %v4829, %v4828
    %v4852 = vpack.c.b16 %v4831, %v4830
    %v4853 = vpack.c.b16 %v4833, %v4832
    %v4854 = vpack.c.b16 %v4835, %v4834
    %v4855 = vpack.c.b16 %v4837, %v4836
    %v4856 = vpack.c.b16 %v4839, %v4838
    %v4857 = vpack.c.b16 %v4841, %v4840
    %4874 = vmatprep.subr.bf16.mxu0 0
    %4875 = vmatpush1.bf16.msra.mxu0 %v4842
    %4876 = vmatprep.subr.bf16.mxu0 0
    %4877 = vmatpush1.bf16.msra.mxu0 %v4843
    %4878 = vmatprep.subr.bf16.mxu0 0
    %4879 = vmatpush1.bf16.msra.mxu0 %v4844
    %4880 = vmatprep.subr.bf16.mxu0 0
    %4881 = vmatpush1.bf16.msra.mxu0 %v4845
    %4882 = vmatprep.subr.bf16.mxu0 0
    %4883 = vmatpush1.bf16.msra.mxu0 %v4846
    %4884 = vmatprep.subr.bf16.mxu0 0
    %4885 = vmatpush1.bf16.msra.mxu0 %v4847
    %4886 = vmatprep.subr.bf16.mxu0 0
    %4887 = vmatpush1.bf16.msra.mxu0 %v4848
    %4888 = vmatprep.subr.bf16.mxu0 0
    %4889 = vmatpush1.bf16.msra.mxu0 %v4849
    %4890 = vmatprep.subr.bf16.mxu0 0
    %4891 = vmatpush1.bf16.msra.mxu0 %v4850
    %4892 = vmatprep.subr.bf16.mxu0 0
    %4893 = vmatpush1.bf16.msra.mxu0 %v4851
    %4894 = vmatprep.subr.bf16.mxu0 0
    %4895 = vmatpush1.bf16.msra.mxu0 %v4852
    %4896 = vmatprep.subr.bf16.mxu0 0
    %4897 = vmatpush1.bf16.msra.mxu0 %v4853
    %4898 = vmatprep.subr.bf16.mxu0 0
    %4899 = vmatpush1.bf16.msra.mxu0 %v4854
    %4900 = vmatprep.subr.bf16.mxu0 0
    %4901 = vmatpush1.bf16.msra.mxu0 %v4855
    %4902 = vmatprep.subr.bf16.mxu0 0
    %4903 = vmatpush1.bf16.msra.mxu0 %v4856
    %4904 = vmatprep.subr.bf16.mxu0 0
    %4905 = vmatpush1.bf16.msra.mxu0 %v4857
    %4906 = vmatprep.mubr.bf16.mxu0 %v4775
    %4907 = vmatmul.mubr.bf16.gmra.mrb[0].mxu0 %v4774
    %v4908 = vpop.f32.mrb[0].mxu0
    %v4909 = vadd.f32 0.0, %v4908
    %v4910 = vpop.f32.mrb[0].mxu0
    %v4911 = vpop.f32.mrb[0].mxu0
    %v4912 = vpop.f32.mrb[0].mxu0
    %4913 = vdwg.mxu0
    %v4914 = vadd.f32 %v4712, %v4909
    %s4915 = scalar_lea.vmem [#allocation17], 768
    %v4916 = vld [vmem:[%s4915] sm:$0xf]
    %v4917 = vld [vmem:[%s4915 + $0x4] sm:$0xf]
    %v4918 = vld [vmem:[%s4915 + $0x8] sm:$0xf]
    %v4919 = vld [vmem:[%s4915 + $0xc] sm:$0xf]
    %v4920 = vld [vmem:[%s4915 + $0x10] sm:$0xf]
    %v4921 = vld [vmem:[%s4915 + $0x14] sm:$0xf]
    %v4922 = vld [vmem:[%s4915 + $0x18] sm:$0xf]
    %v4923 = vld [vmem:[%s4915 + $0x1c] sm:$0xf]
    %v4924 = vld [vmem:[%s4915 + $0x20] sm:$0xf]
    %v4925 = vld [vmem:[%s4915 + $0x24] sm:$0xf]
    %v4926 = vld [vmem:[%s4915 + $0x28] sm:$0xf]
    %v4927 = vld [vmem:[%s4915 + $0x2c] sm:$0xf]
    %v4928 = vld [vmem:[%s4915 + $0x30] sm:$0xf]
    %v4929 = vld [vmem:[%s4915 + $0x34] sm:$0xf]
    %v4930 = vld [vmem:[%s4915 + $0x38] sm:$0xf]
    %v4931 = vld [vmem:[%s4915 + $0x3c] sm:$0xf]
    %v4932 = vld [vmem:[%s4915 + $0x40] sm:$0xf]
    %v4933 = vld [vmem:[%s4915 + $0x44] sm:$0xf]
    %v4934 = vld [vmem:[%s4915 + $0x48] sm:$0xf]
    %v4935 = vld [vmem:[%s4915 + $0x4c] sm:$0xf]
    %v4936 = vld [vmem:[%s4915 + $0x50] sm:$0xf]
    %v4937 = vld [vmem:[%s4915 + $0x54] sm:$0xf]
    %v4938 = vld [vmem:[%s4915 + $0x58] sm:$0xf]
    %v4939 = vld [vmem:[%s4915 + $0x5c] sm:$0xf]
    %v4940 = vld [vmem:[%s4915 + $0x60] sm:$0xf]
    %v4941 = vld [vmem:[%s4915 + $0x64] sm:$0xf]
    %v4942 = vld [vmem:[%s4915 + $0x68] sm:$0xf]
    %v4943 = vld [vmem:[%s4915 + $0x6c] sm:$0xf]
    %v4944 = vld [vmem:[%s4915 + $0x70] sm:$0xf]
    %v4945 = vld [vmem:[%s4915 + $0x74] sm:$0xf]
    %v4946 = vld [vmem:[%s4915 + $0x78] sm:$0xf]
    %v4947 = vld [vmem:[%s4915 + $0x7c] sm:$0xf]
    %v4948 = vrot.slane %v3748, 6
    %v4949 = vrot.slane %v3750, 5
    %v4950 = vsel %vm3765, %v4949, %v4948
    %v4951 = vrot.slane %v3752, 4
    %v4952 = vsel %vm3768, %v4951, %v4950
    %v4953 = vrot.slane %v3754, 3
    %v4954 = vsel %vm3771, %v4953, %v4952
    %v4955 = vrot.slane %v3756, 2
    %v4956 = vsel %vm3774, %v4955, %v4954
    %v4957 = vrot.slane %v3758, 1
    %v4958 = vsel %vm3777, %v4957, %v4956
    %v4959 = vsel %vm3780, %v3760, %v4958
    %v4960 = vrot.slane %v3762, 7
    %v4961 = vsel %vm3783, %v4960, %v4959
    %v4962 = vrot.slane %v3749, 6
    %v4963 = vrot.slane %v3751, 5
    %v4964 = vsel %vm3765, %v4963, %v4962
    %v4965 = vrot.slane %v3753, 4
    %v4966 = vsel %vm3768, %v4965, %v4964
    %v4967 = vrot.slane %v3755, 3
    %v4968 = vsel %vm3771, %v4967, %v4966
    %v4969 = vrot.slane %v3757, 2
    %v4970 = vsel %vm3774, %v4969, %v4968
    %v4971 = vrot.slane %v3759, 1
    %v4972 = vsel %vm3777, %v4971, %v4970
    %v4973 = vsel %vm3780, %v3761, %v4972
    %v4974 = vrot.slane %v3763, 7
    %v4975 = vsel %vm3783, %v4974, %v4973
    %v4976 = vpack.c.b16 %v4961, %v4961
    %v4977 = vpack.c.b16 %v4975, %v4975
    %v5012 = vunpack.c.l.b16 %v4916
    %v5013 = vunpack.c.l.b16 %v4917
    %v5014 = vunpack.c.l.b16 %v4918
    %v5015 = vunpack.c.l.b16 %v4919
    %v5016 = vunpack.c.l.b16 %v4920
    %v5017 = vunpack.c.l.b16 %v4921
    %v5018 = vunpack.c.l.b16 %v4922
    %v5019 = vunpack.c.l.b16 %v4923
    %v5020 = vunpack.c.l.b16 %v4924
    %v5021 = vunpack.c.l.b16 %v4925
    %v5022 = vunpack.c.l.b16 %v4926
    %v5023 = vunpack.c.l.b16 %v4927
    %v5024 = vunpack.c.l.b16 %v4928
    %v5025 = vunpack.c.l.b16 %v4929
    %v5026 = vunpack.c.l.b16 %v4930
    %v5027 = vunpack.c.l.b16 %v4931
    %v5028 = vunpack.c.l.b16 %v4932
    %v5029 = vunpack.c.l.b16 %v4933
    %v5030 = vunpack.c.l.b16 %v4934
    %v5031 = vunpack.c.l.b16 %v4935
    %v5032 = vunpack.c.l.b16 %v4936
    %v5033 = vunpack.c.l.b16 %v4937
    %v5034 = vunpack.c.l.b16 %v4938
    %v5035 = vunpack.c.l.b16 %v4939
    %v5036 = vunpack.c.l.b16 %v4940
    %v5037 = vunpack.c.l.b16 %v4941
    %v5038 = vunpack.c.l.b16 %v4942
    %v5039 = vunpack.c.l.b16 %v4943
    %v5040 = vunpack.c.l.b16 %v4944
    %v5041 = vunpack.c.l.b16 %v4945
    %v5042 = vunpack.c.l.b16 %v4946
    %v5043 = vunpack.c.l.b16 %v4947
    %v5044 = vpack.c.b16 %v5013, %v5012
    %v5045 = vpack.c.b16 %v5015, %v5014
    %v5046 = vpack.c.b16 %v5017, %v5016
    %v5047 = vpack.c.b16 %v5019, %v5018
    %v5048 = vpack.c.b16 %v5021, %v5020
    %v5049 = vpack.c.b16 %v5023, %v5022
    %v5050 = vpack.c.b16 %v5025, %v5024
    %v5051 = vpack.c.b16 %v5027, %v5026
    %v5052 = vpack.c.b16 %v5029, %v5028
    %v5053 = vpack.c.b16 %v5031, %v5030
    %v5054 = vpack.c.b16 %v5033, %v5032
    %v5055 = vpack.c.b16 %v5035, %v5034
    %v5056 = vpack.c.b16 %v5037, %v5036
    %v5057 = vpack.c.b16 %v5039, %v5038
    %v5058 = vpack.c.b16 %v5041, %v5040
    %v5059 = vpack.c.b16 %v5043, %v5042
    %5076 = vmatprep.subr.bf16.mxu0 0
    %5077 = vmatpush1.bf16.msra.mxu0 %v5044
    %5078 = vmatprep.subr.bf16.mxu0 0
    %5079 = vmatpush1.bf16.msra.mxu0 %v5045
    %5080 = vmatprep.subr.bf16.mxu0 0
    %5081 = vmatpush1.bf16.msra.mxu0 %v5046
    %5082 = vmatprep.subr.bf16.mxu0 0
    %5083 = vmatpush1.bf16.msra.mxu0 %v5047
    %5084 = vmatprep.subr.bf16.mxu0 0
    %5085 = vmatpush1.bf16.msra.mxu0 %v5048
    %5086 = vmatprep.subr.bf16.mxu0 0
    %5087 = vmatpush1.bf16.msra.mxu0 %v5049
    %5088 = vmatprep.subr.bf16.mxu0 0
    %5089 = vmatpush1.bf16.msra.mxu0 %v5050
    %5090 = vmatprep.subr.bf16.mxu0 0
    %5091 = vmatpush1.bf16.msra.mxu0 %v5051
    %5092 = vmatprep.subr.bf16.mxu0 0
    %5093 = vmatpush1.bf16.msra.mxu0 %v5052
    %5094 = vmatprep.subr.bf16.mxu0 0
    %5095 = vmatpush1.bf16.msra.mxu0 %v5053
    %5096 = vmatprep.subr.bf16.mxu0 0
    %5097 = vmatpush1.bf16.msra.mxu0 %v5054
    %5098 = vmatprep.subr.bf16.mxu0 0
    %5099 = vmatpush1.bf16.msra.mxu0 %v5055
    %5100 = vmatprep.subr.bf16.mxu0 0
    %5101 = vmatpush1.bf16.msra.mxu0 %v5056
    %5102 = vmatprep.subr.bf16.mxu0 0
    %5103 = vmatpush1.bf16.msra.mxu0 %v5057
    %5104 = vmatprep.subr.bf16.mxu0 0
    %5105 = vmatpush1.bf16.msra.mxu0 %v5058
    %5106 = vmatprep.subr.bf16.mxu0 0
    %5107 = vmatpush1.bf16.msra.mxu0 %v5059
    %5108 = vmatprep.mubr.bf16.mxu0 %v4977
    %5109 = vmatmul.mubr.bf16.gmra.mrb[0].mxu0 %v4976
    %v5110 = vpop.f32.mrb[0].mxu0
    %v5111 = vadd.f32 0.0, %v5110
    %v5112 = vpop.f32.mrb[0].mxu0
    %v5113 = vpop.f32.mrb[0].mxu0
    %v5114 = vpop.f32.mrb[0].mxu0
    %5115 = vdwg.mxu0
    %v5116 = vadd.f32 %v4914, %v5111
    %s5117 = scalar_lea.vmem [#allocation17], 896
    %v5118 = vld [vmem:[%s5117] sm:$0xf]
    %v5119 = vld [vmem:[%s5117 + $0x4] sm:$0xf]
    %v5120 = vld [vmem:[%s5117 + $0x8] sm:$0xf]
    %v5121 = vld [vmem:[%s5117 + $0xc] sm:$0xf]
    %v5122 = vld [vmem:[%s5117 + $0x10] sm:$0xf]
    %v5123 = vld [vmem:[%s5117 + $0x14] sm:$0xf]
    %v5124 = vld [vmem:[%s5117 + $0x18] sm:$0xf]
    %v5125 = vld [vmem:[%s5117 + $0x1c] sm:$0xf]
    %v5126 = vld [vmem:[%s5117 + $0x20] sm:$0xf]
    %v5127 = vld [vmem:[%s5117 + $0x24] sm:$0xf]
    %v5128 = vld [vmem:[%s5117 + $0x28] sm:$0xf]
    %v5129 = vld [vmem:[%s5117 + $0x2c] sm:$0xf]
    %v5130 = vld [vmem:[%s5117 + $0x30] sm:$0xf]
    %v5131 = vld [vmem:[%s5117 + $0x34] sm:$0xf]
    %v5132 = vld [vmem:[%s5117 + $0x38] sm:$0xf]
    %v5133 = vld [vmem:[%s5117 + $0x3c] sm:$0xf]
    %v5134 = vld [vmem:[%s5117 + $0x40] sm:$0xf]
    %v5135 = vld [vmem:[%s5117 + $0x44] sm:$0xf]
    %v5136 = vld [vmem:[%s5117 + $0x48] sm:$0xf]
    %v5137 = vld [vmem:[%s5117 + $0x4c] sm:$0xf]
    %v5138 = vld [vmem:[%s5117 + $0x50] sm:$0xf]
    %v5139 = vld [vmem:[%s5117 + $0x54] sm:$0xf]
    %v5140 = vld [vmem:[%s5117 + $0x58] sm:$0xf]
    %v5141 = vld [vmem:[%s5117 + $0x5c] sm:$0xf]
    %v5142 = vld [vmem:[%s5117 + $0x60] sm:$0xf]
    %v5143 = vld [vmem:[%s5117 + $0x64] sm:$0xf]
    %v5144 = vld [vmem:[%s5117 + $0x68] sm:$0xf]
    %v5145 = vld [vmem:[%s5117 + $0x6c] sm:$0xf]
    %v5146 = vld [vmem:[%s5117 + $0x70] sm:$0xf]
    %v5147 = vld [vmem:[%s5117 + $0x74] sm:$0xf]
    %v5148 = vld [vmem:[%s5117 + $0x78] sm:$0xf]
    %v5149 = vld [vmem:[%s5117 + $0x7c] sm:$0xf]
    %v5150 = vrot.slane %v3748, 7
    %v5151 = vrot.slane %v3750, 6
    %v5152 = vsel %vm3765, %v5151, %v5150
    %v5153 = vrot.slane %v3752, 5
    %v5154 = vsel %vm3768, %v5153, %v5152
    %v5155 = vrot.slane %v3754, 4
    %v5156 = vsel %vm3771, %v5155, %v5154
    %v5157 = vrot.slane %v3756, 3
    %v5158 = vsel %vm3774, %v5157, %v5156
    %v5159 = vrot.slane %v3758, 2
    %v5160 = vsel %vm3777, %v5159, %v5158
    %v5161 = vrot.slane %v3760, 1
    %v5162 = vsel %vm3780, %v5161, %v5160
    %v5163 = vsel %vm3783, %v3762, %v5162
    %v5164 = vrot.slane %v3749, 7
    %v5165 = vrot.slane %v3751, 6
    %v5166 = vsel %vm3765, %v5165, %v5164
    %v5167 = vrot.slane %v3753, 5
    %v5168 = vsel %vm3768, %v5167, %v5166
    %v5169 = vrot.slane %v3755, 4
    %v5170 = vsel %vm3771, %v5169, %v5168
    %v5171 = vrot.slane %v3757, 3
    %v5172 = vsel %vm3774, %v5171, %v5170
    %v5173 = vrot.slane %v3759, 2
    %v5174 = vsel %vm3777, %v5173, %v5172
    %v5175 = vrot.slane %v3761, 1
    %v5176 = vsel %vm3780, %v5175, %v5174
    %v5177 = vsel %vm3783, %v3763, %v5176
    %v5178 = vpack.c.b16 %v5163, %v5163
    %v5179 = vpack.c.b16 %v5177, %v5177
    %v5214 = vunpack.c.l.b16 %v5118
    %v5215 = vunpack.c.l.b16 %v5119
    %v5216 = vunpack.c.l.b16 %v5120
    %v5217 = vunpack.c.l.b16 %v5121
    %v5218 = vunpack.c.l.b16 %v5122
    %v5219 = vunpack.c.l.b16 %v5123
    %v5220 = vunpack.c.l.b16 %v5124
    %v5221 = vunpack.c.l.b16 %v5125
    %v5222 = vunpack.c.l.b16 %v5126
    %v5223 = vunpack.c.l.b16 %v5127
    %v5224 = vunpack.c.l.b16 %v5128
    %v5225 = vunpack.c.l.b16 %v5129
    %v5226 = vunpack.c.l.b16 %v5130
    %v5227 = vunpack.c.l.b16 %v5131
    %v5228 = vunpack.c.l.b16 %v5132
    %v5229 = vunpack.c.l.b16 %v5133
    %v5230 = vunpack.c.l.b16 %v5134
    %v5231 = vunpack.c.l.b16 %v5135
    %v5232 = vunpack.c.l.b16 %v5136
    %v5233 = vunpack.c.l.b16 %v5137
    %v5234 = vunpack.c.l.b16 %v5138
    %v5235 = vunpack.c.l.b16 %v5139
    %v5236 = vunpack.c.l.b16 %v5140
    %v5237 = vunpack.c.l.b16 %v5141
    %v5238 = vunpack.c.l.b16 %v5142
    %v5239 = vunpack.c.l.b16 %v5143
    %v5240 = vunpack.c.l.b16 %v5144
    %v5241 = vunpack.c.l.b16 %v5145
    %v5242 = vunpack.c.l.b16 %v5146
    %v5243 = vunpack.c.l.b16 %v5147
    %v5244 = vunpack.c.l.b16 %v5148
    %v5245 = vunpack.c.l.b16 %v5149
    %v5246 = vpack.c.b16 %v5215, %v5214
    %v5247 = vpack.c.b16 %v5217, %v5216
    %v5248 = vpack.c.b16 %v5219, %v5218
    %v5249 = vpack.c.b16 %v5221, %v5220
    %v5250 = vpack.c.b16 %v5223, %v5222
    %v5251 = vpack.c.b16 %v5225, %v5224
    %v5252 = vpack.c.b16 %v5227, %v5226
    %v5253 = vpack.c.b16 %v5229, %v5228
    %v5254 = vpack.c.b16 %v5231, %v5230
    %v5255 = vpack.c.b16 %v5233, %v5232
    %v5256 = vpack.c.b16 %v5235, %v5234
    %v5257 = vpack.c.b16 %v5237, %v5236
    %v5258 = vpack.c.b16 %v5239, %v5238
    %v5259 = vpack.c.b16 %v5241, %v5240
    %v5260 = vpack.c.b16 %v5243, %v5242
    %v5261 = vpack.c.b16 %v5245, %v5244
    %5278 = vmatprep.subr.bf16.mxu0 0
    %5279 = vmatpush1.bf16.msra.mxu0 %v5246
    %5280 = vmatprep.subr.bf16.mxu0 0
    %5281 = vmatpush1.bf16.msra.mxu0 %v5247
    %5282 = vmatprep.subr.bf16.mxu0 0
    %5283 = vmatpush1.bf16.msra.mxu0 %v5248
    %5284 = vmatprep.subr.bf16.mxu0 0
    %5285 = vmatpush1.bf16.msra.mxu0 %v5249
    %5286 = vmatprep.subr.bf16.mxu0 0
    %5287 = vmatpush1.bf16.msra.mxu0 %v5250
    %5288 = vmatprep.subr.bf16.mxu0 0
    %5289 = vmatpush1.bf16.msra.mxu0 %v5251
    %5290 = vmatprep.subr.bf16.mxu0 0
    %5291 = vmatpush1.bf16.msra.mxu0 %v5252
    %5292 = vmatprep.subr.bf16.mxu0 0
    %5293 = vmatpush1.bf16.msra.mxu0 %v5253
    %5294 = vmatprep.subr.bf16.mxu0 0
    %5295 = vmatpush1.bf16.msra.mxu0 %v5254
    %5296 = vmatprep.subr.bf16.mxu0 0
    %5297 = vmatpush1.bf16.msra.mxu0 %v5255
    %5298 = vmatprep.subr.bf16.mxu0 0
    %5299 = vmatpush1.bf16.msra.mxu0 %v5256
    %5300 = vmatprep.subr.bf16.mxu0 0
    %5301 = vmatpush1.bf16.msra.mxu0 %v5257
    %5302 = vmatprep.subr.bf16.mxu0 0
    %5303 = vmatpush1.bf16.msra.mxu0 %v5258
    %5304 = vmatprep.subr.bf16.mxu0 0
    %5305 = vmatpush1.bf16.msra.mxu0 %v5259
    %5306 = vmatprep.subr.bf16.mxu0 0
    %5307 = vmatpush1.bf16.msra.mxu0 %v5260
    %5308 = vmatprep.subr.bf16.mxu0 0
    %5309 = vmatpush1.bf16.msra.mxu0 %v5261
    %5310 = vmatprep.mubr.bf16.mxu0 %v5179
    %5311 = vmatmul.mubr.bf16.gmra.mrb[0].mxu0 %v5178
    %v5312 = vpop.f32.mrb[0].mxu0
    %v5313 = vadd.f32 0.0, %v5312
    %v5314 = vpop.f32.mrb[0].mxu0
    %v5315 = vpop.f32.mrb[0].mxu0
    %v5316 = vpop.f32.mrb[0].mxu0
    %5317 = vdwg.mxu0
    %v5318 = vadd.f32 %v5116, %v5313
    %v5319 = vld [vmem:[#allocation19] sm:$0x1]
    %v5321 = vlaneseq
    %v5322 = vshrl.u32 %v5321, 7
    %v5323 = vsub.s32 0, %v5322
    %v5324 = vrot.slane %v5319, %v5323
    %v5326 = vadd.f32 %v5318, %v5324
    %v5327 = vmax.f32 %v5326, 0.0
    %5328 = vst [vmem:[#allocation20] sm:$0xff] %v5327
    // Predicated region
    $region90: #{tpu_custom_call.1} parent=1 // pred_check
      _
    $region91: #{tpu_custom_call.1} parent=1 // pred_check_branch
      %5330 = sbr.rel (0) target = $region93
    $region92: #{tpu_custom_call.1} parent=1 // pred_region
      %s5332 = ssub.s32 128, 128
      %5333 = vsyncadd [#allocation4], %s5332
      %s5335 = sshll.u32 [#allocation20], 4
      %s5336 = int_to_ptr.vmem [resolvable:$true] %s5335
      %5338 = dma.vmem_to_hbm [thread:$0]  %s5336, 128, %s11, [#allocation4]
    $region93: #{tpu_custom_call.1} parent=1 // pred_fallthru
      _
    // Predicated region
    $region94: #{tpu_custom_call.1} parent=1 // pred_check
      _
    $region95: #{tpu_custom_call.1} parent=1 // pred_check_branch
      %5340 = sbr.rel (0) target = $region97
    $region96: #{tpu_custom_call.1} parent=1 // pred_region
      %5341 = dma.done [#allocation4], 128
    $region97: #{tpu_custom_call.1} parent=1 // pred_fallthru
      _
    %5342 = vsyncpa [#allocation3], 1
    %5343 = vsyncpa [#allocation6], 1
    %5344 = vsyncpa [#allocation9], 1
    %5345 = vsyncpa [#allocation12], 1
    %5346 = vsyncpa [#allocation15], 1
    %5347 = vsyncpa [#allocation18], 1
    %5348 = vsyncpa [#allocation4], 1

</llo_original>
